<compile_context>
chip_gen: v5e
topology: v5e:2x2
jax: 0.10.0
libtpu: 0.0.40
codegen_flags: <defaults>
</compile_context>

<pallas_src>
import functools
import math

import jax
import jax.numpy as jnp
from jax.experimental import pallas as pl
from jax.experimental.pallas import tpu as pltpu

_EPS = 1e-5
_NEG = -1e9


# ----------------------------------------------------------------------------
# In-kernel helpers (traced into kernel bodies)
# ----------------------------------------------------------------------------

def _mxu(a, b):
    """MXU matmul: bf16 operands (no-op cast if already bf16), f32 accumulation."""
    return jnp.dot(a.astype(jnp.bfloat16), b.astype(jnp.bfloat16),
                   preferred_element_type=jnp.float32)


def _layernorm(y, g, b):
    mu = jnp.mean(y, axis=-1, keepdims=True)
    var = jnp.mean(jnp.square(y - mu), axis=-1, keepdims=True)
    return (y - mu) * jax.lax.rsqrt(var + _EPS) * g + b


def _mha(q, k, v, wo, bo, num_heads, causal):
    """Multi-head attention with the output projection folded into the head loop.

    q: (Sq, D) f32, k/v: (Sk, D) f32, wo: (D, D) bf16, bo: (1, D) f32.
    Returns (Sq, D) f32 = concat_h(softmax(q_h k_h^T / sqrt(Dh)) v_h) @ wo + bo,
    accumulated per head (no concat).
    """
    Sq, D = q.shape
    Sk = k.shape[0]
    Dh = D // num_heads
    scale = 1.0 / math.sqrt(Dh)

    if causal:
        ii = jax.lax.broadcasted_iota(jnp.int32, (Sq, Sk), 0)
        jj = jax.lax.broadcasted_iota(jnp.int32, (Sq, Sk), 1)
        mask = jj > ii

    out = None
    for h in range(num_heads):
        sl = slice(h * Dh, (h + 1) * Dh)
        qh = (q[:, sl] * scale).astype(jnp.bfloat16)
        kh = k[:, sl].astype(jnp.bfloat16)
        # contract on Dh directly (no explicit transpose of k)
        s = jax.lax.dot_general(qh, kh,
                                dimension_numbers=(((1,), (1,)), ((), ())),
                                preferred_element_type=jnp.float32)
        if causal:
            s = jnp.where(mask, _NEG, s)
        mx = jnp.max(s, axis=-1, keepdims=True)
        p = jnp.exp(s - mx)
        p = p * pl.reciprocal(jnp.sum(p, axis=-1, keepdims=True), approx=True)
        ctx = _mxu(p, v[:, sl])                 # (Sq, Dh)
        contrib = _mxu(ctx, wo[sl, :])          # fold output projection per head
        out = contrib if out is None else out + contrib
    return out + bo


# ----------------------------------------------------------------------------
# Fused whole-layer kernels
# ----------------------------------------------------------------------------

def _encoder_layer_kernel(*refs, num_heads, add_pe, final_norm):
    o_ref = refs[-1]
    it = iter(refs[:-1])
    x_ref = next(it)
    pe_ref = next(it) if add_pe else None
    wqkv, bqkv, wo, bo = next(it), next(it), next(it), next(it)
    ln1_g, ln1_b = next(it), next(it)
    w1, b1, w2, b2 = next(it), next(it), next(it), next(it)
    ln2_g, ln2_b = next(it), next(it)
    if final_norm:
        fin_g, fin_b = next(it), next(it)

    x = x_ref[0].astype(jnp.float32)                       # (S, D)
    if add_pe:
        x = 2.0 * x + pe_ref[0]                            # src_tok + PosEnc(src_tok)
    D = x.shape[1]

    # --- self-attention block (post-norm) ---
    qkv = _mxu(x, wqkv[...]) + bqkv[...]                   # (S, 3D)
    q, k, v = qkv[:, :D], qkv[:, D:2 * D], qkv[:, 2 * D:]
    attn = _mha(q, k, v, wo[...], bo[...], num_heads, causal=False)
    y = _layernorm(x + attn, ln1_g[...], ln1_b[...])

    # --- FFN block (post-norm) ---
    h = jnp.maximum(_mxu(y, w1[...]) + b1[...], 0.0)       # ReLU
    z = _mxu(h, w2[...]) + b2[...]
    y = _layernorm(y + z, ln2_g[...], ln2_b[...])

    if final_norm:                                         # encoder-stack final norm
        y = _layernorm(y, fin_g[...], fin_b[...])
    o_ref[0] = y.astype(o_ref.dtype)


def _decoder_layer_kernel(*refs, num_heads, add_pe, final_norm):
    o_ref = refs[-1]
    it = iter(refs[:-1])
    x_ref, mem_ref = next(it), next(it)
    pe_ref = next(it) if add_pe else None
    sa_wqkv, sa_bqkv, sa_wo, sa_bo = next(it), next(it), next(it), next(it)
    ln1_g, ln1_b = next(it), next(it)
    ca_wq, ca_bq, ca_wkv, ca_bkv, ca_wo, ca_bo = (next(it), next(it), next(it),
                                                  next(it), next(it), next(it))
    ln2_g, ln2_b = next(it), next(it)
    w1, b1, w2, b2 = next(it), next(it), next(it), next(it)
    ln3_g, ln3_b = next(it), next(it)
    if final_norm:
        fin_g, fin_b = next(it), next(it)

    x = x_ref[0].astype(jnp.float32)                       # (St, D)
    if add_pe:
        x = 2.0 * x + pe_ref[0]                            # tgt_tok + PosEnc(tgt_tok)
    mem = mem_ref[0].astype(jnp.float32)                   # (Ss, D)
    D = x.shape[1]

    # --- causal self-attention ---
    qkv = _mxu(x, sa_wqkv[...]) + sa_bqkv[...]
    q, k, v = qkv[:, :D], qkv[:, D:2 * D], qkv[:, 2 * D:]
    attn = _mha(q, k, v, sa_wo[...], sa_bo[...], num_heads, causal=True)
    y = _layernorm(x + attn, ln1_g[...], ln1_b[...])

    # --- cross-attention (memory) ---
    q2 = _mxu(y, ca_wq[...]) + ca_bq[...]
    kv = _mxu(mem, ca_wkv[...]) + ca_bkv[...]              # (Ss, 2D)
    k2, v2 = kv[:, :D], kv[:, D:]
    attn2 = _mha(q2, k2, v2, ca_wo[...], ca_bo[...], num_heads, causal=False)
    y = _layernorm(y + attn2, ln2_g[...], ln2_b[...])

    # --- FFN ---
    h = jnp.maximum(_mxu(y, w1[...]) + b1[...], 0.0)
    z = _mxu(h, w2[...]) + b2[...]
    y = _layernorm(y + z, ln3_g[...], ln3_b[...])

    if final_norm:                                         # decoder-stack final norm
        y = _layernorm(y, fin_g[...], fin_b[...])
    o_ref[0] = y.astype(o_ref.dtype)


def _logits_kernel(x_ref, w_ref, b_ref, o_ref, *, inv_temp):
    acc = jnp.dot(x_ref[...], w_ref[...], preferred_element_type=jnp.float32) + b_ref[...]
    o_ref[...] = (acc * inv_temp).astype(o_ref.dtype)


# ----------------------------------------------------------------------------
# pallas_call wrappers
# ----------------------------------------------------------------------------

def _full2_spec(a):
    return pl.BlockSpec(a.shape, lambda i: (0, 0))


def encoder_layer(x, p, *, num_heads, pe=None, final_g=None, final_b=None):
    """Fused encoder layer.  x: [B, S, D] bf16 -> [B, S, D] bf16."""
    B, S, D = x.shape
    add_pe = pe is not None
    final_norm = final_g is not None
    sa = p["self_attn"]

    args = [x]
    specs = [pl.BlockSpec((1, S, D), lambda i: (i, 0, 0))]
    if add_pe:
        args.append(pe[None, :S, :])
        specs.append(pl.BlockSpec((1, S, D), lambda i: (0, 0, 0)))
    weight_args = [sa["wqkv"], sa["bqkv"], sa["wo"], sa["bo"],
                   p["ln1_g"], p["ln1_b"],
                   p["w1"], p["b1"], p["w2"], p["b2"],
                   p["ln2_g"], p["ln2_b"]]
    if final_norm:
        weight_args += [final_g, final_b]
    args += weight_args
    specs += [_full2_spec(a) for a in weight_args]

    return pl.pallas_call(
        functools.partial(_encoder_layer_kernel, num_heads=num_heads,
                          add_pe=add_pe, final_norm=final_norm),
        out_shape=jax.ShapeDtypeStruct((B, S, D), jnp.bfloat16),
        grid=(B,),
        in_specs=specs,
        out_specs=pl.BlockSpec((1, S, D), lambda i: (i, 0, 0)),
        compiler_params=pltpu.CompilerParams(dimension_semantics=("parallel",)),
    )(*args)


def decoder_layer(x, memory, p, *, num_heads, pe=None, final_g=None, final_b=None):
    """Fused decoder layer.  x: [B, St, D] bf16, memory: [B, Ss, D] bf16 -> bf16."""
    B, St, D = x.shape
    Ss = memory.shape[1]
    add_pe = pe is not None
    final_norm = final_g is not None
    sa, ca = p["self_attn"], p["cross_attn"]

    args = [x, memory]
    specs = [pl.BlockSpec((1, St, D), lambda i: (i, 0, 0)),
             pl.BlockSpec((1, Ss, D), lambda i: (i, 0, 0))]
    if add_pe:
        args.append(pe[None, :St, :])
        specs.append(pl.BlockSpec((1, St, D), lambda i: (0, 0, 0)))
    weight_args = [sa["wqkv"], sa["bqkv"], sa["wo"], sa["bo"],
                   p["ln1_g"], p["ln1_b"],
                   ca["wq"], ca["bq"], ca["wkv"], ca["bkv"], ca["wo"], ca["bo"],
                   p["ln2_g"], p["ln2_b"],
                   p["w1"], p["b1"], p["w2"], p["b2"],
                   p["ln3_g"], p["ln3_b"]]
    if final_norm:
        weight_args += [final_g, final_b]
    args += weight_args
    specs += [_full2_spec(a) for a in weight_args]

    return pl.pallas_call(
        functools.partial(_decoder_layer_kernel, num_heads=num_heads,
                          add_pe=add_pe, final_norm=final_norm),
        out_shape=jax.ShapeDtypeStruct((B, St, D), jnp.bfloat16),
        grid=(B,),
        in_specs=specs,
        out_specs=pl.BlockSpec((1, St, D), lambda i: (i, 0, 0)),
        compiler_params=pltpu.CompilerParams(dimension_semantics=("parallel",)),
    )(*args)


def _pick_tile(dim, prefs):
    for t in prefs:
        if dim >= t and dim % t == 0:
            return t
    return dim  # full-extent block (always legal)


def logits_projection(x, w, b, inv_temp):
    """x: [M, D] bf16 @ w: [D, V] bf16 + b, scaled by inv_temp -> f32 [M, V]."""
    M, D = x.shape
    V = w.shape[1]
    tm = _pick_tile(M, (1024, 512, 256, 128))
    tn = _pick_tile(V, (512, 256, 128))
    return pl.pallas_call(
        functools.partial(_logits_kernel, inv_temp=inv_temp),
        out_shape=jax.ShapeDtypeStruct((M, V), jnp.float32),
        grid=(M // tm, V // tn),
        in_specs=[
            pl.BlockSpec((tm, D), lambda i, j: (i, 0)),
            pl.BlockSpec((D, tn), lambda i, j: (0, j)),
            pl.BlockSpec((1, tn), lambda i, j: (0, j)),
        ],
        out_specs=pl.BlockSpec((tm, tn), lambda i, j: (i, j)),
        compiler_params=pltpu.CompilerParams(
            dimension_semantics=("parallel", "parallel")),
    )(x, w, b)


# ----------------------------------------------------------------------------
# Transformer glue (param plumbing only; all math lives in the fused kernels)
# ----------------------------------------------------------------------------

def make_pe_table(max_len, d_model):
    position = jnp.arange(max_len, dtype=jnp.float32)[:, None]
    div_term = jnp.exp(jnp.arange(0, d_model, 2, dtype=jnp.float32)
                       * (-math.log(10000.0) / d_model))
    pe = jnp.zeros((max_len, d_model), jnp.float32)
    pe = pe.at[:, 0::2].set(jnp.sin(position * div_term))
    pe = pe.at[:, 1::2].set(jnp.cos(position * div_term))
    return pe


def my_transformer_forward(params, src_ids, tgt_ids, *, num_heads, temperature=1.0):
    """Returns logits [B, S_tgt, vocab] (training/validating branch of forward).
    `params` must be pre-processed with prepare_params (bf16 weights, (1,N) biases)."""
    B, S_tgt = tgt_ids.shape
    D = params["embedding"].shape[1]
    vocab = params["w_out"].shape[1]

    # embedding lookup (gather; glue, bf16 table)
    src_tok = jnp.take(params["embedding"], src_ids, axis=0)
    tgt_tok = jnp.take(params["embedding"], tgt_ids, axis=0)

    # encoder stack; posenc folded into layer 0, final stack LN folded into last layer
    enc_layers = params["encoder_layers"]
    n_enc = len(enc_layers)
    memory = src_tok
    for li, lp in enumerate(enc_layers):
        memory = encoder_layer(
            memory, lp, num_heads=num_heads,
            pe=params["pe"] if li == 0 else None,
            final_g=params["enc_norm_g"] if li == n_enc - 1 else None,
            final_b=params["enc_norm_b"] if li == n_enc - 1 else None)

    # decoder stack (causal self-attn); same folding
    dec_layers = params["decoder_layers"]
    n_dec = len(dec_layers)
    out = tgt_tok
    for li, lp in enumerate(dec_layers):
        out = decoder_layer(
            out, memory, lp, num_heads=num_heads,
            pe=params["pe"] if li == 0 else None,
            final_g=params["dec_norm_g"] if li == n_dec - 1 else None,
            final_b=params["dec_norm_b"] if li == n_dec - 1 else None)

    # output projection with fused 1/temperature (temperature==0/None -> no division,
    # matching the PyTorch guard)
    if temperature is not None and temperature != 0:
        inv_temp = 1.0 / float(temperature)
    else:
        inv_temp = 1.0
    logits = logits_projection(out.reshape(B * S_tgt, D),
                               params["w_out"], params["b_out"], inv_temp)
    return logits.reshape(B, S_tgt, vocab)


# ----------------------------------------------------------------------------
# Parameter init (f32, PyTorch-like layout) + one-time bf16 / layout preparation
# ----------------------------------------------------------------------------

def init_params(key, *, vocab, d_model, nhead, ff, n_enc, n_dec, max_len, pad_id):
    del nhead  # layout-independent; heads are split inside the kernels

    def nxt():
        nonlocal key
        key, sub = jax.random.split(key)
        return sub

    def w(shape, scale=0.05):
        return jax.random.normal(nxt(), shape, jnp.float32) * scale

    def self_attn_params():
        return dict(wqkv=w((d_model, 3 * d_model)), bqkv=w((3 * d_model,)),
                    wo=w((d_model, d_model)), bo=w((d_model,)))

    def cross_attn_params():
        return dict(wq=w((d_model, d_model)), bq=w((d_model,)),
                    wkv=w((d_model, 2 * d_model)), bkv=w((2 * d_model,)),
                    wo=w((d_model, d_model)), bo=w((d_model,)))

    def enc_layer():
        return dict(self_attn=self_attn_params(),
                    ln1_g=jnp.ones((d_model,)), ln1_b=jnp.zeros((d_model,)),
                    w1=w((d_model, ff)), b1=w((ff,)),
                    w2=w((ff, d_model)), b2=w((d_model,)),
                    ln2_g=jnp.ones((d_model,)), ln2_b=jnp.zeros((d_model,)))

    def dec_layer():
        return dict(self_attn=self_attn_params(), cross_attn=cross_attn_params(),
                    ln1_g=jnp.ones((d_model,)), ln1_b=jnp.zeros((d_model,)),
                    ln2_g=jnp.ones((d_model,)), ln2_b=jnp.zeros((d_model,)),
                    w1=w((d_model, ff)), b1=w((ff,)),
                    w2=w((ff, d_model)), b2=w((d_model,)),
                    ln3_g=jnp.ones((d_model,)), ln3_b=jnp.zeros((d_model,)))

    emb = w((vocab, d_model), scale=0.1)
    emb = emb.at[pad_id].set(0.0)  # nn.Embedding(padding_idx=...) zero row

    return dict(
        embedding=emb,
        pe=make_pe_table(max_len, d_model),
        encoder_layers=[enc_layer() for _ in range(n_enc)],
        decoder_layers=[dec_layer() for _ in range(n_dec)],
        enc_norm_g=jnp.ones((d_model,)), enc_norm_b=jnp.zeros((d_model,)),
        dec_norm_g=jnp.ones((d_model,)), dec_norm_b=jnp.zeros((d_model,)),
        w_out=w((d_model, vocab)), b_out=w((vocab,)),
    )


def prepare_params(params):
    """One-time prep: weight matrices + embedding -> bf16 (halves weight DMA/VMEM and
    removes per-step casts); biases / LN params -> (1, N) f32 lane-dense 2-D refs."""
    def v2(x):
        return jnp.asarray(x, jnp.float32).reshape(1, -1)

    def bf(x):
        return jnp.asarray(x, jnp.bfloat16)

    def sa(p):
        return dict(wqkv=bf(p["wqkv"]), bqkv=v2(p["bqkv"]),
                    wo=bf(p["wo"]), bo=v2(p["bo"]))

    def ca(p):
        return dict(wq=bf(p["wq"]), bq=v2(p["bq"]),
                    wkv=bf(p["wkv"]), bkv=v2(p["bkv"]),
                    wo=bf(p["wo"]), bo=v2(p["bo"]))

    def enc(p):
        return dict(self_attn=sa(p["self_attn"]),
                    ln1_g=v2(p["ln1_g"]), ln1_b=v2(p["ln1_b"]),
                    w1=bf(p["w1"]), b1=v2(p["b1"]),
                    w2=bf(p["w2"]), b2=v2(p["b2"]),
                    ln2_g=v2(p["ln2_g"]), ln2_b=v2(p["ln2_b"]))

    def dec(p):
        return dict(self_attn=sa(p["self_attn"]), cross_attn=ca(p["cross_attn"]),
                    ln1_g=v2(p["ln1_g"]), ln1_b=v2(p["ln1_b"]),
                    ln2_g=v2(p["ln2_g"]), ln2_b=v2(p["ln2_b"]),
                    w1=bf(p["w1"]), b1=v2(p["b1"]),
                    w2=bf(p["w2"]), b2=v2(p["b2"]),
                    ln3_g=v2(p["ln3_g"]), ln3_b=v2(p["ln3_b"]))

    return dict(
        embedding=bf(params["embedding"]),
        pe=jnp.asarray(params["pe"], jnp.float32),
        encoder_layers=[enc(p) for p in params["encoder_layers"]],
        decoder_layers=[dec(p) for p in params["decoder_layers"]],
        enc_norm_g=v2(params["enc_norm_g"]), enc_norm_b=v2(params["enc_norm_b"]),
        dec_norm_g=v2(params["dec_norm_g"]), dec_norm_b=v2(params["dec_norm_b"]),
        w_out=bf(params["w_out"]), b_out=v2(params["b_out"]),
    )


if __name__ == "__main__":
    # small, forward-consistent shapes
    VOCAB, D_MODEL, NHEAD, FF = 64, 32, 2, 64
    N_ENC, N_DEC = 2, 2   # TODO(synk): nn.Transformer defaults to 6+6 layers / ff=2048; scaled down for the demo
    MAX_LEN, PAD_ID = 16, 0
    B, S_SRC, S_TGT = 2, 8, 8

    key = jax.random.PRNGKey(0)
    kp, ks, kt = jax.random.split(key, 3)
    raw_params = init_params(kp, vocab=VOCAB, d_model=D_MODEL, nhead=NHEAD, ff=FF,
                             n_enc=N_ENC, n_dec=N_DEC, max_len=MAX_LEN, pad_id=PAD_ID)
    params = prepare_params(raw_params)   # one-time bf16 / layout prep (outside jit)

    src_ids = jax.random.randint(ks, (B, S_SRC), 1, VOCAB, dtype=jnp.int32)
    tgt_ids = jax.random.randint(kt, (B, S_TGT), 1, VOCAB, dtype=jnp.int32)

    fwd = jax.jit(functools.partial(my_transformer_forward,
                                    num_heads=NHEAD, temperature=1.0))
    logits = fwd(params, src_ids, tgt_ids)
    jax.block_until_ready(logits)

    assert logits.shape == (B, S_TGT, VOCAB)
    assert bool(jnp.all(jnp.isfinite(logits)))
    print("KERNEL_OK")
</pallas_src>

<mosaic_0001>
module attributes {stable_mosaic.version = 11 : i64} {
  func.func @_encoder_layer_kernel(%arg0: i32, %arg1: memref<1x8x32xbf16, #tpu.memory_space<vmem>>, %arg2: memref<1x8x32xf32, #tpu.memory_space<vmem>>, %arg3: memref<32x96xbf16, #tpu.memory_space<vmem>>, %arg4: memref<1x96xf32, #tpu.memory_space<vmem>>, %arg5: memref<32x32xbf16, #tpu.memory_space<vmem>>, %arg6: memref<1x32xf32, #tpu.memory_space<vmem>>, %arg7: memref<1x32xf32, #tpu.memory_space<vmem>>, %arg8: memref<1x32xf32, #tpu.memory_space<vmem>>, %arg9: memref<32x64xbf16, #tpu.memory_space<vmem>>, %arg10: memref<1x64xf32, #tpu.memory_space<vmem>>, %arg11: memref<64x32xbf16, #tpu.memory_space<vmem>>, %arg12: memref<1x32xf32, #tpu.memory_space<vmem>>, %arg13: memref<1x32xf32, #tpu.memory_space<vmem>>, %arg14: memref<1x32xf32, #tpu.memory_space<vmem>>, %arg15: memref<1x8x32xbf16, #tpu.memory_space<vmem>>) attributes {dimension_semantics = [#tpu.dimension_semantics<parallel>], iteration_bounds = array<i64: 2>, scalar_prefetch = 0 : i64, scratch_operands = 0 : i64, tpu.core_type = #tpu.core_type<tc>, window_params = [{transform_indices = @transform_0, window_bounds = array<i64: 1, 8, 32>}, {pipeline_mode = #tpu.pipeline_mode<synchronous>, transform_indices = @transform_1, window_bounds = array<i64: 1, 8, 32>}, {pipeline_mode = #tpu.pipeline_mode<synchronous>, transform_indices = @transform_2, window_bounds = array<i64: 32, 96>}, {pipeline_mode = #tpu.pipeline_mode<synchronous>, transform_indices = @transform_3, window_bounds = array<i64: 1, 96>}, {pipeline_mode = #tpu.pipeline_mode<synchronous>, transform_indices = @transform_4, window_bounds = array<i64: 32, 32>}, {pipeline_mode = #tpu.pipeline_mode<synchronous>, transform_indices = @transform_5, window_bounds = array<i64: 1, 32>}, {pipeline_mode = #tpu.pipeline_mode<synchronous>, transform_indices = @transform_6, window_bounds = array<i64: 1, 32>}, {pipeline_mode = #tpu.pipeline_mode<synchronous>, transform_indices = @transform_7, window_bounds = array<i64: 1, 32>}, {pipeline_mode = #tpu.pipeline_mode<synchronous>, transform_indices = @transform_8, window_bounds = array<i64: 32, 64>}, {pipeline_mode = #tpu.pipeline_mode<synchronous>, transform_indices = @transform_9, window_bounds = array<i64: 1, 64>}, {pipeline_mode = #tpu.pipeline_mode<synchronous>, transform_indices = @transform_10, window_bounds = array<i64: 64, 32>}, {pipeline_mode = #tpu.pipeline_mode<synchronous>, transform_indices = @transform_11, window_bounds = array<i64: 1, 32>}, {pipeline_mode = #tpu.pipeline_mode<synchronous>, transform_indices = @transform_12, window_bounds = array<i64: 1, 32>}, {pipeline_mode = #tpu.pipeline_mode<synchronous>, transform_indices = @transform_13, window_bounds = array<i64: 1, 32>}, {transform_indices = @transform_14, window_bounds = array<i64: 1, 8, 32>}]} {
    %c0 = arith.constant 0 : index
    %c0_0 = arith.constant 0 : index
    %c0_1 = arith.constant 0 : index
    %0 = vector.load %arg1[%c0, %c0_0, %c0_1] : memref<1x8x32xbf16, #tpu.memory_space<vmem>>, vector<1x8x32xbf16>
    %1 = vector.shape_cast %0 : vector<1x8x32xbf16> to vector<8x32xbf16>
    %2 = arith.extf %1 : vector<8x32xbf16> to vector<8x32xf32>
    %cst = arith.constant 2.000000e+00 : f32
    %3 = vector.broadcast %cst : f32 to vector<8x32xf32>
    %4 = arith.mulf %3, %2 : vector<8x32xf32>
    %c0_2 = arith.constant 0 : index
    %c0_3 = arith.constant 0 : index
    %c0_4 = arith.constant 0 : index
    %5 = vector.load %arg2[%c0_2, %c0_3, %c0_4] : memref<1x8x32xf32, #tpu.memory_space<vmem>>, vector<1x8x32xf32>
    %6 = vector.shape_cast %5 : vector<1x8x32xf32> to vector<8x32xf32>
    %7 = arith.addf %4, %6 : vector<8x32xf32>
    %c0_5 = arith.constant 0 : index
    %c0_6 = arith.constant 0 : index
    %8 = vector.load %arg3[%c0_5, %c0_6] : memref<32x96xbf16, #tpu.memory_space<vmem>>, vector<32x96xbf16>
    %9 = arith.truncf %7 : vector<8x32xf32> to vector<8x32xbf16>
    %cst_7 = arith.constant dense<0.000000e+00> : vector<8x96xf32>
    %10 = tpu.matmul %9, %8, %cst_7 {dimension_numbers = #tpu.dot_dimension_numbers<[1], [0], [0], [1], [0, 0, 1, 1], [], []>} : vector<8x32xbf16>, vector<32x96xbf16>, vector<8x96xf32> -> vector<8x96xf32>
    %c0_8 = arith.constant 0 : index
    %c0_9 = arith.constant 0 : index
    %11 = vector.load %arg4[%c0_8, %c0_9] : memref<1x96xf32, #tpu.memory_space<vmem>>, vector<1x96xf32>
    %12 = vector.broadcast %11 : vector<1x96xf32> to vector<8x96xf32>
    %13 = arith.addf %10, %12 : vector<8x96xf32>
    %14 = vector.extract_strided_slice %13 {offsets = [0, 0], sizes = [8, 32], strides = [1, 1]} : vector<8x96xf32> to vector<8x32xf32>
    %15 = vector.extract_strided_slice %13 {offsets = [0, 32], sizes = [8, 32], strides = [1, 1]} : vector<8x96xf32> to vector<8x32xf32>
    %16 = vector.extract_strided_slice %13 {offsets = [0, 64], sizes = [8, 32], strides = [1, 1]} : vector<8x96xf32> to vector<8x32xf32>
    %c0_10 = arith.constant 0 : index
    %c0_11 = arith.constant 0 : index
    %17 = vector.load %arg5[%c0_10, %c0_11] : memref<32x32xbf16, #tpu.memory_space<vmem>>, vector<32x32xbf16>
    %c0_12 = arith.constant 0 : index
    %c0_13 = arith.constant 0 : index
    %18 = vector.load %arg6[%c0_12, %c0_13] : memref<1x32xf32, #tpu.memory_space<vmem>>, vector<1x32xf32>
    %19 = vector.extract_strided_slice %14 {offsets = [0, 0], sizes = [8, 16], strides = [1, 1]} : vector<8x32xf32> to vector<8x16xf32>
    %cst_14 = arith.constant 2.500000e-01 : f32
    %20 = vector.broadcast %cst_14 : f32 to vector<8x16xf32>
    %21 = arith.mulf %19, %20 : vector<8x16xf32>
    %22 = arith.truncf %21 : vector<8x16xf32> to vector<8x16xbf16>
    %23 = vector.extract_strided_slice %15 {offsets = [0, 0], sizes = [8, 16], strides = [1, 1]} : vector<8x32xf32> to vector<8x16xf32>
    %24 = arith.truncf %23 : vector<8x16xf32> to vector<8x16xbf16>
    %cst_15 = arith.constant dense<0.000000e+00> : vector<8x8xf32>
    %25 = tpu.matmul %22, %24, %cst_15 {dimension_numbers = #tpu.dot_dimension_numbers<[1], [1], [0], [0], [0, 0, 1, 0], [], []>} : vector<8x16xbf16>, vector<8x16xbf16>, vector<8x8xf32> -> vector<8x8xf32>
    %cst_16 = arith.constant dense<0xFF800000> : vector<8xf32>
    %26 = vector.multi_reduction <maximumf>, %25, %cst_16 [1] : vector<8x8xf32> to vector<8xf32>
    %27 = vector.shape_cast %26 : vector<8xf32> to vector<8x1xf32>
    %28 = vector.broadcast %27 : vector<8x1xf32> to vector<8x8xf32>
    %29 = arith.subf %25, %28 : vector<8x8xf32>
    %30 = math.exp %29 : vector<8x8xf32>
    %cst_17 = arith.constant dense<0.000000e+00> : vector<8xf32>
    %31 = vector.multi_reduction <add>, %30, %cst_17 [1] : vector<8x8xf32> to vector<8xf32>
    %32 = vector.shape_cast %31 : vector<8xf32> to vector<8x1xf32>
    %33 = tpu.reciprocal %32 {approx = true} : vector<8x1xf32> -> vector<8x1xf32>
    %34 = vector.broadcast %33 : vector<8x1xf32> to vector<8x8xf32>
    %35 = arith.mulf %30, %34 : vector<8x8xf32>
    %36 = vector.extract_strided_slice %16 {offsets = [0, 0], sizes = [8, 16], strides = [1, 1]} : vector<8x32xf32> to vector<8x16xf32>
    %37 = arith.truncf %35 : vector<8x8xf32> to vector<8x8xbf16>
    %38 = arith.truncf %36 : vector<8x16xf32> to vector<8x16xbf16>
    %cst_18 = arith.constant dense<0.000000e+00> : vector<8x16xf32>
    %39 = tpu.matmul %37, %38, %cst_18 {dimension_numbers = #tpu.dot_dimension_numbers<[1], [0], [0], [1], [0, 0, 1, 1], [], []>} : vector<8x8xbf16>, vector<8x16xbf16>, vector<8x16xf32> -> vector<8x16xf32>
    %40 = vector.extract_strided_slice %17 {offsets = [0, 0], sizes = [16, 32], strides = [1, 1]} : vector<32x32xbf16> to vector<16x32xbf16>
    %41 = arith.truncf %39 : vector<8x16xf32> to vector<8x16xbf16>
    %cst_19 = arith.constant dense<0.000000e+00> : vector<8x32xf32>
    %42 = tpu.matmul %41, %40, %cst_19 {dimension_numbers = #tpu.dot_dimension_numbers<[1], [0], [0], [1], [0, 0, 1, 1], [], []>} : vector<8x16xbf16>, vector<16x32xbf16>, vector<8x32xf32> -> vector<8x32xf32>
    %43 = vector.extract_strided_slice %14 {offsets = [0, 16], sizes = [8, 16], strides = [1, 1]} : vector<8x32xf32> to vector<8x16xf32>
    %cst_20 = arith.constant 2.500000e-01 : f32
    %44 = vector.broadcast %cst_20 : f32 to vector<8x16xf32>
    %45 = arith.mulf %43, %44 : vector<8x16xf32>
    %46 = arith.truncf %45 : vector<8x16xf32> to vector<8x16xbf16>
    %47 = vector.extract_strided_slice %15 {offsets = [0, 16], sizes = [8, 16], strides = [1, 1]} : vector<8x32xf32> to vector<8x16xf32>
    %48 = arith.truncf %47 : vector<8x16xf32> to vector<8x16xbf16>
    %cst_21 = arith.constant dense<0.000000e+00> : vector<8x8xf32>
    %49 = tpu.matmul %46, %48, %cst_21 {dimension_numbers = #tpu.dot_dimension_numbers<[1], [1], [0], [0], [0, 0, 1, 0], [], []>} : vector<8x16xbf16>, vector<8x16xbf16>, vector<8x8xf32> -> vector<8x8xf32>
    %cst_22 = arith.constant dense<0xFF800000> : vector<8xf32>
    %50 = vector.multi_reduction <maximumf>, %49, %cst_22 [1] : vector<8x8xf32> to vector<8xf32>
    %51 = vector.shape_cast %50 : vector<8xf32> to vector<8x1xf32>
    %52 = vector.broadcast %51 : vector<8x1xf32> to vector<8x8xf32>
    %53 = arith.subf %49, %52 : vector<8x8xf32>
    %54 = math.exp %53 : vector<8x8xf32>
    %cst_23 = arith.constant dense<0.000000e+00> : vector<8xf32>
    %55 = vector.multi_reduction <add>, %54, %cst_23 [1] : vector<8x8xf32> to vector<8xf32>
    %56 = vector.shape_cast %55 : vector<8xf32> to vector<8x1xf32>
    %57 = tpu.reciprocal %56 {approx = true} : vector<8x1xf32> -> vector<8x1xf32>
    %58 = vector.broadcast %57 : vector<8x1xf32> to vector<8x8xf32>
    %59 = arith.mulf %54, %58 : vector<8x8xf32>
    %60 = vector.extract_strided_slice %16 {offsets = [0, 16], sizes = [8, 16], strides = [1, 1]} : vector<8x32xf32> to vector<8x16xf32>
    %61 = arith.truncf %59 : vector<8x8xf32> to vector<8x8xbf16>
    %62 = arith.truncf %60 : vector<8x16xf32> to vector<8x16xbf16>
    %cst_24 = arith.constant dense<0.000000e+00> : vector<8x16xf32>
    %63 = tpu.matmul %61, %62, %cst_24 {dimension_numbers = #tpu.dot_dimension_numbers<[1], [0], [0], [1], [0, 0, 1, 1], [], []>} : vector<8x8xbf16>, vector<8x16xbf16>, vector<8x16xf32> -> vector<8x16xf32>
    %64 = vector.extract_strided_slice %17 {offsets = [16, 0], sizes = [16, 32], strides = [1, 1]} : vector<32x32xbf16> to vector<16x32xbf16>
    %65 = arith.truncf %63 : vector<8x16xf32> to vector<8x16xbf16>
    %cst_25 = arith.constant dense<0.000000e+00> : vector<8x32xf32>
    %66 = tpu.matmul %65, %64, %cst_25 {dimension_numbers = #tpu.dot_dimension_numbers<[1], [0], [0], [1], [0, 0, 1, 1], [], []>} : vector<8x16xbf16>, vector<16x32xbf16>, vector<8x32xf32> -> vector<8x32xf32>
    %67 = arith.addf %42, %66 : vector<8x32xf32>
    %68 = vector.broadcast %18 : vector<1x32xf32> to vector<8x32xf32>
    %69 = arith.addf %67, %68 : vector<8x32xf32>
    %70 = arith.addf %7, %69 : vector<8x32xf32>
    %c0_26 = arith.constant 0 : index
    %c0_27 = arith.constant 0 : index
    %71 = vector.load %arg7[%c0_26, %c0_27] : memref<1x32xf32, #tpu.memory_space<vmem>>, vector<1x32xf32>
    %c0_28 = arith.constant 0 : index
    %c0_29 = arith.constant 0 : index
    %72 = vector.load %arg8[%c0_28, %c0_29] : memref<1x32xf32, #tpu.memory_space<vmem>>, vector<1x32xf32>
    %cst_30 = arith.constant dense<0.000000e+00> : vector<8xf32>
    %73 = vector.multi_reduction <add>, %70, %cst_30 [1] : vector<8x32xf32> to vector<8xf32>
    %74 = vector.shape_cast %73 : vector<8xf32> to vector<8x1xf32>
    %cst_31 = arith.constant 3.200000e+01 : f32
    %75 = vector.broadcast %cst_31 : f32 to vector<8x1xf32>
    %76 = arith.divf %74, %75 : vector<8x1xf32>
    %77 = vector.broadcast %76 : vector<8x1xf32> to vector<8x32xf32>
    %78 = arith.subf %70, %77 : vector<8x32xf32>
    %79 = arith.mulf %78, %78 : vector<8x32xf32>
    %cst_32 = arith.constant dense<0.000000e+00> : vector<8xf32>
    %80 = vector.multi_reduction <add>, %79, %cst_32 [1] : vector<8x32xf32> to vector<8xf32>
    %81 = vector.shape_cast %80 : vector<8xf32> to vector<8x1xf32>
    %cst_33 = arith.constant 3.200000e+01 : f32
    %82 = vector.broadcast %cst_33 : f32 to vector<8x1xf32>
    %83 = arith.divf %81, %82 : vector<8x1xf32>
    %84 = vector.broadcast %76 : vector<8x1xf32> to vector<8x32xf32>
    %85 = arith.subf %70, %84 : vector<8x32xf32>
    %cst_34 = arith.constant 9.99999974E-6 : f32
    %86 = vector.broadcast %cst_34 : f32 to vector<8x1xf32>
    %87 = arith.addf %83, %86 : vector<8x1xf32>
    %88 = math.rsqrt %87 : vector<8x1xf32>
    %89 = vector.broadcast %88 : vector<8x1xf32> to vector<8x32xf32>
    %90 = arith.mulf %85, %89 : vector<8x32xf32>
    %91 = vector.broadcast %71 : vector<1x32xf32> to vector<8x32xf32>
    %92 = arith.mulf %90, %91 : vector<8x32xf32>
    %93 = vector.broadcast %72 : vector<1x32xf32> to vector<8x32xf32>
    %94 = arith.addf %92, %93 : vector<8x32xf32>
    %c0_35 = arith.constant 0 : index
    %c0_36 = arith.constant 0 : index
    %95 = vector.load %arg9[%c0_35, %c0_36] : memref<32x64xbf16, #tpu.memory_space<vmem>>, vector<32x64xbf16>
    %96 = arith.truncf %94 : vector<8x32xf32> to vector<8x32xbf16>
    %cst_37 = arith.constant dense<0.000000e+00> : vector<8x64xf32>
    %97 = tpu.matmul %96, %95, %cst_37 {dimension_numbers = #tpu.dot_dimension_numbers<[1], [0], [0], [1], [0, 0, 1, 1], [], []>} : vector<8x32xbf16>, vector<32x64xbf16>, vector<8x64xf32> -> vector<8x64xf32>
    %c0_38 = arith.constant 0 : index
    %c0_39 = arith.constant 0 : index
    %98 = vector.load %arg10[%c0_38, %c0_39] : memref<1x64xf32, #tpu.memory_space<vmem>>, vector<1x64xf32>
    %99 = vector.broadcast %98 : vector<1x64xf32> to vector<8x64xf32>
    %100 = arith.addf %97, %99 : vector<8x64xf32>
    %cst_40 = arith.constant 0.000000e+00 : f32
    %101 = vector.broadcast %cst_40 : f32 to vector<8x64xf32>
    %102 = arith.maximumf %100, %101 : vector<8x64xf32>
    %c0_41 = arith.constant 0 : index
    %c0_42 = arith.constant 0 : index
    %103 = vector.load %arg11[%c0_41, %c0_42] : memref<64x32xbf16, #tpu.memory_space<vmem>>, vector<64x32xbf16>
    %104 = arith.truncf %102 : vector<8x64xf32> to vector<8x64xbf16>
    %cst_43 = arith.constant dense<0.000000e+00> : vector<8x32xf32>
    %105 = tpu.matmul %104, %103, %cst_43 {dimension_numbers = #tpu.dot_dimension_numbers<[1], [0], [0], [1], [0, 0, 1, 1], [], []>} : vector<8x64xbf16>, vector<64x32xbf16>, vector<8x32xf32> -> vector<8x32xf32>
    %c0_44 = arith.constant 0 : index
    %c0_45 = arith.constant 0 : index
    %106 = vector.load %arg12[%c0_44, %c0_45] : memref<1x32xf32, #tpu.memory_space<vmem>>, vector<1x32xf32>
    %107 = vector.broadcast %106 : vector<1x32xf32> to vector<8x32xf32>
    %108 = arith.addf %105, %107 : vector<8x32xf32>
    %109 = arith.addf %94, %108 : vector<8x32xf32>
    %c0_46 = arith.constant 0 : index
    %c0_47 = arith.constant 0 : index
    %110 = vector.load %arg13[%c0_46, %c0_47] : memref<1x32xf32, #tpu.memory_space<vmem>>, vector<1x32xf32>
    %c0_48 = arith.constant 0 : index
    %c0_49 = arith.constant 0 : index
    %111 = vector.load %arg14[%c0_48, %c0_49] : memref<1x32xf32, #tpu.memory_space<vmem>>, vector<1x32xf32>
    %cst_50 = arith.constant dense<0.000000e+00> : vector<8xf32>
    %112 = vector.multi_reduction <add>, %109, %cst_50 [1] : vector<8x32xf32> to vector<8xf32>
    %113 = vector.shape_cast %112 : vector<8xf32> to vector<8x1xf32>
    %cst_51 = arith.constant 3.200000e+01 : f32
    %114 = vector.broadcast %cst_51 : f32 to vector<8x1xf32>
    %115 = arith.divf %113, %114 : vector<8x1xf32>
    %116 = vector.broadcast %115 : vector<8x1xf32> to vector<8x32xf32>
    %117 = arith.subf %109, %116 : vector<8x32xf32>
    %118 = arith.mulf %117, %117 : vector<8x32xf32>
    %cst_52 = arith.constant dense<0.000000e+00> : vector<8xf32>
    %119 = vector.multi_reduction <add>, %118, %cst_52 [1] : vector<8x32xf32> to vector<8xf32>
    %120 = vector.shape_cast %119 : vector<8xf32> to vector<8x1xf32>
    %cst_53 = arith.constant 3.200000e+01 : f32
    %121 = vector.broadcast %cst_53 : f32 to vector<8x1xf32>
    %122 = arith.divf %120, %121 : vector<8x1xf32>
    %123 = vector.broadcast %115 : vector<8x1xf32> to vector<8x32xf32>
    %124 = arith.subf %109, %123 : vector<8x32xf32>
    %cst_54 = arith.constant 9.99999974E-6 : f32
    %125 = vector.broadcast %cst_54 : f32 to vector<8x1xf32>
    %126 = arith.addf %122, %125 : vector<8x1xf32>
    %127 = math.rsqrt %126 : vector<8x1xf32>
    %128 = vector.broadcast %127 : vector<8x1xf32> to vector<8x32xf32>
    %129 = arith.mulf %124, %128 : vector<8x32xf32>
    %130 = vector.broadcast %110 : vector<1x32xf32> to vector<8x32xf32>
    %131 = arith.mulf %129, %130 : vector<8x32xf32>
    %132 = vector.broadcast %111 : vector<1x32xf32> to vector<8x32xf32>
    %133 = arith.addf %131, %132 : vector<8x32xf32>
    %134 = arith.truncf %133 : vector<8x32xf32> to vector<8x32xbf16>
    %c0_55 = arith.constant 0 : index
    %c0_56 = arith.constant 0 : index
    %c0_57 = arith.constant 0 : index
    %135 = vector.load %arg15[%c0_55, %c0_56, %c0_57] : memref<1x8x32xbf16, #tpu.memory_space<vmem>>, vector<1x8x32xbf16>
    %136 = vector.shape_cast %135 : vector<1x8x32xbf16> to vector<8x32xbf16>
    %137 = vector.shape_cast %134 : vector<8x32xbf16> to vector<1x8x32xbf16>
    tpu.vector_store %arg15[%c0_55, %c0_56, %c0_57], %137 {strides = array<i32>} : memref<1x8x32xbf16, #tpu.memory_space<vmem>>, vector<1x8x32xbf16>,
    return
  }
  func.func @transform_0(%arg0: i32) -> (i32, i32, i32) {
    %c0_i32 = arith.constant 0 : i32
    %c0_i32_0 = arith.constant 0 : i32
    %c0_i32_1 = arith.constant 0 : i32
    return %arg0, %c0_i32, %c0_i32_0 : i32, i32, i32
  }
  func.func @transform_1(%arg0: i32) -> (i32, i32, i32) {
    %c0_i32 = arith.constant 0 : i32
    %c0_i32_0 = arith.constant 0 : i32
    %c0_i32_1 = arith.constant 0 : i32
    %c0_i32_2 = arith.constant 0 : i32
    return %c0_i32, %c0_i32_0, %c0_i32_1 : i32, i32, i32
  }
  func.func @transform_2(%arg0: i32) -> (i32, i32) {
    %c0_i32 = arith.constant 0 : i32
    %c0_i32_0 = arith.constant 0 : i32
    %c0_i32_1 = arith.constant 0 : i32
    return %c0_i32, %c0_i32_0 : i32, i32
  }
  func.func @transform_3(%arg0: i32) -> (i32, i32) {
    %c0_i32 = arith.constant 0 : i32
    %c0_i32_0 = arith.constant 0 : i32
    %c0_i32_1 = arith.constant 0 : i32
    return %c0_i32, %c0_i32_0 : i32, i32
  }
  func.func @transform_4(%arg0: i32) -> (i32, i32) {
    %c0_i32 = arith.constant 0 : i32
    %c0_i32_0 = arith.constant 0 : i32
    %c0_i32_1 = arith.constant 0 : i32
    return %c0_i32, %c0_i32_0 : i32, i32
  }
  func.func @transform_5(%arg0: i32) -> (i32, i32) {
    %c0_i32 = arith.constant 0 : i32
    %c0_i32_0 = arith.constant 0 : i32
    %c0_i32_1 = arith.constant 0 : i32
    return %c0_i32, %c0_i32_0 : i32, i32
  }
  func.func @transform_6(%arg0: i32) -> (i32, i32) {
    %c0_i32 = arith.constant 0 : i32
    %c0_i32_0 = arith.constant 0 : i32
    %c0_i32_1 = arith.constant 0 : i32
    return %c0_i32, %c0_i32_0 : i32, i32
  }
  func.func @transform_7(%arg0: i32) -> (i32, i32) {
    %c0_i32 = arith.constant 0 : i32
    %c0_i32_0 = arith.constant 0 : i32
    %c0_i32_1 = arith.constant 0 : i32
    return %c0_i32, %c0_i32_0 : i32, i32
  }
  func.func @transform_8(%arg0: i32) -> (i32, i32) {
    %c0_i32 = arith.constant 0 : i32
    %c0_i32_0 = arith.constant 0 : i32
    %c0_i32_1 = arith.constant 0 : i32
    return %c0_i32, %c0_i32_0 : i32, i32
  }
  func.func @transform_9(%arg0: i32) -> (i32, i32) {
    %c0_i32 = arith.constant 0 : i32
    %c0_i32_0 = arith.constant 0 : i32
    %c0_i32_1 = arith.constant 0 : i32
    return %c0_i32, %c0_i32_0 : i32, i32
  }
  func.func @transform_10(%arg0: i32) -> (i32, i32) {
    %c0_i32 = arith.constant 0 : i32
    %c0_i32_0 = arith.constant 0 : i32
    %c0_i32_1 = arith.constant 0 : i32
    return %c0_i32, %c0_i32_0 : i32, i32
  }
  func.func @transform_11(%arg0: i32) -> (i32, i32) {
    %c0_i32 = arith.constant 0 : i32
    %c0_i32_0 = arith.constant 0 : i32
    %c0_i32_1 = arith.constant 0 : i32
    return %c0_i32, %c0_i32_0 : i32, i32
  }
  func.func @transform_12(%arg0: i32) -> (i32, i32) {
    %c0_i32 = arith.constant 0 : i32
    %c0_i32_0 = arith.constant 0 : i32
    %c0_i32_1 = arith.constant 0 : i32
    return %c0_i32, %c0_i32_0 : i32, i32
  }
  func.func @transform_13(%arg0: i32) -> (i32, i32) {
    %c0_i32 = arith.constant 0 : i32
    %c0_i32_0 = arith.constant 0 : i32
    %c0_i32_1 = arith.constant 0 : i32
    return %c0_i32, %c0_i32_0 : i32, i32
  }
  func.func @transform_14(%arg0: i32) -> (i32, i32, i32) {
    %c0_i32 = arith.constant 0 : i32
    %c0_i32_0 = arith.constant 0 : i32
    %c0_i32_1 = arith.constant 0 : i32
    return %arg0, %c0_i32, %c0_i32_0 : i32, i32, i32
  }
}

module attributes {stable_mosaic.version = 11 : i64} {
  func.func @_encoder_layer_kernel(%arg0: i32, %arg1: memref<1x8x32xbf16, #tpu.memory_space<vmem>>, %arg2: memref<32x96xbf16, #tpu.memory_space<vmem>>, %arg3: memref<1x96xf32, #tpu.memory_space<vmem>>, %arg4: memref<32x32xbf16, #tpu.memory_space<vmem>>, %arg5: memref<1x32xf32, #tpu.memory_space<vmem>>, %arg6: memref<1x32xf32, #tpu.memory_space<vmem>>, %arg7: memref<1x32xf32, #tpu.memory_space<vmem>>, %arg8: memref<32x64xbf16, #tpu.memory_space<vmem>>, %arg9: memref<1x64xf32, #tpu.memory_space<vmem>>, %arg10: memref<64x32xbf16, #tpu.memory_space<vmem>>, %arg11: memref<1x32xf32, #tpu.memory_space<vmem>>, %arg12: memref<1x32xf32, #tpu.memory_space<vmem>>, %arg13: memref<1x32xf32, #tpu.memory_space<vmem>>, %arg14: memref<1x32xf32, #tpu.memory_space<vmem>>, %arg15: memref<1x32xf32, #tpu.memory_space<vmem>>, %arg16: memref<1x8x32xbf16, #tpu.memory_space<vmem>>) attributes {dimension_semantics = [#tpu.dimension_semantics<parallel>], iteration_bounds = array<i64: 2>, scalar_prefetch = 0 : i64, scratch_operands = 0 : i64, tpu.core_type = #tpu.core_type<tc>, window_params = [{transform_indices = @transform_0, window_bounds = array<i64: 1, 8, 32>}, {pipeline_mode = #tpu.pipeline_mode<synchronous>, transform_indices = @transform_1, window_bounds = array<i64: 32, 96>}, {pipeline_mode = #tpu.pipeline_mode<synchronous>, transform_indices = @transform_2, window_bounds = array<i64: 1, 96>}, {pipeline_mode = #tpu.pipeline_mode<synchronous>, transform_indices = @transform_3, window_bounds = array<i64: 32, 32>}, {pipeline_mode = #tpu.pipeline_mode<synchronous>, transform_indices = @transform_4, window_bounds = array<i64: 1, 32>}, {pipeline_mode = #tpu.pipeline_mode<synchronous>, transform_indices = @transform_5, window_bounds = array<i64: 1, 32>}, {pipeline_mode = #tpu.pipeline_mode<synchronous>, transform_indices = @transform_6, window_bounds = array<i64: 1, 32>}, {pipeline_mode = #tpu.pipeline_mode<synchronous>, transform_indices = @transform_7, window_bounds = array<i64: 32, 64>}, {pipeline_mode = #tpu.pipeline_mode<synchronous>, transform_indices = @transform_8, window_bounds = array<i64: 1, 64>}, {pipeline_mode = #tpu.pipeline_mode<synchronous>, transform_indices = @transform_9, window_bounds = array<i64: 64, 32>}, {pipeline_mode = #tpu.pipeline_mode<synchronous>, transform_indices = @transform_10, window_bounds = array<i64: 1, 32>}, {pipeline_mode = #tpu.pipeline_mode<synchronous>, transform_indices = @transform_11, window_bounds = array<i64: 1, 32>}, {pipeline_mode = #tpu.pipeline_mode<synchronous>, transform_indices = @transform_12, window_bounds = array<i64: 1, 32>}, {pipeline_mode = #tpu.pipeline_mode<synchronous>, transform_indices = @transform_13, window_bounds = array<i64: 1, 32>}, {pipeline_mode = #tpu.pipeline_mode<synchronous>, transform_indices = @transform_14, window_bounds = array<i64: 1, 32>}, {transform_indices = @transform_15, window_bounds = array<i64: 1, 8, 32>}]} {
    %c0 = arith.constant 0 : index
    %c0_0 = arith.constant 0 : index
    %c0_1 = arith.constant 0 : index
    %0 = vector.load %arg1[%c0, %c0_0, %c0_1] : memref<1x8x32xbf16, #tpu.memory_space<vmem>>, vector<1x8x32xbf16>
    %1 = vector.shape_cast %0 : vector<1x8x32xbf16> to vector<8x32xbf16>
    %2 = arith.extf %1 : vector<8x32xbf16> to vector<8x32xf32>
    %c0_2 = arith.constant 0 : index
    %c0_3 = arith.constant 0 : index
    %3 = vector.load %arg2[%c0_2, %c0_3] : memref<32x96xbf16, #tpu.memory_space<vmem>>, vector<32x96xbf16>
    %4 = arith.truncf %2 : vector<8x32xf32> to vector<8x32xbf16>
    %cst = arith.constant dense<0.000000e+00> : vector<8x96xf32>
    %5 = tpu.matmul %4, %3, %cst {dimension_numbers = #tpu.dot_dimension_numbers<[1], [0], [0], [1], [0, 0, 1, 1], [], []>} : vector<8x32xbf16>, vector<32x96xbf16>, vector<8x96xf32> -> vector<8x96xf32>
    %c0_4 = arith.constant 0 : index
    %c0_5 = arith.constant 0 : index
    %6 = vector.load %arg3[%c0_4, %c0_5] : memref<1x96xf32, #tpu.memory_space<vmem>>, vector<1x96xf32>
    %7 = vector.broadcast %6 : vector<1x96xf32> to vector<8x96xf32>
    %8 = arith.addf %5, %7 : vector<8x96xf32>
    %9 = vector.extract_strided_slice %8 {offsets = [0, 0], sizes = [8, 32], strides = [1, 1]} : vector<8x96xf32> to vector<8x32xf32>
    %10 = vector.extract_strided_slice %8 {offsets = [0, 32], sizes = [8, 32], strides = [1, 1]} : vector<8x96xf32> to vector<8x32xf32>
    %11 = vector.extract_strided_slice %8 {offsets = [0, 64], sizes = [8, 32], strides = [1, 1]} : vector<8x96xf32> to vector<8x32xf32>
    %c0_6 = arith.constant 0 : index
    %c0_7 = arith.constant 0 : index
    %12 = vector.load %arg4[%c0_6, %c0_7] : memref<32x32xbf16, #tpu.memory_space<vmem>>, vector<32x32xbf16>
    %c0_8 = arith.constant 0 : index
    %c0_9 = arith.constant 0 : index
    %13 = vector.load %arg5[%c0_8, %c0_9] : memref<1x32xf32, #tpu.memory_space<vmem>>, vector<1x32xf32>
    %14 = vector.extract_strided_slice %9 {offsets = [0, 0], sizes = [8, 16], strides = [1, 1]} : vector<8x32xf32> to vector<8x16xf32>
    %cst_10 = arith.constant 2.500000e-01 : f32
    %15 = vector.broadcast %cst_10 : f32 to vector<8x16xf32>
    %16 = arith.mulf %14, %15 : vector<8x16xf32>
    %17 = arith.truncf %16 : vector<8x16xf32> to vector<8x16xbf16>
    %18 = vector.extract_strided_slice %10 {offsets = [0, 0], sizes = [8, 16], strides = [1, 1]} : vector<8x32xf32> to vector<8x16xf32>
    %19 = arith.truncf %18 : vector<8x16xf32> to vector<8x16xbf16>
    %cst_11 = arith.constant dense<0.000000e+00> : vector<8x8xf32>
    %20 = tpu.matmul %17, %19, %cst_11 {dimension_numbers = #tpu.dot_dimension_numbers<[1], [1], [0], [0], [0, 0, 1, 0], [], []>} : vector<8x16xbf16>, vector<8x16xbf16>, vector<8x8xf32> -> vector<8x8xf32>
    %cst_12 = arith.constant dense<0xFF800000> : vector<8xf32>
    %21 = vector.multi_reduction <maximumf>, %20, %cst_12 [1] : vector<8x8xf32> to vector<8xf32>
    %22 = vector.shape_cast %21 : vector<8xf32> to vector<8x1xf32>
    %23 = vector.broadcast %22 : vector<8x1xf32> to vector<8x8xf32>
    %24 = arith.subf %20, %23 : vector<8x8xf32>
    %25 = math.exp %24 : vector<8x8xf32>
    %cst_13 = arith.constant dense<0.000000e+00> : vector<8xf32>
    %26 = vector.multi_reduction <add>, %25, %cst_13 [1] : vector<8x8xf32> to vector<8xf32>
    %27 = vector.shape_cast %26 : vector<8xf32> to vector<8x1xf32>
    %28 = tpu.reciprocal %27 {approx = true} : vector<8x1xf32> -> vector<8x1xf32>
    %29 = vector.broadcast %28 : vector<8x1xf32> to vector<8x8xf32>
    %30 = arith.mulf %25, %29 : vector<8x8xf32>
    %31 = vector.extract_strided_slice %11 {offsets = [0, 0], sizes = [8, 16], strides = [1, 1]} : vector<8x32xf32> to vector<8x16xf32>
    %32 = arith.truncf %30 : vector<8x8xf32> to vector<8x8xbf16>
    %33 = arith.truncf %31 : vector<8x16xf32> to vector<8x16xbf16>
    %cst_14 = arith.constant dense<0.000000e+00> : vector<8x16xf32>
    %34 = tpu.matmul %32, %33, %cst_14 {dimension_numbers = #tpu.dot_dimension_numbers<[1], [0], [0], [1], [0, 0, 1, 1], [], []>} : vector<8x8xbf16>, vector<8x16xbf16>, vector<8x16xf32> -> vector<8x16xf32>
    %35 = vector.extract_strided_slice %12 {offsets = [0, 0], sizes = [16, 32], strides = [1, 1]} : vector<32x32xbf16> to vector<16x32xbf16>
    %36 = arith.truncf %34 : vector<8x16xf32> to vector<8x16xbf16>
    %cst_15 = arith.constant dense<0.000000e+00> : vector<8x32xf32>
    %37 = tpu.matmul %36, %35, %cst_15 {dimension_numbers = #tpu.dot_dimension_numbers<[1], [0], [0], [1], [0, 0, 1, 1], [], []>} : vector<8x16xbf16>, vector<16x32xbf16>, vector<8x32xf32> -> vector<8x32xf32>
    %38 = vector.extract_strided_slice %9 {offsets = [0, 16], sizes = [8, 16], strides = [1, 1]} : vector<8x32xf32> to vector<8x16xf32>
    %cst_16 = arith.constant 2.500000e-01 : f32
    %39 = vector.broadcast %cst_16 : f32 to vector<8x16xf32>
    %40 = arith.mulf %38, %39 : vector<8x16xf32>
    %41 = arith.truncf %40 : vector<8x16xf32> to vector<8x16xbf16>
    %42 = vector.extract_strided_slice %10 {offsets = [0, 16], sizes = [8, 16], strides = [1, 1]} : vector<8x32xf32> to vector<8x16xf32>
    %43 = arith.truncf %42 : vector<8x16xf32> to vector<8x16xbf16>
    %cst_17 = arith.constant dense<0.000000e+00> : vector<8x8xf32>
    %44 = tpu.matmul %41, %43, %cst_17 {dimension_numbers = #tpu.dot_dimension_numbers<[1], [1], [0], [0], [0, 0, 1, 0], [], []>} : vector<8x16xbf16>, vector<8x16xbf16>, vector<8x8xf32> -> vector<8x8xf32>
    %cst_18 = arith.constant dense<0xFF800000> : vector<8xf32>
    %45 = vector.multi_reduction <maximumf>, %44, %cst_18 [1] : vector<8x8xf32> to vector<8xf32>
    %46 = vector.shape_cast %45 : vector<8xf32> to vector<8x1xf32>
    %47 = vector.broadcast %46 : vector<8x1xf32> to vector<8x8xf32>
    %48 = arith.subf %44, %47 : vector<8x8xf32>
    %49 = math.exp %48 : vector<8x8xf32>
    %cst_19 = arith.constant dense<0.000000e+00> : vector<8xf32>
    %50 = vector.multi_reduction <add>, %49, %cst_19 [1] : vector<8x8xf32> to vector<8xf32>
    %51 = vector.shape_cast %50 : vector<8xf32> to vector<8x1xf32>
    %52 = tpu.reciprocal %51 {approx = true} : vector<8x1xf32> -> vector<8x1xf32>
    %53 = vector.broadcast %52 : vector<8x1xf32> to vector<8x8xf32>
    %54 = arith.mulf %49, %53 : vector<8x8xf32>
    %55 = vector.extract_strided_slice %11 {offsets = [0, 16], sizes = [8, 16], strides = [1, 1]} : vector<8x32xf32> to vector<8x16xf32>
    %56 = arith.truncf %54 : vector<8x8xf32> to vector<8x8xbf16>
    %57 = arith.truncf %55 : vector<8x16xf32> to vector<8x16xbf16>
    %cst_20 = arith.constant dense<0.000000e+00> : vector<8x16xf32>
    %58 = tpu.matmul %56, %57, %cst_20 {dimension_numbers = #tpu.dot_dimension_numbers<[1], [0], [0], [1], [0, 0, 1, 1], [], []>} : vector<8x8xbf16>, vector<8x16xbf16>, vector<8x16xf32> -> vector<8x16xf32>
    %59 = vector.extract_strided_slice %12 {offsets = [16, 0], sizes = [16, 32], strides = [1, 1]} : vector<32x32xbf16> to vector<16x32xbf16>
    %60 = arith.truncf %58 : vector<8x16xf32> to vector<8x16xbf16>
    %cst_21 = arith.constant dense<0.000000e+00> : vector<8x32xf32>
    %61 = tpu.matmul %60, %59, %cst_21 {dimension_numbers = #tpu.dot_dimension_numbers<[1], [0], [0], [1], [0, 0, 1, 1], [], []>} : vector<8x16xbf16>, vector<16x32xbf16>, vector<8x32xf32> -> vector<8x32xf32>
    %62 = arith.addf %37, %61 : vector<8x32xf32>
    %63 = vector.broadcast %13 : vector<1x32xf32> to vector<8x32xf32>
    %64 = arith.addf %62, %63 : vector<8x32xf32>
    %65 = arith.addf %2, %64 : vector<8x32xf32>
    %c0_22 = arith.constant 0 : index
    %c0_23 = arith.constant 0 : index
    %66 = vector.load %arg6[%c0_22, %c0_23] : memref<1x32xf32, #tpu.memory_space<vmem>>, vector<1x32xf32>
    %c0_24 = arith.constant 0 : index
    %c0_25 = arith.constant 0 : index
    %67 = vector.load %arg7[%c0_24, %c0_25] : memref<1x32xf32, #tpu.memory_space<vmem>>, vector<1x32xf32>
    %cst_26 = arith.constant dense<0.000000e+00> : vector<8xf32>
    %68 = vector.multi_reduction <add>, %65, %cst_26 [1] : vector<8x32xf32> to vector<8xf32>
    %69 = vector.shape_cast %68 : vector<8xf32> to vector<8x1xf32>
    %cst_27 = arith.constant 3.200000e+01 : f32
    %70 = vector.broadcast %cst_27 : f32 to vector<8x1xf32>
    %71 = arith.divf %69, %70 : vector<8x1xf32>
    %72 = vector.broadcast %71 : vector<8x1xf32> to vector<8x32xf32>
    %73 = arith.subf %65, %72 : vector<8x32xf32>
    %74 = arith.mulf %73, %73 : vector<8x32xf32>
    %cst_28 = arith.constant dense<0.000000e+00> : vector<8xf32>
    %75 = vector.multi_reduction <add>, %74, %cst_28 [1] : vector<8x32xf32> to vector<8xf32>
    %76 = vector.shape_cast %75 : vector<8xf32> to vector<8x1xf32>
    %cst_29 = arith.constant 3.200000e+01 : f32
    %77 = vector.broadcast %cst_29 : f32 to vector<8x1xf32>
    %78 = arith.divf %76, %77 : vector<8x1xf32>
    %79 = vector.broadcast %71 : vector<8x1xf32> to vector<8x32xf32>
    %80 = arith.subf %65, %79 : vector<8x32xf32>
    %cst_30 = arith.constant 9.99999974E-6 : f32
    %81 = vector.broadcast %cst_30 : f32 to vector<8x1xf32>
    %82 = arith.addf %78, %81 : vector<8x1xf32>
    %83 = math.rsqrt %82 : vector<8x1xf32>
    %84 = vector.broadcast %83 : vector<8x1xf32> to vector<8x32xf32>
    %85 = arith.mulf %80, %84 : vector<8x32xf32>
    %86 = vector.broadcast %66 : vector<1x32xf32> to vector<8x32xf32>
    %87 = arith.mulf %85, %86 : vector<8x32xf32>
    %88 = vector.broadcast %67 : vector<1x32xf32> to vector<8x32xf32>
    %89 = arith.addf %87, %88 : vector<8x32xf32>
    %c0_31 = arith.constant 0 : index
    %c0_32 = arith.constant 0 : index
    %90 = vector.load %arg8[%c0_31, %c0_32] : memref<32x64xbf16, #tpu.memory_space<vmem>>, vector<32x64xbf16>
    %91 = arith.truncf %89 : vector<8x32xf32> to vector<8x32xbf16>
    %cst_33 = arith.constant dense<0.000000e+00> : vector<8x64xf32>
    %92 = tpu.matmul %91, %90, %cst_33 {dimension_numbers = #tpu.dot_dimension_numbers<[1], [0], [0], [1], [0, 0, 1, 1], [], []>} : vector<8x32xbf16>, vector<32x64xbf16>, vector<8x64xf32> -> vector<8x64xf32>
    %c0_34 = arith.constant 0 : index
    %c0_35 = arith.constant 0 : index
    %93 = vector.load %arg9[%c0_34, %c0_35] : memref<1x64xf32, #tpu.memory_space<vmem>>, vector<1x64xf32>
    %94 = vector.broadcast %93 : vector<1x64xf32> to vector<8x64xf32>
    %95 = arith.addf %92, %94 : vector<8x64xf32>
    %cst_36 = arith.constant 0.000000e+00 : f32
    %96 = vector.broadcast %cst_36 : f32 to vector<8x64xf32>
    %97 = arith.maximumf %95, %96 : vector<8x64xf32>
    %c0_37 = arith.constant 0 : index
    %c0_38 = arith.constant 0 : index
    %98 = vector.load %arg10[%c0_37, %c0_38] : memref<64x32xbf16, #tpu.memory_space<vmem>>, vector<64x32xbf16>
    %99 = arith.truncf %97 : vector<8x64xf32> to vector<8x64xbf16>
    %cst_39 = arith.constant dense<0.000000e+00> : vector<8x32xf32>
    %100 = tpu.matmul %99, %98, %cst_39 {dimension_numbers = #tpu.dot_dimension_numbers<[1], [0], [0], [1], [0, 0, 1, 1], [], []>} : vector<8x64xbf16>, vector<64x32xbf16>, vector<8x32xf32> -> vector<8x32xf32>
    %c0_40 = arith.constant 0 : index
    %c0_41 = arith.constant 0 : index
    %101 = vector.load %arg11[%c0_40, %c0_41] : memref<1x32xf32, #tpu.memory_space<vmem>>, vector<1x32xf32>
    %102 = vector.broadcast %101 : vector<1x32xf32> to vector<8x32xf32>
    %103 = arith.addf %100, %102 : vector<8x32xf32>
    %104 = arith.addf %89, %103 : vector<8x32xf32>
    %c0_42 = arith.constant 0 : index
    %c0_43 = arith.constant 0 : index
    %105 = vector.load %arg12[%c0_42, %c0_43] : memref<1x32xf32, #tpu.memory_space<vmem>>, vector<1x32xf32>
    %c0_44 = arith.constant 0 : index
    %c0_45 = arith.constant 0 : index
    %106 = vector.load %arg13[%c0_44, %c0_45] : memref<1x32xf32, #tpu.memory_space<vmem>>, vector<1x32xf32>
    %cst_46 = arith.constant dense<0.000000e+00> : vector<8xf32>
    %107 = vector.multi_reduction <add>, %104, %cst_46 [1] : vector<8x32xf32> to vector<8xf32>
    %108 = vector.shape_cast %107 : vector<8xf32> to vector<8x1xf32>
    %cst_47 = arith.constant 3.200000e+01 : f32
    %109 = vector.broadcast %cst_47 : f32 to vector<8x1xf32>
    %110 = arith.divf %108, %109 : vector<8x1xf32>
    %111 = vector.broadcast %110 : vector<8x1xf32> to vector<8x32xf32>
    %112 = arith.subf %104, %111 : vector<8x32xf32>
    %113 = arith.mulf %112, %112 : vector<8x32xf32>
    %cst_48 = arith.constant dense<0.000000e+00> : vector<8xf32>
    %114 = vector.multi_reduction <add>, %113, %cst_48 [1] : vector<8x32xf32> to vector<8xf32>
    %115 = vector.shape_cast %114 : vector<8xf32> to vector<8x1xf32>
    %cst_49 = arith.constant 3.200000e+01 : f32
    %116 = vector.broadcast %cst_49 : f32 to vector<8x1xf32>
    %117 = arith.divf %115, %116 : vector<8x1xf32>
    %118 = vector.broadcast %110 : vector<8x1xf32> to vector<8x32xf32>
    %119 = arith.subf %104, %118 : vector<8x32xf32>
    %cst_50 = arith.constant 9.99999974E-6 : f32
    %120 = vector.broadcast %cst_50 : f32 to vector<8x1xf32>
    %121 = arith.addf %117, %120 : vector<8x1xf32>
    %122 = math.rsqrt %121 : vector<8x1xf32>
    %123 = vector.broadcast %122 : vector<8x1xf32> to vector<8x32xf32>
    %124 = arith.mulf %119, %123 : vector<8x32xf32>
    %125 = vector.broadcast %105 : vector<1x32xf32> to vector<8x32xf32>
    %126 = arith.mulf %124, %125 : vector<8x32xf32>
    %127 = vector.broadcast %106 : vector<1x32xf32> to vector<8x32xf32>
    %128 = arith.addf %126, %127 : vector<8x32xf32>
    %c0_51 = arith.constant 0 : index
    %c0_52 = arith.constant 0 : index
    %129 = vector.load %arg14[%c0_51, %c0_52] : memref<1x32xf32, #tpu.memory_space<vmem>>, vector<1x32xf32>
    %c0_53 = arith.constant 0 : index
    %c0_54 = arith.constant 0 : index
    %130 = vector.load %arg15[%c0_53, %c0_54] : memref<1x32xf32, #tpu.memory_space<vmem>>, vector<1x32xf32>
    %cst_55 = arith.constant dense<0.000000e+00> : vector<8xf32>
    %131 = vector.multi_reduction <add>, %128, %cst_55 [1] : vector<8x32xf32> to vector<8xf32>
    %132 = vector.shape_cast %131 : vector<8xf32> to vector<8x1xf32>
    %cst_56 = arith.constant 3.200000e+01 : f32
    %133 = vector.broadcast %cst_56 : f32 to vector<8x1xf32>
    %134 = arith.divf %132, %133 : vector<8x1xf32>
    %135 = vector.broadcast %134 : vector<8x1xf32> to vector<8x32xf32>
    %136 = arith.subf %128, %135 : vector<8x32xf32>
    %137 = arith.mulf %136, %136 : vector<8x32xf32>
    %cst_57 = arith.constant dense<0.000000e+00> : vector<8xf32>
    %138 = vector.multi_reduction <add>, %137, %cst_57 [1] : vector<8x32xf32> to vector<8xf32>
    %139 = vector.shape_cast %138 : vector<8xf32> to vector<8x1xf32>
    %cst_58 = arith.constant 3.200000e+01 : f32
    %140 = vector.broadcast %cst_58 : f32 to vector<8x1xf32>
    %141 = arith.divf %139, %140 : vector<8x1xf32>
    %142 = vector.broadcast %134 : vector<8x1xf32> to vector<8x32xf32>
    %143 = arith.subf %128, %142 : vector<8x32xf32>
    %cst_59 = arith.constant 9.99999974E-6 : f32
    %144 = vector.broadcast %cst_59 : f32 to vector<8x1xf32>
    %145 = arith.addf %141, %144 : vector<8x1xf32>
    %146 = math.rsqrt %145 : vector<8x1xf32>
    %147 = vector.broadcast %146 : vector<8x1xf32> to vector<8x32xf32>
    %148 = arith.mulf %143, %147 : vector<8x32xf32>
    %149 = vector.broadcast %129 : vector<1x32xf32> to vector<8x32xf32>
    %150 = arith.mulf %148, %149 : vector<8x32xf32>
    %151 = vector.broadcast %130 : vector<1x32xf32> to vector<8x32xf32>
    %152 = arith.addf %150, %151 : vector<8x32xf32>
    %153 = arith.truncf %152 : vector<8x32xf32> to vector<8x32xbf16>
    %c0_60 = arith.constant 0 : index
    %c0_61 = arith.constant 0 : index
    %c0_62 = arith.constant 0 : index
    %154 = vector.load %arg16[%c0_60, %c0_61, %c0_62] : memref<1x8x32xbf16, #tpu.memory_space<vmem>>, vector<1x8x32xbf16>
    %155 = vector.shape_cast %154 : vector<1x8x32xbf16> to vector<8x32xbf16>
    %156 = vector.shape_cast %153 : vector<8x32xbf16> to vector<1x8x32xbf16>
    tpu.vector_store %arg16[%c0_60, %c0_61, %c0_62], %156 {strides = array<i32>} : memref<1x8x32xbf16, #tpu.memory_space<vmem>>, vector<1x8x32xbf16>,
    return
  }
  func.func @transform_0(%arg0: i32) -> (i32, i32, i32) {
    %c0_i32 = arith.constant 0 : i32
    %c0_i32_0 = arith.constant 0 : i32
    %c0_i32_1 = arith.constant 0 : i32
    return %arg0, %c0_i32, %c0_i32_0 : i32, i32, i32
  }
  func.func @transform_1(%arg0: i32) -> (i32, i32) {
    %c0_i32 = arith.constant 0 : i32
    %c0_i32_0 = arith.constant 0 : i32
    %c0_i32_1 = arith.constant 0 : i32
    return %c0_i32, %c0_i32_0 : i32, i32
  }
  func.func @transform_2(%arg0: i32) -> (i32, i32) {
    %c0_i32 = arith.constant 0 : i32
    %c0_i32_0 = arith.constant 0 : i32
    %c0_i32_1 = arith.constant 0 : i32
    return %c0_i32, %c0_i32_0 : i32, i32
  }
  func.func @transform_3(%arg0: i32) -> (i32, i32) {
    %c0_i32 = arith.constant 0 : i32
    %c0_i32_0 = arith.constant 0 : i32
    %c0_i32_1 = arith.constant 0 : i32
    return %c0_i32, %c0_i32_0 : i32, i32
  }
  func.func @transform_4(%arg0: i32) -> (i32, i32) {
    %c0_i32 = arith.constant 0 : i32
    %c0_i32_0 = arith.constant 0 : i32
    %c0_i32_1 = arith.constant 0 : i32
    return %c0_i32, %c0_i32_0 : i32, i32
  }
  func.func @transform_5(%arg0: i32) -> (i32, i32) {
    %c0_i32 = arith.constant 0 : i32
    %c0_i32_0 = arith.constant 0 : i32
    %c0_i32_1 = arith.constant 0 : i32
    return %c0_i32, %c0_i32_0 : i32, i32
  }
  func.func @transform_6(%arg0: i32) -> (i32, i32) {
    %c0_i32 = arith.constant 0 : i32
    %c0_i32_0 = arith.constant 0 : i32
    %c0_i32_1 = arith.constant 0 : i32
    return %c0_i32, %c0_i32_0 : i32, i32
  }
  func.func @transform_7(%arg0: i32) -> (i32, i32) {
    %c0_i32 = arith.constant 0 : i32
    %c0_i32_0 = arith.constant 0 : i32
    %c0_i32_1 = arith.constant 0 : i32
    return %c0_i32, %c0_i32_0 : i32, i32
  }
  func.func @transform_8(%arg0: i32) -> (i32, i32) {
    %c0_i32 = arith.constant 0 : i32
    %c0_i32_0 = arith.constant 0 : i32
    %c0_i32_1 = arith.constant 0 : i32
    return %c0_i32, %c0_i32_0 : i32, i32
  }
  func.func @transform_9(%arg0: i32) -> (i32, i32) {
    %c0_i32 = arith.constant 0 : i32
    %c0_i32_0 = arith.constant 0 : i32
    %c0_i32_1 = arith.constant 0 : i32
    return %c0_i32, %c0_i32_0 : i32, i32
  }
  func.func @transform_10(%arg0: i32) -> (i32, i32) {
    %c0_i32 = arith.constant 0 : i32
    %c0_i32_0 = arith.constant 0 : i32
    %c0_i32_1 = arith.constant 0 : i32
    return %c0_i32, %c0_i32_0 : i32, i32
  }
  func.func @transform_11(%arg0: i32) -> (i32, i32) {
    %c0_i32 = arith.constant 0 : i32
    %c0_i32_0 = arith.constant 0 : i32
    %c0_i32_1 = arith.constant 0 : i32
    return %c0_i32, %c0_i32_0 : i32, i32
  }
  func.func @transform_12(%arg0: i32) -> (i32, i32) {
    %c0_i32 = arith.constant 0 : i32
    %c0_i32_0 = arith.constant 0 : i32
    %c0_i32_1 = arith.constant 0 : i32
    return %c0_i32, %c0_i32_0 : i32, i32
  }
  func.func @transform_13(%arg0: i32) -> (i32, i32) {
    %c0_i32 = arith.constant 0 : i32
    %c0_i32_0 = arith.constant 0 : i32
    %c0_i32_1 = arith.constant 0 : i32
    return %c0_i32, %c0_i32_0 : i32, i32
  }
  func.func @transform_14(%arg0: i32) -> (i32, i32) {
    %c0_i32 = arith.constant 0 : i32
    %c0_i32_0 = arith.constant 0 : i32
    %c0_i32_1 = arith.constant 0 : i32
    return %c0_i32, %c0_i32_0 : i32, i32
  }
  func.func @transform_15(%arg0: i32) -> (i32, i32, i32) {
    %c0_i32 = arith.constant 0 : i32
    %c0_i32_0 = arith.constant 0 : i32
    %c0_i32_1 = arith.constant 0 : i32
    return %arg0, %c0_i32, %c0_i32_0 : i32, i32, i32
  }
}

module attributes {stable_mosaic.version = 11 : i64} {
  func.func @_decoder_layer_kernel(%arg0: i32, %arg1: memref<1x8x32xbf16, #tpu.memory_space<vmem>>, %arg2: memref<1x8x32xbf16, #tpu.memory_space<vmem>>, %arg3: memref<1x8x32xf32, #tpu.memory_space<vmem>>, %arg4: memref<32x96xbf16, #tpu.memory_space<vmem>>, %arg5: memref<1x96xf32, #tpu.memory_space<vmem>>, %arg6: memref<32x32xbf16, #tpu.memory_space<vmem>>, %arg7: memref<1x32xf32, #tpu.memory_space<vmem>>, %arg8: memref<1x32xf32, #tpu.memory_space<vmem>>, %arg9: memref<1x32xf32, #tpu.memory_space<vmem>>, %arg10: memref<32x32xbf16, #tpu.memory_space<vmem>>, %arg11: memref<1x32xf32, #tpu.memory_space<vmem>>, %arg12: memref<32x64xbf16, #tpu.memory_space<vmem>>, %arg13: memref<1x64xf32, #tpu.memory_space<vmem>>, %arg14: memref<32x32xbf16, #tpu.memory_space<vmem>>, %arg15: memref<1x32xf32, #tpu.memory_space<vmem>>, %arg16: memref<1x32xf32, #tpu.memory_space<vmem>>, %arg17: memref<1x32xf32, #tpu.memory_space<vmem>>, %arg18: memref<32x64xbf16, #tpu.memory_space<vmem>>, %arg19: memref<1x64xf32, #tpu.memory_space<vmem>>, %arg20: memref<64x32xbf16, #tpu.memory_space<vmem>>, %arg21: memref<1x32xf32, #tpu.memory_space<vmem>>, %arg22: memref<1x32xf32, #tpu.memory_space<vmem>>, %arg23: memref<1x32xf32, #tpu.memory_space<vmem>>, %arg24: memref<1x8x32xbf16, #tpu.memory_space<vmem>>) attributes {dimension_semantics = [#tpu.dimension_semantics<parallel>], iteration_bounds = array<i64: 2>, scalar_prefetch = 0 : i64, scratch_operands = 0 : i64, tpu.core_type = #tpu.core_type<tc>, window_params = [{transform_indices = @transform_0, window_bounds = array<i64: 1, 8, 32>}, {transform_indices = @transform_1, window_bounds = array<i64: 1, 8, 32>}, {pipeline_mode = #tpu.pipeline_mode<synchronous>, transform_indices = @transform_2, window_bounds = array<i64: 1, 8, 32>}, {pipeline_mode = #tpu.pipeline_mode<synchronous>, transform_indices = @transform_3, window_bounds = array<i64: 32, 96>}, {pipeline_mode = #tpu.pipeline_mode<synchronous>, transform_indices = @transform_4, window_bounds = array<i64: 1, 96>}, {pipeline_mode = #tpu.pipeline_mode<synchronous>, transform_indices = @transform_5, window_bounds = array<i64: 32, 32>}, {pipeline_mode = #tpu.pipeline_mode<synchronous>, transform_indices = @transform_6, window_bounds = array<i64: 1, 32>}, {pipeline_mode = #tpu.pipeline_mode<synchronous>, transform_indices = @transform_7, window_bounds = array<i64: 1, 32>}, {pipeline_mode = #tpu.pipeline_mode<synchronous>, transform_indices = @transform_8, window_bounds = array<i64: 1, 32>}, {pipeline_mode = #tpu.pipeline_mode<synchronous>, transform_indices = @transform_9, window_bounds = array<i64: 32, 32>}, {pipeline_mode = #tpu.pipeline_mode<synchronous>, transform_indices = @transform_10, window_bounds = array<i64: 1, 32>}, {pipeline_mode = #tpu.pipeline_mode<synchronous>, transform_indices = @transform_11, window_bounds = array<i64: 32, 64>}, {pipeline_mode = #tpu.pipeline_mode<synchronous>, transform_indices = @transform_12, window_bounds = array<i64: 1, 64>}, {pipeline_mode = #tpu.pipeline_mode<synchronous>, transform_indices = @transform_13, window_bounds = array<i64: 32, 32>}, {pipeline_mode = #tpu.pipeline_mode<synchronous>, transform_indices = @transform_14, window_bounds = array<i64: 1, 32>}, {pipeline_mode = #tpu.pipeline_mode<synchronous>, transform_indices = @transform_15, window_bounds = array<i64: 1, 32>}, {pipeline_mode = #tpu.pipeline_mode<synchronous>, transform_indices = @transform_16, window_bounds = array<i64: 1, 32>}, {pipeline_mode = #tpu.pipeline_mode<synchronous>, transform_indices = @transform_17, window_bounds = array<i64: 32, 64>}, {pipeline_mode = #tpu.pipeline_mode<synchronous>, transform_indices = @transform_18, window_bounds = array<i64: 1, 64>}, {pipeline_mode = #tpu.pipeline_mode<synchronous>, transform_indices = @transform_19, window_bounds = array<i64: 64, 32>}, {pipeline_mode = #tpu.pipeline_mode<synchronous>, transform_indices = @transform_20, window_bounds = array<i64: 1, 32>}, {pipeline_mode = #tpu.pipeline_mode<synchronous>, transform_indices = @transform_21, window_bounds = array<i64: 1, 32>}, {pipeline_mode = #tpu.pipeline_mode<synchronous>, transform_indices = @transform_22, window_bounds = array<i64: 1, 32>}, {transform_indices = @transform_23, window_bounds = array<i64: 1, 8, 32>}]} {
    %c0 = arith.constant 0 : index
    %c0_0 = arith.constant 0 : index
    %c0_1 = arith.constant 0 : index
    %0 = vector.load %arg1[%c0, %c0_0, %c0_1] : memref<1x8x32xbf16, #tpu.memory_space<vmem>>, vector<1x8x32xbf16>
    %1 = vector.shape_cast %0 : vector<1x8x32xbf16> to vector<8x32xbf16>
    %2 = arith.extf %1 : vector<8x32xbf16> to vector<8x32xf32>
    %cst = arith.constant 2.000000e+00 : f32
    %3 = vector.broadcast %cst : f32 to vector<8x32xf32>
    %4 = arith.mulf %3, %2 : vector<8x32xf32>
    %c0_2 = arith.constant 0 : index
    %c0_3 = arith.constant 0 : index
    %c0_4 = arith.constant 0 : index
    %5 = vector.load %arg3[%c0_2, %c0_3, %c0_4] : memref<1x8x32xf32, #tpu.memory_space<vmem>>, vector<1x8x32xf32>
    %6 = vector.shape_cast %5 : vector<1x8x32xf32> to vector<8x32xf32>
    %7 = arith.addf %4, %6 : vector<8x32xf32>
    %c0_5 = arith.constant 0 : index
    %c0_6 = arith.constant 0 : index
    %c0_7 = arith.constant 0 : index
    %8 = vector.load %arg2[%c0_5, %c0_6, %c0_7] : memref<1x8x32xbf16, #tpu.memory_space<vmem>>, vector<1x8x32xbf16>
    %9 = vector.shape_cast %8 : vector<1x8x32xbf16> to vector<8x32xbf16>
    %10 = arith.extf %9 : vector<8x32xbf16> to vector<8x32xf32>
    %c0_8 = arith.constant 0 : index
    %c0_9 = arith.constant 0 : index
    %11 = vector.load %arg4[%c0_8, %c0_9] : memref<32x96xbf16, #tpu.memory_space<vmem>>, vector<32x96xbf16>
    %12 = arith.truncf %7 : vector<8x32xf32> to vector<8x32xbf16>
    %cst_10 = arith.constant dense<0.000000e+00> : vector<8x96xf32>
    %13 = tpu.matmul %12, %11, %cst_10 {dimension_numbers = #tpu.dot_dimension_numbers<[1], [0], [0], [1], [0, 0, 1, 1], [], []>} : vector<8x32xbf16>, vector<32x96xbf16>, vector<8x96xf32> -> vector<8x96xf32>
    %c0_11 = arith.constant 0 : index
    %c0_12 = arith.constant 0 : index
    %14 = vector.load %arg5[%c0_11, %c0_12] : memref<1x96xf32, #tpu.memory_space<vmem>>, vector<1x96xf32>
    %15 = vector.broadcast %14 : vector<1x96xf32> to vector<8x96xf32>
    %16 = arith.addf %13, %15 : vector<8x96xf32>
    %17 = vector.extract_strided_slice %16 {offsets = [0, 0], sizes = [8, 32], strides = [1, 1]} : vector<8x96xf32> to vector<8x32xf32>
    %18 = vector.extract_strided_slice %16 {offsets = [0, 32], sizes = [8, 32], strides = [1, 1]} : vector<8x96xf32> to vector<8x32xf32>
    %19 = vector.extract_strided_slice %16 {offsets = [0, 64], sizes = [8, 32], strides = [1, 1]} : vector<8x96xf32> to vector<8x32xf32>
    %c0_13 = arith.constant 0 : index
    %c0_14 = arith.constant 0 : index
    %20 = vector.load %arg6[%c0_13, %c0_14] : memref<32x32xbf16, #tpu.memory_space<vmem>>, vector<32x32xbf16>
    %c0_15 = arith.constant 0 : index
    %c0_16 = arith.constant 0 : index
    %21 = vector.load %arg7[%c0_15, %c0_16] : memref<1x32xf32, #tpu.memory_space<vmem>>, vector<1x32xf32>
    %22 = tpu.iota {dimensions = array<i32: 0>} : vector<8x8xi32>
    %23 = tpu.iota {dimensions = array<i32: 1>} : vector<8x8xi32>
    %24 = arith.cmpi sgt, %23, %22 : vector<8x8xi32>
    %25 = vector.extract_strided_slice %17 {offsets = [0, 0], sizes = [8, 16], strides = [1, 1]} : vector<8x32xf32> to vector<8x16xf32>
    %cst_17 = arith.constant 2.500000e-01 : f32
    %26 = vector.broadcast %cst_17 : f32 to vector<8x16xf32>
    %27 = arith.mulf %25, %26 : vector<8x16xf32>
    %28 = arith.truncf %27 : vector<8x16xf32> to vector<8x16xbf16>
    %29 = vector.extract_strided_slice %18 {offsets = [0, 0], sizes = [8, 16], strides = [1, 1]} : vector<8x32xf32> to vector<8x16xf32>
    %30 = arith.truncf %29 : vector<8x16xf32> to vector<8x16xbf16>
    %cst_18 = arith.constant dense<0.000000e+00> : vector<8x8xf32>
    %31 = tpu.matmul %28, %30, %cst_18 {dimension_numbers = #tpu.dot_dimension_numbers<[1], [1], [0], [0], [0, 0, 1, 0], [], []>} : vector<8x16xbf16>, vector<8x16xbf16>, vector<8x8xf32> -> vector<8x8xf32>
    %cst_19 = arith.constant -1.000000e+09 : f32
    %32 = vector.broadcast %cst_19 : f32 to vector<8x8xf32>
    %33 = arith.select %24, %32, %31 : vector<8x8xi1>, vector<8x8xf32>
    %cst_20 = arith.constant dense<0xFF800000> : vector<8xf32>
    %34 = vector.multi_reduction <maximumf>, %33, %cst_20 [1] : vector<8x8xf32> to vector<8xf32>
    %35 = vector.shape_cast %34 : vector<8xf32> to vector<8x1xf32>
    %36 = vector.broadcast %35 : vector<8x1xf32> to vector<8x8xf32>
    %37 = arith.subf %33, %36 : vector<8x8xf32>
    %38 = math.exp %37 : vector<8x8xf32>
    %cst_21 = arith.constant dense<0.000000e+00> : vector<8xf32>
    %39 = vector.multi_reduction <add>, %38, %cst_21 [1] : vector<8x8xf32> to vector<8xf32>
    %40 = vector.shape_cast %39 : vector<8xf32> to vector<8x1xf32>
    %41 = tpu.reciprocal %40 {approx = true} : vector<8x1xf32> -> vector<8x1xf32>
    %42 = vector.broadcast %41 : vector<8x1xf32> to vector<8x8xf32>
    %43 = arith.mulf %38, %42 : vector<8x8xf32>
    %44 = vector.extract_strided_slice %19 {offsets = [0, 0], sizes = [8, 16], strides = [1, 1]} : vector<8x32xf32> to vector<8x16xf32>
    %45 = arith.truncf %43 : vector<8x8xf32> to vector<8x8xbf16>
    %46 = arith.truncf %44 : vector<8x16xf32> to vector<8x16xbf16>
    %cst_22 = arith.constant dense<0.000000e+00> : vector<8x16xf32>
    %47 = tpu.matmul %45, %46, %cst_22 {dimension_numbers = #tpu.dot_dimension_numbers<[1], [0], [0], [1], [0, 0, 1, 1], [], []>} : vector<8x8xbf16>, vector<8x16xbf16>, vector<8x16xf32> -> vector<8x16xf32>
    %48 = vector.extract_strided_slice %20 {offsets = [0, 0], sizes = [16, 32], strides = [1, 1]} : vector<32x32xbf16> to vector<16x32xbf16>
    %49 = arith.truncf %47 : vector<8x16xf32> to vector<8x16xbf16>
    %cst_23 = arith.constant dense<0.000000e+00> : vector<8x32xf32>
    %50 = tpu.matmul %49, %48, %cst_23 {dimension_numbers = #tpu.dot_dimension_numbers<[1], [0], [0], [1], [0, 0, 1, 1], [], []>} : vector<8x16xbf16>, vector<16x32xbf16>, vector<8x32xf32> -> vector<8x32xf32>
    %51 = vector.extract_strided_slice %17 {offsets = [0, 16], sizes = [8, 16], strides = [1, 1]} : vector<8x32xf32> to vector<8x16xf32>
    %cst_24 = arith.constant 2.500000e-01 : f32
    %52 = vector.broadcast %cst_24 : f32 to vector<8x16xf32>
    %53 = arith.mulf %51, %52 : vector<8x16xf32>
    %54 = arith.truncf %53 : vector<8x16xf32> to vector<8x16xbf16>
    %55 = vector.extract_strided_slice %18 {offsets = [0, 16], sizes = [8, 16], strides = [1, 1]} : vector<8x32xf32> to vector<8x16xf32>
    %56 = arith.truncf %55 : vector<8x16xf32> to vector<8x16xbf16>
    %cst_25 = arith.constant dense<0.000000e+00> : vector<8x8xf32>
    %57 = tpu.matmul %54, %56, %cst_25 {dimension_numbers = #tpu.dot_dimension_numbers<[1], [1], [0], [0], [0, 0, 1, 0], [], []>} : vector<8x16xbf16>, vector<8x16xbf16>, vector<8x8xf32> -> vector<8x8xf32>
    %cst_26 = arith.constant -1.000000e+09 : f32
    %58 = vector.broadcast %cst_26 : f32 to vector<8x8xf32>
    %59 = arith.select %24, %58, %57 : vector<8x8xi1>, vector<8x8xf32>
    %cst_27 = arith.constant dense<0xFF800000> : vector<8xf32>
    %60 = vector.multi_reduction <maximumf>, %59, %cst_27 [1] : vector<8x8xf32> to vector<8xf32>
    %61 = vector.shape_cast %60 : vector<8xf32> to vector<8x1xf32>
    %62 = vector.broadcast %61 : vector<8x1xf32> to vector<8x8xf32>
    %63 = arith.subf %59, %62 : vector<8x8xf32>
    %64 = math.exp %63 : vector<8x8xf32>
    %cst_28 = arith.constant dense<0.000000e+00> : vector<8xf32>
    %65 = vector.multi_reduction <add>, %64, %cst_28 [1] : vector<8x8xf32> to vector<8xf32>
    %66 = vector.shape_cast %65 : vector<8xf32> to vector<8x1xf32>
    %67 = tpu.reciprocal %66 {approx = true} : vector<8x1xf32> -> vector<8x1xf32>
    %68 = vector.broadcast %67 : vector<8x1xf32> to vector<8x8xf32>
    %69 = arith.mulf %64, %68 : vector<8x8xf32>
    %70 = vector.extract_strided_slice %19 {offsets = [0, 16], sizes = [8, 16], strides = [1, 1]} : vector<8x32xf32> to vector<8x16xf32>
    %71 = arith.truncf %69 : vector<8x8xf32> to vector<8x8xbf16>
    %72 = arith.truncf %70 : vector<8x16xf32> to vector<8x16xbf16>
    %cst_29 = arith.constant dense<0.000000e+00> : vector<8x16xf32>
    %73 = tpu.matmul %71, %72, %cst_29 {dimension_numbers = #tpu.dot_dimension_numbers<[1], [0], [0], [1], [0, 0, 1, 1], [], []>} : vector<8x8xbf16>, vector<8x16xbf16>, vector<8x16xf32> -> vector<8x16xf32>
    %74 = vector.extract_strided_slice %20 {offsets = [16, 0], sizes = [16, 32], strides = [1, 1]} : vector<32x32xbf16> to vector<16x32xbf16>
    %75 = arith.truncf %73 : vector<8x16xf32> to vector<8x16xbf16>
    %cst_30 = arith.constant dense<0.000000e+00> : vector<8x32xf32>
    %76 = tpu.matmul %75, %74, %cst_30 {dimension_numbers = #tpu.dot_dimension_numbers<[1], [0], [0], [1], [0, 0, 1, 1], [], []>} : vector<8x16xbf16>, vector<16x32xbf16>, vector<8x32xf32> -> vector<8x32xf32>
    %77 = arith.addf %50, %76 : vector<8x32xf32>
    %78 = vector.broadcast %21 : vector<1x32xf32> to vector<8x32xf32>
    %79 = arith.addf %77, %78 : vector<8x32xf32>
    %80 = arith.addf %7, %79 : vector<8x32xf32>
    %c0_31 = arith.constant 0 : index
    %c0_32 = arith.constant 0 : index
    %81 = vector.load %arg8[%c0_31, %c0_32] : memref<1x32xf32, #tpu.memory_space<vmem>>, vector<1x32xf32>
    %c0_33 = arith.constant 0 : index
    %c0_34 = arith.constant 0 : index
    %82 = vector.load %arg9[%c0_33, %c0_34] : memref<1x32xf32, #tpu.memory_space<vmem>>, vector<1x32xf32>
    %cst_35 = arith.constant dense<0.000000e+00> : vector<8xf32>
    %83 = vector.multi_reduction <add>, %80, %cst_35 [1] : vector<8x32xf32> to vector<8xf32>
    %84 = vector.shape_cast %83 : vector<8xf32> to vector<8x1xf32>
    %cst_36 = arith.constant 3.200000e+01 : f32
    %85 = vector.broadcast %cst_36 : f32 to vector<8x1xf32>
    %86 = arith.divf %84, %85 : vector<8x1xf32>
    %87 = vector.broadcast %86 : vector<8x1xf32> to vector<8x32xf32>
    %88 = arith.subf %80, %87 : vector<8x32xf32>
    %89 = arith.mulf %88, %88 : vector<8x32xf32>
    %cst_37 = arith.constant dense<0.000000e+00> : vector<8xf32>
    %90 = vector.multi_reduction <add>, %89, %cst_37 [1] : vector<8x32xf32> to vector<8xf32>
    %91 = vector.shape_cast %90 : vector<8xf32> to vector<8x1xf32>
    %cst_38 = arith.constant 3.200000e+01 : f32
    %92 = vector.broadcast %cst_38 : f32 to vector<8x1xf32>
    %93 = arith.divf %91, %92 : vector<8x1xf32>
    %94 = vector.broadcast %86 : vector<8x1xf32> to vector<8x32xf32>
    %95 = arith.subf %80, %94 : vector<8x32xf32>
    %cst_39 = arith.constant 9.99999974E-6 : f32
    %96 = vector.broadcast %cst_39 : f32 to vector<8x1xf32>
    %97 = arith.addf %93, %96 : vector<8x1xf32>
    %98 = math.rsqrt %97 : vector<8x1xf32>
    %99 = vector.broadcast %98 : vector<8x1xf32> to vector<8x32xf32>
    %100 = arith.mulf %95, %99 : vector<8x32xf32>
    %101 = vector.broadcast %81 : vector<1x32xf32> to vector<8x32xf32>
    %102 = arith.mulf %100, %101 : vector<8x32xf32>
    %103 = vector.broadcast %82 : vector<1x32xf32> to vector<8x32xf32>
    %104 = arith.addf %102, %103 : vector<8x32xf32>
    %c0_40 = arith.constant 0 : index
    %c0_41 = arith.constant 0 : index
    %105 = vector.load %arg10[%c0_40, %c0_41] : memref<32x32xbf16, #tpu.memory_space<vmem>>, vector<32x32xbf16>
    %106 = arith.truncf %104 : vector<8x32xf32> to vector<8x32xbf16>
    %cst_42 = arith.constant dense<0.000000e+00> : vector<8x32xf32>
    %107 = tpu.matmul %106, %105, %cst_42 {dimension_numbers = #tpu.dot_dimension_numbers<[1], [0], [0], [1], [0, 0, 1, 1], [], []>} : vector<8x32xbf16>, vector<32x32xbf16>, vector<8x32xf32> -> vector<8x32xf32>
    %c0_43 = arith.constant 0 : index
    %c0_44 = arith.constant 0 : index
    %108 = vector.load %arg11[%c0_43, %c0_44] : memref<1x32xf32, #tpu.memory_space<vmem>>, vector<1x32xf32>
    %109 = vector.broadcast %108 : vector<1x32xf32> to vector<8x32xf32>
    %110 = arith.addf %107, %109 : vector<8x32xf32>
    %c0_45 = arith.constant 0 : index
    %c0_46 = arith.constant 0 : index
    %111 = vector.load %arg12[%c0_45, %c0_46] : memref<32x64xbf16, #tpu.memory_space<vmem>>, vector<32x64xbf16>
    %112 = arith.truncf %10 : vector<8x32xf32> to vector<8x32xbf16>
    %cst_47 = arith.constant dense<0.000000e+00> : vector<8x64xf32>
    %113 = tpu.matmul %112, %111, %cst_47 {dimension_numbers = #tpu.dot_dimension_numbers<[1], [0], [0], [1], [0, 0, 1, 1], [], []>} : vector<8x32xbf16>, vector<32x64xbf16>, vector<8x64xf32> -> vector<8x64xf32>
    %c0_48 = arith.constant 0 : index
    %c0_49 = arith.constant 0 : index
    %114 = vector.load %arg13[%c0_48, %c0_49] : memref<1x64xf32, #tpu.memory_space<vmem>>, vector<1x64xf32>
    %115 = vector.broadcast %114 : vector<1x64xf32> to vector<8x64xf32>
    %116 = arith.addf %113, %115 : vector<8x64xf32>
    %117 = vector.extract_strided_slice %116 {offsets = [0, 0], sizes = [8, 32], strides = [1, 1]} : vector<8x64xf32> to vector<8x32xf32>
    %118 = vector.extract_strided_slice %116 {offsets = [0, 32], sizes = [8, 32], strides = [1, 1]} : vector<8x64xf32> to vector<8x32xf32>
    %c0_50 = arith.constant 0 : index
    %c0_51 = arith.constant 0 : index
    %119 = vector.load %arg14[%c0_50, %c0_51] : memref<32x32xbf16, #tpu.memory_space<vmem>>, vector<32x32xbf16>
    %c0_52 = arith.constant 0 : index
    %c0_53 = arith.constant 0 : index
    %120 = vector.load %arg15[%c0_52, %c0_53] : memref<1x32xf32, #tpu.memory_space<vmem>>, vector<1x32xf32>
    %121 = vector.extract_strided_slice %110 {offsets = [0, 0], sizes = [8, 16], strides = [1, 1]} : vector<8x32xf32> to vector<8x16xf32>
    %cst_54 = arith.constant 2.500000e-01 : f32
    %122 = vector.broadcast %cst_54 : f32 to vector<8x16xf32>
    %123 = arith.mulf %121, %122 : vector<8x16xf32>
    %124 = arith.truncf %123 : vector<8x16xf32> to vector<8x16xbf16>
    %125 = vector.extract_strided_slice %117 {offsets = [0, 0], sizes = [8, 16], strides = [1, 1]} : vector<8x32xf32> to vector<8x16xf32>
    %126 = arith.truncf %125 : vector<8x16xf32> to vector<8x16xbf16>
    %cst_55 = arith.constant dense<0.000000e+00> : vector<8x8xf32>
    %127 = tpu.matmul %124, %126, %cst_55 {dimension_numbers = #tpu.dot_dimension_numbers<[1], [1], [0], [0], [0, 0, 1, 0], [], []>} : vector<8x16xbf16>, vector<8x16xbf16>, vector<8x8xf32> -> vector<8x8xf32>
    %cst_56 = arith.constant dense<0xFF800000> : vector<8xf32>
    %128 = vector.multi_reduction <maximumf>, %127, %cst_56 [1] : vector<8x8xf32> to vector<8xf32>
    %129 = vector.shape_cast %128 : vector<8xf32> to vector<8x1xf32>
    %130 = vector.broadcast %129 : vector<8x1xf32> to vector<8x8xf32>
    %131 = arith.subf %127, %130 : vector<8x8xf32>
    %132 = math.exp %131 : vector<8x8xf32>
    %cst_57 = arith.constant dense<0.000000e+00> : vector<8xf32>
    %133 = vector.multi_reduction <add>, %132, %cst_57 [1] : vector<8x8xf32> to vector<8xf32>
    %134 = vector.shape_cast %133 : vector<8xf32> to vector<8x1xf32>
    %135 = tpu.reciprocal %134 {approx = true} : vector<8x1xf32> -> vector<8x1xf32>
    %136 = vector.broadcast %135 : vector<8x1xf32> to vector<8x8xf32>
    %137 = arith.mulf %132, %136 : vector<8x8xf32>
    %138 = vector.extract_strided_slice %118 {offsets = [0, 0], sizes = [8, 16], strides = [1, 1]} : vector<8x32xf32> to vector<8x16xf32>
    %139 = arith.truncf %137 : vector<8x8xf32> to vector<8x8xbf16>
    %140 = arith.truncf %138 : vector<8x16xf32> to vector<8x16xbf16>
    %cst_58 = arith.constant dense<0.000000e+00> : vector<8x16xf32>
    %141 = tpu.matmul %139, %140, %cst_58 {dimension_numbers = #tpu.dot_dimension_numbers<[1], [0], [0], [1], [0, 0, 1, 1], [], []>} : vector<8x8xbf16>, vector<8x16xbf16>, vector<8x16xf32> -> vector<8x16xf32>
    %142 = vector.extract_strided_slice %119 {offsets = [0, 0], sizes = [16, 32], strides = [1, 1]} : vector<32x32xbf16> to vector<16x32xbf16>
    %143 = arith.truncf %141 : vector<8x16xf32> to vector<8x16xbf16>
    %cst_59 = arith.constant dense<0.000000e+00> : vector<8x32xf32>
    %144 = tpu.matmul %143, %142, %cst_59 {dimension_numbers = #tpu.dot_dimension_numbers<[1], [0], [0], [1], [0, 0, 1, 1], [], []>} : vector<8x16xbf16>, vector<16x32xbf16>, vector<8x32xf32> -> vector<8x32xf32>
    %145 = vector.extract_strided_slice %110 {offsets = [0, 16], sizes = [8, 16], strides = [1, 1]} : vector<8x32xf32> to vector<8x16xf32>
    %cst_60 = arith.constant 2.500000e-01 : f32
    %146 = vector.broadcast %cst_60 : f32 to vector<8x16xf32>
    %147 = arith.mulf %145, %146 : vector<8x16xf32>
    %148 = arith.truncf %147 : vector<8x16xf32> to vector<8x16xbf16>
    %149 = vector.extract_strided_slice %117 {offsets = [0, 16], sizes = [8, 16], strides = [1, 1]} : vector<8x32xf32> to vector<8x16xf32>
    %150 = arith.truncf %149 : vector<8x16xf32> to vector<8x16xbf16>
    %cst_61 = arith.constant dense<0.000000e+00> : vector<8x8xf32>
    %151 = tpu.matmul %148, %150, %cst_61 {dimension_numbers = #tpu.dot_dimension_numbers<[1], [1], [0], [0], [0, 0, 1, 0], [], []>} : vector<8x16xbf16>, vector<8x16xbf16>, vector<8x8xf32> -> vector<8x8xf32>
    %cst_62 = arith.constant dense<0xFF800000> : vector<8xf32>
    %152 = vector.multi_reduction <maximumf>, %151, %cst_62 [1] : vector<8x8xf32> to vector<8xf32>
    %153 = vector.shape_cast %152 : vector<8xf32> to vector<8x1xf32>
    %154 = vector.broadcast %153 : vector<8x1xf32> to vector<8x8xf32>
    %155 = arith.subf %151, %154 : vector<8x8xf32>
    %156 = math.exp %155 : vector<8x8xf32>
    %cst_63 = arith.constant dense<0.000000e+00> : vector<8xf32>
    %157 = vector.multi_reduction <add>, %156, %cst_63 [1] : vector<8x8xf32> to vector<8xf32>
    %158 = vector.shape_cast %157 : vector<8xf32> to vector<8x1xf32>
    %159 = tpu.reciprocal %158 {approx = true} : vector<8x1xf32> -> vector<8x1xf32>
    %160 = vector.broadcast %159 : vector<8x1xf32> to vector<8x8xf32>
    %161 = arith.mulf %156, %160 : vector<8x8xf32>
    %162 = vector.extract_strided_slice %118 {offsets = [0, 16], sizes = [8, 16], strides = [1, 1]} : vector<8x32xf32> to vector<8x16xf32>
    %163 = arith.truncf %161 : vector<8x8xf32> to vector<8x8xbf16>
    %164 = arith.truncf %162 : vector<8x16xf32> to vector<8x16xbf16>
    %cst_64 = arith.constant dense<0.000000e+00> : vector<8x16xf32>
    %165 = tpu.matmul %163, %164, %cst_64 {dimension_numbers = #tpu.dot_dimension_numbers<[1], [0], [0], [1], [0, 0, 1, 1], [], []>} : vector<8x8xbf16>, vector<8x16xbf16>, vector<8x16xf32> -> vector<8x16xf32>
    %166 = vector.extract_strided_slice %119 {offsets = [16, 0], sizes = [16, 32], strides = [1, 1]} : vector<32x32xbf16> to vector<16x32xbf16>
    %167 = arith.truncf %165 : vector<8x16xf32> to vector<8x16xbf16>
    %cst_65 = arith.constant dense<0.000000e+00> : vector<8x32xf32>
    %168 = tpu.matmul %167, %166, %cst_65 {dimension_numbers = #tpu.dot_dimension_numbers<[1], [0], [0], [1], [0, 0, 1, 1], [], []>} : vector<8x16xbf16>, vector<16x32xbf16>, vector<8x32xf32> -> vector<8x32xf32>
    %169 = arith.addf %144, %168 : vector<8x32xf32>
    %170 = vector.broadcast %120 : vector<1x32xf32> to vector<8x32xf32>
    %171 = arith.addf %169, %170 : vector<8x32xf32>
    %172 = arith.addf %104, %171 : vector<8x32xf32>
    %c0_66 = arith.constant 0 : index
    %c0_67 = arith.constant 0 : index
    %173 = vector.load %arg16[%c0_66, %c0_67] : memref<1x32xf32, #tpu.memory_space<vmem>>, vector<1x32xf32>
    %c0_68 = arith.constant 0 : index
    %c0_69 = arith.constant 0 : index
    %174 = vector.load %arg17[%c0_68, %c0_69] : memref<1x32xf32, #tpu.memory_space<vmem>>, vector<1x32xf32>
    %cst_70 = arith.constant dense<0.000000e+00> : vector<8xf32>
    %175 = vector.multi_reduction <add>, %172, %cst_70 [1] : vector<8x32xf32> to vector<8xf32>
    %176 = vector.shape_cast %175 : vector<8xf32> to vector<8x1xf32>
    %cst_71 = arith.constant 3.200000e+01 : f32
    %177 = vector.broadcast %cst_71 : f32 to vector<8x1xf32>
    %178 = arith.divf %176, %177 : vector<8x1xf32>
    %179 = vector.broadcast %178 : vector<8x1xf32> to vector<8x32xf32>
    %180 = arith.subf %172, %179 : vector<8x32xf32>
    %181 = arith.mulf %180, %180 : vector<8x32xf32>
    %cst_72 = arith.constant dense<0.000000e+00> : vector<8xf32>
    %182 = vector.multi_reduction <add>, %181, %cst_72 [1] : vector<8x32xf32> to vector<8xf32>
    %183 = vector.shape_cast %182 : vector<8xf32> to vector<8x1xf32>
    %cst_73 = arith.constant 3.200000e+01 : f32
    %184 = vector.broadcast %cst_73 : f32 to vector<8x1xf32>
    %185 = arith.divf %183, %184 : vector<8x1xf32>
    %186 = vector.broadcast %178 : vector<8x1xf32> to vector<8x32xf32>
    %187 = arith.subf %172, %186 : vector<8x32xf32>
    %cst_74 = arith.constant 9.99999974E-6 : f32
    %188 = vector.broadcast %cst_74 : f32 to vector<8x1xf32>
    %189 = arith.addf %185, %188 : vector<8x1xf32>
    %190 = math.rsqrt %189 : vector<8x1xf32>
    %191 = vector.broadcast %190 : vector<8x1xf32> to vector<8x32xf32>
    %192 = arith.mulf %187, %191 : vector<8x32xf32>
    %193 = vector.broadcast %173 : vector<1x32xf32> to vector<8x32xf32>
    %194 = arith.mulf %192, %193 : vector<8x32xf32>
    %195 = vector.broadcast %174 : vector<1x32xf32> to vector<8x32xf32>
    %196 = arith.addf %194, %195 : vector<8x32xf32>
    %c0_75 = arith.constant 0 : index
    %c0_76 = arith.constant 0 : index
    %197 = vector.load %arg18[%c0_75, %c0_76] : memref<32x64xbf16, #tpu.memory_space<vmem>>, vector<32x64xbf16>
    %198 = arith.truncf %196 : vector<8x32xf32> to vector<8x32xbf16>
    %cst_77 = arith.constant dense<0.000000e+00> : vector<8x64xf32>
    %199 = tpu.matmul %198, %197, %cst_77 {dimension_numbers = #tpu.dot_dimension_numbers<[1], [0], [0], [1], [0, 0, 1, 1], [], []>} : vector<8x32xbf16>, vector<32x64xbf16>, vector<8x64xf32> -> vector<8x64xf32>
    %c0_78 = arith.constant 0 : index
    %c0_79 = arith.constant 0 : index
    %200 = vector.load %arg19[%c0_78, %c0_79] : memref<1x64xf32, #tpu.memory_space<vmem>>, vector<1x64xf32>
    %201 = vector.broadcast %200 : vector<1x64xf32> to vector<8x64xf32>
    %202 = arith.addf %199, %201 : vector<8x64xf32>
    %cst_80 = arith.constant 0.000000e+00 : f32
    %203 = vector.broadcast %cst_80 : f32 to vector<8x64xf32>
    %204 = arith.maximumf %202, %203 : vector<8x64xf32>
    %c0_81 = arith.constant 0 : index
    %c0_82 = arith.constant 0 : index
    %205 = vector.load %arg20[%c0_81, %c0_82] : memref<64x32xbf16, #tpu.memory_space<vmem>>, vector<64x32xbf16>
    %206 = arith.truncf %204 : vector<8x64xf32> to vector<8x64xbf16>
    %cst_83 = arith.constant dense<0.000000e+00> : vector<8x32xf32>
    %207 = tpu.matmul %206, %205, %cst_83 {dimension_numbers = #tpu.dot_dimension_numbers<[1], [0], [0], [1], [0, 0, 1, 1], [], []>} : vector<8x64xbf16>, vector<64x32xbf16>, vector<8x32xf32> -> vector<8x32xf32>
    %c0_84 = arith.constant 0 : index
    %c0_85 = arith.constant 0 : index
    %208 = vector.load %arg21[%c0_84, %c0_85] : memref<1x32xf32, #tpu.memory_space<vmem>>, vector<1x32xf32>
    %209 = vector.broadcast %208 : vector<1x32xf32> to vector<8x32xf32>
    %210 = arith.addf %207, %209 : vector<8x32xf32>
    %211 = arith.addf %196, %210 : vector<8x32xf32>
    %c0_86 = arith.constant 0 : index
    %c0_87 = arith.constant 0 : index
    %212 = vector.load %arg22[%c0_86, %c0_87] : memref<1x32xf32, #tpu.memory_space<vmem>>, vector<1x32xf32>
    %c0_88 = arith.constant 0 : index
    %c0_89 = arith.constant 0 : index
    %213 = vector.load %arg23[%c0_88, %c0_89] : memref<1x32xf32, #tpu.memory_space<vmem>>, vector<1x32xf32>
    %cst_90 = arith.constant dense<0.000000e+00> : vector<8xf32>
    %214 = vector.multi_reduction <add>, %211, %cst_90 [1] : vector<8x32xf32> to vector<8xf32>
    %215 = vector.shape_cast %214 : vector<8xf32> to vector<8x1xf32>
    %cst_91 = arith.constant 3.200000e+01 : f32
    %216 = vector.broadcast %cst_91 : f32 to vector<8x1xf32>
    %217 = arith.divf %215, %216 : vector<8x1xf32>
    %218 = vector.broadcast %217 : vector<8x1xf32> to vector<8x32xf32>
    %219 = arith.subf %211, %218 : vector<8x32xf32>
    %220 = arith.mulf %219, %219 : vector<8x32xf32>
    %cst_92 = arith.constant dense<0.000000e+00> : vector<8xf32>
    %221 = vector.multi_reduction <add>, %220, %cst_92 [1] : vector<8x32xf32> to vector<8xf32>
    %222 = vector.shape_cast %221 : vector<8xf32> to vector<8x1xf32>
    %cst_93 = arith.constant 3.200000e+01 : f32
    %223 = vector.broadcast %cst_93 : f32 to vector<8x1xf32>
    %224 = arith.divf %222, %223 : vector<8x1xf32>
    %225 = vector.broadcast %217 : vector<8x1xf32> to vector<8x32xf32>
    %226 = arith.subf %211, %225 : vector<8x32xf32>
    %cst_94 = arith.constant 9.99999974E-6 : f32
    %227 = vector.broadcast %cst_94 : f32 to vector<8x1xf32>
    %228 = arith.addf %224, %227 : vector<8x1xf32>
    %229 = math.rsqrt %228 : vector<8x1xf32>
    %230 = vector.broadcast %229 : vector<8x1xf32> to vector<8x32xf32>
    %231 = arith.mulf %226, %230 : vector<8x32xf32>
    %232 = vector.broadcast %212 : vector<1x32xf32> to vector<8x32xf32>
    %233 = arith.mulf %231, %232 : vector<8x32xf32>
    %234 = vector.broadcast %213 : vector<1x32xf32> to vector<8x32xf32>
    %235 = arith.addf %233, %234 : vector<8x32xf32>
    %236 = arith.truncf %235 : vector<8x32xf32> to vector<8x32xbf16>
    %c0_95 = arith.constant 0 : index
    %c0_96 = arith.constant 0 : index
    %c0_97 = arith.constant 0 : index
    %237 = vector.load %arg24[%c0_95, %c0_96, %c0_97] : memref<1x8x32xbf16, #tpu.memory_space<vmem>>, vector<1x8x32xbf16>
    %238 = vector.shape_cast %237 : vector<1x8x32xbf16> to vector<8x32xbf16>
    %239 = vector.shape_cast %236 : vector<8x32xbf16> to vector<1x8x32xbf16>
    tpu.vector_store %arg24[%c0_95, %c0_96, %c0_97], %239 {strides = array<i32>} : memref<1x8x32xbf16, #tpu.memory_space<vmem>>, vector<1x8x32xbf16>,
    return
  }
  func.func @transform_0(%arg0: i32) -> (i32, i32, i32) {
    %c0_i32 = arith.constant 0 : i32
    %c0_i32_0 = arith.constant 0 : i32
    %c0_i32_1 = arith.constant 0 : i32
    return %arg0, %c0_i32, %c0_i32_0 : i32, i32, i32
  }
  func.func @transform_1(%arg0: i32) -> (i32, i32, i32) {
    %c0_i32 = arith.constant 0 : i32
    %c0_i32_0 = arith.constant 0 : i32
    %c0_i32_1 = arith.constant 0 : i32
    return %arg0, %c0_i32, %c0_i32_0 : i32, i32, i32
  }
  func.func @transform_2(%arg0: i32) -> (i32, i32, i32) {
    %c0_i32 = arith.constant 0 : i32
    %c0_i32_0 = arith.constant 0 : i32
    %c0_i32_1 = arith.constant 0 : i32
    %c0_i32_2 = arith.constant 0 : i32
    return %c0_i32, %c0_i32_0, %c0_i32_1 : i32, i32, i32
  }
  func.func @transform_3(%arg0: i32) -> (i32, i32) {
    %c0_i32 = arith.constant 0 : i32
    %c0_i32_0 = arith.constant 0 : i32
    %c0_i32_1 = arith.constant 0 : i32
    return %c0_i32, %c0_i32_0 : i32, i32
  }
  func.func @transform_4(%arg0: i32) -> (i32, i32) {
    %c0_i32 = arith.constant 0 : i32
    %c0_i32_0 = arith.constant 0 : i32
    %c0_i32_1 = arith.constant 0 : i32
    return %c0_i32, %c0_i32_0 : i32, i32
  }
  func.func @transform_5(%arg0: i32) -> (i32, i32) {
    %c0_i32 = arith.constant 0 : i32
    %c0_i32_0 = arith.constant 0 : i32
    %c0_i32_1 = arith.constant 0 : i32
    return %c0_i32, %c0_i32_0 : i32, i32
  }
  func.func @transform_6(%arg0: i32) -> (i32, i32) {
    %c0_i32 = arith.constant 0 : i32
    %c0_i32_0 = arith.constant 0 : i32
    %c0_i32_1 = arith.constant 0 : i32
    return %c0_i32, %c0_i32_0 : i32, i32
  }
  func.func @transform_7(%arg0: i32) -> (i32, i32) {
    %c0_i32 = arith.constant 0 : i32
    %c0_i32_0 = arith.constant 0 : i32
    %c0_i32_1 = arith.constant 0 : i32
    return %c0_i32, %c0_i32_0 : i32, i32
  }
  func.func @transform_8(%arg0: i32) -> (i32, i32) {
    %c0_i32 = arith.constant 0 : i32
    %c0_i32_0 = arith.constant 0 : i32
    %c0_i32_1 = arith.constant 0 : i32
    return %c0_i32, %c0_i32_0 : i32, i32
  }
  func.func @transform_9(%arg0: i32) -> (i32, i32) {
    %c0_i32 = arith.constant 0 : i32
    %c0_i32_0 = arith.constant 0 : i32
    %c0_i32_1 = arith.constant 0 : i32
    return %c0_i32, %c0_i32_0 : i32, i32
  }
  func.func @transform_10(%arg0: i32) -> (i32, i32) {
    %c0_i32 = arith.constant 0 : i32
    %c0_i32_0 = arith.constant 0 : i32
    %c0_i32_1 = arith.constant 0 : i32
    return %c0_i32, %c0_i32_0 : i32, i32
  }
  func.func @transform_11(%arg0: i32) -> (i32, i32) {
    %c0_i32 = arith.constant 0 : i32
    %c0_i32_0 = arith.constant 0 : i32
    %c0_i32_1 = arith.constant 0 : i32
    return %c0_i32, %c0_i32_0 : i32, i32
  }
  func.func @transform_12(%arg0: i32) -> (i32, i32) {
    %c0_i32 = arith.constant 0 : i32
    %c0_i32_0 = arith.constant 0 : i32
    %c0_i32_1 = arith.constant 0 : i32
    return %c0_i32, %c0_i32_0 : i32, i32
  }
  func.func @transform_13(%arg0: i32) -> (i32, i32) {
    %c0_i32 = arith.constant 0 : i32
    %c0_i32_0 = arith.constant 0 : i32
    %c0_i32_1 = arith.constant 0 : i32
    return %c0_i32, %c0_i32_0 : i32, i32
  }
  func.func @transform_14(%arg0: i32) -> (i32, i32) {
    %c0_i32 = arith.constant 0 : i32
    %c0_i32_0 = arith.constant 0 : i32
    %c0_i32_1 = arith.constant 0 : i32
    return %c0_i32, %c0_i32_0 : i32, i32
  }
  func.func @transform_15(%arg0: i32) -> (i32, i32) {
    %c0_i32 = arith.constant 0 : i32
    %c0_i32_0 = arith.constant 0 : i32
    %c0_i32_1 = arith.constant 0 : i32
    return %c0_i32, %c0_i32_0 : i32, i32
  }
  func.func @transform_16(%arg0: i32) -> (i32, i32) {
    %c0_i32 = arith.constant 0 : i32
    %c0_i32_0 = arith.constant 0 : i32
    %c0_i32_1 = arith.constant 0 : i32
    return %c0_i32, %c0_i32_0 : i32, i32
  }
  func.func @transform_17(%arg0: i32) -> (i32, i32) {
    %c0_i32 = arith.constant 0 : i32
    %c0_i32_0 = arith.constant 0 : i32
    %c0_i32_1 = arith.constant 0 : i32
    return %c0_i32, %c0_i32_0 : i32, i32
  }
  func.func @transform_18(%arg0: i32) -> (i32, i32) {
    %c0_i32 = arith.constant 0 : i32
    %c0_i32_0 = arith.constant 0 : i32
    %c0_i32_1 = arith.constant 0 : i32
    return %c0_i32, %c0_i32_0 : i32, i32
  }
  func.func @transform_19(%arg0: i32) -> (i32, i32) {
    %c0_i32 = arith.constant 0 : i32
    %c0_i32_0 = arith.constant 0 : i32
    %c0_i32_1 = arith.constant 0 : i32
    return %c0_i32, %c0_i32_0 : i32, i32
  }
  func.func @transform_20(%arg0: i32) -> (i32, i32) {
    %c0_i32 = arith.constant 0 : i32
    %c0_i32_0 = arith.constant 0 : i32
    %c0_i32_1 = arith.constant 0 : i32
    return %c0_i32, %c0_i32_0 : i32, i32
  }
  func.func @transform_21(%arg0: i32) -> (i32, i32) {
    %c0_i32 = arith.constant 0 : i32
    %c0_i32_0 = arith.constant 0 : i32
    %c0_i32_1 = arith.constant 0 : i32
    return %c0_i32, %c0_i32_0 : i32, i32
  }
  func.func @transform_22(%arg0: i32) -> (i32, i32) {
    %c0_i32 = arith.constant 0 : i32
    %c0_i32_0 = arith.constant 0 : i32
    %c0_i32_1 = arith.constant 0 : i32
    return %c0_i32, %c0_i32_0 : i32, i32
  }
  func.func @transform_23(%arg0: i32) -> (i32, i32, i32) {
    %c0_i32 = arith.constant 0 : i32
    %c0_i32_0 = arith.constant 0 : i32
    %c0_i32_1 = arith.constant 0 : i32
    return %arg0, %c0_i32, %c0_i32_0 : i32, i32, i32
  }
}

module attributes {stable_mosaic.version = 11 : i64} {
  func.func @_decoder_layer_kernel(%arg0: i32, %arg1: memref<1x8x32xbf16, #tpu.memory_space<vmem>>, %arg2: memref<1x8x32xbf16, #tpu.memory_space<vmem>>, %arg3: memref<32x96xbf16, #tpu.memory_space<vmem>>, %arg4: memref<1x96xf32, #tpu.memory_space<vmem>>, %arg5: memref<32x32xbf16, #tpu.memory_space<vmem>>, %arg6: memref<1x32xf32, #tpu.memory_space<vmem>>, %arg7: memref<1x32xf32, #tpu.memory_space<vmem>>, %arg8: memref<1x32xf32, #tpu.memory_space<vmem>>, %arg9: memref<32x32xbf16, #tpu.memory_space<vmem>>, %arg10: memref<1x32xf32, #tpu.memory_space<vmem>>, %arg11: memref<32x64xbf16, #tpu.memory_space<vmem>>, %arg12: memref<1x64xf32, #tpu.memory_space<vmem>>, %arg13: memref<32x32xbf16, #tpu.memory_space<vmem>>, %arg14: memref<1x32xf32, #tpu.memory_space<vmem>>, %arg15: memref<1x32xf32, #tpu.memory_space<vmem>>, %arg16: memref<1x32xf32, #tpu.memory_space<vmem>>, %arg17: memref<32x64xbf16, #tpu.memory_space<vmem>>, %arg18: memref<1x64xf32, #tpu.memory_space<vmem>>, %arg19: memref<64x32xbf16, #tpu.memory_space<vmem>>, %arg20: memref<1x32xf32, #tpu.memory_space<vmem>>, %arg21: memref<1x32xf32, #tpu.memory_space<vmem>>, %arg22: memref<1x32xf32, #tpu.memory_space<vmem>>, %arg23: memref<1x32xf32, #tpu.memory_space<vmem>>, %arg24: memref<1x32xf32, #tpu.memory_space<vmem>>, %arg25: memref<1x8x32xbf16, #tpu.memory_space<vmem>>) attributes {dimension_semantics = [#tpu.dimension_semantics<parallel>], iteration_bounds = array<i64: 2>, scalar_prefetch = 0 : i64, scratch_operands = 0 : i64, tpu.core_type = #tpu.core_type<tc>, window_params = [{transform_indices = @transform_0, window_bounds = array<i64: 1, 8, 32>}, {transform_indices = @transform_1, window_bounds = array<i64: 1, 8, 32>}, {pipeline_mode = #tpu.pipeline_mode<synchronous>, transform_indices = @transform_2, window_bounds = array<i64: 32, 96>}, {pipeline_mode = #tpu.pipeline_mode<synchronous>, transform_indices = @transform_3, window_bounds = array<i64: 1, 96>}, {pipeline_mode = #tpu.pipeline_mode<synchronous>, transform_indices = @transform_4, window_bounds = array<i64: 32, 32>}, {pipeline_mode = #tpu.pipeline_mode<synchronous>, transform_indices = @transform_5, window_bounds = array<i64: 1, 32>}, {pipeline_mode = #tpu.pipeline_mode<synchronous>, transform_indices = @transform_6, window_bounds = array<i64: 1, 32>}, {pipeline_mode = #tpu.pipeline_mode<synchronous>, transform_indices = @transform_7, window_bounds = array<i64: 1, 32>}, {pipeline_mode = #tpu.pipeline_mode<synchronous>, transform_indices = @transform_8, window_bounds = array<i64: 32, 32>}, {pipeline_mode = #tpu.pipeline_mode<synchronous>, transform_indices = @transform_9, window_bounds = array<i64: 1, 32>}, {pipeline_mode = #tpu.pipeline_mode<synchronous>, transform_indices = @transform_10, window_bounds = array<i64: 32, 64>}, {pipeline_mode = #tpu.pipeline_mode<synchronous>, transform_indices = @transform_11, window_bounds = array<i64: 1, 64>}, {pipeline_mode = #tpu.pipeline_mode<synchronous>, transform_indices = @transform_12, window_bounds = array<i64: 32, 32>}, {pipeline_mode = #tpu.pipeline_mode<synchronous>, transform_indices = @transform_13, window_bounds = array<i64: 1, 32>}, {pipeline_mode = #tpu.pipeline_mode<synchronous>, transform_indices = @transform_14, window_bounds = array<i64: 1, 32>}, {pipeline_mode = #tpu.pipeline_mode<synchronous>, transform_indices = @transform_15, window_bounds = array<i64: 1, 32>}, {pipeline_mode = #tpu.pipeline_mode<synchronous>, transform_indices = @transform_16, window_bounds = array<i64: 32, 64>}, {pipeline_mode = #tpu.pipeline_mode<synchronous>, transform_indices = @transform_17, window_bounds = array<i64: 1, 64>}, {pipeline_mode = #tpu.pipeline_mode<synchronous>, transform_indices = @transform_18, window_bounds = array<i64: 64, 32>}, {pipeline_mode = #tpu.pipeline_mode<synchronous>, transform_indices = @transform_19, window_bounds = array<i64: 1, 32>}, {pipeline_mode = #tpu.pipeline_mode<synchronous>, transform_indices = @transform_20, window_bounds = array<i64: 1, 32>}, {pipeline_mode = #tpu.pipeline_mode<synchronous>, transform_indices = @transform_21, window_bounds = array<i64: 1, 32>}, {pipeline_mode = #tpu.pipeline_mode<synchronous>, transform_indices = @transform_22, window_bounds = array<i64: 1, 32>}, {pipeline_mode = #tpu.pipeline_mode<synchronous>, transform_indices = @transform_23, window_bounds = array<i64: 1, 32>}, {transform_indices = @transform_24, window_bounds = array<i64: 1, 8, 32>}]} {
    %c0 = arith.constant 0 : index
    %c0_0 = arith.constant 0 : index
    %c0_1 = arith.constant 0 : index
    %0 = vector.load %arg1[%c0, %c0_0, %c0_1] : memref<1x8x32xbf16, #tpu.memory_space<vmem>>, vector<1x8x32xbf16>
    %1 = vector.shape_cast %0 : vector<1x8x32xbf16> to vector<8x32xbf16>
    %2 = arith.extf %1 : vector<8x32xbf16> to vector<8x32xf32>
    %c0_2 = arith.constant 0 : index
    %c0_3 = arith.constant 0 : index
    %c0_4 = arith.constant 0 : index
    %3 = vector.load %arg2[%c0_2, %c0_3, %c0_4] : memref<1x8x32xbf16, #tpu.memory_space<vmem>>, vector<1x8x32xbf16>
    %4 = vector.shape_cast %3 : vector<1x8x32xbf16> to vector<8x32xbf16>
    %5 = arith.extf %4 : vector<8x32xbf16> to vector<8x32xf32>
    %c0_5 = arith.constant 0 : index
    %c0_6 = arith.constant 0 : index
    %6 = vector.load %arg3[%c0_5, %c0_6] : memref<32x96xbf16, #tpu.memory_space<vmem>>, vector<32x96xbf16>
    %7 = arith.truncf %2 : vector<8x32xf32> to vector<8x32xbf16>
    %cst = arith.constant dense<0.000000e+00> : vector<8x96xf32>
    %8 = tpu.matmul %7, %6, %cst {dimension_numbers = #tpu.dot_dimension_numbers<[1], [0], [0], [1], [0, 0, 1, 1], [], []>} : vector<8x32xbf16>, vector<32x96xbf16>, vector<8x96xf32> -> vector<8x96xf32>
    %c0_7 = arith.constant 0 : index
    %c0_8 = arith.constant 0 : index
    %9 = vector.load %arg4[%c0_7, %c0_8] : memref<1x96xf32, #tpu.memory_space<vmem>>, vector<1x96xf32>
    %10 = vector.broadcast %9 : vector<1x96xf32> to vector<8x96xf32>
    %11 = arith.addf %8, %10 : vector<8x96xf32>
    %12 = vector.extract_strided_slice %11 {offsets = [0, 0], sizes = [8, 32], strides = [1, 1]} : vector<8x96xf32> to vector<8x32xf32>
    %13 = vector.extract_strided_slice %11 {offsets = [0, 32], sizes = [8, 32], strides = [1, 1]} : vector<8x96xf32> to vector<8x32xf32>
    %14 = vector.extract_strided_slice %11 {offsets = [0, 64], sizes = [8, 32], strides = [1, 1]} : vector<8x96xf32> to vector<8x32xf32>
    %c0_9 = arith.constant 0 : index
    %c0_10 = arith.constant 0 : index
    %15 = vector.load %arg5[%c0_9, %c0_10] : memref<32x32xbf16, #tpu.memory_space<vmem>>, vector<32x32xbf16>
    %c0_11 = arith.constant 0 : index
    %c0_12 = arith.constant 0 : index
    %16 = vector.load %arg6[%c0_11, %c0_12] : memref<1x32xf32, #tpu.memory_space<vmem>>, vector<1x32xf32>
    %17 = tpu.iota {dimensions = array<i32: 0>} : vector<8x8xi32>
    %18 = tpu.iota {dimensions = array<i32: 1>} : vector<8x8xi32>
    %19 = arith.cmpi sgt, %18, %17 : vector<8x8xi32>
    %20 = vector.extract_strided_slice %12 {offsets = [0, 0], sizes = [8, 16], strides = [1, 1]} : vector<8x32xf32> to vector<8x16xf32>
    %cst_13 = arith.constant 2.500000e-01 : f32
    %21 = vector.broadcast %cst_13 : f32 to vector<8x16xf32>
    %22 = arith.mulf %20, %21 : vector<8x16xf32>
    %23 = arith.truncf %22 : vector<8x16xf32> to vector<8x16xbf16>
    %24 = vector.extract_strided_slice %13 {offsets = [0, 0], sizes = [8, 16], strides = [1, 1]} : vector<8x32xf32> to vector<8x16xf32>
    %25 = arith.truncf %24 : vector<8x16xf32> to vector<8x16xbf16>
    %cst_14 = arith.constant dense<0.000000e+00> : vector<8x8xf32>
    %26 = tpu.matmul %23, %25, %cst_14 {dimension_numbers = #tpu.dot_dimension_numbers<[1], [1], [0], [0], [0, 0, 1, 0], [], []>} : vector<8x16xbf16>, vector<8x16xbf16>, vector<8x8xf32> -> vector<8x8xf32>
    %cst_15 = arith.constant -1.000000e+09 : f32
    %27 = vector.broadcast %cst_15 : f32 to vector<8x8xf32>
    %28 = arith.select %19, %27, %26 : vector<8x8xi1>, vector<8x8xf32>
    %cst_16 = arith.constant dense<0xFF800000> : vector<8xf32>
    %29 = vector.multi_reduction <maximumf>, %28, %cst_16 [1] : vector<8x8xf32> to vector<8xf32>
    %30 = vector.shape_cast %29 : vector<8xf32> to vector<8x1xf32>
    %31 = vector.broadcast %30 : vector<8x1xf32> to vector<8x8xf32>
    %32 = arith.subf %28, %31 : vector<8x8xf32>
    %33 = math.exp %32 : vector<8x8xf32>
    %cst_17 = arith.constant dense<0.000000e+00> : vector<8xf32>
    %34 = vector.multi_reduction <add>, %33, %cst_17 [1] : vector<8x8xf32> to vector<8xf32>
    %35 = vector.shape_cast %34 : vector<8xf32> to vector<8x1xf32>
    %36 = tpu.reciprocal %35 {approx = true} : vector<8x1xf32> -> vector<8x1xf32>
    %37 = vector.broadcast %36 : vector<8x1xf32> to vector<8x8xf32>
    %38 = arith.mulf %33, %37 : vector<8x8xf32>
    %39 = vector.extract_strided_slice %14 {offsets = [0, 0], sizes = [8, 16], strides = [1, 1]} : vector<8x32xf32> to vector<8x16xf32>
    %40 = arith.truncf %38 : vector<8x8xf32> to vector<8x8xbf16>
    %41 = arith.truncf %39 : vector<8x16xf32> to vector<8x16xbf16>
    %cst_18 = arith.constant dense<0.000000e+00> : vector<8x16xf32>
    %42 = tpu.matmul %40, %41, %cst_18 {dimension_numbers = #tpu.dot_dimension_numbers<[1], [0], [0], [1], [0, 0, 1, 1], [], []>} : vector<8x8xbf16>, vector<8x16xbf16>, vector<8x16xf32> -> vector<8x16xf32>
    %43 = vector.extract_strided_slice %15 {offsets = [0, 0], sizes = [16, 32], strides = [1, 1]} : vector<32x32xbf16> to vector<16x32xbf16>
    %44 = arith.truncf %42 : vector<8x16xf32> to vector<8x16xbf16>
    %cst_19 = arith.constant dense<0.000000e+00> : vector<8x32xf32>
    %45 = tpu.matmul %44, %43, %cst_19 {dimension_numbers = #tpu.dot_dimension_numbers<[1], [0], [0], [1], [0, 0, 1, 1], [], []>} : vector<8x16xbf16>, vector<16x32xbf16>, vector<8x32xf32> -> vector<8x32xf32>
    %46 = vector.extract_strided_slice %12 {offsets = [0, 16], sizes = [8, 16], strides = [1, 1]} : vector<8x32xf32> to vector<8x16xf32>
    %cst_20 = arith.constant 2.500000e-01 : f32
    %47 = vector.broadcast %cst_20 : f32 to vector<8x16xf32>
    %48 = arith.mulf %46, %47 : vector<8x16xf32>
    %49 = arith.truncf %48 : vector<8x16xf32> to vector<8x16xbf16>
    %50 = vector.extract_strided_slice %13 {offsets = [0, 16], sizes = [8, 16], strides = [1, 1]} : vector<8x32xf32> to vector<8x16xf32>
    %51 = arith.truncf %50 : vector<8x16xf32> to vector<8x16xbf16>
    %cst_21 = arith.constant dense<0.000000e+00> : vector<8x8xf32>
    %52 = tpu.matmul %49, %51, %cst_21 {dimension_numbers = #tpu.dot_dimension_numbers<[1], [1], [0], [0], [0, 0, 1, 0], [], []>} : vector<8x16xbf16>, vector<8x16xbf16>, vector<8x8xf32> -> vector<8x8xf32>
    %cst_22 = arith.constant -1.000000e+09 : f32
    %53 = vector.broadcast %cst_22 : f32 to vector<8x8xf32>
    %54 = arith.select %19, %53, %52 : vector<8x8xi1>, vector<8x8xf32>
    %cst_23 = arith.constant dense<0xFF800000> : vector<8xf32>
    %55 = vector.multi_reduction <maximumf>, %54, %cst_23 [1] : vector<8x8xf32> to vector<8xf32>
    %56 = vector.shape_cast %55 : vector<8xf32> to vector<8x1xf32>
    %57 = vector.broadcast %56 : vector<8x1xf32> to vector<8x8xf32>
    %58 = arith.subf %54, %57 : vector<8x8xf32>
    %59 = math.exp %58 : vector<8x8xf32>
    %cst_24 = arith.constant dense<0.000000e+00> : vector<8xf32>
    %60 = vector.multi_reduction <add>, %59, %cst_24 [1] : vector<8x8xf32> to vector<8xf32>
    %61 = vector.shape_cast %60 : vector<8xf32> to vector<8x1xf32>
    %62 = tpu.reciprocal %61 {approx = true} : vector<8x1xf32> -> vector<8x1xf32>
    %63 = vector.broadcast %62 : vector<8x1xf32> to vector<8x8xf32>
    %64 = arith.mulf %59, %63 : vector<8x8xf32>
    %65 = vector.extract_strided_slice %14 {offsets = [0, 16], sizes = [8, 16], strides = [1, 1]} : vector<8x32xf32> to vector<8x16xf32>
    %66 = arith.truncf %64 : vector<8x8xf32> to vector<8x8xbf16>
    %67 = arith.truncf %65 : vector<8x16xf32> to vector<8x16xbf16>
    %cst_25 = arith.constant dense<0.000000e+00> : vector<8x16xf32>
    %68 = tpu.matmul %66, %67, %cst_25 {dimension_numbers = #tpu.dot_dimension_numbers<[1], [0], [0], [1], [0, 0, 1, 1], [], []>} : vector<8x8xbf16>, vector<8x16xbf16>, vector<8x16xf32> -> vector<8x16xf32>
    %69 = vector.extract_strided_slice %15 {offsets = [16, 0], sizes = [16, 32], strides = [1, 1]} : vector<32x32xbf16> to vector<16x32xbf16>
    %70 = arith.truncf %68 : vector<8x16xf32> to vector<8x16xbf16>
    %cst_26 = arith.constant dense<0.000000e+00> : vector<8x32xf32>
    %71 = tpu.matmul %70, %69, %cst_26 {dimension_numbers = #tpu.dot_dimension_numbers<[1], [0], [0], [1], [0, 0, 1, 1], [], []>} : vector<8x16xbf16>, vector<16x32xbf16>, vector<8x32xf32> -> vector<8x32xf32>
    %72 = arith.addf %45, %71 : vector<8x32xf32>
    %73 = vector.broadcast %16 : vector<1x32xf32> to vector<8x32xf32>
    %74 = arith.addf %72, %73 : vector<8x32xf32>
    %75 = arith.addf %2, %74 : vector<8x32xf32>
    %c0_27 = arith.constant 0 : index
    %c0_28 = arith.constant 0 : index
    %76 = vector.load %arg7[%c0_27, %c0_28] : memref<1x32xf32, #tpu.memory_space<vmem>>, vector<1x32xf32>
    %c0_29 = arith.constant 0 : index
    %c0_30 = arith.constant 0 : index
    %77 = vector.load %arg8[%c0_29, %c0_30] : memref<1x32xf32, #tpu.memory_space<vmem>>, vector<1x32xf32>
    %cst_31 = arith.constant dense<0.000000e+00> : vector<8xf32>
    %78 = vector.multi_reduction <add>, %75, %cst_31 [1] : vector<8x32xf32> to vector<8xf32>
    %79 = vector.shape_cast %78 : vector<8xf32> to vector<8x1xf32>
    %cst_32 = arith.constant 3.200000e+01 : f32
    %80 = vector.broadcast %cst_32 : f32 to vector<8x1xf32>
    %81 = arith.divf %79, %80 : vector<8x1xf32>
    %82 = vector.broadcast %81 : vector<8x1xf32> to vector<8x32xf32>
    %83 = arith.subf %75, %82 : vector<8x32xf32>
    %84 = arith.mulf %83, %83 : vector<8x32xf32>
    %cst_33 = arith.constant dense<0.000000e+00> : vector<8xf32>
    %85 = vector.multi_reduction <add>, %84, %cst_33 [1] : vector<8x32xf32> to vector<8xf32>
    %86 = vector.shape_cast %85 : vector<8xf32> to vector<8x1xf32>
    %cst_34 = arith.constant 3.200000e+01 : f32
    %87 = vector.broadcast %cst_34 : f32 to vector<8x1xf32>
    %88 = arith.divf %86, %87 : vector<8x1xf32>
    %89 = vector.broadcast %81 : vector<8x1xf32> to vector<8x32xf32>
    %90 = arith.subf %75, %89 : vector<8x32xf32>
    %cst_35 = arith.constant 9.99999974E-6 : f32
    %91 = vector.broadcast %cst_35 : f32 to vector<8x1xf32>
    %92 = arith.addf %88, %91 : vector<8x1xf32>
    %93 = math.rsqrt %92 : vector<8x1xf32>
    %94 = vector.broadcast %93 : vector<8x1xf32> to vector<8x32xf32>
    %95 = arith.mulf %90, %94 : vector<8x32xf32>
    %96 = vector.broadcast %76 : vector<1x32xf32> to vector<8x32xf32>
    %97 = arith.mulf %95, %96 : vector<8x32xf32>
    %98 = vector.broadcast %77 : vector<1x32xf32> to vector<8x32xf32>
    %99 = arith.addf %97, %98 : vector<8x32xf32>
    %c0_36 = arith.constant 0 : index
    %c0_37 = arith.constant 0 : index
    %100 = vector.load %arg9[%c0_36, %c0_37] : memref<32x32xbf16, #tpu.memory_space<vmem>>, vector<32x32xbf16>
    %101 = arith.truncf %99 : vector<8x32xf32> to vector<8x32xbf16>
    %cst_38 = arith.constant dense<0.000000e+00> : vector<8x32xf32>
    %102 = tpu.matmul %101, %100, %cst_38 {dimension_numbers = #tpu.dot_dimension_numbers<[1], [0], [0], [1], [0, 0, 1, 1], [], []>} : vector<8x32xbf16>, vector<32x32xbf16>, vector<8x32xf32> -> vector<8x32xf32>
    %c0_39 = arith.constant 0 : index
    %c0_40 = arith.constant 0 : index
    %103 = vector.load %arg10[%c0_39, %c0_40] : memref<1x32xf32, #tpu.memory_space<vmem>>, vector<1x32xf32>
    %104 = vector.broadcast %103 : vector<1x32xf32> to vector<8x32xf32>
    %105 = arith.addf %102, %104 : vector<8x32xf32>
    %c0_41 = arith.constant 0 : index
    %c0_42 = arith.constant 0 : index
    %106 = vector.load %arg11[%c0_41, %c0_42] : memref<32x64xbf16, #tpu.memory_space<vmem>>, vector<32x64xbf16>
    %107 = arith.truncf %5 : vector<8x32xf32> to vector<8x32xbf16>
    %cst_43 = arith.constant dense<0.000000e+00> : vector<8x64xf32>
    %108 = tpu.matmul %107, %106, %cst_43 {dimension_numbers = #tpu.dot_dimension_numbers<[1], [0], [0], [1], [0, 0, 1, 1], [], []>} : vector<8x32xbf16>, vector<32x64xbf16>, vector<8x64xf32> -> vector<8x64xf32>
    %c0_44 = arith.constant 0 : index
    %c0_45 = arith.constant 0 : index
    %109 = vector.load %arg12[%c0_44, %c0_45] : memref<1x64xf32, #tpu.memory_space<vmem>>, vector<1x64xf32>
    %110 = vector.broadcast %109 : vector<1x64xf32> to vector<8x64xf32>
    %111 = arith.addf %108, %110 : vector<8x64xf32>
    %112 = vector.extract_strided_slice %111 {offsets = [0, 0], sizes = [8, 32], strides = [1, 1]} : vector<8x64xf32> to vector<8x32xf32>
    %113 = vector.extract_strided_slice %111 {offsets = [0, 32], sizes = [8, 32], strides = [1, 1]} : vector<8x64xf32> to vector<8x32xf32>
    %c0_46 = arith.constant 0 : index
    %c0_47 = arith.constant 0 : index
    %114 = vector.load %arg13[%c0_46, %c0_47] : memref<32x32xbf16, #tpu.memory_space<vmem>>, vector<32x32xbf16>
    %c0_48 = arith.constant 0 : index
    %c0_49 = arith.constant 0 : index
    %115 = vector.load %arg14[%c0_48, %c0_49] : memref<1x32xf32, #tpu.memory_space<vmem>>, vector<1x32xf32>
    %116 = vector.extract_strided_slice %105 {offsets = [0, 0], sizes = [8, 16], strides = [1, 1]} : vector<8x32xf32> to vector<8x16xf32>
    %cst_50 = arith.constant 2.500000e-01 : f32
    %117 = vector.broadcast %cst_50 : f32 to vector<8x16xf32>
    %118 = arith.mulf %116, %117 : vector<8x16xf32>
    %119 = arith.truncf %118 : vector<8x16xf32> to vector<8x16xbf16>
    %120 = vector.extract_strided_slice %112 {offsets = [0, 0], sizes = [8, 16], strides = [1, 1]} : vector<8x32xf32> to vector<8x16xf32>
    %121 = arith.truncf %120 : vector<8x16xf32> to vector<8x16xbf16>
    %cst_51 = arith.constant dense<0.000000e+00> : vector<8x8xf32>
    %122 = tpu.matmul %119, %121, %cst_51 {dimension_numbers = #tpu.dot_dimension_numbers<[1], [1], [0], [0], [0, 0, 1, 0], [], []>} : vector<8x16xbf16>, vector<8x16xbf16>, vector<8x8xf32> -> vector<8x8xf32>
    %cst_52 = arith.constant dense<0xFF800000> : vector<8xf32>
    %123 = vector.multi_reduction <maximumf>, %122, %cst_52 [1] : vector<8x8xf32> to vector<8xf32>
    %124 = vector.shape_cast %123 : vector<8xf32> to vector<8x1xf32>
    %125 = vector.broadcast %124 : vector<8x1xf32> to vector<8x8xf32>
    %126 = arith.subf %122, %125 : vector<8x8xf32>
    %127 = math.exp %126 : vector<8x8xf32>
    %cst_53 = arith.constant dense<0.000000e+00> : vector<8xf32>
    %128 = vector.multi_reduction <add>, %127, %cst_53 [1] : vector<8x8xf32> to vector<8xf32>
    %129 = vector.shape_cast %128 : vector<8xf32> to vector<8x1xf32>
    %130 = tpu.reciprocal %129 {approx = true} : vector<8x1xf32> -> vector<8x1xf32>
    %131 = vector.broadcast %130 : vector<8x1xf32> to vector<8x8xf32>
    %132 = arith.mulf %127, %131 : vector<8x8xf32>
    %133 = vector.extract_strided_slice %113 {offsets = [0, 0], sizes = [8, 16], strides = [1, 1]} : vector<8x32xf32> to vector<8x16xf32>
    %134 = arith.truncf %132 : vector<8x8xf32> to vector<8x8xbf16>
    %135 = arith.truncf %133 : vector<8x16xf32> to vector<8x16xbf16>
    %cst_54 = arith.constant dense<0.000000e+00> : vector<8x16xf32>
    %136 = tpu.matmul %134, %135, %cst_54 {dimension_numbers = #tpu.dot_dimension_numbers<[1], [0], [0], [1], [0, 0, 1, 1], [], []>} : vector<8x8xbf16>, vector<8x16xbf16>, vector<8x16xf32> -> vector<8x16xf32>
    %137 = vector.extract_strided_slice %114 {offsets = [0, 0], sizes = [16, 32], strides = [1, 1]} : vector<32x32xbf16> to vector<16x32xbf16>
    %138 = arith.truncf %136 : vector<8x16xf32> to vector<8x16xbf16>
    %cst_55 = arith.constant dense<0.000000e+00> : vector<8x32xf32>
    %139 = tpu.matmul %138, %137, %cst_55 {dimension_numbers = #tpu.dot_dimension_numbers<[1], [0], [0], [1], [0, 0, 1, 1], [], []>} : vector<8x16xbf16>, vector<16x32xbf16>, vector<8x32xf32> -> vector<8x32xf32>
    %140 = vector.extract_strided_slice %105 {offsets = [0, 16], sizes = [8, 16], strides = [1, 1]} : vector<8x32xf32> to vector<8x16xf32>
    %cst_56 = arith.constant 2.500000e-01 : f32
    %141 = vector.broadcast %cst_56 : f32 to vector<8x16xf32>
    %142 = arith.mulf %140, %141 : vector<8x16xf32>
    %143 = arith.truncf %142 : vector<8x16xf32> to vector<8x16xbf16>
    %144 = vector.extract_strided_slice %112 {offsets = [0, 16], sizes = [8, 16], strides = [1, 1]} : vector<8x32xf32> to vector<8x16xf32>
    %145 = arith.truncf %144 : vector<8x16xf32> to vector<8x16xbf16>
    %cst_57 = arith.constant dense<0.000000e+00> : vector<8x8xf32>
    %146 = tpu.matmul %143, %145, %cst_57 {dimension_numbers = #tpu.dot_dimension_numbers<[1], [1], [0], [0], [0, 0, 1, 0], [], []>} : vector<8x16xbf16>, vector<8x16xbf16>, vector<8x8xf32> -> vector<8x8xf32>
    %cst_58 = arith.constant dense<0xFF800000> : vector<8xf32>
    %147 = vector.multi_reduction <maximumf>, %146, %cst_58 [1] : vector<8x8xf32> to vector<8xf32>
    %148 = vector.shape_cast %147 : vector<8xf32> to vector<8x1xf32>
    %149 = vector.broadcast %148 : vector<8x1xf32> to vector<8x8xf32>
    %150 = arith.subf %146, %149 : vector<8x8xf32>
    %151 = math.exp %150 : vector<8x8xf32>
    %cst_59 = arith.constant dense<0.000000e+00> : vector<8xf32>
    %152 = vector.multi_reduction <add>, %151, %cst_59 [1] : vector<8x8xf32> to vector<8xf32>
    %153 = vector.shape_cast %152 : vector<8xf32> to vector<8x1xf32>
    %154 = tpu.reciprocal %153 {approx = true} : vector<8x1xf32> -> vector<8x1xf32>
    %155 = vector.broadcast %154 : vector<8x1xf32> to vector<8x8xf32>
    %156 = arith.mulf %151, %155 : vector<8x8xf32>
    %157 = vector.extract_strided_slice %113 {offsets = [0, 16], sizes = [8, 16], strides = [1, 1]} : vector<8x32xf32> to vector<8x16xf32>
    %158 = arith.truncf %156 : vector<8x8xf32> to vector<8x8xbf16>
    %159 = arith.truncf %157 : vector<8x16xf32> to vector<8x16xbf16>
    %cst_60 = arith.constant dense<0.000000e+00> : vector<8x16xf32>
    %160 = tpu.matmul %158, %159, %cst_60 {dimension_numbers = #tpu.dot_dimension_numbers<[1], [0], [0], [1], [0, 0, 1, 1], [], []>} : vector<8x8xbf16>, vector<8x16xbf16>, vector<8x16xf32> -> vector<8x16xf32>
    %161 = vector.extract_strided_slice %114 {offsets = [16, 0], sizes = [16, 32], strides = [1, 1]} : vector<32x32xbf16> to vector<16x32xbf16>
    %162 = arith.truncf %160 : vector<8x16xf32> to vector<8x16xbf16>
    %cst_61 = arith.constant dense<0.000000e+00> : vector<8x32xf32>
    %163 = tpu.matmul %162, %161, %cst_61 {dimension_numbers = #tpu.dot_dimension_numbers<[1], [0], [0], [1], [0, 0, 1, 1], [], []>} : vector<8x16xbf16>, vector<16x32xbf16>, vector<8x32xf32> -> vector<8x32xf32>
    %164 = arith.addf %139, %163 : vector<8x32xf32>
    %165 = vector.broadcast %115 : vector<1x32xf32> to vector<8x32xf32>
    %166 = arith.addf %164, %165 : vector<8x32xf32>
    %167 = arith.addf %99, %166 : vector<8x32xf32>
    %c0_62 = arith.constant 0 : index
    %c0_63 = arith.constant 0 : index
    %168 = vector.load %arg15[%c0_62, %c0_63] : memref<1x32xf32, #tpu.memory_space<vmem>>, vector<1x32xf32>
    %c0_64 = arith.constant 0 : index
    %c0_65 = arith.constant 0 : index
    %169 = vector.load %arg16[%c0_64, %c0_65] : memref<1x32xf32, #tpu.memory_space<vmem>>, vector<1x32xf32>
    %cst_66 = arith.constant dense<0.000000e+00> : vector<8xf32>
    %170 = vector.multi_reduction <add>, %167, %cst_66 [1] : vector<8x32xf32> to vector<8xf32>
    %171 = vector.shape_cast %170 : vector<8xf32> to vector<8x1xf32>
    %cst_67 = arith.constant 3.200000e+01 : f32
    %172 = vector.broadcast %cst_67 : f32 to vector<8x1xf32>
    %173 = arith.divf %171, %172 : vector<8x1xf32>
    %174 = vector.broadcast %173 : vector<8x1xf32> to vector<8x32xf32>
    %175 = arith.subf %167, %174 : vector<8x32xf32>
    %176 = arith.mulf %175, %175 : vector<8x32xf32>
    %cst_68 = arith.constant dense<0.000000e+00> : vector<8xf32>
    %177 = vector.multi_reduction <add>, %176, %cst_68 [1] : vector<8x32xf32> to vector<8xf32>
    %178 = vector.shape_cast %177 : vector<8xf32> to vector<8x1xf32>
    %cst_69 = arith.constant 3.200000e+01 : f32
    %179 = vector.broadcast %cst_69 : f32 to vector<8x1xf32>
    %180 = arith.divf %178, %179 : vector<8x1xf32>
    %181 = vector.broadcast %173 : vector<8x1xf32> to vector<8x32xf32>
    %182 = arith.subf %167, %181 : vector<8x32xf32>
    %cst_70 = arith.constant 9.99999974E-6 : f32
    %183 = vector.broadcast %cst_70 : f32 to vector<8x1xf32>
    %184 = arith.addf %180, %183 : vector<8x1xf32>
    %185 = math.rsqrt %184 : vector<8x1xf32>
    %186 = vector.broadcast %185 : vector<8x1xf32> to vector<8x32xf32>
    %187 = arith.mulf %182, %186 : vector<8x32xf32>
    %188 = vector.broadcast %168 : vector<1x32xf32> to vector<8x32xf32>
    %189 = arith.mulf %187, %188 : vector<8x32xf32>
    %190 = vector.broadcast %169 : vector<1x32xf32> to vector<8x32xf32>
    %191 = arith.addf %189, %190 : vector<8x32xf32>
    %c0_71 = arith.constant 0 : index
    %c0_72 = arith.constant 0 : index
    %192 = vector.load %arg17[%c0_71, %c0_72] : memref<32x64xbf16, #tpu.memory_space<vmem>>, vector<32x64xbf16>
    %193 = arith.truncf %191 : vector<8x32xf32> to vector<8x32xbf16>
    %cst_73 = arith.constant dense<0.000000e+00> : vector<8x64xf32>
    %194 = tpu.matmul %193, %192, %cst_73 {dimension_numbers = #tpu.dot_dimension_numbers<[1], [0], [0], [1], [0, 0, 1, 1], [], []>} : vector<8x32xbf16>, vector<32x64xbf16>, vector<8x64xf32> -> vector<8x64xf32>
    %c0_74 = arith.constant 0 : index
    %c0_75 = arith.constant 0 : index
    %195 = vector.load %arg18[%c0_74, %c0_75] : memref<1x64xf32, #tpu.memory_space<vmem>>, vector<1x64xf32>
    %196 = vector.broadcast %195 : vector<1x64xf32> to vector<8x64xf32>
    %197 = arith.addf %194, %196 : vector<8x64xf32>
    %cst_76 = arith.constant 0.000000e+00 : f32
    %198 = vector.broadcast %cst_76 : f32 to vector<8x64xf32>
    %199 = arith.maximumf %197, %198 : vector<8x64xf32>
    %c0_77 = arith.constant 0 : index
    %c0_78 = arith.constant 0 : index
    %200 = vector.load %arg19[%c0_77, %c0_78] : memref<64x32xbf16, #tpu.memory_space<vmem>>, vector<64x32xbf16>
    %201 = arith.truncf %199 : vector<8x64xf32> to vector<8x64xbf16>
    %cst_79 = arith.constant dense<0.000000e+00> : vector<8x32xf32>
    %202 = tpu.matmul %201, %200, %cst_79 {dimension_numbers = #tpu.dot_dimension_numbers<[1], [0], [0], [1], [0, 0, 1, 1], [], []>} : vector<8x64xbf16>, vector<64x32xbf16>, vector<8x32xf32> -> vector<8x32xf32>
    %c0_80 = arith.constant 0 : index
    %c0_81 = arith.constant 0 : index
    %203 = vector.load %arg20[%c0_80, %c0_81] : memref<1x32xf32, #tpu.memory_space<vmem>>, vector<1x32xf32>
    %204 = vector.broadcast %203 : vector<1x32xf32> to vector<8x32xf32>
    %205 = arith.addf %202, %204 : vector<8x32xf32>
    %206 = arith.addf %191, %205 : vector<8x32xf32>
    %c0_82 = arith.constant 0 : index
    %c0_83 = arith.constant 0 : index
    %207 = vector.load %arg21[%c0_82, %c0_83] : memref<1x32xf32, #tpu.memory_space<vmem>>, vector<1x32xf32>
    %c0_84 = arith.constant 0 : index
    %c0_85 = arith.constant 0 : index
    %208 = vector.load %arg22[%c0_84, %c0_85] : memref<1x32xf32, #tpu.memory_space<vmem>>, vector<1x32xf32>
    %cst_86 = arith.constant dense<0.000000e+00> : vector<8xf32>
    %209 = vector.multi_reduction <add>, %206, %cst_86 [1] : vector<8x32xf32> to vector<8xf32>
    %210 = vector.shape_cast %209 : vector<8xf32> to vector<8x1xf32>
    %cst_87 = arith.constant 3.200000e+01 : f32
    %211 = vector.broadcast %cst_87 : f32 to vector<8x1xf32>
    %212 = arith.divf %210, %211 : vector<8x1xf32>
    %213 = vector.broadcast %212 : vector<8x1xf32> to vector<8x32xf32>
    %214 = arith.subf %206, %213 : vector<8x32xf32>
    %215 = arith.mulf %214, %214 : vector<8x32xf32>
    %cst_88 = arith.constant dense<0.000000e+00> : vector<8xf32>
    %216 = vector.multi_reduction <add>, %215, %cst_88 [1] : vector<8x32xf32> to vector<8xf32>
    %217 = vector.shape_cast %216 : vector<8xf32> to vector<8x1xf32>
    %cst_89 = arith.constant 3.200000e+01 : f32
    %218 = vector.broadcast %cst_89 : f32 to vector<8x1xf32>
    %219 = arith.divf %217, %218 : vector<8x1xf32>
    %220 = vector.broadcast %212 : vector<8x1xf32> to vector<8x32xf32>
    %221 = arith.subf %206, %220 : vector<8x32xf32>
    %cst_90 = arith.constant 9.99999974E-6 : f32
    %222 = vector.broadcast %cst_90 : f32 to vector<8x1xf32>
    %223 = arith.addf %219, %222 : vector<8x1xf32>
    %224 = math.rsqrt %223 : vector<8x1xf32>
    %225 = vector.broadcast %224 : vector<8x1xf32> to vector<8x32xf32>
    %226 = arith.mulf %221, %225 : vector<8x32xf32>
    %227 = vector.broadcast %207 : vector<1x32xf32> to vector<8x32xf32>
    %228 = arith.mulf %226, %227 : vector<8x32xf32>
    %229 = vector.broadcast %208 : vector<1x32xf32> to vector<8x32xf32>
    %230 = arith.addf %228, %229 : vector<8x32xf32>
    %c0_91 = arith.constant 0 : index
    %c0_92 = arith.constant 0 : index
    %231 = vector.load %arg23[%c0_91, %c0_92] : memref<1x32xf32, #tpu.memory_space<vmem>>, vector<1x32xf32>
    %c0_93 = arith.constant 0 : index
    %c0_94 = arith.constant 0 : index
    %232 = vector.load %arg24[%c0_93, %c0_94] : memref<1x32xf32, #tpu.memory_space<vmem>>, vector<1x32xf32>
    %cst_95 = arith.constant dense<0.000000e+00> : vector<8xf32>
    %233 = vector.multi_reduction <add>, %230, %cst_95 [1] : vector<8x32xf32> to vector<8xf32>
    %234 = vector.shape_cast %233 : vector<8xf32> to vector<8x1xf32>
    %cst_96 = arith.constant 3.200000e+01 : f32
    %235 = vector.broadcast %cst_96 : f32 to vector<8x1xf32>
    %236 = arith.divf %234, %235 : vector<8x1xf32>
    %237 = vector.broadcast %236 : vector<8x1xf32> to vector<8x32xf32>
    %238 = arith.subf %230, %237 : vector<8x32xf32>
    %239 = arith.mulf %238, %238 : vector<8x32xf32>
    %cst_97 = arith.constant dense<0.000000e+00> : vector<8xf32>
    %240 = vector.multi_reduction <add>, %239, %cst_97 [1] : vector<8x32xf32> to vector<8xf32>
    %241 = vector.shape_cast %240 : vector<8xf32> to vector<8x1xf32>
    %cst_98 = arith.constant 3.200000e+01 : f32
    %242 = vector.broadcast %cst_98 : f32 to vector<8x1xf32>
    %243 = arith.divf %241, %242 : vector<8x1xf32>
    %244 = vector.broadcast %236 : vector<8x1xf32> to vector<8x32xf32>
    %245 = arith.subf %230, %244 : vector<8x32xf32>
    %cst_99 = arith.constant 9.99999974E-6 : f32
    %246 = vector.broadcast %cst_99 : f32 to vector<8x1xf32>
    %247 = arith.addf %243, %246 : vector<8x1xf32>
    %248 = math.rsqrt %247 : vector<8x1xf32>
    %249 = vector.broadcast %248 : vector<8x1xf32> to vector<8x32xf32>
    %250 = arith.mulf %245, %249 : vector<8x32xf32>
    %251 = vector.broadcast %231 : vector<1x32xf32> to vector<8x32xf32>
    %252 = arith.mulf %250, %251 : vector<8x32xf32>
    %253 = vector.broadcast %232 : vector<1x32xf32> to vector<8x32xf32>
    %254 = arith.addf %252, %253 : vector<8x32xf32>
    %255 = arith.truncf %254 : vector<8x32xf32> to vector<8x32xbf16>
    %c0_100 = arith.constant 0 : index
    %c0_101 = arith.constant 0 : index
    %c0_102 = arith.constant 0 : index
    %256 = vector.load %arg25[%c0_100, %c0_101, %c0_102] : memref<1x8x32xbf16, #tpu.memory_space<vmem>>, vector<1x8x32xbf16>
    %257 = vector.shape_cast %256 : vector<1x8x32xbf16> to vector<8x32xbf16>
    %258 = vector.shape_cast %255 : vector<8x32xbf16> to vector<1x8x32xbf16>
    tpu.vector_store %arg25[%c0_100, %c0_101, %c0_102], %258 {strides = array<i32>} : memref<1x8x32xbf16, #tpu.memory_space<vmem>>, vector<1x8x32xbf16>,
    return
  }
  func.func @transform_0(%arg0: i32) -> (i32, i32, i32) {
    %c0_i32 = arith.constant 0 : i32
    %c0_i32_0 = arith.constant 0 : i32
    %c0_i32_1 = arith.constant 0 : i32
    return %arg0, %c0_i32, %c0_i32_0 : i32, i32, i32
  }
  func.func @transform_1(%arg0: i32) -> (i32, i32, i32) {
    %c0_i32 = arith.constant 0 : i32
    %c0_i32_0 = arith.constant 0 : i32
    %c0_i32_1 = arith.constant 0 : i32
    return %arg0, %c0_i32, %c0_i32_0 : i32, i32, i32
  }
  func.func @transform_2(%arg0: i32) -> (i32, i32) {
    %c0_i32 = arith.constant 0 : i32
    %c0_i32_0 = arith.constant 0 : i32
    %c0_i32_1 = arith.constant 0 : i32
    return %c0_i32, %c0_i32_0 : i32, i32
  }
  func.func @transform_3(%arg0: i32) -> (i32, i32) {
    %c0_i32 = arith.constant 0 : i32
    %c0_i32_0 = arith.constant 0 : i32
    %c0_i32_1 = arith.constant 0 : i32
    return %c0_i32, %c0_i32_0 : i32, i32
  }
  func.func @transform_4(%arg0: i32) -> (i32, i32) {
    %c0_i32 = arith.constant 0 : i32
    %c0_i32_0 = arith.constant 0 : i32
    %c0_i32_1 = arith.constant 0 : i32
    return %c0_i32, %c0_i32_0 : i32, i32
  }
  func.func @transform_5(%arg0: i32) -> (i32, i32) {
    %c0_i32 = arith.constant 0 : i32
    %c0_i32_0 = arith.constant 0 : i32
    %c0_i32_1 = arith.constant 0 : i32
    return %c0_i32, %c0_i32_0 : i32, i32
  }
  func.func @transform_6(%arg0: i32) -> (i32, i32) {
    %c0_i32 = arith.constant 0 : i32
    %c0_i32_0 = arith.constant 0 : i32
    %c0_i32_1 = arith.constant 0 : i32
    return %c0_i32, %c0_i32_0 : i32, i32
  }
  func.func @transform_7(%arg0: i32) -> (i32, i32) {
    %c0_i32 = arith.constant 0 : i32
    %c0_i32_0 = arith.constant 0 : i32
    %c0_i32_1 = arith.constant 0 : i32
    return %c0_i32, %c0_i32_0 : i32, i32
  }
  func.func @transform_8(%arg0: i32) -> (i32, i32) {
    %c0_i32 = arith.constant 0 : i32
    %c0_i32_0 = arith.constant 0 : i32
    %c0_i32_1 = arith.constant 0 : i32
    return %c0_i32, %c0_i32_0 : i32, i32
  }
  func.func @transform_9(%arg0: i32) -> (i32, i32) {
    %c0_i32 = arith.constant 0 : i32
    %c0_i32_0 = arith.constant 0 : i32
    %c0_i32_1 = arith.constant 0 : i32
    return %c0_i32, %c0_i32_0 : i32, i32
  }
  func.func @transform_10(%arg0: i32) -> (i32, i32) {
    %c0_i32 = arith.constant 0 : i32
    %c0_i32_0 = arith.constant 0 : i32
    %c0_i32_1 = arith.constant 0 : i32
    return %c0_i32, %c0_i32_0 : i32, i32
  }
  func.func @transform_11(%arg0: i32) -> (i32, i32) {
    %c0_i32 = arith.constant 0 : i32
    %c0_i32_0 = arith.constant 0 : i32
    %c0_i32_1 = arith.constant 0 : i32
    return %c0_i32, %c0_i32_0 : i32, i32
  }
  func.func @transform_12(%arg0: i32) -> (i32, i32) {
    %c0_i32 = arith.constant 0 : i32
    %c0_i32_0 = arith.constant 0 : i32
    %c0_i32_1 = arith.constant 0 : i32
    return %c0_i32, %c0_i32_0 : i32, i32
  }
  func.func @transform_13(%arg0: i32) -> (i32, i32) {
    %c0_i32 = arith.constant 0 : i32
    %c0_i32_0 = arith.constant 0 : i32
    %c0_i32_1 = arith.constant 0 : i32
    return %c0_i32, %c0_i32_0 : i32, i32
  }
  func.func @transform_14(%arg0: i32) -> (i32, i32) {
    %c0_i32 = arith.constant 0 : i32
    %c0_i32_0 = arith.constant 0 : i32
    %c0_i32_1 = arith.constant 0 : i32
    return %c0_i32, %c0_i32_0 : i32, i32
  }
  func.func @transform_15(%arg0: i32) -> (i32, i32) {
    %c0_i32 = arith.constant 0 : i32
    %c0_i32_0 = arith.constant 0 : i32
    %c0_i32_1 = arith.constant 0 : i32
    return %c0_i32, %c0_i32_0 : i32, i32
  }
  func.func @transform_16(%arg0: i32) -> (i32, i32) {
    %c0_i32 = arith.constant 0 : i32
    %c0_i32_0 = arith.constant 0 : i32
    %c0_i32_1 = arith.constant 0 : i32
    return %c0_i32, %c0_i32_0 : i32, i32
  }
  func.func @transform_17(%arg0: i32) -> (i32, i32) {
    %c0_i32 = arith.constant 0 : i32
    %c0_i32_0 = arith.constant 0 : i32
    %c0_i32_1 = arith.constant 0 : i32
    return %c0_i32, %c0_i32_0 : i32, i32
  }
  func.func @transform_18(%arg0: i32) -> (i32, i32) {
    %c0_i32 = arith.constant 0 : i32
    %c0_i32_0 = arith.constant 0 : i32
    %c0_i32_1 = arith.constant 0 : i32
    return %c0_i32, %c0_i32_0 : i32, i32
  }
  func.func @transform_19(%arg0: i32) -> (i32, i32) {
    %c0_i32 = arith.constant 0 : i32
    %c0_i32_0 = arith.constant 0 : i32
    %c0_i32_1 = arith.constant 0 : i32
    return %c0_i32, %c0_i32_0 : i32, i32
  }
  func.func @transform_20(%arg0: i32) -> (i32, i32) {
    %c0_i32 = arith.constant 0 : i32
    %c0_i32_0 = arith.constant 0 : i32
    %c0_i32_1 = arith.constant 0 : i32
    return %c0_i32, %c0_i32_0 : i32, i32
  }
  func.func @transform_21(%arg0: i32) -> (i32, i32) {
    %c0_i32 = arith.constant 0 : i32
    %c0_i32_0 = arith.constant 0 : i32
    %c0_i32_1 = arith.constant 0 : i32
    return %c0_i32, %c0_i32_0 : i32, i32
  }
  func.func @transform_22(%arg0: i32) -> (i32, i32) {
    %c0_i32 = arith.constant 0 : i32
    %c0_i32_0 = arith.constant 0 : i32
    %c0_i32_1 = arith.constant 0 : i32
    return %c0_i32, %c0_i32_0 : i32, i32
  }
  func.func @transform_23(%arg0: i32) -> (i32, i32) {
    %c0_i32 = arith.constant 0 : i32
    %c0_i32_0 = arith.constant 0 : i32
    %c0_i32_1 = arith.constant 0 : i32
    return %c0_i32, %c0_i32_0 : i32, i32
  }
  func.func @transform_24(%arg0: i32) -> (i32, i32, i32) {
    %c0_i32 = arith.constant 0 : i32
    %c0_i32_0 = arith.constant 0 : i32
    %c0_i32_1 = arith.constant 0 : i32
    return %arg0, %c0_i32, %c0_i32_0 : i32, i32, i32
  }
}

module attributes {stable_mosaic.version = 11 : i64} {
  func.func @_logits_kernel(%arg0: i32, %arg1: i32, %arg2: memref<16x32xbf16, #tpu.memory_space<vmem>>, %arg3: memref<32x64xbf16, #tpu.memory_space<vmem>>, %arg4: memref<1x64xf32, #tpu.memory_space<vmem>>, %arg5: memref<16x64xf32, #tpu.memory_space<vmem>>) attributes {dimension_semantics = [#tpu.dimension_semantics<parallel>, #tpu.dimension_semantics<parallel>], iteration_bounds = array<i64: 1, 1>, scalar_prefetch = 0 : i64, scratch_operands = 0 : i64, tpu.core_type = #tpu.core_type<tc>, window_params = [{transform_indices = @transform_0, window_bounds = array<i64: 16, 32>}, {transform_indices = @transform_1, window_bounds = array<i64: 32, 64>}, {transform_indices = @transform_2, window_bounds = array<i64: 1, 64>}, {transform_indices = @transform_3, window_bounds = array<i64: 16, 64>}]} {
    %c0 = arith.constant 0 : index
    %c0_0 = arith.constant 0 : index
    %0 = vector.load %arg2[%c0, %c0_0] : memref<16x32xbf16, #tpu.memory_space<vmem>>, vector<16x32xbf16>
    %c0_1 = arith.constant 0 : index
    %c0_2 = arith.constant 0 : index
    %1 = vector.load %arg3[%c0_1, %c0_2] : memref<32x64xbf16, #tpu.memory_space<vmem>>, vector<32x64xbf16>
    %cst = arith.constant dense<0.000000e+00> : vector<16x64xf32>
    %2 = tpu.matmul %0, %1, %cst {dimension_numbers = #tpu.dot_dimension_numbers<[1], [0], [0], [1], [0, 0, 1, 1], [], []>} : vector<16x32xbf16>, vector<32x64xbf16>, vector<16x64xf32> -> vector<16x64xf32>
    %c0_3 = arith.constant 0 : index
    %c0_4 = arith.constant 0 : index
    %3 = vector.load %arg4[%c0_3, %c0_4] : memref<1x64xf32, #tpu.memory_space<vmem>>, vector<1x64xf32>
    %4 = vector.broadcast %3 : vector<1x64xf32> to vector<16x64xf32>
    %5 = arith.addf %2, %4 : vector<16x64xf32>
    %cst_5 = arith.constant 1.000000e+00 : f32
    %6 = vector.broadcast %cst_5 : f32 to vector<16x64xf32>
    %7 = arith.mulf %5, %6 : vector<16x64xf32>
    %c0_6 = arith.constant 0 : index
    %c0_7 = arith.constant 0 : index
    %8 = vector.load %arg5[%c0_6, %c0_7] : memref<16x64xf32, #tpu.memory_space<vmem>>, vector<16x64xf32>
    tpu.vector_store %arg5[%c0_6, %c0_7], %7 {strides = array<i32>} : memref<16x64xf32, #tpu.memory_space<vmem>>, vector<16x64xf32>,
    return
  }
  func.func @transform_0(%arg0: i32, %arg1: i32) -> (i32, i32) {
    %c0_i32 = arith.constant 0 : i32
    %c0_i32_0 = arith.constant 0 : i32
    return %arg0, %c0_i32 : i32, i32
  }
  func.func @transform_1(%arg0: i32, %arg1: i32) -> (i32, i32) {
    %c0_i32 = arith.constant 0 : i32
    %c0_i32_0 = arith.constant 0 : i32
    return %c0_i32, %arg1 : i32, i32
  }
  func.func @transform_2(%arg0: i32, %arg1: i32) -> (i32, i32) {
    %c0_i32 = arith.constant 0 : i32
    %c0_i32_0 = arith.constant 0 : i32
    return %c0_i32, %arg1 : i32, i32
  }
  func.func @transform_3(%arg0: i32, %arg1: i32) -> (i32, i32) {
    %c0_i32 = arith.constant 0 : i32
    return %arg0, %arg1 : i32, i32
  }
}

</mosaic_0001>

<llo_original>
// kernel: my_transformer_forward.5
$region0: #{my_transformer_forward.5}
  #allocation0 [shape = 'u32[]', space=smem, size = 0x4, offset = 0x4, fixed_abs, tag = 'smem constant byte address 0x4 - core index']
  #allocation1 [shape = 'u32[72,128]{1,0:T(1,128)}', space=vmem, size = 0x9000, scoped, tag = 'internal scratch']
  %s0 = inlined_call_operand.vmem [shape: bf16[2,8,32], index: 0, kind: input, shape index: {}]
  %s1 = inlined_call_operand.vmem [shape: f32[1,8,32], index: 1, kind: input, shape index: {}]
  %s2 = inlined_call_operand.vmem [shape: bf16[32,96], index: 2, kind: input, shape index: {}]
  %s3 = inlined_call_operand.vmem [shape: f32[1,96], index: 3, kind: input, shape index: {}]
  %s4 = inlined_call_operand.vmem [shape: bf16[32,32], index: 4, kind: input, shape index: {}]
  %s5 = inlined_call_operand.vmem [shape: f32[1,32], index: 5, kind: input, shape index: {}]
  %s6 = inlined_call_operand.vmem [shape: f32[1,32], index: 6, kind: input, shape index: {}]
  %s7 = inlined_call_operand.vmem [shape: f32[1,32], index: 7, kind: input, shape index: {}]
  %s8 = inlined_call_operand.vmem [shape: bf16[32,64], index: 8, kind: input, shape index: {}]
  %s9 = inlined_call_operand.vmem [shape: f32[1,64], index: 9, kind: input, shape index: {}]
  %s10 = inlined_call_operand.vmem [shape: bf16[64,32], index: 10, kind: input, shape index: {}]
  %s11 = inlined_call_operand.vmem [shape: f32[1,32], index: 11, kind: input, shape index: {}]
  %s12 = inlined_call_operand.vmem [shape: f32[1,32], index: 12, kind: input, shape index: {}]
  %s13 = inlined_call_operand.vmem [shape: f32[1,32], index: 13, kind: input, shape index: {}]
  %s14 = inlined_call_operand.vmem [shape: bf16[2,8,32], index: 14, kind: output, shape index: {}]
  %s15 = sld [smem:[#allocation0]]
  $region89: #{my_transformer_forward.5} parent=0
    _
  %s17 = ssub.s32 1, %s15
  %s18 = scalar_select 0, %s17, %s15
  loop: start=0, step=1, limit=4
  $region2: #{my_transformer_forward.5} parent=0 // loop_pre_header
    _
  $region3: #{my_transformer_forward.5} parent=0 // loop_header
    %s20 = sphi 0, %s24
    %p21 = scmp.ge.s32.totalorder %s20, 4
    %s30 = sphi 0, %s32
    %s33 = sphi 0, %s30
    %s34 = sphi 0, %s33
    %s50 = sphi 0, %s34
    %s54 = sphi 0, %s54
    %s56 = sphi 0, %s54
    %s57 = sphi 0, %s56
    %s71 = sphi 0, %s57
    %s75 = sphi 0, %s75
    %s77 = sphi 0, %s75
    %s78 = sphi 0, %s77
    %s92 = sphi 0, %s78
    %s96 = sphi 0, %s96
    %s98 = sphi 0, %s96
    %s99 = sphi 0, %s98
    %s113 = sphi 0, %s99
    %s117 = sphi 0, %s117
    %s119 = sphi 0, %s117
    %s120 = sphi 0, %s119
    %s134 = sphi 0, %s120
    %s138 = sphi 0, %s138
    %s140 = sphi 0, %s138
    %s141 = sphi 0, %s140
    %s155 = sphi 0, %s141
    %s159 = sphi 0, %s159
    %s161 = sphi 0, %s159
    %s162 = sphi 0, %s161
    %s176 = sphi 0, %s162
    %s180 = sphi 0, %s180
    %s182 = sphi 0, %s180
    %s183 = sphi 0, %s182
    %s197 = sphi 0, %s183
    %s201 = sphi 0, %s201
    %s203 = sphi 0, %s201
    %s204 = sphi 0, %s203
    %s218 = sphi 0, %s204
    %s222 = sphi 0, %s222
    %s224 = sphi 0, %s222
    %s225 = sphi 0, %s224
    %s239 = sphi 0, %s225
    %s243 = sphi 0, %s243
    %s245 = sphi 0, %s243
    %s246 = sphi 0, %s245
    %s260 = sphi 0, %s246
    %s264 = sphi 0, %s264
    %s266 = sphi 0, %s264
    %s267 = sphi 0, %s266
    %s281 = sphi 0, %s267
    %s285 = sphi 0, %s285
    %s287 = sphi 0, %s285
    %s288 = sphi 0, %s287
    %s302 = sphi 0, %s288
    %s306 = sphi 0, %s306
    %s308 = sphi 0, %s306
    %s309 = sphi 0, %s308
    %s323 = sphi 0, %s309
    %s329 = sphi 0, %s331
    %s332 = sphi 0, %s329
    %s333 = sphi 0, %s332
    %s349 = sphi 0, %s333
  $region4: #{my_transformer_forward.5} parent=0 // loop_header_branch
    %23 = sbr.rel (%p21) target = $region8
  $region5: #{my_transformer_forward.5} parent=0 // loop_body
    %s25 = ssub.s32 %s20, 1
    %s26 = ssub.s32 %s20, 2
    %s27 = sadd.s32 %s20, 1
    %s28 = ssub.s32 %s20, %s27
    %p29 = scmp.eq.s32.totalorder %s28, 0
    %s31 = sadd.s32 %s30, 1
    %s32 = scalar_select %p29, %s30, %s31
    %p35 = pneg %p29
    %p36 = scmp.eq.s32.totalorder %s20, 1
    %p37 = por %p35, %p36
    %p38 = scmp.ne.s32.totalorder %s30, %s33
    %p39 = scmp.eq.s32.totalorder %s20, 0
    %p40 = por %p38, %p39
    %p41 = scmp.ne.s32.totalorder %s30, %s33
    %p42 = scmp.eq.s32.totalorder %s25, 1
    %p43 = por %p41, %p42
    %p44 = scmp.ne.s32.totalorder %s33, %s34
    %p45 = scmp.eq.s32.totalorder %s25, 0
    %p46 = por %p44, %p45
    %p47 = scmp.ne.s32.totalorder %s33, %s34
    %p48 = scmp.eq.s32.totalorder %s26, 1
    %p49 = por %p47, %p48
    %p51 = scmp.ne.s32.totalorder %s34, %s50
    %p52 = scmp.eq.s32.totalorder %s26, 0
    %p53 = por %p51, %p52
    %s55 = sadd.s32 %s54, 1
    %p58 = scmp.eq.s32.totalorder %s20, 1
    %p59 = scmp.ne.s32.totalorder %s54, %s56
    %p60 = scmp.eq.s32.totalorder %s20, 0
    %p61 = por %p59, %p60
    %p62 = scmp.ne.s32.totalorder %s54, %s56
    %p63 = scmp.eq.s32.totalorder %s25, 1
    %p64 = por %p62, %p63
    %p65 = scmp.ne.s32.totalorder %s56, %s57
    %p66 = scmp.eq.s32.totalorder %s25, 0
    %p67 = por %p65, %p66
    %p68 = scmp.ne.s32.totalorder %s56, %s57
    %p69 = scmp.eq.s32.totalorder %s26, 1
    %p70 = por %p68, %p69
    %p72 = scmp.ne.s32.totalorder %s57, %s71
    %p73 = scmp.eq.s32.totalorder %s26, 0
    %p74 = por %p72, %p73
    %s76 = sadd.s32 %s75, 1
    %p79 = scmp.eq.s32.totalorder %s20, 1
    %p80 = scmp.ne.s32.totalorder %s75, %s77
    %p81 = scmp.eq.s32.totalorder %s20, 0
    %p82 = por %p80, %p81
    %p83 = scmp.ne.s32.totalorder %s75, %s77
    %p84 = scmp.eq.s32.totalorder %s25, 1
    %p85 = por %p83, %p84
    %p86 = scmp.ne.s32.totalorder %s77, %s78
    %p87 = scmp.eq.s32.totalorder %s25, 0
    %p88 = por %p86, %p87
    %p89 = scmp.ne.s32.totalorder %s77, %s78
    %p90 = scmp.eq.s32.totalorder %s26, 1
    %p91 = por %p89, %p90
    %p93 = scmp.ne.s32.totalorder %s78, %s92
    %p94 = scmp.eq.s32.totalorder %s26, 0
    %p95 = por %p93, %p94
    %s97 = sadd.s32 %s96, 1
    %p100 = scmp.eq.s32.totalorder %s20, 1
    %p101 = scmp.ne.s32.totalorder %s96, %s98
    %p102 = scmp.eq.s32.totalorder %s20, 0
    %p103 = por %p101, %p102
    %p104 = scmp.ne.s32.totalorder %s96, %s98
    %p105 = scmp.eq.s32.totalorder %s25, 1
    %p106 = por %p104, %p105
    %p107 = scmp.ne.s32.totalorder %s98, %s99
    %p108 = scmp.eq.s32.totalorder %s25, 0
    %p109 = por %p107, %p108
    %p110 = scmp.ne.s32.totalorder %s98, %s99
    %p111 = scmp.eq.s32.totalorder %s26, 1
    %p112 = por %p110, %p111
    %p114 = scmp.ne.s32.totalorder %s99, %s113
    %p115 = scmp.eq.s32.totalorder %s26, 0
    %p116 = por %p114, %p115
    %s118 = sadd.s32 %s117, 1
    %p121 = scmp.eq.s32.totalorder %s20, 1
    %p122 = scmp.ne.s32.totalorder %s117, %s119
    %p123 = scmp.eq.s32.totalorder %s20, 0
    %p124 = por %p122, %p123
    %p125 = scmp.ne.s32.totalorder %s117, %s119
    %p126 = scmp.eq.s32.totalorder %s25, 1
    %p127 = por %p125, %p126
    %p128 = scmp.ne.s32.totalorder %s119, %s120
    %p129 = scmp.eq.s32.totalorder %s25, 0
    %p130 = por %p128, %p129
    %p131 = scmp.ne.s32.totalorder %s119, %s120
    %p132 = scmp.eq.s32.totalorder %s26, 1
    %p133 = por %p131, %p132
    %p135 = scmp.ne.s32.totalorder %s120, %s134
    %p136 = scmp.eq.s32.totalorder %s26, 0
    %p137 = por %p135, %p136
    %s139 = sadd.s32 %s138, 1
    %p142 = scmp.eq.s32.totalorder %s20, 1
    %p143 = scmp.ne.s32.totalorder %s138, %s140
    %p144 = scmp.eq.s32.totalorder %s20, 0
    %p145 = por %p143, %p144
    %p146 = scmp.ne.s32.totalorder %s138, %s140
    %p147 = scmp.eq.s32.totalorder %s25, 1
    %p148 = por %p146, %p147
    %p149 = scmp.ne.s32.totalorder %s140, %s141
    %p150 = scmp.eq.s32.totalorder %s25, 0
    %p151 = por %p149, %p150
    %p152 = scmp.ne.s32.totalorder %s140, %s141
    %p153 = scmp.eq.s32.totalorder %s26, 1
    %p154 = por %p152, %p153
    %p156 = scmp.ne.s32.totalorder %s141, %s155
    %p157 = scmp.eq.s32.totalorder %s26, 0
    %p158 = por %p156, %p157
    %s160 = sadd.s32 %s159, 1
    %p163 = scmp.eq.s32.totalorder %s20, 1
    %p164 = scmp.ne.s32.totalorder %s159, %s161
    %p165 = scmp.eq.s32.totalorder %s20, 0
    %p166 = por %p164, %p165
    %p167 = scmp.ne.s32.totalorder %s159, %s161
    %p168 = scmp.eq.s32.totalorder %s25, 1
    %p169 = por %p167, %p168
    %p170 = scmp.ne.s32.totalorder %s161, %s162
    %p171 = scmp.eq.s32.totalorder %s25, 0
    %p172 = por %p170, %p171
    %p173 = scmp.ne.s32.totalorder %s161, %s162
    %p174 = scmp.eq.s32.totalorder %s26, 1
    %p175 = por %p173, %p174
    %p177 = scmp.ne.s32.totalorder %s162, %s176
    %p178 = scmp.eq.s32.totalorder %s26, 0
    %p179 = por %p177, %p178
    %s181 = sadd.s32 %s180, 1
    %p184 = scmp.eq.s32.totalorder %s20, 1
    %p185 = scmp.ne.s32.totalorder %s180, %s182
    %p186 = scmp.eq.s32.totalorder %s20, 0
    %p187 = por %p185, %p186
    %p188 = scmp.ne.s32.totalorder %s180, %s182
    %p189 = scmp.eq.s32.totalorder %s25, 1
    %p190 = por %p188, %p189
    %p191 = scmp.ne.s32.totalorder %s182, %s183
    %p192 = scmp.eq.s32.totalorder %s25, 0
    %p193 = por %p191, %p192
    %p194 = scmp.ne.s32.totalorder %s182, %s183
    %p195 = scmp.eq.s32.totalorder %s26, 1
    %p196 = por %p194, %p195
    %p198 = scmp.ne.s32.totalorder %s183, %s197
    %p199 = scmp.eq.s32.totalorder %s26, 0
    %p200 = por %p198, %p199
    %s202 = sadd.s32 %s201, 1
    %p205 = scmp.eq.s32.totalorder %s20, 1
    %p206 = scmp.ne.s32.totalorder %s201, %s203
    %p207 = scmp.eq.s32.totalorder %s20, 0
    %p208 = por %p206, %p207
    %p209 = scmp.ne.s32.totalorder %s201, %s203
    %p210 = scmp.eq.s32.totalorder %s25, 1
    %p211 = por %p209, %p210
    %p212 = scmp.ne.s32.totalorder %s203, %s204
    %p213 = scmp.eq.s32.totalorder %s25, 0
    %p214 = por %p212, %p213
    %p215 = scmp.ne.s32.totalorder %s203, %s204
    %p216 = scmp.eq.s32.totalorder %s26, 1
    %p217 = por %p215, %p216
    %p219 = scmp.ne.s32.totalorder %s204, %s218
    %p220 = scmp.eq.s32.totalorder %s26, 0
    %p221 = por %p219, %p220
    %s223 = sadd.s32 %s222, 1
    %p226 = scmp.eq.s32.totalorder %s20, 1
    %p227 = scmp.ne.s32.totalorder %s222, %s224
    %p228 = scmp.eq.s32.totalorder %s20, 0
    %p229 = por %p227, %p228
    %p230 = scmp.ne.s32.totalorder %s222, %s224
    %p231 = scmp.eq.s32.totalorder %s25, 1
    %p232 = por %p230, %p231
    %p233 = scmp.ne.s32.totalorder %s224, %s225
    %p234 = scmp.eq.s32.totalorder %s25, 0
    %p235 = por %p233, %p234
    %p236 = scmp.ne.s32.totalorder %s224, %s225
    %p237 = scmp.eq.s32.totalorder %s26, 1
    %p238 = por %p236, %p237
    %p240 = scmp.ne.s32.totalorder %s225, %s239
    %p241 = scmp.eq.s32.totalorder %s26, 0
    %p242 = por %p240, %p241
    %s244 = sadd.s32 %s243, 1
    %p247 = scmp.eq.s32.totalorder %s20, 1
    %p248 = scmp.ne.s32.totalorder %s243, %s245
    %p249 = scmp.eq.s32.totalorder %s20, 0
    %p250 = por %p248, %p249
    %p251 = scmp.ne.s32.totalorder %s243, %s245
    %p252 = scmp.eq.s32.totalorder %s25, 1
    %p253 = por %p251, %p252
    %p254 = scmp.ne.s32.totalorder %s245, %s246
    %p255 = scmp.eq.s32.totalorder %s25, 0
    %p256 = por %p254, %p255
    %p257 = scmp.ne.s32.totalorder %s245, %s246
    %p258 = scmp.eq.s32.totalorder %s26, 1
    %p259 = por %p257, %p258
    %p261 = scmp.ne.s32.totalorder %s246, %s260
    %p262 = scmp.eq.s32.totalorder %s26, 0
    %p263 = por %p261, %p262
    %s265 = sadd.s32 %s264, 1
    %p268 = scmp.eq.s32.totalorder %s20, 1
    %p269 = scmp.ne.s32.totalorder %s264, %s266
    %p270 = scmp.eq.s32.totalorder %s20, 0
    %p271 = por %p269, %p270
    %p272 = scmp.ne.s32.totalorder %s264, %s266
    %p273 = scmp.eq.s32.totalorder %s25, 1
    %p274 = por %p272, %p273
    %p275 = scmp.ne.s32.totalorder %s266, %s267
    %p276 = scmp.eq.s32.totalorder %s25, 0
    %p277 = por %p275, %p276
    %p278 = scmp.ne.s32.totalorder %s266, %s267
    %p279 = scmp.eq.s32.totalorder %s26, 1
    %p280 = por %p278, %p279
    %p282 = scmp.ne.s32.totalorder %s267, %s281
    %p283 = scmp.eq.s32.totalorder %s26, 0
    %p284 = por %p282, %p283
    %s286 = sadd.s32 %s285, 1
    %p289 = scmp.eq.s32.totalorder %s20, 1
    %p290 = scmp.ne.s32.totalorder %s285, %s287
    %p291 = scmp.eq.s32.totalorder %s20, 0
    %p292 = por %p290, %p291
    %p293 = scmp.ne.s32.totalorder %s285, %s287
    %p294 = scmp.eq.s32.totalorder %s25, 1
    %p295 = por %p293, %p294
    %p296 = scmp.ne.s32.totalorder %s287, %s288
    %p297 = scmp.eq.s32.totalorder %s25, 0
    %p298 = por %p296, %p297
    %p299 = scmp.ne.s32.totalorder %s287, %s288
    %p300 = scmp.eq.s32.totalorder %s26, 1
    %p301 = por %p299, %p300
    %p303 = scmp.ne.s32.totalorder %s288, %s302
    %p304 = scmp.eq.s32.totalorder %s26, 0
    %p305 = por %p303, %p304
    %s307 = sadd.s32 %s306, 1
    %p310 = scmp.eq.s32.totalorder %s20, 1
    %p311 = scmp.ne.s32.totalorder %s306, %s308
    %p312 = scmp.eq.s32.totalorder %s20, 0
    %p313 = por %p311, %p312
    %p314 = scmp.ne.s32.totalorder %s306, %s308
    %p315 = scmp.eq.s32.totalorder %s25, 1
    %p316 = por %p314, %p315
    %p317 = scmp.ne.s32.totalorder %s308, %s309
    %p318 = scmp.eq.s32.totalorder %s25, 0
    %p319 = por %p317, %p318
    %p320 = scmp.ne.s32.totalorder %s308, %s309
    %p321 = scmp.eq.s32.totalorder %s26, 1
    %p322 = por %p320, %p321
    %p324 = scmp.ne.s32.totalorder %s309, %s323
    %p325 = scmp.eq.s32.totalorder %s26, 0
    %p326 = por %p324, %p325
    %s327 = ssub.s32 %s20, %s27
    %p328 = scmp.eq.s32.totalorder %s327, 0
    %s330 = sadd.s32 %s329, 1
    %s331 = scalar_select %p328, %s329, %s330
    %p334 = pneg %p328
    %p335 = scmp.eq.s32.totalorder %s20, 1
    %p336 = por %p334, %p335
    %p337 = scmp.ne.s32.totalorder %s329, %s332
    %p338 = scmp.eq.s32.totalorder %s20, 0
    %p339 = por %p337, %p338
    %p340 = scmp.ne.s32.totalorder %s329, %s332
    %p341 = scmp.eq.s32.totalorder %s25, 1
    %p342 = por %p340, %p341
    %p343 = scmp.ne.s32.totalorder %s332, %s333
    %p344 = scmp.eq.s32.totalorder %s25, 0
    %p345 = por %p343, %p344
    %p346 = scmp.ne.s32.totalorder %s332, %s333
    %p347 = scmp.eq.s32.totalorder %s26, 1
    %p348 = por %p346, %p347
    %p350 = scmp.ne.s32.totalorder %s333, %s349
    %p351 = scmp.eq.s32.totalorder %s26, 0
    %p352 = por %p350, %p351
    %p353 = scmp.le.s32.totalorder 1, %s20
    %p354 = scmp.lt.s32.totalorder %s20, 3
    %p355 = pnand %p353, %p354
    %p356 = pneg %p355
    // Predicated region
    $region9: #{my_transformer_forward.5} parent=5 // pred_check
      _
    $region10: #{my_transformer_forward.5} parent=5 // pred_check_branch
      %358 = sbr.rel (%p355) target = $region12
    $region11: #{my_transformer_forward.5} parent=5 // pred_region
      %s359 = ssub.s32 %s20, 1
      // Predicated region
      $region13: #{my_transformer_forward.5} parent=11 // pred_check
        %p360 = pneg %p67
      $region14: #{my_transformer_forward.5} parent=11 // pred_check_branch
        %362 = sbr.rel (%p360) target = $region16
      $region15: #{my_transformer_forward.5} parent=11 // pred_region
        _
      $region16: #{my_transformer_forward.5} parent=11 // pred_fallthru
        _
      // Predicated region
      $region17: #{my_transformer_forward.5} parent=11 // pred_check
        %p363 = pneg %p88
      $region18: #{my_transformer_forward.5} parent=11 // pred_check_branch
        %365 = sbr.rel (%p363) target = $region20
      $region19: #{my_transformer_forward.5} parent=11 // pred_region
        _
      $region20: #{my_transformer_forward.5} parent=11 // pred_fallthru
        _
      // Predicated region
      $region21: #{my_transformer_forward.5} parent=11 // pred_check
        %p366 = pneg %p109
      $region22: #{my_transformer_forward.5} parent=11 // pred_check_branch
        %368 = sbr.rel (%p366) target = $region24
      $region23: #{my_transformer_forward.5} parent=11 // pred_region
        _
      $region24: #{my_transformer_forward.5} parent=11 // pred_fallthru
        _
      // Predicated region
      $region25: #{my_transformer_forward.5} parent=11 // pred_check
        %p369 = pneg %p130
      $region26: #{my_transformer_forward.5} parent=11 // pred_check_branch
        %371 = sbr.rel (%p369) target = $region28
      $region27: #{my_transformer_forward.5} parent=11 // pred_region
        _
      $region28: #{my_transformer_forward.5} parent=11 // pred_fallthru
        _
      // Predicated region
      $region29: #{my_transformer_forward.5} parent=11 // pred_check
        %p372 = pneg %p151
      $region30: #{my_transformer_forward.5} parent=11 // pred_check_branch
        %374 = sbr.rel (%p372) target = $region32
      $region31: #{my_transformer_forward.5} parent=11 // pred_region
        _
      $region32: #{my_transformer_forward.5} parent=11 // pred_fallthru
        _
      // Predicated region
      $region33: #{my_transformer_forward.5} parent=11 // pred_check
        %p375 = pneg %p172
      $region34: #{my_transformer_forward.5} parent=11 // pred_check_branch
        %377 = sbr.rel (%p375) target = $region36
      $region35: #{my_transformer_forward.5} parent=11 // pred_region
        _
      $region36: #{my_transformer_forward.5} parent=11 // pred_fallthru
        _
      // Predicated region
      $region37: #{my_transformer_forward.5} parent=11 // pred_check
        %p378 = pneg %p193
      $region38: #{my_transformer_forward.5} parent=11 // pred_check_branch
        %380 = sbr.rel (%p378) target = $region40
      $region39: #{my_transformer_forward.5} parent=11 // pred_region
        _
      $region40: #{my_transformer_forward.5} parent=11 // pred_fallthru
        _
      // Predicated region
      $region41: #{my_transformer_forward.5} parent=11 // pred_check
        %p381 = pneg %p214
      $region42: #{my_transformer_forward.5} parent=11 // pred_check_branch
        %383 = sbr.rel (%p381) target = $region44
      $region43: #{my_transformer_forward.5} parent=11 // pred_region
        _
      $region44: #{my_transformer_forward.5} parent=11 // pred_fallthru
        _
      // Predicated region
      $region45: #{my_transformer_forward.5} parent=11 // pred_check
        %p384 = pneg %p235
      $region46: #{my_transformer_forward.5} parent=11 // pred_check_branch
        %386 = sbr.rel (%p384) target = $region48
      $region47: #{my_transformer_forward.5} parent=11 // pred_region
        _
      $region48: #{my_transformer_forward.5} parent=11 // pred_fallthru
        _
      // Predicated region
      $region49: #{my_transformer_forward.5} parent=11 // pred_check
        %p387 = pneg %p256
      $region50: #{my_transformer_forward.5} parent=11 // pred_check_branch
        %389 = sbr.rel (%p387) target = $region52
      $region51: #{my_transformer_forward.5} parent=11 // pred_region
        _
      $region52: #{my_transformer_forward.5} parent=11 // pred_fallthru
        _
      // Predicated region
      $region53: #{my_transformer_forward.5} parent=11 // pred_check
        %p390 = pneg %p277
      $region54: #{my_transformer_forward.5} parent=11 // pred_check_branch
        %392 = sbr.rel (%p390) target = $region56
      $region55: #{my_transformer_forward.5} parent=11 // pred_region
        _
      $region56: #{my_transformer_forward.5} parent=11 // pred_fallthru
        _
      // Predicated region
      $region57: #{my_transformer_forward.5} parent=11 // pred_check
        %p393 = pneg %p298
      $region58: #{my_transformer_forward.5} parent=11 // pred_check_branch
        %395 = sbr.rel (%p393) target = $region60
      $region59: #{my_transformer_forward.5} parent=11 // pred_region
        _
      $region60: #{my_transformer_forward.5} parent=11 // pred_fallthru
        _
      // Predicated region
      $region61: #{my_transformer_forward.5} parent=11 // pred_check
        %p396 = pneg %p319
      $region62: #{my_transformer_forward.5} parent=11 // pred_check_branch
        %398 = sbr.rel (%p396) target = $region64
      $region63: #{my_transformer_forward.5} parent=11 // pred_region
        _
      $region64: #{my_transformer_forward.5} parent=11 // pred_fallthru
        _
    $region12: #{my_transformer_forward.5} parent=5 // pred_fallthru
      _
    %p399 = scmp.lt.s32.totalorder %s20, 2
    // Predicated region
    $region65: #{my_transformer_forward.5} parent=5 // pred_check
      %p400 = pneg %p399
    $region66: #{my_transformer_forward.5} parent=5 // pred_check_branch
      %402 = sbr.rel (%p400) target = $region68
    $region67: #{my_transformer_forward.5} parent=5 // pred_region
      // Predicated region
      $region69: #{my_transformer_forward.5} parent=67 // pred_check
        %p403 = pneg %p40
      $region70: #{my_transformer_forward.5} parent=67 // pred_check_branch
        %405 = sbr.rel (%p403) target = $region72
      $region71: #{my_transformer_forward.5} parent=67 // pred_region
        %p406 = scmp.lt.s32.totalorder %s20, 1
        %s407 = scalar_select %p406, %s20, 1
        %s408 = smul.addr %s407, 4
        %s409 = scalar_lea.vmem %s0, %s408
      $region72: #{my_transformer_forward.5} parent=67 // pred_fallthru
        _
    $region68: #{my_transformer_forward.5} parent=5 // pred_fallthru
      _
    %p410 = scmp.le.s32.totalorder 1, %s20
    %p411 = scmp.lt.s32.totalorder %s20, 3
    %p412 = pnand %p410, %p411
    %p413 = pneg %p412
    // Predicated region
    $region73: #{my_transformer_forward.5} parent=5 // pred_check
      _
    $region74: #{my_transformer_forward.5} parent=5 // pred_check_branch
      %415 = sbr.rel (%p412) target = $region76
    $region75: #{my_transformer_forward.5} parent=5 // pred_region
      %s416 = ssub.s32 %s20, 1
      %p417 = scmp.lt.s32.totalorder %s25, 1
      %s418 = scalar_select %p417, %s25, 1
      %s419 = smul.addr %s418, 4
      %s420 = scalar_lea.vmem %s0, %s419
      %p421 = pneg %p46
      %p422 = pneg %p43
      %p423 = pneg %p67
      %p424 = pneg %p64
      %p425 = pneg %p88
      %p426 = pneg %p85
      %p427 = pneg %p109
      %p428 = pneg %p106
      %p429 = pneg %p130
      %p430 = pneg %p127
      %p431 = pneg %p151
      %p432 = pneg %p148
      %p433 = pneg %p172
      %p434 = pneg %p169
      %p435 = pneg %p193
      %p436 = pneg %p190
      %p437 = pneg %p214
      %p438 = pneg %p211
      %p439 = pneg %p235
      %p440 = pneg %p232
      %p441 = pneg %p256
      %p442 = pneg %p253
      %p443 = pneg %p277
      %p444 = pneg %p274
      %p445 = pneg %p298
      %p446 = pneg %p295
      %p447 = pneg %p319
      %p448 = pneg %p316
      %p449 = pneg %p345
      %p450 = pneg %p342
      %p451 = scmp.lt.s32.totalorder %s25, 1
      %s452 = scalar_select %p451, %s25, 1
      %s453 = smul.addr %s452, 4
      %s454 = scalar_lea.vmem %s14, %s453
      %p455 = scmp.lt.s32.totalorder %s25, 1
      %s456 = scalar_select %p455, %s25, 1
      %s457 = smul.addr %s456, 4
      %s458 = scalar_lea.vmem %s0, %s457
      %p459 = scmp.lt.s32.totalorder %s25, 1
      %s460 = scalar_select %p459, %s25, 1
      %s461 = smul.addr %s460, 4
      %s462 = scalar_lea.vmem %s14, %s461
      %v464 = vld [vmem:[%s458] sm:$0xf]
      %v465 = vunpack.c.l.bf16 %v464
      %v466 = vmul.f32 %v465, 2.0
      %v467 = vld [vmem:[%s1] sm:$0xff]
      %v468 = vadd.f32 %v466, %v467
      %v469 = vld [vmem:[%s2] sm:$0xf]
      %v470 = vld [vmem:[%s2 + $0x4] sm:$0xf]
      %v471 = vld [vmem:[%s2 + $0x8] sm:$0xf]
      %v472 = vld [vmem:[%s2 + $0xc] sm:$0xf]
      %v473 = vpack.c.bf16 %v468, %v468
      %v474 = vld [vmem:[%s3] sm:$0x1]
      %v476 = vperm.slane %v474, 0
      %v482 = vunpack.c.l.b16 %v469
      %v483 = vunpack.c.l.b16 %v470
      %v484 = vunpack.c.l.b16 %v471
      %v485 = vunpack.c.l.b16 %v472
      %v486 = vpack.c.b16 %v483, %v482
      %v487 = vpack.c.b16 %v485, %v484
      %vm490 = vcmask 261120
      %v492 = vsel %vm490, %v473, 0
      %494 = vmatpush.bf16.msra.mxu0 0
      %495 = vmatpush.bf16.msra.mxu0 0
      %496 = vmatpush.bf16.msra.mxu0 0
      %497 = vmatpush.bf16.msra.mxu0 0
      %498 = vmatpush.bf16.msra.mxu0 0
      %499 = vmatpush.bf16.msra.mxu0 0
      %500 = vmatpush.bf16.msra.mxu0 %v487
      %501 = vmatpush.bf16.msra.mxu0 %v486
      %502 = vmatmul.bf16.gmra.mxu0 %v492
      %v503 = vpop.f32.mrf.mxu0
      %v504 = vadd.f32 %v476, %v503
      %v505 = vpop.f32.mrf.mxu0
      %506 = vdwg.mxu0
      %v507 = vld [vmem:[%s4] sm:$0xf]
      %v508 = vld [vmem:[%s4 + $0x4] sm:$0xf]
      %v509 = vld [vmem:[%s4 + $0x8] sm:$0xf]
      %v510 = vld [vmem:[%s4 + $0xc] sm:$0xf]
      %v511 = vld [vmem:[%s5] sm:$0x1]
      %v512 = vmul.f32 %v504, 0.25
      %v513 = vpack.c.bf16 %v512, %v512
      %v514 = vpack.c.bf16 %v504, %v504
      %516 = vrot.lane.b32.xlu0 %v514, 96
      %v517 = vpop.permute.xlu0 %516
      %vm518 = vcmask 130048
      %v520 = vsel %vm518, %v513, 0
      %v523 = vsel %vm518, %v517, 0
      %525 = vmatpush.bf16.xpose.msra.mxu0 0
      %526 = vmatpush.bf16.xpose.msra.mxu0 0
      %527 = vmatpush.bf16.xpose.msra.mxu0 0
      %528 = vmatpush.bf16.xpose.msra.mxu0 0
      %529 = vmatpush.bf16.xpose.msra.mxu0 0
      %530 = vmatpush.bf16.xpose.msra.mxu0 0
      %531 = vmatpush.bf16.xpose.msra.mxu0 0
      %532 = vmatpush.bf16.xpose.msra.mxu0 %v523
      %533 = vmatmul.bf16.gmra.mxu0 %v520
      %v534 = vpop.f32.mrf.mxu0
      %v535 = vadd.f32 0.0, %v534
      %v536 = vpop.f32.mrf.mxu0
      %537 = vdwg.mxu0
      %vm538 = vcmask 64512
      %v539 = vsel %vm538, %v535, -inf
      %540 = vmax.xlane.f32.xlu0 %v539
      %v541 = vpop.xlane.xlu0 %540
      %v542 = vsub.f32 %v535, %v541
      %v543 = vmul.f32 %v542, 1.442695
      %v544 = vpow.pop %v543
      %v545 = vsel %vm538, %v544, 0.0
      %546 = vadd.xlane.f32.xlu0 %v545
      %v547 = vpop.xlane.xlu0 %546
      %v548 = vrcp.pop %v547
      %v549 = vmul.f32 %v544, %v548
      %v550 = vpack.c.bf16 %v549, %v549
      %551 = vrot.lane.b32.xlu0 %v514, 64
      %v552 = vpop.permute.xlu0 %551
      %v554 = vsel %vm538, %v550, 0
      %vm556 = vcmask 1043456
      %v558 = vsel %vm556, %v552, 0
      %560 = vmatpush.bf16.msra.mxu0 0
      %561 = vmatpush.bf16.msra.mxu0 0
      %562 = vmatpush.bf16.msra.mxu0 0
      %563 = vmatpush.bf16.msra.mxu0 0
      %564 = vmatpush.bf16.msra.mxu0 0
      %565 = vmatpush.bf16.msra.mxu0 0
      %566 = vmatpush.bf16.msra.mxu0 0
      %567 = vmatpush.bf16.msra.mxu0 %v558
      %568 = vmatmul.bf16.gmra.mxu0 %v554
      %v569 = vpop.f32.mrf.mxu0
      %v570 = vadd.f32 0.0, %v569
      %v571 = vpop.f32.mrf.mxu0
      %572 = vdwg.mxu0
      %v573 = vpack.c.bf16 %v570, %v570
      %575 = vrot.lane.b32.xlu0 %v513, 112
      %v576 = vpop.permute.xlu0 %575
      %577 = vrot.lane.b32.xlu0 %v514, 80
      %v578 = vpop.permute.xlu0 %577
      %v580 = vsel %vm518, %v576, 0
      %v583 = vsel %vm518, %v578, 0
      %585 = vmatpush.bf16.xpose.msra.mxu0 0
      %586 = vmatpush.bf16.xpose.msra.mxu0 0
      %587 = vmatpush.bf16.xpose.msra.mxu0 0
      %588 = vmatpush.bf16.xpose.msra.mxu0 0
      %589 = vmatpush.bf16.xpose.msra.mxu0 0
      %590 = vmatpush.bf16.xpose.msra.mxu0 0
      %591 = vmatpush.bf16.xpose.msra.mxu0 0
      %592 = vmatpush.bf16.xpose.msra.mxu0 %v583
      %593 = vmatmul.bf16.gmra.mxu0 %v580
      %v594 = vpop.f32.mrf.mxu0
      %v595 = vadd.f32 0.0, %v594
      %v596 = vpop.f32.mrf.mxu0
      %597 = vdwg.mxu0
      %v598 = vsel %vm538, %v595, -inf
      %599 = vmax.xlane.f32.xlu0 %v598
      %v600 = vpop.xlane.xlu0 %599
      %v601 = vsub.f32 %v595, %v600
      %v602 = vmul.f32 %v601, 1.442695
      %v603 = vpow.pop %v602
      %v604 = vsel %vm538, %v603, 0.0
      %605 = vadd.xlane.f32.xlu0 %v604
      %v606 = vpop.xlane.xlu0 %605
      %v607 = vrcp.pop %v606
      %v608 = vmul.f32 %v603, %v607
      %v609 = vpack.c.bf16 %v608, %v608
      %610 = vrot.lane.b32.xlu0 %v514, 48
      %v611 = vpop.permute.xlu0 %610
      %v613 = vsel %vm538, %v609, 0
      %v616 = vsel %vm556, %v611, 0
      %618 = vmatpush.bf16.msra.mxu0 0
      %619 = vmatpush.bf16.msra.mxu0 0
      %620 = vmatpush.bf16.msra.mxu0 0
      %621 = vmatpush.bf16.msra.mxu0 0
      %622 = vmatpush.bf16.msra.mxu0 0
      %623 = vmatpush.bf16.msra.mxu0 0
      %624 = vmatpush.bf16.msra.mxu0 0
      %625 = vmatpush.bf16.msra.mxu0 %v616
      %626 = vmatmul.bf16.gmra.mxu0 %v613
      %v627 = vpop.f32.mrf.mxu0
      %v628 = vadd.f32 0.0, %v627
      %v629 = vpop.f32.mrf.mxu0
      %630 = vdwg.mxu0
      %v631 = vpack.c.bf16 %v628, %v628
      %v634 = vunpack.c.l.b16 %v509
      %v635 = vunpack.c.l.b16 %v510
      %v636 = vpack.c.b16 %v635, %v634
      %v639 = vsel %vm518, %v631, 0
      %641 = vmatpush.bf16.msra.mxu0 0
      %642 = vmatpush.bf16.msra.mxu0 0
      %643 = vmatpush.bf16.msra.mxu0 0
      %644 = vmatpush.bf16.msra.mxu0 0
      %645 = vmatpush.bf16.msra.mxu0 0
      %646 = vmatpush.bf16.msra.mxu0 0
      %647 = vmatpush.bf16.msra.mxu0 0
      %648 = vmatpush.bf16.msra.mxu0 %v636
      %649 = vmatmul.bf16.gmra.mxu0 %v639
      %v650 = vpop.f32.mrf.mxu0
      %v651 = vadd.f32 0.0, %v650
      %v652 = vpop.f32.mrf.mxu0
      %653 = vdwg.mxu0
      %v656 = vunpack.c.l.b16 %v507
      %v657 = vunpack.c.l.b16 %v508
      %v658 = vpack.c.b16 %v657, %v656
      %v661 = vsel %vm518, %v573, 0
      %663 = vmatpush.bf16.msra.mxu0 0
      %664 = vmatpush.bf16.msra.mxu0 0
      %665 = vmatpush.bf16.msra.mxu0 0
      %666 = vmatpush.bf16.msra.mxu0 0
      %667 = vmatpush.bf16.msra.mxu0 0
      %668 = vmatpush.bf16.msra.mxu0 0
      %669 = vmatpush.bf16.msra.mxu0 0
      %670 = vmatpush.bf16.msra.mxu0 %v658
      %671 = vmatmul.bf16.gmra.mxu0 %v661
      %v672 = vpop.f32.mrf.mxu0
      %v673 = vadd.f32 %v651, %v672
      %v674 = vpop.f32.mrf.mxu0
      %675 = vdwg.mxu0
      %v677 = vperm.slane %v511, 0
      %v679 = vadd.f32 %v673, %v677
      %v680 = vadd.f32 %v468, %v679
      %v681 = vld [vmem:[%s6] sm:$0x1]
      %v682 = vld [vmem:[%s7] sm:$0x1]
      %v683 = vsel %vm490, %v680, 0.0
      %684 = vadd.xlane.f32.xlu0 %v683
      %v685 = vpop.xlane.xlu0 %684
      %v686 = vrcp.pop 32.0
      %v687 = vmul.f32 32.0, %v686
      %v688 = vsub.f32 1.0, %v687
      %v689 = vmul.f32 %v686, %v688
      %v690 = vadd.f32 %v686, %v689
      %vm691 = vweird.f32 %v686
      %v692 = vsel %vm691, %v686, %v690
      %v693 = vmul.f32 %v685, %v692
      %v694 = vsub.f32 %v680, %v693
      %v695 = vmul.f32 %v694, %v694
      %v696 = vsel %vm490, %v695, 0.0
      %697 = vadd.xlane.f32.xlu0 %v696
      %v698 = vpop.xlane.xlu0 %697
      %v699 = vmul.f32 %v698, %v692
      %v700 = vadd.f32 %v699, 1e-05
      %v701 = vrsqrt.pop %v700
      %v702 = vmul.f32 %v701, %v700
      %v703 = vmul.f32 %v702, %v701
      %v704 = vmul.f32 0.5, %v703
      %v705 = vsub.f32 1.5, %v704
      %v706 = vmul.f32 %v701, %v705
      %vm707 = vweird.f32 %v700
      %vm708 = vweird.f32 %v701
      %vm709 = vmor %vm707, %vm708
      %v710 = vsel %vm709, %v701, %v706
      %v711 = vmul.f32 %v694, %v710
      %v713 = vperm.slane %v681, 0
      %v715 = vmul.f32 %v711, %v713
      %v717 = vperm.slane %v682, 0
      %v719 = vadd.f32 %v715, %v717
      %v720 = vld [vmem:[%s8] sm:$0xf]
      %v721 = vld [vmem:[%s8 + $0x4] sm:$0xf]
      %v722 = vld [vmem:[%s8 + $0x8] sm:$0xf]
      %v723 = vld [vmem:[%s8 + $0xc] sm:$0xf]
      %v724 = vpack.c.bf16 %v719, %v719
      %v725 = vld [vmem:[%s9] sm:$0x1]
      %v727 = vperm.slane %v725, 0
      %v733 = vunpack.c.l.b16 %v720
      %v734 = vunpack.c.l.b16 %v721
      %v735 = vunpack.c.l.b16 %v722
      %v736 = vunpack.c.l.b16 %v723
      %v737 = vpack.c.b16 %v734, %v733
      %v738 = vpack.c.b16 %v736, %v735
      %v742 = vsel %vm490, %v724, 0
      %744 = vmatpush.bf16.msra.mxu0 0
      %745 = vmatpush.bf16.msra.mxu0 0
      %746 = vmatpush.bf16.msra.mxu0 0
      %747 = vmatpush.bf16.msra.mxu0 0
      %748 = vmatpush.bf16.msra.mxu0 0
      %749 = vmatpush.bf16.msra.mxu0 0
      %750 = vmatpush.bf16.msra.mxu0 %v738
      %751 = vmatpush.bf16.msra.mxu0 %v737
      %752 = vmatmul.bf16.gmra.mxu0 %v742
      %v753 = vpop.f32.mrf.mxu0
      %v754 = vadd.f32 %v727, %v753
      %v755 = vpop.f32.mrf.mxu0
      %756 = vdwg.mxu0
      %v757 = vmax.f32 %v754, 0.0
      %v758 = vld [vmem:[%s10] sm:$0xf]
      %v759 = vld [vmem:[%s10 + $0x4] sm:$0xf]
      %v760 = vld [vmem:[%s10 + $0x8] sm:$0xf]
      %v761 = vld [vmem:[%s10 + $0xc] sm:$0xf]
      %v762 = vld [vmem:[%s10 + $0x10] sm:$0xf]
      %v763 = vld [vmem:[%s10 + $0x14] sm:$0xf]
      %v764 = vld [vmem:[%s10 + $0x18] sm:$0xf]
      %v765 = vld [vmem:[%s10 + $0x1c] sm:$0xf]
      %v766 = vpack.c.bf16 %v757, %v757
      %v767 = vld [vmem:[%s11] sm:$0x1]
      %v769 = vperm.slane %v767, 0
      %v779 = vunpack.c.l.b16 %v758
      %v780 = vunpack.c.l.b16 %v759
      %v781 = vunpack.c.l.b16 %v760
      %v782 = vunpack.c.l.b16 %v761
      %v783 = vunpack.c.l.b16 %v762
      %v784 = vunpack.c.l.b16 %v763
      %v785 = vunpack.c.l.b16 %v764
      %v786 = vunpack.c.l.b16 %v765
      %v787 = vpack.c.b16 %v780, %v779
      %v788 = vpack.c.b16 %v782, %v781
      %v789 = vpack.c.b16 %v784, %v783
      %v790 = vpack.c.b16 %v786, %v785
      %vm795 = vcmask 523264
      %v797 = vsel %vm795, %v766, 0
      %799 = vmatpush.bf16.msra.mxu0 0
      %800 = vmatpush.bf16.msra.mxu0 0
      %801 = vmatpush.bf16.msra.mxu0 0
      %802 = vmatpush.bf16.msra.mxu0 0
      %803 = vmatpush.bf16.msra.mxu0 %v790
      %804 = vmatpush.bf16.msra.mxu0 %v789
      %805 = vmatpush.bf16.msra.mxu0 %v788
      %806 = vmatpush.bf16.msra.mxu0 %v787
      %807 = vmatmul.bf16.gmra.mxu0 %v797
      %v808 = vpop.f32.mrf.mxu0
      %v809 = vadd.f32 %v769, %v808
      %v810 = vpop.f32.mrf.mxu0
      %811 = vdwg.mxu0
      %v812 = vadd.f32 %v719, %v809
      %v813 = vld [vmem:[%s12] sm:$0x1]
      %v814 = vld [vmem:[%s13] sm:$0x1]
      %v815 = vsel %vm490, %v812, 0.0
      %816 = vadd.xlane.f32.xlu0 %v815
      %v817 = vpop.xlane.xlu0 %816
      %v818 = vmul.f32 %v817, %v692
      %v819 = vsub.f32 %v812, %v818
      %v820 = vmul.f32 %v819, %v819
      %v821 = vsel %vm490, %v820, 0.0
      %822 = vadd.xlane.f32.xlu0 %v821
      %v823 = vpop.xlane.xlu0 %822
      %v824 = vmul.f32 %v823, %v692
      %v825 = vadd.f32 %v824, 1e-05
      %v826 = vrsqrt.pop %v825
      %v827 = vmul.f32 %v826, %v825
      %v828 = vmul.f32 %v827, %v826
      %v829 = vmul.f32 0.5, %v828
      %v830 = vsub.f32 1.5, %v829
      %v831 = vmul.f32 %v826, %v830
      %vm832 = vweird.f32 %v825
      %vm833 = vweird.f32 %v826
      %vm834 = vmor %vm832, %vm833
      %v835 = vsel %vm834, %v826, %v831
      %v836 = vmul.f32 %v819, %v835
      %v838 = vperm.slane %v813, 0
      %v840 = vmul.f32 %v836, %v838
      %v842 = vperm.slane %v814, 0
      %v844 = vadd.f32 %v840, %v842
      %v845 = vpack.c.bf16 %v844, %v844
      %vm846 = vcmask 257024
      %847 = vst.msk [vmem:[%s462] sm:$0xf] %vm846, %v845
      %p848 = scmp.lt.s32.totalorder %s25, 1
      %s849 = scalar_select %p848, %s25, 1
      %s850 = smul.addr %s849, 4
      %s851 = scalar_lea.vmem %s14, %s850
      // Predicated region
      $region77: #{my_transformer_forward.5} parent=75 // pred_check
        %p852 = pneg %p342
      $region78: #{my_transformer_forward.5} parent=75 // pred_check_branch
        %854 = sbr.rel (%p852) target = $region80
      $region79: #{my_transformer_forward.5} parent=75 // pred_region
        _
      $region80: #{my_transformer_forward.5} parent=75 // pred_fallthru
        _
    $region76: #{my_transformer_forward.5} parent=5 // pred_fallthru
      _
    %p855 = scmp.le.s32.totalorder 2, %s20
    // Predicated region
    $region81: #{my_transformer_forward.5} parent=5 // pred_check
      %p856 = pneg %p855
    $region82: #{my_transformer_forward.5} parent=5 // pred_check_branch
      %858 = sbr.rel (%p856) target = $region84
    $region83: #{my_transformer_forward.5} parent=5 // pred_region
      %s859 = ssub.s32 %s20, 2
      // Predicated region
      $region85: #{my_transformer_forward.5} parent=83 // pred_check
        %p860 = pneg %p348
      $region86: #{my_transformer_forward.5} parent=83 // pred_check_branch
        %862 = sbr.rel (%p860) target = $region88
      $region87: #{my_transformer_forward.5} parent=83 // pred_region
        %p863 = scmp.lt.s32.totalorder %s26, 1
        %s864 = scalar_select %p863, %s26, 1
        %s865 = smul.addr %s864, 4
        %s866 = scalar_lea.vmem %s14, %s865
      $region88: #{my_transformer_forward.5} parent=83 // pred_fallthru
        _
    $region84: #{my_transformer_forward.5} parent=5 // pred_fallthru
      _
  $region6: #{my_transformer_forward.5} parent=0 // loop_footer
    %s24 = sadd.s32 1, %s20
  $region7: #{my_transformer_forward.5} parent=0 // loop_footer_branch
    %19 = sbr.rel target = $region3
  $region8: #{my_transformer_forward.5} parent=0 // loop_exit
    _

// kernel: my_transformer_forward.6
$region0: #{my_transformer_forward.6}
  #allocation0 [shape = 'u32[]', space=smem, size = 0x4, offset = 0x4, fixed_abs, tag = 'smem constant byte address 0x4 - core index']
  #allocation1 [shape = 'u32[72,128]{1,0:T(1,128)}', space=vmem, size = 0x9000, scoped, tag = 'internal scratch']
  %s0 = inlined_call_operand.vmem [shape: bf16[2,8,32], index: 0, kind: input, shape index: {}]
  %s1 = inlined_call_operand.vmem [shape: bf16[32,96], index: 1, kind: input, shape index: {}]
  %s2 = inlined_call_operand.vmem [shape: f32[1,96], index: 2, kind: input, shape index: {}]
  %s3 = inlined_call_operand.vmem [shape: bf16[32,32], index: 3, kind: input, shape index: {}]
  %s4 = inlined_call_operand.vmem [shape: f32[1,32], index: 4, kind: input, shape index: {}]
  %s5 = inlined_call_operand.vmem [shape: f32[1,32], index: 5, kind: input, shape index: {}]
  %s6 = inlined_call_operand.vmem [shape: f32[1,32], index: 6, kind: input, shape index: {}]
  %s7 = inlined_call_operand.vmem [shape: bf16[32,64], index: 7, kind: input, shape index: {}]
  %s8 = inlined_call_operand.vmem [shape: f32[1,64], index: 8, kind: input, shape index: {}]
  %s9 = inlined_call_operand.vmem [shape: bf16[64,32], index: 9, kind: input, shape index: {}]
  %s10 = inlined_call_operand.vmem [shape: f32[1,32], index: 10, kind: input, shape index: {}]
  %s11 = inlined_call_operand.vmem [shape: f32[1,32], index: 11, kind: input, shape index: {}]
  %s12 = inlined_call_operand.vmem [shape: f32[1,32], index: 12, kind: input, shape index: {}]
  %s13 = inlined_call_operand.vmem [shape: f32[1,32], index: 13, kind: input, shape index: {}]
  %s14 = inlined_call_operand.vmem [shape: f32[1,32], index: 14, kind: input, shape index: {}]
  %s15 = inlined_call_operand.vmem [shape: bf16[2,8,32], index: 15, kind: output, shape index: {}]
  %s16 = sld [smem:[#allocation0]]
  $region93: #{my_transformer_forward.6} parent=0
    _
  %s18 = ssub.s32 1, %s16
  %s19 = scalar_select 0, %s18, %s16
  loop: start=0, step=1, limit=4
  $region2: #{my_transformer_forward.6} parent=0 // loop_pre_header
    _
  $region3: #{my_transformer_forward.6} parent=0 // loop_header
    %s21 = sphi 0, %s25
    %p22 = scmp.ge.s32.totalorder %s21, 4
    %s31 = sphi 0, %s33
    %s34 = sphi 0, %s31
    %s35 = sphi 0, %s34
    %s51 = sphi 0, %s35
    %s55 = sphi 0, %s55
    %s57 = sphi 0, %s55
    %s58 = sphi 0, %s57
    %s72 = sphi 0, %s58
    %s76 = sphi 0, %s76
    %s78 = sphi 0, %s76
    %s79 = sphi 0, %s78
    %s93 = sphi 0, %s79
    %s97 = sphi 0, %s97
    %s99 = sphi 0, %s97
    %s100 = sphi 0, %s99
    %s114 = sphi 0, %s100
    %s118 = sphi 0, %s118
    %s120 = sphi 0, %s118
    %s121 = sphi 0, %s120
    %s135 = sphi 0, %s121
    %s139 = sphi 0, %s139
    %s141 = sphi 0, %s139
    %s142 = sphi 0, %s141
    %s156 = sphi 0, %s142
    %s160 = sphi 0, %s160
    %s162 = sphi 0, %s160
    %s163 = sphi 0, %s162
    %s177 = sphi 0, %s163
    %s181 = sphi 0, %s181
    %s183 = sphi 0, %s181
    %s184 = sphi 0, %s183
    %s198 = sphi 0, %s184
    %s202 = sphi 0, %s202
    %s204 = sphi 0, %s202
    %s205 = sphi 0, %s204
    %s219 = sphi 0, %s205
    %s223 = sphi 0, %s223
    %s225 = sphi 0, %s223
    %s226 = sphi 0, %s225
    %s240 = sphi 0, %s226
    %s244 = sphi 0, %s244
    %s246 = sphi 0, %s244
    %s247 = sphi 0, %s246
    %s261 = sphi 0, %s247
    %s265 = sphi 0, %s265
    %s267 = sphi 0, %s265
    %s268 = sphi 0, %s267
    %s282 = sphi 0, %s268
    %s286 = sphi 0, %s286
    %s288 = sphi 0, %s286
    %s289 = sphi 0, %s288
    %s303 = sphi 0, %s289
    %s307 = sphi 0, %s307
    %s309 = sphi 0, %s307
    %s310 = sphi 0, %s309
    %s324 = sphi 0, %s310
    %s328 = sphi 0, %s328
    %s330 = sphi 0, %s328
    %s331 = sphi 0, %s330
    %s345 = sphi 0, %s331
    %s351 = sphi 0, %s353
    %s354 = sphi 0, %s351
    %s355 = sphi 0, %s354
    %s371 = sphi 0, %s355
  $region4: #{my_transformer_forward.6} parent=0 // loop_header_branch
    %24 = sbr.rel (%p22) target = $region8
  $region5: #{my_transformer_forward.6} parent=0 // loop_body
    %s26 = ssub.s32 %s21, 1
    %s27 = ssub.s32 %s21, 2
    %s28 = sadd.s32 %s21, 1
    %s29 = ssub.s32 %s21, %s28
    %p30 = scmp.eq.s32.totalorder %s29, 0
    %s32 = sadd.s32 %s31, 1
    %s33 = scalar_select %p30, %s31, %s32
    %p36 = pneg %p30
    %p37 = scmp.eq.s32.totalorder %s21, 1
    %p38 = por %p36, %p37
    %p39 = scmp.ne.s32.totalorder %s31, %s34
    %p40 = scmp.eq.s32.totalorder %s21, 0
    %p41 = por %p39, %p40
    %p42 = scmp.ne.s32.totalorder %s31, %s34
    %p43 = scmp.eq.s32.totalorder %s26, 1
    %p44 = por %p42, %p43
    %p45 = scmp.ne.s32.totalorder %s34, %s35
    %p46 = scmp.eq.s32.totalorder %s26, 0
    %p47 = por %p45, %p46
    %p48 = scmp.ne.s32.totalorder %s34, %s35
    %p49 = scmp.eq.s32.totalorder %s27, 1
    %p50 = por %p48, %p49
    %p52 = scmp.ne.s32.totalorder %s35, %s51
    %p53 = scmp.eq.s32.totalorder %s27, 0
    %p54 = por %p52, %p53
    %s56 = sadd.s32 %s55, 1
    %p59 = scmp.eq.s32.totalorder %s21, 1
    %p60 = scmp.ne.s32.totalorder %s55, %s57
    %p61 = scmp.eq.s32.totalorder %s21, 0
    %p62 = por %p60, %p61
    %p63 = scmp.ne.s32.totalorder %s55, %s57
    %p64 = scmp.eq.s32.totalorder %s26, 1
    %p65 = por %p63, %p64
    %p66 = scmp.ne.s32.totalorder %s57, %s58
    %p67 = scmp.eq.s32.totalorder %s26, 0
    %p68 = por %p66, %p67
    %p69 = scmp.ne.s32.totalorder %s57, %s58
    %p70 = scmp.eq.s32.totalorder %s27, 1
    %p71 = por %p69, %p70
    %p73 = scmp.ne.s32.totalorder %s58, %s72
    %p74 = scmp.eq.s32.totalorder %s27, 0
    %p75 = por %p73, %p74
    %s77 = sadd.s32 %s76, 1
    %p80 = scmp.eq.s32.totalorder %s21, 1
    %p81 = scmp.ne.s32.totalorder %s76, %s78
    %p82 = scmp.eq.s32.totalorder %s21, 0
    %p83 = por %p81, %p82
    %p84 = scmp.ne.s32.totalorder %s76, %s78
    %p85 = scmp.eq.s32.totalorder %s26, 1
    %p86 = por %p84, %p85
    %p87 = scmp.ne.s32.totalorder %s78, %s79
    %p88 = scmp.eq.s32.totalorder %s26, 0
    %p89 = por %p87, %p88
    %p90 = scmp.ne.s32.totalorder %s78, %s79
    %p91 = scmp.eq.s32.totalorder %s27, 1
    %p92 = por %p90, %p91
    %p94 = scmp.ne.s32.totalorder %s79, %s93
    %p95 = scmp.eq.s32.totalorder %s27, 0
    %p96 = por %p94, %p95
    %s98 = sadd.s32 %s97, 1
    %p101 = scmp.eq.s32.totalorder %s21, 1
    %p102 = scmp.ne.s32.totalorder %s97, %s99
    %p103 = scmp.eq.s32.totalorder %s21, 0
    %p104 = por %p102, %p103
    %p105 = scmp.ne.s32.totalorder %s97, %s99
    %p106 = scmp.eq.s32.totalorder %s26, 1
    %p107 = por %p105, %p106
    %p108 = scmp.ne.s32.totalorder %s99, %s100
    %p109 = scmp.eq.s32.totalorder %s26, 0
    %p110 = por %p108, %p109
    %p111 = scmp.ne.s32.totalorder %s99, %s100
    %p112 = scmp.eq.s32.totalorder %s27, 1
    %p113 = por %p111, %p112
    %p115 = scmp.ne.s32.totalorder %s100, %s114
    %p116 = scmp.eq.s32.totalorder %s27, 0
    %p117 = por %p115, %p116
    %s119 = sadd.s32 %s118, 1
    %p122 = scmp.eq.s32.totalorder %s21, 1
    %p123 = scmp.ne.s32.totalorder %s118, %s120
    %p124 = scmp.eq.s32.totalorder %s21, 0
    %p125 = por %p123, %p124
    %p126 = scmp.ne.s32.totalorder %s118, %s120
    %p127 = scmp.eq.s32.totalorder %s26, 1
    %p128 = por %p126, %p127
    %p129 = scmp.ne.s32.totalorder %s120, %s121
    %p130 = scmp.eq.s32.totalorder %s26, 0
    %p131 = por %p129, %p130
    %p132 = scmp.ne.s32.totalorder %s120, %s121
    %p133 = scmp.eq.s32.totalorder %s27, 1
    %p134 = por %p132, %p133
    %p136 = scmp.ne.s32.totalorder %s121, %s135
    %p137 = scmp.eq.s32.totalorder %s27, 0
    %p138 = por %p136, %p137
    %s140 = sadd.s32 %s139, 1
    %p143 = scmp.eq.s32.totalorder %s21, 1
    %p144 = scmp.ne.s32.totalorder %s139, %s141
    %p145 = scmp.eq.s32.totalorder %s21, 0
    %p146 = por %p144, %p145
    %p147 = scmp.ne.s32.totalorder %s139, %s141
    %p148 = scmp.eq.s32.totalorder %s26, 1
    %p149 = por %p147, %p148
    %p150 = scmp.ne.s32.totalorder %s141, %s142
    %p151 = scmp.eq.s32.totalorder %s26, 0
    %p152 = por %p150, %p151
    %p153 = scmp.ne.s32.totalorder %s141, %s142
    %p154 = scmp.eq.s32.totalorder %s27, 1
    %p155 = por %p153, %p154
    %p157 = scmp.ne.s32.totalorder %s142, %s156
    %p158 = scmp.eq.s32.totalorder %s27, 0
    %p159 = por %p157, %p158
    %s161 = sadd.s32 %s160, 1
    %p164 = scmp.eq.s32.totalorder %s21, 1
    %p165 = scmp.ne.s32.totalorder %s160, %s162
    %p166 = scmp.eq.s32.totalorder %s21, 0
    %p167 = por %p165, %p166
    %p168 = scmp.ne.s32.totalorder %s160, %s162
    %p169 = scmp.eq.s32.totalorder %s26, 1
    %p170 = por %p168, %p169
    %p171 = scmp.ne.s32.totalorder %s162, %s163
    %p172 = scmp.eq.s32.totalorder %s26, 0
    %p173 = por %p171, %p172
    %p174 = scmp.ne.s32.totalorder %s162, %s163
    %p175 = scmp.eq.s32.totalorder %s27, 1
    %p176 = por %p174, %p175
    %p178 = scmp.ne.s32.totalorder %s163, %s177
    %p179 = scmp.eq.s32.totalorder %s27, 0
    %p180 = por %p178, %p179
    %s182 = sadd.s32 %s181, 1
    %p185 = scmp.eq.s32.totalorder %s21, 1
    %p186 = scmp.ne.s32.totalorder %s181, %s183
    %p187 = scmp.eq.s32.totalorder %s21, 0
    %p188 = por %p186, %p187
    %p189 = scmp.ne.s32.totalorder %s181, %s183
    %p190 = scmp.eq.s32.totalorder %s26, 1
    %p191 = por %p189, %p190
    %p192 = scmp.ne.s32.totalorder %s183, %s184
    %p193 = scmp.eq.s32.totalorder %s26, 0
    %p194 = por %p192, %p193
    %p195 = scmp.ne.s32.totalorder %s183, %s184
    %p196 = scmp.eq.s32.totalorder %s27, 1
    %p197 = por %p195, %p196
    %p199 = scmp.ne.s32.totalorder %s184, %s198
    %p200 = scmp.eq.s32.totalorder %s27, 0
    %p201 = por %p199, %p200
    %s203 = sadd.s32 %s202, 1
    %p206 = scmp.eq.s32.totalorder %s21, 1
    %p207 = scmp.ne.s32.totalorder %s202, %s204
    %p208 = scmp.eq.s32.totalorder %s21, 0
    %p209 = por %p207, %p208
    %p210 = scmp.ne.s32.totalorder %s202, %s204
    %p211 = scmp.eq.s32.totalorder %s26, 1
    %p212 = por %p210, %p211
    %p213 = scmp.ne.s32.totalorder %s204, %s205
    %p214 = scmp.eq.s32.totalorder %s26, 0
    %p215 = por %p213, %p214
    %p216 = scmp.ne.s32.totalorder %s204, %s205
    %p217 = scmp.eq.s32.totalorder %s27, 1
    %p218 = por %p216, %p217
    %p220 = scmp.ne.s32.totalorder %s205, %s219
    %p221 = scmp.eq.s32.totalorder %s27, 0
    %p222 = por %p220, %p221
    %s224 = sadd.s32 %s223, 1
    %p227 = scmp.eq.s32.totalorder %s21, 1
    %p228 = scmp.ne.s32.totalorder %s223, %s225
    %p229 = scmp.eq.s32.totalorder %s21, 0
    %p230 = por %p228, %p229
    %p231 = scmp.ne.s32.totalorder %s223, %s225
    %p232 = scmp.eq.s32.totalorder %s26, 1
    %p233 = por %p231, %p232
    %p234 = scmp.ne.s32.totalorder %s225, %s226
    %p235 = scmp.eq.s32.totalorder %s26, 0
    %p236 = por %p234, %p235
    %p237 = scmp.ne.s32.totalorder %s225, %s226
    %p238 = scmp.eq.s32.totalorder %s27, 1
    %p239 = por %p237, %p238
    %p241 = scmp.ne.s32.totalorder %s226, %s240
    %p242 = scmp.eq.s32.totalorder %s27, 0
    %p243 = por %p241, %p242
    %s245 = sadd.s32 %s244, 1
    %p248 = scmp.eq.s32.totalorder %s21, 1
    %p249 = scmp.ne.s32.totalorder %s244, %s246
    %p250 = scmp.eq.s32.totalorder %s21, 0
    %p251 = por %p249, %p250
    %p252 = scmp.ne.s32.totalorder %s244, %s246
    %p253 = scmp.eq.s32.totalorder %s26, 1
    %p254 = por %p252, %p253
    %p255 = scmp.ne.s32.totalorder %s246, %s247
    %p256 = scmp.eq.s32.totalorder %s26, 0
    %p257 = por %p255, %p256
    %p258 = scmp.ne.s32.totalorder %s246, %s247
    %p259 = scmp.eq.s32.totalorder %s27, 1
    %p260 = por %p258, %p259
    %p262 = scmp.ne.s32.totalorder %s247, %s261
    %p263 = scmp.eq.s32.totalorder %s27, 0
    %p264 = por %p262, %p263
    %s266 = sadd.s32 %s265, 1
    %p269 = scmp.eq.s32.totalorder %s21, 1
    %p270 = scmp.ne.s32.totalorder %s265, %s267
    %p271 = scmp.eq.s32.totalorder %s21, 0
    %p272 = por %p270, %p271
    %p273 = scmp.ne.s32.totalorder %s265, %s267
    %p274 = scmp.eq.s32.totalorder %s26, 1
    %p275 = por %p273, %p274
    %p276 = scmp.ne.s32.totalorder %s267, %s268
    %p277 = scmp.eq.s32.totalorder %s26, 0
    %p278 = por %p276, %p277
    %p279 = scmp.ne.s32.totalorder %s267, %s268
    %p280 = scmp.eq.s32.totalorder %s27, 1
    %p281 = por %p279, %p280
    %p283 = scmp.ne.s32.totalorder %s268, %s282
    %p284 = scmp.eq.s32.totalorder %s27, 0
    %p285 = por %p283, %p284
    %s287 = sadd.s32 %s286, 1
    %p290 = scmp.eq.s32.totalorder %s21, 1
    %p291 = scmp.ne.s32.totalorder %s286, %s288
    %p292 = scmp.eq.s32.totalorder %s21, 0
    %p293 = por %p291, %p292
    %p294 = scmp.ne.s32.totalorder %s286, %s288
    %p295 = scmp.eq.s32.totalorder %s26, 1
    %p296 = por %p294, %p295
    %p297 = scmp.ne.s32.totalorder %s288, %s289
    %p298 = scmp.eq.s32.totalorder %s26, 0
    %p299 = por %p297, %p298
    %p300 = scmp.ne.s32.totalorder %s288, %s289
    %p301 = scmp.eq.s32.totalorder %s27, 1
    %p302 = por %p300, %p301
    %p304 = scmp.ne.s32.totalorder %s289, %s303
    %p305 = scmp.eq.s32.totalorder %s27, 0
    %p306 = por %p304, %p305
    %s308 = sadd.s32 %s307, 1
    %p311 = scmp.eq.s32.totalorder %s21, 1
    %p312 = scmp.ne.s32.totalorder %s307, %s309
    %p313 = scmp.eq.s32.totalorder %s21, 0
    %p314 = por %p312, %p313
    %p315 = scmp.ne.s32.totalorder %s307, %s309
    %p316 = scmp.eq.s32.totalorder %s26, 1
    %p317 = por %p315, %p316
    %p318 = scmp.ne.s32.totalorder %s309, %s310
    %p319 = scmp.eq.s32.totalorder %s26, 0
    %p320 = por %p318, %p319
    %p321 = scmp.ne.s32.totalorder %s309, %s310
    %p322 = scmp.eq.s32.totalorder %s27, 1
    %p323 = por %p321, %p322
    %p325 = scmp.ne.s32.totalorder %s310, %s324
    %p326 = scmp.eq.s32.totalorder %s27, 0
    %p327 = por %p325, %p326
    %s329 = sadd.s32 %s328, 1
    %p332 = scmp.eq.s32.totalorder %s21, 1
    %p333 = scmp.ne.s32.totalorder %s328, %s330
    %p334 = scmp.eq.s32.totalorder %s21, 0
    %p335 = por %p333, %p334
    %p336 = scmp.ne.s32.totalorder %s328, %s330
    %p337 = scmp.eq.s32.totalorder %s26, 1
    %p338 = por %p336, %p337
    %p339 = scmp.ne.s32.totalorder %s330, %s331
    %p340 = scmp.eq.s32.totalorder %s26, 0
    %p341 = por %p339, %p340
    %p342 = scmp.ne.s32.totalorder %s330, %s331
    %p343 = scmp.eq.s32.totalorder %s27, 1
    %p344 = por %p342, %p343
    %p346 = scmp.ne.s32.totalorder %s331, %s345
    %p347 = scmp.eq.s32.totalorder %s27, 0
    %p348 = por %p346, %p347
    %s349 = ssub.s32 %s21, %s28
    %p350 = scmp.eq.s32.totalorder %s349, 0
    %s352 = sadd.s32 %s351, 1
    %s353 = scalar_select %p350, %s351, %s352
    %p356 = pneg %p350
    %p357 = scmp.eq.s32.totalorder %s21, 1
    %p358 = por %p356, %p357
    %p359 = scmp.ne.s32.totalorder %s351, %s354
    %p360 = scmp.eq.s32.totalorder %s21, 0
    %p361 = por %p359, %p360
    %p362 = scmp.ne.s32.totalorder %s351, %s354
    %p363 = scmp.eq.s32.totalorder %s26, 1
    %p364 = por %p362, %p363
    %p365 = scmp.ne.s32.totalorder %s354, %s355
    %p366 = scmp.eq.s32.totalorder %s26, 0
    %p367 = por %p365, %p366
    %p368 = scmp.ne.s32.totalorder %s354, %s355
    %p369 = scmp.eq.s32.totalorder %s27, 1
    %p370 = por %p368, %p369
    %p372 = scmp.ne.s32.totalorder %s355, %s371
    %p373 = scmp.eq.s32.totalorder %s27, 0
    %p374 = por %p372, %p373
    %p375 = scmp.le.s32.totalorder 1, %s21
    %p376 = scmp.lt.s32.totalorder %s21, 3
    %p377 = pnand %p375, %p376
    %p378 = pneg %p377
    // Predicated region
    $region9: #{my_transformer_forward.6} parent=5 // pred_check
      _
    $region10: #{my_transformer_forward.6} parent=5 // pred_check_branch
      %380 = sbr.rel (%p377) target = $region12
    $region11: #{my_transformer_forward.6} parent=5 // pred_region
      %s381 = ssub.s32 %s21, 1
      // Predicated region
      $region13: #{my_transformer_forward.6} parent=11 // pred_check
        %p382 = pneg %p68
      $region14: #{my_transformer_forward.6} parent=11 // pred_check_branch
        %384 = sbr.rel (%p382) target = $region16
      $region15: #{my_transformer_forward.6} parent=11 // pred_region
        _
      $region16: #{my_transformer_forward.6} parent=11 // pred_fallthru
        _
      // Predicated region
      $region17: #{my_transformer_forward.6} parent=11 // pred_check
        %p385 = pneg %p89
      $region18: #{my_transformer_forward.6} parent=11 // pred_check_branch
        %387 = sbr.rel (%p385) target = $region20
      $region19: #{my_transformer_forward.6} parent=11 // pred_region
        _
      $region20: #{my_transformer_forward.6} parent=11 // pred_fallthru
        _
      // Predicated region
      $region21: #{my_transformer_forward.6} parent=11 // pred_check
        %p388 = pneg %p110
      $region22: #{my_transformer_forward.6} parent=11 // pred_check_branch
        %390 = sbr.rel (%p388) target = $region24
      $region23: #{my_transformer_forward.6} parent=11 // pred_region
        _
      $region24: #{my_transformer_forward.6} parent=11 // pred_fallthru
        _
      // Predicated region
      $region25: #{my_transformer_forward.6} parent=11 // pred_check
        %p391 = pneg %p131
      $region26: #{my_transformer_forward.6} parent=11 // pred_check_branch
        %393 = sbr.rel (%p391) target = $region28
      $region27: #{my_transformer_forward.6} parent=11 // pred_region
        _
      $region28: #{my_transformer_forward.6} parent=11 // pred_fallthru
        _
      // Predicated region
      $region29: #{my_transformer_forward.6} parent=11 // pred_check
        %p394 = pneg %p152
      $region30: #{my_transformer_forward.6} parent=11 // pred_check_branch
        %396 = sbr.rel (%p394) target = $region32
      $region31: #{my_transformer_forward.6} parent=11 // pred_region
        _
      $region32: #{my_transformer_forward.6} parent=11 // pred_fallthru
        _
      // Predicated region
      $region33: #{my_transformer_forward.6} parent=11 // pred_check
        %p397 = pneg %p173
      $region34: #{my_transformer_forward.6} parent=11 // pred_check_branch
        %399 = sbr.rel (%p397) target = $region36
      $region35: #{my_transformer_forward.6} parent=11 // pred_region
        _
      $region36: #{my_transformer_forward.6} parent=11 // pred_fallthru
        _
      // Predicated region
      $region37: #{my_transformer_forward.6} parent=11 // pred_check
        %p400 = pneg %p194
      $region38: #{my_transformer_forward.6} parent=11 // pred_check_branch
        %402 = sbr.rel (%p400) target = $region40
      $region39: #{my_transformer_forward.6} parent=11 // pred_region
        _
      $region40: #{my_transformer_forward.6} parent=11 // pred_fallthru
        _
      // Predicated region
      $region41: #{my_transformer_forward.6} parent=11 // pred_check
        %p403 = pneg %p215
      $region42: #{my_transformer_forward.6} parent=11 // pred_check_branch
        %405 = sbr.rel (%p403) target = $region44
      $region43: #{my_transformer_forward.6} parent=11 // pred_region
        _
      $region44: #{my_transformer_forward.6} parent=11 // pred_fallthru
        _
      // Predicated region
      $region45: #{my_transformer_forward.6} parent=11 // pred_check
        %p406 = pneg %p236
      $region46: #{my_transformer_forward.6} parent=11 // pred_check_branch
        %408 = sbr.rel (%p406) target = $region48
      $region47: #{my_transformer_forward.6} parent=11 // pred_region
        _
      $region48: #{my_transformer_forward.6} parent=11 // pred_fallthru
        _
      // Predicated region
      $region49: #{my_transformer_forward.6} parent=11 // pred_check
        %p409 = pneg %p257
      $region50: #{my_transformer_forward.6} parent=11 // pred_check_branch
        %411 = sbr.rel (%p409) target = $region52
      $region51: #{my_transformer_forward.6} parent=11 // pred_region
        _
      $region52: #{my_transformer_forward.6} parent=11 // pred_fallthru
        _
      // Predicated region
      $region53: #{my_transformer_forward.6} parent=11 // pred_check
        %p412 = pneg %p278
      $region54: #{my_transformer_forward.6} parent=11 // pred_check_branch
        %414 = sbr.rel (%p412) target = $region56
      $region55: #{my_transformer_forward.6} parent=11 // pred_region
        _
      $region56: #{my_transformer_forward.6} parent=11 // pred_fallthru
        _
      // Predicated region
      $region57: #{my_transformer_forward.6} parent=11 // pred_check
        %p415 = pneg %p299
      $region58: #{my_transformer_forward.6} parent=11 // pred_check_branch
        %417 = sbr.rel (%p415) target = $region60
      $region59: #{my_transformer_forward.6} parent=11 // pred_region
        _
      $region60: #{my_transformer_forward.6} parent=11 // pred_fallthru
        _
      // Predicated region
      $region61: #{my_transformer_forward.6} parent=11 // pred_check
        %p418 = pneg %p320
      $region62: #{my_transformer_forward.6} parent=11 // pred_check_branch
        %420 = sbr.rel (%p418) target = $region64
      $region63: #{my_transformer_forward.6} parent=11 // pred_region
        _
      $region64: #{my_transformer_forward.6} parent=11 // pred_fallthru
        _
      // Predicated region
      $region65: #{my_transformer_forward.6} parent=11 // pred_check
        %p421 = pneg %p341
      $region66: #{my_transformer_forward.6} parent=11 // pred_check_branch
        %423 = sbr.rel (%p421) target = $region68
      $region67: #{my_transformer_forward.6} parent=11 // pred_region
        _
      $region68: #{my_transformer_forward.6} parent=11 // pred_fallthru
        _
    $region12: #{my_transformer_forward.6} parent=5 // pred_fallthru
      _
    %p424 = scmp.lt.s32.totalorder %s21, 2
    // Predicated region
    $region69: #{my_transformer_forward.6} parent=5 // pred_check
      %p425 = pneg %p424
    $region70: #{my_transformer_forward.6} parent=5 // pred_check_branch
      %427 = sbr.rel (%p425) target = $region72
    $region71: #{my_transformer_forward.6} parent=5 // pred_region
      // Predicated region
      $region73: #{my_transformer_forward.6} parent=71 // pred_check
        %p428 = pneg %p41
      $region74: #{my_transformer_forward.6} parent=71 // pred_check_branch
        %430 = sbr.rel (%p428) target = $region76
      $region75: #{my_transformer_forward.6} parent=71 // pred_region
        %p431 = scmp.lt.s32.totalorder %s21, 1
        %s432 = scalar_select %p431, %s21, 1
        %s433 = smul.addr %s432, 4
        %s434 = scalar_lea.vmem %s0, %s433
      $region76: #{my_transformer_forward.6} parent=71 // pred_fallthru
        _
    $region72: #{my_transformer_forward.6} parent=5 // pred_fallthru
      _
    %p435 = scmp.le.s32.totalorder 1, %s21
    %p436 = scmp.lt.s32.totalorder %s21, 3
    %p437 = pnand %p435, %p436
    %p438 = pneg %p437
    // Predicated region
    $region77: #{my_transformer_forward.6} parent=5 // pred_check
      _
    $region78: #{my_transformer_forward.6} parent=5 // pred_check_branch
      %440 = sbr.rel (%p437) target = $region80
    $region79: #{my_transformer_forward.6} parent=5 // pred_region
      %s441 = ssub.s32 %s21, 1
      %p442 = scmp.lt.s32.totalorder %s26, 1
      %s443 = scalar_select %p442, %s26, 1
      %s444 = smul.addr %s443, 4
      %s445 = scalar_lea.vmem %s0, %s444
      %p446 = pneg %p47
      %p447 = pneg %p44
      %p448 = pneg %p68
      %p449 = pneg %p65
      %p450 = pneg %p89
      %p451 = pneg %p86
      %p452 = pneg %p110
      %p453 = pneg %p107
      %p454 = pneg %p131
      %p455 = pneg %p128
      %p456 = pneg %p152
      %p457 = pneg %p149
      %p458 = pneg %p173
      %p459 = pneg %p170
      %p460 = pneg %p194
      %p461 = pneg %p191
      %p462 = pneg %p215
      %p463 = pneg %p212
      %p464 = pneg %p236
      %p465 = pneg %p233
      %p466 = pneg %p257
      %p467 = pneg %p254
      %p468 = pneg %p278
      %p469 = pneg %p275
      %p470 = pneg %p299
      %p471 = pneg %p296
      %p472 = pneg %p320
      %p473 = pneg %p317
      %p474 = pneg %p341
      %p475 = pneg %p338
      %p476 = pneg %p367
      %p477 = pneg %p364
      %p478 = scmp.lt.s32.totalorder %s26, 1
      %s479 = scalar_select %p478, %s26, 1
      %s480 = smul.addr %s479, 4
      %s481 = scalar_lea.vmem %s15, %s480
      %p482 = scmp.lt.s32.totalorder %s26, 1
      %s483 = scalar_select %p482, %s26, 1
      %s484 = smul.addr %s483, 4
      %s485 = scalar_lea.vmem %s0, %s484
      %p486 = scmp.lt.s32.totalorder %s26, 1
      %s487 = scalar_select %p486, %s26, 1
      %s488 = smul.addr %s487, 4
      %s489 = scalar_lea.vmem %s15, %s488
      %v491 = vld [vmem:[%s485] sm:$0xf]
      %v492 = vunpack.c.l.bf16 %v491
      %v493 = vld [vmem:[%s1] sm:$0xf]
      %v494 = vld [vmem:[%s1 + $0x4] sm:$0xf]
      %v495 = vld [vmem:[%s1 + $0x8] sm:$0xf]
      %v496 = vld [vmem:[%s1 + $0xc] sm:$0xf]
      %v497 = vld [vmem:[%s2] sm:$0x1]
      %v499 = vperm.slane %v497, 0
      %v505 = vunpack.c.l.b16 %v493
      %v506 = vunpack.c.l.b16 %v494
      %v507 = vunpack.c.l.b16 %v495
      %v508 = vunpack.c.l.b16 %v496
      %v509 = vpack.c.b16 %v506, %v505
      %v510 = vpack.c.b16 %v508, %v507
      %vm513 = vcmask 261120
      %v515 = vsel %vm513, %v491, 0
      %517 = vmatpush.bf16.msra.mxu0 0
      %518 = vmatpush.bf16.msra.mxu0 0
      %519 = vmatpush.bf16.msra.mxu0 0
      %520 = vmatpush.bf16.msra.mxu0 0
      %521 = vmatpush.bf16.msra.mxu0 0
      %522 = vmatpush.bf16.msra.mxu0 0
      %523 = vmatpush.bf16.msra.mxu0 %v510
      %524 = vmatpush.bf16.msra.mxu0 %v509
      %525 = vmatmul.bf16.gmra.mxu0 %v515
      %v526 = vpop.f32.mrf.mxu0
      %v527 = vadd.f32 %v499, %v526
      %v528 = vpop.f32.mrf.mxu0
      %529 = vdwg.mxu0
      %v530 = vld [vmem:[%s3] sm:$0xf]
      %v531 = vld [vmem:[%s3 + $0x4] sm:$0xf]
      %v532 = vld [vmem:[%s3 + $0x8] sm:$0xf]
      %v533 = vld [vmem:[%s3 + $0xc] sm:$0xf]
      %v534 = vld [vmem:[%s4] sm:$0x1]
      %v535 = vmul.f32 %v527, 0.25
      %v536 = vpack.c.bf16 %v535, %v535
      %v537 = vpack.c.bf16 %v527, %v527
      %539 = vrot.lane.b32.xlu0 %v537, 96
      %v540 = vpop.permute.xlu0 %539
      %vm541 = vcmask 130048
      %v543 = vsel %vm541, %v536, 0
      %v546 = vsel %vm541, %v540, 0
      %548 = vmatpush.bf16.xpose.msra.mxu0 0
      %549 = vmatpush.bf16.xpose.msra.mxu0 0
      %550 = vmatpush.bf16.xpose.msra.mxu0 0
      %551 = vmatpush.bf16.xpose.msra.mxu0 0
      %552 = vmatpush.bf16.xpose.msra.mxu0 0
      %553 = vmatpush.bf16.xpose.msra.mxu0 0
      %554 = vmatpush.bf16.xpose.msra.mxu0 0
      %555 = vmatpush.bf16.xpose.msra.mxu0 %v546
      %556 = vmatmul.bf16.gmra.mxu0 %v543
      %v557 = vpop.f32.mrf.mxu0
      %v558 = vadd.f32 0.0, %v557
      %v559 = vpop.f32.mrf.mxu0
      %560 = vdwg.mxu0
      %vm561 = vcmask 64512
      %v562 = vsel %vm561, %v558, -inf
      %563 = vmax.xlane.f32.xlu0 %v562
      %v564 = vpop.xlane.xlu0 %563
      %v565 = vsub.f32 %v558, %v564
      %v566 = vmul.f32 %v565, 1.442695
      %v567 = vpow.pop %v566
      %v568 = vsel %vm561, %v567, 0.0
      %569 = vadd.xlane.f32.xlu0 %v568
      %v570 = vpop.xlane.xlu0 %569
      %v571 = vrcp.pop %v570
      %v572 = vmul.f32 %v567, %v571
      %v573 = vpack.c.bf16 %v572, %v572
      %574 = vrot.lane.b32.xlu0 %v537, 64
      %v575 = vpop.permute.xlu0 %574
      %v577 = vsel %vm561, %v573, 0
      %vm579 = vcmask 1043456
      %v581 = vsel %vm579, %v575, 0
      %583 = vmatpush.bf16.msra.mxu0 0
      %584 = vmatpush.bf16.msra.mxu0 0
      %585 = vmatpush.bf16.msra.mxu0 0
      %586 = vmatpush.bf16.msra.mxu0 0
      %587 = vmatpush.bf16.msra.mxu0 0
      %588 = vmatpush.bf16.msra.mxu0 0
      %589 = vmatpush.bf16.msra.mxu0 0
      %590 = vmatpush.bf16.msra.mxu0 %v581
      %591 = vmatmul.bf16.gmra.mxu0 %v577
      %v592 = vpop.f32.mrf.mxu0
      %v593 = vadd.f32 0.0, %v592
      %v594 = vpop.f32.mrf.mxu0
      %595 = vdwg.mxu0
      %v596 = vpack.c.bf16 %v593, %v593
      %598 = vrot.lane.b32.xlu0 %v536, 112
      %v599 = vpop.permute.xlu0 %598
      %600 = vrot.lane.b32.xlu0 %v537, 80
      %v601 = vpop.permute.xlu0 %600
      %v603 = vsel %vm541, %v599, 0
      %v606 = vsel %vm541, %v601, 0
      %608 = vmatpush.bf16.xpose.msra.mxu0 0
      %609 = vmatpush.bf16.xpose.msra.mxu0 0
      %610 = vmatpush.bf16.xpose.msra.mxu0 0
      %611 = vmatpush.bf16.xpose.msra.mxu0 0
      %612 = vmatpush.bf16.xpose.msra.mxu0 0
      %613 = vmatpush.bf16.xpose.msra.mxu0 0
      %614 = vmatpush.bf16.xpose.msra.mxu0 0
      %615 = vmatpush.bf16.xpose.msra.mxu0 %v606
      %616 = vmatmul.bf16.gmra.mxu0 %v603
      %v617 = vpop.f32.mrf.mxu0
      %v618 = vadd.f32 0.0, %v617
      %v619 = vpop.f32.mrf.mxu0
      %620 = vdwg.mxu0
      %v621 = vsel %vm561, %v618, -inf
      %622 = vmax.xlane.f32.xlu0 %v621
      %v623 = vpop.xlane.xlu0 %622
      %v624 = vsub.f32 %v618, %v623
      %v625 = vmul.f32 %v624, 1.442695
      %v626 = vpow.pop %v625
      %v627 = vsel %vm561, %v626, 0.0
      %628 = vadd.xlane.f32.xlu0 %v627
      %v629 = vpop.xlane.xlu0 %628
      %v630 = vrcp.pop %v629
      %v631 = vmul.f32 %v626, %v630
      %v632 = vpack.c.bf16 %v631, %v631
      %633 = vrot.lane.b32.xlu0 %v537, 48
      %v634 = vpop.permute.xlu0 %633
      %v636 = vsel %vm561, %v632, 0
      %v639 = vsel %vm579, %v634, 0
      %641 = vmatpush.bf16.msra.mxu0 0
      %642 = vmatpush.bf16.msra.mxu0 0
      %643 = vmatpush.bf16.msra.mxu0 0
      %644 = vmatpush.bf16.msra.mxu0 0
      %645 = vmatpush.bf16.msra.mxu0 0
      %646 = vmatpush.bf16.msra.mxu0 0
      %647 = vmatpush.bf16.msra.mxu0 0
      %648 = vmatpush.bf16.msra.mxu0 %v639
      %649 = vmatmul.bf16.gmra.mxu0 %v636
      %v650 = vpop.f32.mrf.mxu0
      %v651 = vadd.f32 0.0, %v650
      %v652 = vpop.f32.mrf.mxu0
      %653 = vdwg.mxu0
      %v654 = vpack.c.bf16 %v651, %v651
      %v657 = vunpack.c.l.b16 %v532
      %v658 = vunpack.c.l.b16 %v533
      %v659 = vpack.c.b16 %v658, %v657
      %v662 = vsel %vm541, %v654, 0
      %664 = vmatpush.bf16.msra.mxu0 0
      %665 = vmatpush.bf16.msra.mxu0 0
      %666 = vmatpush.bf16.msra.mxu0 0
      %667 = vmatpush.bf16.msra.mxu0 0
      %668 = vmatpush.bf16.msra.mxu0 0
      %669 = vmatpush.bf16.msra.mxu0 0
      %670 = vmatpush.bf16.msra.mxu0 0
      %671 = vmatpush.bf16.msra.mxu0 %v659
      %672 = vmatmul.bf16.gmra.mxu0 %v662
      %v673 = vpop.f32.mrf.mxu0
      %v674 = vadd.f32 0.0, %v673
      %v675 = vpop.f32.mrf.mxu0
      %676 = vdwg.mxu0
      %v679 = vunpack.c.l.b16 %v530
      %v680 = vunpack.c.l.b16 %v531
      %v681 = vpack.c.b16 %v680, %v679
      %v684 = vsel %vm541, %v596, 0
      %686 = vmatpush.bf16.msra.mxu0 0
      %687 = vmatpush.bf16.msra.mxu0 0
      %688 = vmatpush.bf16.msra.mxu0 0
      %689 = vmatpush.bf16.msra.mxu0 0
      %690 = vmatpush.bf16.msra.mxu0 0
      %691 = vmatpush.bf16.msra.mxu0 0
      %692 = vmatpush.bf16.msra.mxu0 0
      %693 = vmatpush.bf16.msra.mxu0 %v681
      %694 = vmatmul.bf16.gmra.mxu0 %v684
      %v695 = vpop.f32.mrf.mxu0
      %v696 = vadd.f32 %v674, %v695
      %v697 = vpop.f32.mrf.mxu0
      %698 = vdwg.mxu0
      %v700 = vperm.slane %v534, 0
      %v702 = vadd.f32 %v696, %v700
      %v703 = vadd.f32 %v492, %v702
      %v704 = vld [vmem:[%s5] sm:$0x1]
      %v705 = vld [vmem:[%s6] sm:$0x1]
      %v706 = vsel %vm513, %v703, 0.0
      %707 = vadd.xlane.f32.xlu0 %v706
      %v708 = vpop.xlane.xlu0 %707
      %v709 = vrcp.pop 32.0
      %v710 = vmul.f32 32.0, %v709
      %v711 = vsub.f32 1.0, %v710
      %v712 = vmul.f32 %v709, %v711
      %v713 = vadd.f32 %v709, %v712
      %vm714 = vweird.f32 %v709
      %v715 = vsel %vm714, %v709, %v713
      %v716 = vmul.f32 %v708, %v715
      %v717 = vsub.f32 %v703, %v716
      %v718 = vmul.f32 %v717, %v717
      %v719 = vsel %vm513, %v718, 0.0
      %720 = vadd.xlane.f32.xlu0 %v719
      %v721 = vpop.xlane.xlu0 %720
      %v722 = vmul.f32 %v721, %v715
      %v723 = vadd.f32 %v722, 1e-05
      %v724 = vrsqrt.pop %v723
      %v725 = vmul.f32 %v724, %v723
      %v726 = vmul.f32 %v725, %v724
      %v727 = vmul.f32 0.5, %v726
      %v728 = vsub.f32 1.5, %v727
      %v729 = vmul.f32 %v724, %v728
      %vm730 = vweird.f32 %v723
      %vm731 = vweird.f32 %v724
      %vm732 = vmor %vm730, %vm731
      %v733 = vsel %vm732, %v724, %v729
      %v734 = vmul.f32 %v717, %v733
      %v736 = vperm.slane %v704, 0
      %v738 = vmul.f32 %v734, %v736
      %v740 = vperm.slane %v705, 0
      %v742 = vadd.f32 %v738, %v740
      %v743 = vld [vmem:[%s7] sm:$0xf]
      %v744 = vld [vmem:[%s7 + $0x4] sm:$0xf]
      %v745 = vld [vmem:[%s7 + $0x8] sm:$0xf]
      %v746 = vld [vmem:[%s7 + $0xc] sm:$0xf]
      %v747 = vpack.c.bf16 %v742, %v742
      %v748 = vld [vmem:[%s8] sm:$0x1]
      %v750 = vperm.slane %v748, 0
      %v756 = vunpack.c.l.b16 %v743
      %v757 = vunpack.c.l.b16 %v744
      %v758 = vunpack.c.l.b16 %v745
      %v759 = vunpack.c.l.b16 %v746
      %v760 = vpack.c.b16 %v757, %v756
      %v761 = vpack.c.b16 %v759, %v758
      %v765 = vsel %vm513, %v747, 0
      %767 = vmatpush.bf16.msra.mxu0 0
      %768 = vmatpush.bf16.msra.mxu0 0
      %769 = vmatpush.bf16.msra.mxu0 0
      %770 = vmatpush.bf16.msra.mxu0 0
      %771 = vmatpush.bf16.msra.mxu0 0
      %772 = vmatpush.bf16.msra.mxu0 0
      %773 = vmatpush.bf16.msra.mxu0 %v761
      %774 = vmatpush.bf16.msra.mxu0 %v760
      %775 = vmatmul.bf16.gmra.mxu0 %v765
      %v776 = vpop.f32.mrf.mxu0
      %v777 = vadd.f32 %v750, %v776
      %v778 = vpop.f32.mrf.mxu0
      %779 = vdwg.mxu0
      %v780 = vmax.f32 %v777, 0.0
      %v781 = vld [vmem:[%s9] sm:$0xf]
      %v782 = vld [vmem:[%s9 + $0x4] sm:$0xf]
      %v783 = vld [vmem:[%s9 + $0x8] sm:$0xf]
      %v784 = vld [vmem:[%s9 + $0xc] sm:$0xf]
      %v785 = vld [vmem:[%s9 + $0x10] sm:$0xf]
      %v786 = vld [vmem:[%s9 + $0x14] sm:$0xf]
      %v787 = vld [vmem:[%s9 + $0x18] sm:$0xf]
      %v788 = vld [vmem:[%s9 + $0x1c] sm:$0xf]
      %v789 = vpack.c.bf16 %v780, %v780
      %v790 = vld [vmem:[%s10] sm:$0x1]
      %v792 = vperm.slane %v790, 0
      %v802 = vunpack.c.l.b16 %v781
      %v803 = vunpack.c.l.b16 %v782
      %v804 = vunpack.c.l.b16 %v783
      %v805 = vunpack.c.l.b16 %v784
      %v806 = vunpack.c.l.b16 %v785
      %v807 = vunpack.c.l.b16 %v786
      %v808 = vunpack.c.l.b16 %v787
      %v809 = vunpack.c.l.b16 %v788
      %v810 = vpack.c.b16 %v803, %v802
      %v811 = vpack.c.b16 %v805, %v804
      %v812 = vpack.c.b16 %v807, %v806
      %v813 = vpack.c.b16 %v809, %v808
      %vm818 = vcmask 523264
      %v820 = vsel %vm818, %v789, 0
      %822 = vmatpush.bf16.msra.mxu0 0
      %823 = vmatpush.bf16.msra.mxu0 0
      %824 = vmatpush.bf16.msra.mxu0 0
      %825 = vmatpush.bf16.msra.mxu0 0
      %826 = vmatpush.bf16.msra.mxu0 %v813
      %827 = vmatpush.bf16.msra.mxu0 %v812
      %828 = vmatpush.bf16.msra.mxu0 %v811
      %829 = vmatpush.bf16.msra.mxu0 %v810
      %830 = vmatmul.bf16.gmra.mxu0 %v820
      %v831 = vpop.f32.mrf.mxu0
      %v832 = vadd.f32 %v792, %v831
      %v833 = vpop.f32.mrf.mxu0
      %834 = vdwg.mxu0
      %v835 = vadd.f32 %v742, %v832
      %v836 = vld [vmem:[%s11] sm:$0x1]
      %v837 = vld [vmem:[%s12] sm:$0x1]
      %v838 = vsel %vm513, %v835, 0.0
      %839 = vadd.xlane.f32.xlu0 %v838
      %v840 = vpop.xlane.xlu0 %839
      %v841 = vmul.f32 %v840, %v715
      %v842 = vsub.f32 %v835, %v841
      %v843 = vmul.f32 %v842, %v842
      %v844 = vsel %vm513, %v843, 0.0
      %845 = vadd.xlane.f32.xlu0 %v844
      %v846 = vpop.xlane.xlu0 %845
      %v847 = vmul.f32 %v846, %v715
      %v848 = vadd.f32 %v847, 1e-05
      %v849 = vrsqrt.pop %v848
      %v850 = vmul.f32 %v849, %v848
      %v851 = vmul.f32 %v850, %v849
      %v852 = vmul.f32 0.5, %v851
      %v853 = vsub.f32 1.5, %v852
      %v854 = vmul.f32 %v849, %v853
      %vm855 = vweird.f32 %v848
      %vm856 = vweird.f32 %v849
      %vm857 = vmor %vm855, %vm856
      %v858 = vsel %vm857, %v849, %v854
      %v859 = vmul.f32 %v842, %v858
      %v861 = vperm.slane %v836, 0
      %v863 = vmul.f32 %v859, %v861
      %v865 = vperm.slane %v837, 0
      %v867 = vadd.f32 %v863, %v865
      %v868 = vld [vmem:[%s13] sm:$0x1]
      %v869 = vld [vmem:[%s14] sm:$0x1]
      %v870 = vsel %vm513, %v867, 0.0
      %871 = vadd.xlane.f32.xlu0 %v870
      %v872 = vpop.xlane.xlu0 %871
      %v873 = vmul.f32 %v872, %v715
      %v874 = vsub.f32 %v867, %v873
      %v875 = vmul.f32 %v874, %v874
      %v876 = vsel %vm513, %v875, 0.0
      %877 = vadd.xlane.f32.xlu0 %v876
      %v878 = vpop.xlane.xlu0 %877
      %v879 = vmul.f32 %v878, %v715
      %v880 = vadd.f32 %v879, 1e-05
      %v881 = vrsqrt.pop %v880
      %v882 = vmul.f32 %v881, %v880
      %v883 = vmul.f32 %v882, %v881
      %v884 = vmul.f32 0.5, %v883
      %v885 = vsub.f32 1.5, %v884
      %v886 = vmul.f32 %v881, %v885
      %vm887 = vweird.f32 %v880
      %vm888 = vweird.f32 %v881
      %vm889 = vmor %vm887, %vm888
      %v890 = vsel %vm889, %v881, %v886
      %v891 = vmul.f32 %v874, %v890
      %v893 = vperm.slane %v868, 0
      %v895 = vmul.f32 %v891, %v893
      %v897 = vperm.slane %v869, 0
      %v899 = vadd.f32 %v895, %v897
      %v900 = vpack.c.bf16 %v899, %v899
      %vm901 = vcmask 257024
      %902 = vst.msk [vmem:[%s489] sm:$0xf] %vm901, %v900
      %p903 = scmp.lt.s32.totalorder %s26, 1
      %s904 = scalar_select %p903, %s26, 1
      %s905 = smul.addr %s904, 4
      %s906 = scalar_lea.vmem %s15, %s905
      // Predicated region
      $region81: #{my_transformer_forward.6} parent=79 // pred_check
        %p907 = pneg %p364
      $region82: #{my_transformer_forward.6} parent=79 // pred_check_branch
        %909 = sbr.rel (%p907) target = $region84
      $region83: #{my_transformer_forward.6} parent=79 // pred_region
        _
      $region84: #{my_transformer_forward.6} parent=79 // pred_fallthru
        _
    $region80: #{my_transformer_forward.6} parent=5 // pred_fallthru
      _
    %p910 = scmp.le.s32.totalorder 2, %s21
    // Predicated region
    $region85: #{my_transformer_forward.6} parent=5 // pred_check
      %p911 = pneg %p910
    $region86: #{my_transformer_forward.6} parent=5 // pred_check_branch
      %913 = sbr.rel (%p911) target = $region88
    $region87: #{my_transformer_forward.6} parent=5 // pred_region
      %s914 = ssub.s32 %s21, 2
      // Predicated region
      $region89: #{my_transformer_forward.6} parent=87 // pred_check
        %p915 = pneg %p370
      $region90: #{my_transformer_forward.6} parent=87 // pred_check_branch
        %917 = sbr.rel (%p915) target = $region92
      $region91: #{my_transformer_forward.6} parent=87 // pred_region
        %p918 = scmp.lt.s32.totalorder %s27, 1
        %s919 = scalar_select %p918, %s27, 1
        %s920 = smul.addr %s919, 4
        %s921 = scalar_lea.vmem %s15, %s920
      $region92: #{my_transformer_forward.6} parent=87 // pred_fallthru
        _
    $region88: #{my_transformer_forward.6} parent=5 // pred_fallthru
      _
  $region6: #{my_transformer_forward.6} parent=0 // loop_footer
    %s25 = sadd.s32 1, %s21
  $region7: #{my_transformer_forward.6} parent=0 // loop_footer_branch
    %20 = sbr.rel target = $region3
  $region8: #{my_transformer_forward.6} parent=0 // loop_exit
    _

// kernel: my_transformer_forward.9
$region0: #{my_transformer_forward.9}
  #allocation0 [shape = 'u32[]', space=smem, size = 0x4, offset = 0x4, fixed_abs, tag = 'smem constant byte address 0x4 - core index']
  #allocation1 [shape = 'u32[72,128]{1,0:T(1,128)}', space=vmem, size = 0x9000, scoped, tag = 'internal scratch']
  %s0 = inlined_call_operand.vmem [shape: bf16[16,32], index: 0, kind: input, shape index: {}]
  %s1 = inlined_call_operand.vmem [shape: bf16[32,64], index: 1, kind: input, shape index: {}]
  %s2 = inlined_call_operand.vmem [shape: f32[1,64], index: 2, kind: input, shape index: {}]
  %s3 = inlined_call_operand.hbm [shape: f32[16,64], index: 3, kind: output, shape index: {}]
  %s4 = sld [smem:[#allocation0]]
  $region22: #{my_transformer_forward.9} parent=0
    _
  %s6 = ssub.s32 1, %s4
  %s7 = scalar_select 0, %s6, %s4
  $region1: #{my_transformer_forward.9} parent=0
    #allocation2 [shape = 'u8[8192]{0}', space=vmem, size = 0x2000, scoped, tag = 'output window, operand 0, single buffered']
    #allocation3 [shape = 's32[1]{0}', space=sflag, size = 0x4, scoped, tag = 'scoped memory for my_transformer_forward.9']
    %8 = vsyncpa [#allocation3], 0
    // Predicated region
    $region2: #{my_transformer_forward.9} parent=1 // pred_check
      _
    $region3: #{my_transformer_forward.9} parent=1 // pred_check_branch
      %10 = sbr.rel (0) target = $region5
    $region4: #{my_transformer_forward.9} parent=1 // pred_region
      _
    $region5: #{my_transformer_forward.9} parent=1 // pred_fallthru
      _
    // Predicated region
    $region6: #{my_transformer_forward.9} parent=1 // pred_check
      _
    $region7: #{my_transformer_forward.9} parent=1 // pred_check_branch
      %12 = sbr.rel (0) target = $region9
    $region8: #{my_transformer_forward.9} parent=1 // pred_region
      _
    $region9: #{my_transformer_forward.9} parent=1 // pred_fallthru
      _
    // Predicated region
    $region10: #{my_transformer_forward.9} parent=1 // pred_check
      _
    $region11: #{my_transformer_forward.9} parent=1 // pred_check_branch
      %14 = sbr.rel (0) target = $region13
    $region12: #{my_transformer_forward.9} parent=1 // pred_region
      _
    $region13: #{my_transformer_forward.9} parent=1 // pred_fallthru
      _
    %v16 = vld [vmem:[%s0] sm:$0xf]
    %v17 = vld [vmem:[%s0 + $0x4] sm:$0xf]
    %v18 = vld [vmem:[%s1] sm:$0xf]
    %v19 = vld [vmem:[%s1 + $0x4] sm:$0xf]
    %v20 = vld [vmem:[%s1 + $0x8] sm:$0xf]
    %v21 = vld [vmem:[%s1 + $0xc] sm:$0xf]
    %v22 = vld [vmem:[%s2] sm:$0x1]
    %v24 = vperm.slane %v22, 0
    %v28 = vunpack.c.l.b16 %v16
    %v29 = vunpack.c.l.b16 %v17
    %v30 = vpack.c.b16 %v29, %v28
    %v35 = vunpack.c.l.b16 %v18
    %v36 = vunpack.c.l.b16 %v19
    %v37 = vunpack.c.l.b16 %v20
    %v38 = vunpack.c.l.b16 %v21
    %v39 = vpack.c.b16 %v36, %v35
    %v40 = vpack.c.b16 %v38, %v37
    %vm43 = vcmask 261120
    %v45 = vsel %vm43, %v30, 0
    %47 = vmatpush.bf16.msra.mxu0 0
    %48 = vmatpush.bf16.msra.mxu0 0
    %49 = vmatpush.bf16.msra.mxu0 0
    %50 = vmatpush.bf16.msra.mxu0 0
    %51 = vmatpush.bf16.msra.mxu0 0
    %52 = vmatpush.bf16.msra.mxu0 0
    %53 = vmatpush.bf16.msra.mxu0 %v40
    %54 = vmatpush.bf16.msra.mxu0 %v39
    %55 = vmatmul.bf16.gmra.mxu0 %v45
    %v56 = vpop.f32.mrf.mxu0
    %v57 = vadd.f32 %v24, %v56
    %v58 = vpop.f32.mrf.mxu0
    %v59 = vadd.f32 %v24, %v58
    %60 = vdwg.mxu0
    %vm61 = vcmask 523264
    %62 = vst.msk [vmem:[#allocation2] sm:$0xff] %vm61, %v57
    %63 = vst.msk [vmem:[#allocation2 + $0x8] sm:$0xff] %vm61, %v59
    // Predicated region
    $region14: #{my_transformer_forward.9} parent=1 // pred_check
      _
    $region15: #{my_transformer_forward.9} parent=1 // pred_check_branch
      %65 = sbr.rel (0) target = $region17
    $region16: #{my_transformer_forward.9} parent=1 // pred_region
      %67 = vsyncadd [#allocation3], 0
      %s68 = sshll.u32 [#allocation2], 4
      %s69 = int_to_ptr.vmem [resolvable:$true] %s68
      %s70 = sshll.u32 %s3, 4
      %s71 = int_to_ptr.hbm [resolvable:$true] %s70
      %76 = dma.vmem_to_hbm [thread:$0]  %s69, 256, %s71, [#allocation3], 128, 128, 8
    $region17: #{my_transformer_forward.9} parent=1 // pred_fallthru
      _
    // Predicated region
    $region18: #{my_transformer_forward.9} parent=1 // pred_check
      _
    $region19: #{my_transformer_forward.9} parent=1 // pred_check_branch
      %78 = sbr.rel (0) target = $region21
    $region20: #{my_transformer_forward.9} parent=1 // pred_region
      %80 = dma.done [#allocation3], 256
    $region21: #{my_transformer_forward.9} parent=1 // pred_fallthru
      _
    %81 = vsyncpa [#allocation3], 1

// kernel: my_transformer_forward.7
$region0: #{my_transformer_forward.7}
  #allocation0 [shape = 'u32[]', space=smem, size = 0x4, offset = 0x4, fixed_abs, tag = 'smem constant byte address 0x4 - core index']
  #allocation1 [shape = 'u32[72,128]{1,0:T(1,128)}', space=vmem, size = 0x9000, scoped, tag = 'internal scratch']
  %s0 = inlined_call_operand.vmem [shape: bf16[2,8,32], index: 0, kind: input, shape index: {}]
  %s1 = inlined_call_operand.vmem [shape: bf16[2,8,32], index: 1, kind: input, shape index: {}]
  %s2 = inlined_call_operand.vmem [shape: f32[1,8,32], index: 2, kind: input, shape index: {}]
  %s3 = inlined_call_operand.vmem [shape: bf16[32,96], index: 3, kind: input, shape index: {}]
  %s4 = inlined_call_operand.hbm [shape: f32[1,96], index: 4, kind: input, shape index: {}]
  %s5 = inlined_call_operand.vmem [shape: bf16[32,32], index: 5, kind: input, shape index: {}]
  %s6 = inlined_call_operand.hbm [shape: f32[1,32], index: 6, kind: input, shape index: {}]
  %s7 = inlined_call_operand.hbm [shape: f32[1,32], index: 7, kind: input, shape index: {}]
  %s8 = inlined_call_operand.hbm [shape: f32[1,32], index: 8, kind: input, shape index: {}]
  %s9 = inlined_call_operand.vmem [shape: bf16[32,32], index: 9, kind: input, shape index: {}]
  %s10 = inlined_call_operand.hbm [shape: f32[1,32], index: 10, kind: input, shape index: {}]
  %s11 = inlined_call_operand.vmem [shape: bf16[32,64], index: 11, kind: input, shape index: {}]
  %s12 = inlined_call_operand.hbm [shape: f32[1,64], index: 12, kind: input, shape index: {}]
  %s13 = inlined_call_operand.vmem [shape: bf16[32,32], index: 13, kind: input, shape index: {}]
  %s14 = inlined_call_operand.hbm [shape: f32[1,32], index: 14, kind: input, shape index: {}]
  %s15 = inlined_call_operand.hbm [shape: f32[1,32], index: 15, kind: input, shape index: {}]
  %s16 = inlined_call_operand.hbm [shape: f32[1,32], index: 16, kind: input, shape index: {}]
  %s17 = inlined_call_operand.vmem [shape: bf16[32,64], index: 17, kind: input, shape index: {}]
  %s18 = inlined_call_operand.hbm [shape: f32[1,64], index: 18, kind: input, shape index: {}]
  %s19 = inlined_call_operand.vmem [shape: bf16[64,32], index: 19, kind: input, shape index: {}]
  %s20 = inlined_call_operand.hbm [shape: f32[1,32], index: 20, kind: input, shape index: {}]
  %s21 = inlined_call_operand.hbm [shape: f32[1,32], index: 21, kind: input, shape index: {}]
  %s22 = inlined_call_operand.hbm [shape: f32[1,32], index: 22, kind: input, shape index: {}]
  %s23 = inlined_call_operand.vmem [shape: bf16[2,8,32], index: 23, kind: output, shape index: {}]
  %s24 = sld [smem:[#allocation0]]
  $region177: #{my_transformer_forward.7} parent=0
    _
  %s26 = ssub.s32 1, %s24
  %s27 = scalar_select 0, %s26, %s24
  $region1: #{my_transformer_forward.7} parent=0
    #allocation2 [shape = 'u8[512]{0}', space=vmem, size = 0x400, scoped, tag = 'input window, operand 4, single buffered']
    #allocation3 [shape = 's32[2]{0}', space=sflag, size = 0x8, scoped, tag = 'scoped memory for my_transformer_forward.7']
    #allocation4 [shape = 'u8[512]{0}', space=vmem, size = 0x400, scoped, tag = 'input window, operand 6, single buffered']
    #allocation5 [shape = 's32[1]{0}', space=sflag, size = 0x4, scoped, tag = 'scoped memory for my_transformer_forward.7']
    #allocation6 [shape = 'u8[512]{0}', space=vmem, size = 0x400, scoped, tag = 'input window, operand 7, single buffered']
    #allocation7 [shape = 'u8[512]{0}', space=vmem, size = 0x400, scoped, tag = 'input window, operand 8, single buffered']
    #allocation8 [shape = 's32[1]{0}', space=sflag, size = 0x4, scoped, tag = 'scoped memory for my_transformer_forward.7']
    #allocation9 [shape = 'u8[512]{0}', space=vmem, size = 0x400, scoped, tag = 'input window, operand 10, single buffered']
    #allocation10 [shape = 'u8[512]{0}', space=vmem, size = 0x400, scoped, tag = 'input window, operand 12, single buffered']
    #allocation11 [shape = 's32[1]{0}', space=sflag, size = 0x4, scoped, tag = 'scoped memory for my_transformer_forward.7']
    #allocation12 [shape = 'u8[512]{0}', space=vmem, size = 0x400, scoped, tag = 'input window, operand 14, single buffered']
    #allocation13 [shape = 'u8[512]{0}', space=vmem, size = 0x400, scoped, tag = 'input window, operand 15, single buffered']
    #allocation14 [shape = 's32[1]{0}', space=sflag, size = 0x4, scoped, tag = 'scoped memory for my_transformer_forward.7']
    #allocation15 [shape = 'u8[512]{0}', space=vmem, size = 0x400, scoped, tag = 'input window, operand 16, single buffered']
    #allocation16 [shape = 'u8[512]{0}', space=vmem, size = 0x400, scoped, tag = 'input window, operand 18, single buffered']
    #allocation17 [shape = 's32[1]{0}', space=sflag, size = 0x4, scoped, tag = 'scoped memory for my_transformer_forward.7']
    #allocation18 [shape = 'u8[512]{0}', space=vmem, size = 0x400, scoped, tag = 'input window, operand 20, single buffered']
    #allocation19 [shape = 'u8[512]{0}', space=vmem, size = 0x400, scoped, tag = 'input window, operand 21, single buffered']
    #allocation20 [shape = 's32[1]{0}', space=sflag, size = 0x4, scoped, tag = 'scoped memory for my_transformer_forward.7']
    #allocation21 [shape = 'u8[512]{0}', space=vmem, size = 0x400, scoped, tag = 'input window, operand 22, single buffered']
    %28 = vsyncpa [#allocation3], 0
    %29 = vsyncpa [#allocation5], 0
    %30 = vsyncpa [#allocation8], 0
    %31 = vsyncpa [#allocation11], 0
    %32 = vsyncpa [#allocation14], 0
    %33 = vsyncpa [#allocation17], 0
    %34 = vsyncpa [#allocation20], 0
    loop: start=0, step=1, limit=4
    $region2: #{my_transformer_forward.7} parent=1 // loop_pre_header
      _
    $region3: #{my_transformer_forward.7} parent=1 // loop_header
      %s36 = sphi 0, %s40
      %p37 = scmp.ge.s32.totalorder %s36, 4
      %s46 = sphi 0, %s48
      %s49 = sphi 0, %s46
      %s50 = sphi 0, %s49
      %s66 = sphi 0, %s50
      %s72 = sphi 0, %s74
      %s75 = sphi 0, %s72
      %s76 = sphi 0, %s75
      %s92 = sphi 0, %s76
      %s96 = sphi 0, %s96
      %s98 = sphi 0, %s96
      %s99 = sphi 0, %s98
      %s113 = sphi 0, %s99
      %s117 = sphi 0, %s117
      %s119 = sphi 0, %s117
      %s120 = sphi 0, %s119
      %s134 = sphi 0, %s120
      %s138 = sphi 0, %s138
      %s140 = sphi 0, %s138
      %s141 = sphi 0, %s140
      %s155 = sphi 0, %s141
      %s159 = sphi 0, %s159
      %s161 = sphi 0, %s159
      %s162 = sphi 0, %s161
      %s176 = sphi 0, %s162
      %s180 = sphi 0, %s180
      %s182 = sphi 0, %s180
      %s183 = sphi 0, %s182
      %s197 = sphi 0, %s183
      %s201 = sphi 0, %s201
      %s203 = sphi 0, %s201
      %s204 = sphi 0, %s203
      %s218 = sphi 0, %s204
      %s222 = sphi 0, %s222
      %s224 = sphi 0, %s222
      %s225 = sphi 0, %s224
      %s239 = sphi 0, %s225
      %s243 = sphi 0, %s243
      %s245 = sphi 0, %s243
      %s246 = sphi 0, %s245
      %s260 = sphi 0, %s246
      %s264 = sphi 0, %s264
      %s266 = sphi 0, %s264
      %s267 = sphi 0, %s266
      %s281 = sphi 0, %s267
      %s285 = sphi 0, %s285
      %s287 = sphi 0, %s285
      %s288 = sphi 0, %s287
      %s302 = sphi 0, %s288
      %s306 = sphi 0, %s306
      %s308 = sphi 0, %s306
      %s309 = sphi 0, %s308
      %s323 = sphi 0, %s309
      %s327 = sphi 0, %s327
      %s329 = sphi 0, %s327
      %s330 = sphi 0, %s329
      %s344 = sphi 0, %s330
      %s348 = sphi 0, %s348
      %s350 = sphi 0, %s348
      %s351 = sphi 0, %s350
      %s365 = sphi 0, %s351
      %s369 = sphi 0, %s369
      %s371 = sphi 0, %s369
      %s372 = sphi 0, %s371
      %s386 = sphi 0, %s372
      %s390 = sphi 0, %s390
      %s392 = sphi 0, %s390
      %s393 = sphi 0, %s392
      %s407 = sphi 0, %s393
      %s411 = sphi 0, %s411
      %s413 = sphi 0, %s411
      %s414 = sphi 0, %s413
      %s428 = sphi 0, %s414
      %s432 = sphi 0, %s432
      %s434 = sphi 0, %s432
      %s435 = sphi 0, %s434
      %s449 = sphi 0, %s435
      %s453 = sphi 0, %s453
      %s455 = sphi 0, %s453
      %s456 = sphi 0, %s455
      %s470 = sphi 0, %s456
      %s474 = sphi 0, %s474
      %s476 = sphi 0, %s474
      %s477 = sphi 0, %s476
      %s491 = sphi 0, %s477
      %s495 = sphi 0, %s495
      %s497 = sphi 0, %s495
      %s498 = sphi 0, %s497
      %s512 = sphi 0, %s498
      %s516 = sphi 0, %s516
      %s518 = sphi 0, %s516
      %s519 = sphi 0, %s518
      %s533 = sphi 0, %s519
      %s539 = sphi 0, %s541
      %s542 = sphi 0, %s539
      %s543 = sphi 0, %s542
      %s559 = sphi 0, %s543
    $region4: #{my_transformer_forward.7} parent=1 // loop_header_branch
      %39 = sbr.rel (%p37) target = $region8
    $region5: #{my_transformer_forward.7} parent=1 // loop_body
      %s41 = ssub.s32 %s36, 1
      %s42 = ssub.s32 %s36, 2
      %s43 = sadd.s32 %s36, 1
      %s44 = ssub.s32 %s36, %s43
      %p45 = scmp.eq.s32.totalorder %s44, 0
      %s47 = sadd.s32 %s46, 1
      %s48 = scalar_select %p45, %s46, %s47
      %p51 = pneg %p45
      %p52 = scmp.eq.s32.totalorder %s36, 1
      %p53 = por %p51, %p52
      %p54 = scmp.ne.s32.totalorder %s46, %s49
      %p55 = scmp.eq.s32.totalorder %s36, 0
      %p56 = por %p54, %p55
      %p57 = scmp.ne.s32.totalorder %s46, %s49
      %p58 = scmp.eq.s32.totalorder %s41, 1
      %p59 = por %p57, %p58
      %p60 = scmp.ne.s32.totalorder %s49, %s50
      %p61 = scmp.eq.s32.totalorder %s41, 0
      %p62 = por %p60, %p61
      %p63 = scmp.ne.s32.totalorder %s49, %s50
      %p64 = scmp.eq.s32.totalorder %s42, 1
      %p65 = por %p63, %p64
      %p67 = scmp.ne.s32.totalorder %s50, %s66
      %p68 = scmp.eq.s32.totalorder %s42, 0
      %p69 = por %p67, %p68
      %s70 = ssub.s32 %s36, %s43
      %p71 = scmp.eq.s32.totalorder %s70, 0
      %s73 = sadd.s32 %s72, 1
      %s74 = scalar_select %p71, %s72, %s73
      %p77 = pneg %p71
      %p78 = scmp.eq.s32.totalorder %s36, 1
      %p79 = por %p77, %p78
      %p80 = scmp.ne.s32.totalorder %s72, %s75
      %p81 = scmp.eq.s32.totalorder %s36, 0
      %p82 = por %p80, %p81
      %p83 = scmp.ne.s32.totalorder %s72, %s75
      %p84 = scmp.eq.s32.totalorder %s41, 1
      %p85 = por %p83, %p84
      %p86 = scmp.ne.s32.totalorder %s75, %s76
      %p87 = scmp.eq.s32.totalorder %s41, 0
      %p88 = por %p86, %p87
      %p89 = scmp.ne.s32.totalorder %s75, %s76
      %p90 = scmp.eq.s32.totalorder %s42, 1
      %p91 = por %p89, %p90
      %p93 = scmp.ne.s32.totalorder %s76, %s92
      %p94 = scmp.eq.s32.totalorder %s42, 0
      %p95 = por %p93, %p94
      %s97 = sadd.s32 %s96, 1
      %p100 = scmp.eq.s32.totalorder %s36, 1
      %p101 = scmp.ne.s32.totalorder %s96, %s98
      %p102 = scmp.eq.s32.totalorder %s36, 0
      %p103 = por %p101, %p102
      %p104 = scmp.ne.s32.totalorder %s96, %s98
      %p105 = scmp.eq.s32.totalorder %s41, 1
      %p106 = por %p104, %p105
      %p107 = scmp.ne.s32.totalorder %s98, %s99
      %p108 = scmp.eq.s32.totalorder %s41, 0
      %p109 = por %p107, %p108
      %p110 = scmp.ne.s32.totalorder %s98, %s99
      %p111 = scmp.eq.s32.totalorder %s42, 1
      %p112 = por %p110, %p111
      %p114 = scmp.ne.s32.totalorder %s99, %s113
      %p115 = scmp.eq.s32.totalorder %s42, 0
      %p116 = por %p114, %p115
      %s118 = sadd.s32 %s117, 1
      %p121 = scmp.eq.s32.totalorder %s36, 1
      %p122 = scmp.ne.s32.totalorder %s117, %s119
      %p123 = scmp.eq.s32.totalorder %s36, 0
      %p124 = por %p122, %p123
      %p125 = scmp.ne.s32.totalorder %s117, %s119
      %p126 = scmp.eq.s32.totalorder %s41, 1
      %p127 = por %p125, %p126
      %p128 = scmp.ne.s32.totalorder %s119, %s120
      %p129 = scmp.eq.s32.totalorder %s41, 0
      %p130 = por %p128, %p129
      %p131 = scmp.ne.s32.totalorder %s119, %s120
      %p132 = scmp.eq.s32.totalorder %s42, 1
      %p133 = por %p131, %p132
      %p135 = scmp.ne.s32.totalorder %s120, %s134
      %p136 = scmp.eq.s32.totalorder %s42, 0
      %p137 = por %p135, %p136
      %s139 = sadd.s32 %s138, 1
      %p142 = scmp.eq.s32.totalorder %s36, 1
      %p143 = scmp.ne.s32.totalorder %s138, %s140
      %p144 = scmp.eq.s32.totalorder %s36, 0
      %p145 = por %p143, %p144
      %p146 = scmp.ne.s32.totalorder %s138, %s140
      %p147 = scmp.eq.s32.totalorder %s41, 1
      %p148 = por %p146, %p147
      %p149 = scmp.ne.s32.totalorder %s140, %s141
      %p150 = scmp.eq.s32.totalorder %s41, 0
      %p151 = por %p149, %p150
      %p152 = scmp.ne.s32.totalorder %s140, %s141
      %p153 = scmp.eq.s32.totalorder %s42, 1
      %p154 = por %p152, %p153
      %p156 = scmp.ne.s32.totalorder %s141, %s155
      %p157 = scmp.eq.s32.totalorder %s42, 0
      %p158 = por %p156, %p157
      %s160 = sadd.s32 %s159, 1
      %p163 = scmp.eq.s32.totalorder %s36, 1
      %p164 = scmp.ne.s32.totalorder %s159, %s161
      %p165 = scmp.eq.s32.totalorder %s36, 0
      %p166 = por %p164, %p165
      %p167 = scmp.ne.s32.totalorder %s159, %s161
      %p168 = scmp.eq.s32.totalorder %s41, 1
      %p169 = por %p167, %p168
      %p170 = scmp.ne.s32.totalorder %s161, %s162
      %p171 = scmp.eq.s32.totalorder %s41, 0
      %p172 = por %p170, %p171
      %p173 = scmp.ne.s32.totalorder %s161, %s162
      %p174 = scmp.eq.s32.totalorder %s42, 1
      %p175 = por %p173, %p174
      %p177 = scmp.ne.s32.totalorder %s162, %s176
      %p178 = scmp.eq.s32.totalorder %s42, 0
      %p179 = por %p177, %p178
      %s181 = sadd.s32 %s180, 1
      %p184 = scmp.eq.s32.totalorder %s36, 1
      %p185 = scmp.ne.s32.totalorder %s180, %s182
      %p186 = scmp.eq.s32.totalorder %s36, 0
      %p187 = por %p185, %p186
      %p188 = scmp.ne.s32.totalorder %s180, %s182
      %p189 = scmp.eq.s32.totalorder %s41, 1
      %p190 = por %p188, %p189
      %p191 = scmp.ne.s32.totalorder %s182, %s183
      %p192 = scmp.eq.s32.totalorder %s41, 0
      %p193 = por %p191, %p192
      %p194 = scmp.ne.s32.totalorder %s182, %s183
      %p195 = scmp.eq.s32.totalorder %s42, 1
      %p196 = por %p194, %p195
      %p198 = scmp.ne.s32.totalorder %s183, %s197
      %p199 = scmp.eq.s32.totalorder %s42, 0
      %p200 = por %p198, %p199
      %s202 = sadd.s32 %s201, 1
      %p205 = scmp.eq.s32.totalorder %s36, 1
      %p206 = scmp.ne.s32.totalorder %s201, %s203
      %p207 = scmp.eq.s32.totalorder %s36, 0
      %p208 = por %p206, %p207
      %p209 = scmp.ne.s32.totalorder %s201, %s203
      %p210 = scmp.eq.s32.totalorder %s41, 1
      %p211 = por %p209, %p210
      %p212 = scmp.ne.s32.totalorder %s203, %s204
      %p213 = scmp.eq.s32.totalorder %s41, 0
      %p214 = por %p212, %p213
      %p215 = scmp.ne.s32.totalorder %s203, %s204
      %p216 = scmp.eq.s32.totalorder %s42, 1
      %p217 = por %p215, %p216
      %p219 = scmp.ne.s32.totalorder %s204, %s218
      %p220 = scmp.eq.s32.totalorder %s42, 0
      %p221 = por %p219, %p220
      %s223 = sadd.s32 %s222, 1
      %p226 = scmp.eq.s32.totalorder %s36, 1
      %p227 = scmp.ne.s32.totalorder %s222, %s224
      %p228 = scmp.eq.s32.totalorder %s36, 0
      %p229 = por %p227, %p228
      %p230 = scmp.ne.s32.totalorder %s222, %s224
      %p231 = scmp.eq.s32.totalorder %s41, 1
      %p232 = por %p230, %p231
      %p233 = scmp.ne.s32.totalorder %s224, %s225
      %p234 = scmp.eq.s32.totalorder %s41, 0
      %p235 = por %p233, %p234
      %p236 = scmp.ne.s32.totalorder %s224, %s225
      %p237 = scmp.eq.s32.totalorder %s42, 1
      %p238 = por %p236, %p237
      %p240 = scmp.ne.s32.totalorder %s225, %s239
      %p241 = scmp.eq.s32.totalorder %s42, 0
      %p242 = por %p240, %p241
      %s244 = sadd.s32 %s243, 1
      %p247 = scmp.eq.s32.totalorder %s36, 1
      %p248 = scmp.ne.s32.totalorder %s243, %s245
      %p249 = scmp.eq.s32.totalorder %s36, 0
      %p250 = por %p248, %p249
      %p251 = scmp.ne.s32.totalorder %s243, %s245
      %p252 = scmp.eq.s32.totalorder %s41, 1
      %p253 = por %p251, %p252
      %p254 = scmp.ne.s32.totalorder %s245, %s246
      %p255 = scmp.eq.s32.totalorder %s41, 0
      %p256 = por %p254, %p255
      %p257 = scmp.ne.s32.totalorder %s245, %s246
      %p258 = scmp.eq.s32.totalorder %s42, 1
      %p259 = por %p257, %p258
      %p261 = scmp.ne.s32.totalorder %s246, %s260
      %p262 = scmp.eq.s32.totalorder %s42, 0
      %p263 = por %p261, %p262
      %s265 = sadd.s32 %s264, 1
      %p268 = scmp.eq.s32.totalorder %s36, 1
      %p269 = scmp.ne.s32.totalorder %s264, %s266
      %p270 = scmp.eq.s32.totalorder %s36, 0
      %p271 = por %p269, %p270
      %p272 = scmp.ne.s32.totalorder %s264, %s266
      %p273 = scmp.eq.s32.totalorder %s41, 1
      %p274 = por %p272, %p273
      %p275 = scmp.ne.s32.totalorder %s266, %s267
      %p276 = scmp.eq.s32.totalorder %s41, 0
      %p277 = por %p275, %p276
      %p278 = scmp.ne.s32.totalorder %s266, %s267
      %p279 = scmp.eq.s32.totalorder %s42, 1
      %p280 = por %p278, %p279
      %p282 = scmp.ne.s32.totalorder %s267, %s281
      %p283 = scmp.eq.s32.totalorder %s42, 0
      %p284 = por %p282, %p283
      %s286 = sadd.s32 %s285, 1
      %p289 = scmp.eq.s32.totalorder %s36, 1
      %p290 = scmp.ne.s32.totalorder %s285, %s287
      %p291 = scmp.eq.s32.totalorder %s36, 0
      %p292 = por %p290, %p291
      %p293 = scmp.ne.s32.totalorder %s285, %s287
      %p294 = scmp.eq.s32.totalorder %s41, 1
      %p295 = por %p293, %p294
      %p296 = scmp.ne.s32.totalorder %s287, %s288
      %p297 = scmp.eq.s32.totalorder %s41, 0
      %p298 = por %p296, %p297
      %p299 = scmp.ne.s32.totalorder %s287, %s288
      %p300 = scmp.eq.s32.totalorder %s42, 1
      %p301 = por %p299, %p300
      %p303 = scmp.ne.s32.totalorder %s288, %s302
      %p304 = scmp.eq.s32.totalorder %s42, 0
      %p305 = por %p303, %p304
      %s307 = sadd.s32 %s306, 1
      %p310 = scmp.eq.s32.totalorder %s36, 1
      %p311 = scmp.ne.s32.totalorder %s306, %s308
      %p312 = scmp.eq.s32.totalorder %s36, 0
      %p313 = por %p311, %p312
      %p314 = scmp.ne.s32.totalorder %s306, %s308
      %p315 = scmp.eq.s32.totalorder %s41, 1
      %p316 = por %p314, %p315
      %p317 = scmp.ne.s32.totalorder %s308, %s309
      %p318 = scmp.eq.s32.totalorder %s41, 0
      %p319 = por %p317, %p318
      %p320 = scmp.ne.s32.totalorder %s308, %s309
      %p321 = scmp.eq.s32.totalorder %s42, 1
      %p322 = por %p320, %p321
      %p324 = scmp.ne.s32.totalorder %s309, %s323
      %p325 = scmp.eq.s32.totalorder %s42, 0
      %p326 = por %p324, %p325
      %s328 = sadd.s32 %s327, 1
      %p331 = scmp.eq.s32.totalorder %s36, 1
      %p332 = scmp.ne.s32.totalorder %s327, %s329
      %p333 = scmp.eq.s32.totalorder %s36, 0
      %p334 = por %p332, %p333
      %p335 = scmp.ne.s32.totalorder %s327, %s329
      %p336 = scmp.eq.s32.totalorder %s41, 1
      %p337 = por %p335, %p336
      %p338 = scmp.ne.s32.totalorder %s329, %s330
      %p339 = scmp.eq.s32.totalorder %s41, 0
      %p340 = por %p338, %p339
      %p341 = scmp.ne.s32.totalorder %s329, %s330
      %p342 = scmp.eq.s32.totalorder %s42, 1
      %p343 = por %p341, %p342
      %p345 = scmp.ne.s32.totalorder %s330, %s344
      %p346 = scmp.eq.s32.totalorder %s42, 0
      %p347 = por %p345, %p346
      %s349 = sadd.s32 %s348, 1
      %p352 = scmp.eq.s32.totalorder %s36, 1
      %p353 = scmp.ne.s32.totalorder %s348, %s350
      %p354 = scmp.eq.s32.totalorder %s36, 0
      %p355 = por %p353, %p354
      %p356 = scmp.ne.s32.totalorder %s348, %s350
      %p357 = scmp.eq.s32.totalorder %s41, 1
      %p358 = por %p356, %p357
      %p359 = scmp.ne.s32.totalorder %s350, %s351
      %p360 = scmp.eq.s32.totalorder %s41, 0
      %p361 = por %p359, %p360
      %p362 = scmp.ne.s32.totalorder %s350, %s351
      %p363 = scmp.eq.s32.totalorder %s42, 1
      %p364 = por %p362, %p363
      %p366 = scmp.ne.s32.totalorder %s351, %s365
      %p367 = scmp.eq.s32.totalorder %s42, 0
      %p368 = por %p366, %p367
      %s370 = sadd.s32 %s369, 1
      %p373 = scmp.eq.s32.totalorder %s36, 1
      %p374 = scmp.ne.s32.totalorder %s369, %s371
      %p375 = scmp.eq.s32.totalorder %s36, 0
      %p376 = por %p374, %p375
      %p377 = scmp.ne.s32.totalorder %s369, %s371
      %p378 = scmp.eq.s32.totalorder %s41, 1
      %p379 = por %p377, %p378
      %p380 = scmp.ne.s32.totalorder %s371, %s372
      %p381 = scmp.eq.s32.totalorder %s41, 0
      %p382 = por %p380, %p381
      %p383 = scmp.ne.s32.totalorder %s371, %s372
      %p384 = scmp.eq.s32.totalorder %s42, 1
      %p385 = por %p383, %p384
      %p387 = scmp.ne.s32.totalorder %s372, %s386
      %p388 = scmp.eq.s32.totalorder %s42, 0
      %p389 = por %p387, %p388
      %s391 = sadd.s32 %s390, 1
      %p394 = scmp.eq.s32.totalorder %s36, 1
      %p395 = scmp.ne.s32.totalorder %s390, %s392
      %p396 = scmp.eq.s32.totalorder %s36, 0
      %p397 = por %p395, %p396
      %p398 = scmp.ne.s32.totalorder %s390, %s392
      %p399 = scmp.eq.s32.totalorder %s41, 1
      %p400 = por %p398, %p399
      %p401 = scmp.ne.s32.totalorder %s392, %s393
      %p402 = scmp.eq.s32.totalorder %s41, 0
      %p403 = por %p401, %p402
      %p404 = scmp.ne.s32.totalorder %s392, %s393
      %p405 = scmp.eq.s32.totalorder %s42, 1
      %p406 = por %p404, %p405
      %p408 = scmp.ne.s32.totalorder %s393, %s407
      %p409 = scmp.eq.s32.totalorder %s42, 0
      %p410 = por %p408, %p409
      %s412 = sadd.s32 %s411, 1
      %p415 = scmp.eq.s32.totalorder %s36, 1
      %p416 = scmp.ne.s32.totalorder %s411, %s413
      %p417 = scmp.eq.s32.totalorder %s36, 0
      %p418 = por %p416, %p417
      %p419 = scmp.ne.s32.totalorder %s411, %s413
      %p420 = scmp.eq.s32.totalorder %s41, 1
      %p421 = por %p419, %p420
      %p422 = scmp.ne.s32.totalorder %s413, %s414
      %p423 = scmp.eq.s32.totalorder %s41, 0
      %p424 = por %p422, %p423
      %p425 = scmp.ne.s32.totalorder %s413, %s414
      %p426 = scmp.eq.s32.totalorder %s42, 1
      %p427 = por %p425, %p426
      %p429 = scmp.ne.s32.totalorder %s414, %s428
      %p430 = scmp.eq.s32.totalorder %s42, 0
      %p431 = por %p429, %p430
      %s433 = sadd.s32 %s432, 1
      %p436 = scmp.eq.s32.totalorder %s36, 1
      %p437 = scmp.ne.s32.totalorder %s432, %s434
      %p438 = scmp.eq.s32.totalorder %s36, 0
      %p439 = por %p437, %p438
      %p440 = scmp.ne.s32.totalorder %s432, %s434
      %p441 = scmp.eq.s32.totalorder %s41, 1
      %p442 = por %p440, %p441
      %p443 = scmp.ne.s32.totalorder %s434, %s435
      %p444 = scmp.eq.s32.totalorder %s41, 0
      %p445 = por %p443, %p444
      %p446 = scmp.ne.s32.totalorder %s434, %s435
      %p447 = scmp.eq.s32.totalorder %s42, 1
      %p448 = por %p446, %p447
      %p450 = scmp.ne.s32.totalorder %s435, %s449
      %p451 = scmp.eq.s32.totalorder %s42, 0
      %p452 = por %p450, %p451
      %s454 = sadd.s32 %s453, 1
      %p457 = scmp.eq.s32.totalorder %s36, 1
      %p458 = scmp.ne.s32.totalorder %s453, %s455
      %p459 = scmp.eq.s32.totalorder %s36, 0
      %p460 = por %p458, %p459
      %p461 = scmp.ne.s32.totalorder %s453, %s455
      %p462 = scmp.eq.s32.totalorder %s41, 1
      %p463 = por %p461, %p462
      %p464 = scmp.ne.s32.totalorder %s455, %s456
      %p465 = scmp.eq.s32.totalorder %s41, 0
      %p466 = por %p464, %p465
      %p467 = scmp.ne.s32.totalorder %s455, %s456
      %p468 = scmp.eq.s32.totalorder %s42, 1
      %p469 = por %p467, %p468
      %p471 = scmp.ne.s32.totalorder %s456, %s470
      %p472 = scmp.eq.s32.totalorder %s42, 0
      %p473 = por %p471, %p472
      %s475 = sadd.s32 %s474, 1
      %p478 = scmp.eq.s32.totalorder %s36, 1
      %p479 = scmp.ne.s32.totalorder %s474, %s476
      %p480 = scmp.eq.s32.totalorder %s36, 0
      %p481 = por %p479, %p480
      %p482 = scmp.ne.s32.totalorder %s474, %s476
      %p483 = scmp.eq.s32.totalorder %s41, 1
      %p484 = por %p482, %p483
      %p485 = scmp.ne.s32.totalorder %s476, %s477
      %p486 = scmp.eq.s32.totalorder %s41, 0
      %p487 = por %p485, %p486
      %p488 = scmp.ne.s32.totalorder %s476, %s477
      %p489 = scmp.eq.s32.totalorder %s42, 1
      %p490 = por %p488, %p489
      %p492 = scmp.ne.s32.totalorder %s477, %s491
      %p493 = scmp.eq.s32.totalorder %s42, 0
      %p494 = por %p492, %p493
      %s496 = sadd.s32 %s495, 1
      %p499 = scmp.eq.s32.totalorder %s36, 1
      %p500 = scmp.ne.s32.totalorder %s495, %s497
      %p501 = scmp.eq.s32.totalorder %s36, 0
      %p502 = por %p500, %p501
      %p503 = scmp.ne.s32.totalorder %s495, %s497
      %p504 = scmp.eq.s32.totalorder %s41, 1
      %p505 = por %p503, %p504
      %p506 = scmp.ne.s32.totalorder %s497, %s498
      %p507 = scmp.eq.s32.totalorder %s41, 0
      %p508 = por %p506, %p507
      %p509 = scmp.ne.s32.totalorder %s497, %s498
      %p510 = scmp.eq.s32.totalorder %s42, 1
      %p511 = por %p509, %p510
      %p513 = scmp.ne.s32.totalorder %s498, %s512
      %p514 = scmp.eq.s32.totalorder %s42, 0
      %p515 = por %p513, %p514
      %s517 = sadd.s32 %s516, 1
      %p520 = scmp.eq.s32.totalorder %s36, 1
      %p521 = scmp.ne.s32.totalorder %s516, %s518
      %p522 = scmp.eq.s32.totalorder %s36, 0
      %p523 = por %p521, %p522
      %p524 = scmp.ne.s32.totalorder %s516, %s518
      %p525 = scmp.eq.s32.totalorder %s41, 1
      %p526 = por %p524, %p525
      %p527 = scmp.ne.s32.totalorder %s518, %s519
      %p528 = scmp.eq.s32.totalorder %s41, 0
      %p529 = por %p527, %p528
      %p530 = scmp.ne.s32.totalorder %s518, %s519
      %p531 = scmp.eq.s32.totalorder %s42, 1
      %p532 = por %p530, %p531
      %p534 = scmp.ne.s32.totalorder %s519, %s533
      %p535 = scmp.eq.s32.totalorder %s42, 0
      %p536 = por %p534, %p535
      %s537 = ssub.s32 %s36, %s43
      %p538 = scmp.eq.s32.totalorder %s537, 0
      %s540 = sadd.s32 %s539, 1
      %s541 = scalar_select %p538, %s539, %s540
      %p544 = pneg %p538
      %p545 = scmp.eq.s32.totalorder %s36, 1
      %p546 = por %p544, %p545
      %p547 = scmp.ne.s32.totalorder %s539, %s542
      %p548 = scmp.eq.s32.totalorder %s36, 0
      %p549 = por %p547, %p548
      %p550 = scmp.ne.s32.totalorder %s539, %s542
      %p551 = scmp.eq.s32.totalorder %s41, 1
      %p552 = por %p550, %p551
      %p553 = scmp.ne.s32.totalorder %s542, %s543
      %p554 = scmp.eq.s32.totalorder %s41, 0
      %p555 = por %p553, %p554
      %p556 = scmp.ne.s32.totalorder %s542, %s543
      %p557 = scmp.eq.s32.totalorder %s42, 1
      %p558 = por %p556, %p557
      %p560 = scmp.ne.s32.totalorder %s543, %s559
      %p561 = scmp.eq.s32.totalorder %s42, 0
      %p562 = por %p560, %p561
      %p563 = scmp.le.s32.totalorder 1, %s36
      %p564 = scmp.lt.s32.totalorder %s36, 3
      %p565 = pnand %p563, %p564
      %p566 = pneg %p565
      // Predicated region
      $region9: #{my_transformer_forward.7} parent=5 // pred_check
        _
      $region10: #{my_transformer_forward.7} parent=5 // pred_check_branch
        %568 = sbr.rel (%p565) target = $region12
      $region11: #{my_transformer_forward.7} parent=5 // pred_region
        %s569 = ssub.s32 %s36, 1
        // Predicated region
        $region13: #{my_transformer_forward.7} parent=11 // pred_check
          %p570 = pneg %p109
        $region14: #{my_transformer_forward.7} parent=11 // pred_check_branch
          %572 = sbr.rel (%p570) target = $region16
        $region15: #{my_transformer_forward.7} parent=11 // pred_region
          _
        $region16: #{my_transformer_forward.7} parent=11 // pred_fallthru
          _
        // Predicated region
        $region17: #{my_transformer_forward.7} parent=11 // pred_check
          %p573 = pneg %p130
        $region18: #{my_transformer_forward.7} parent=11 // pred_check_branch
          %575 = sbr.rel (%p573) target = $region20
        $region19: #{my_transformer_forward.7} parent=11 // pred_region
          _
        $region20: #{my_transformer_forward.7} parent=11 // pred_fallthru
          _
        // Predicated region
        $region21: #{my_transformer_forward.7} parent=11 // pred_check
          %p576 = pneg %p151
        $region22: #{my_transformer_forward.7} parent=11 // pred_check_branch
          %578 = sbr.rel (%p576) target = $region24
        $region23: #{my_transformer_forward.7} parent=11 // pred_region
          %580 = vsyncadd [#allocation3], 0
          %s582 = sshll.u32 %s4, 4
          %s583 = int_to_ptr.hbm [resolvable:$true] %s582
          %s584 = sshll.u32 [#allocation2], 4
          %s585 = int_to_ptr.vmem [resolvable:$true] %s584
          %587 = dma.hbm_to_vmem [thread:$0]  %s583, 16, %s585, [#allocation3]
        $region24: #{my_transformer_forward.7} parent=11 // pred_fallthru
          _
        // Predicated region
        $region25: #{my_transformer_forward.7} parent=11 // pred_check
          %p588 = pneg %p172
        $region26: #{my_transformer_forward.7} parent=11 // pred_check_branch
          %590 = sbr.rel (%p588) target = $region28
        $region27: #{my_transformer_forward.7} parent=11 // pred_region
          _
        $region28: #{my_transformer_forward.7} parent=11 // pred_fallthru
          _
        // Predicated region
        $region29: #{my_transformer_forward.7} parent=11 // pred_check
          %p591 = pneg %p193
        $region30: #{my_transformer_forward.7} parent=11 // pred_check_branch
          %593 = sbr.rel (%p591) target = $region32
        $region31: #{my_transformer_forward.7} parent=11 // pred_region
          %595 = vsyncadd [#allocation5], 0
          %s597 = sshll.u32 %s6, 4
          %s598 = int_to_ptr.hbm [resolvable:$true] %s597
          %s599 = sshll.u32 [#allocation4], 4
          %s600 = int_to_ptr.vmem [resolvable:$true] %s599
          %602 = dma.hbm_to_vmem [thread:$0]  %s598, 16, %s600, [#allocation5]
        $region32: #{my_transformer_forward.7} parent=11 // pred_fallthru
          _
        // Predicated region
        $region33: #{my_transformer_forward.7} parent=11 // pred_check
          %p603 = pneg %p214
        $region34: #{my_transformer_forward.7} parent=11 // pred_check_branch
          %605 = sbr.rel (%p603) target = $region36
        $region35: #{my_transformer_forward.7} parent=11 // pred_region
          %607 = vsyncadd [#allocation5], 0
          %s609 = sshll.u32 %s7, 4
          %s610 = int_to_ptr.hbm [resolvable:$true] %s609
          %s611 = sshll.u32 [#allocation6], 4
          %s612 = int_to_ptr.vmem [resolvable:$true] %s611
          %614 = dma.hbm_to_vmem [thread:$0]  %s610, 16, %s612, [#allocation5]
        $region36: #{my_transformer_forward.7} parent=11 // pred_fallthru
          _
        // Predicated region
        $region37: #{my_transformer_forward.7} parent=11 // pred_check
          %p615 = pneg %p235
        $region38: #{my_transformer_forward.7} parent=11 // pred_check_branch
          %617 = sbr.rel (%p615) target = $region40
        $region39: #{my_transformer_forward.7} parent=11 // pred_region
          %619 = vsyncadd [#allocation8], 0
          %s621 = sshll.u32 %s8, 4
          %s622 = int_to_ptr.hbm [resolvable:$true] %s621
          %s623 = sshll.u32 [#allocation7], 4
          %s624 = int_to_ptr.vmem [resolvable:$true] %s623
          %626 = dma.hbm_to_vmem [thread:$0]  %s622, 16, %s624, [#allocation8]
        $region40: #{my_transformer_forward.7} parent=11 // pred_fallthru
          _
        // Predicated region
        $region41: #{my_transformer_forward.7} parent=11 // pred_check
          %p627 = pneg %p256
        $region42: #{my_transformer_forward.7} parent=11 // pred_check_branch
          %629 = sbr.rel (%p627) target = $region44
        $region43: #{my_transformer_forward.7} parent=11 // pred_region
          _
        $region44: #{my_transformer_forward.7} parent=11 // pred_fallthru
          _
        // Predicated region
        $region45: #{my_transformer_forward.7} parent=11 // pred_check
          %p630 = pneg %p277
        $region46: #{my_transformer_forward.7} parent=11 // pred_check_branch
          %632 = sbr.rel (%p630) target = $region48
        $region47: #{my_transformer_forward.7} parent=11 // pred_region
          %634 = vsyncadd [#allocation8], 0
          %s636 = sshll.u32 %s10, 4
          %s637 = int_to_ptr.hbm [resolvable:$true] %s636
          %s638 = sshll.u32 [#allocation9], 4
          %s639 = int_to_ptr.vmem [resolvable:$true] %s638
          %641 = dma.hbm_to_vmem [thread:$0]  %s637, 16, %s639, [#allocation8]
        $region48: #{my_transformer_forward.7} parent=11 // pred_fallthru
          _
        // Predicated region
        $region49: #{my_transformer_forward.7} parent=11 // pred_check
          %p642 = pneg %p298
        $region50: #{my_transformer_forward.7} parent=11 // pred_check_branch
          %644 = sbr.rel (%p642) target = $region52
        $region51: #{my_transformer_forward.7} parent=11 // pred_region
          _
        $region52: #{my_transformer_forward.7} parent=11 // pred_fallthru
          _
        // Predicated region
        $region53: #{my_transformer_forward.7} parent=11 // pred_check
          %p645 = pneg %p319
        $region54: #{my_transformer_forward.7} parent=11 // pred_check_branch
          %647 = sbr.rel (%p645) target = $region56
        $region55: #{my_transformer_forward.7} parent=11 // pred_region
          %649 = vsyncadd [#allocation11], 0
          %s651 = sshll.u32 %s12, 4
          %s652 = int_to_ptr.hbm [resolvable:$true] %s651
          %s653 = sshll.u32 [#allocation10], 4
          %s654 = int_to_ptr.vmem [resolvable:$true] %s653
          %656 = dma.hbm_to_vmem [thread:$0]  %s652, 16, %s654, [#allocation11]
        $region56: #{my_transformer_forward.7} parent=11 // pred_fallthru
          _
        // Predicated region
        $region57: #{my_transformer_forward.7} parent=11 // pred_check
          %p657 = pneg %p340
        $region58: #{my_transformer_forward.7} parent=11 // pred_check_branch
          %659 = sbr.rel (%p657) target = $region60
        $region59: #{my_transformer_forward.7} parent=11 // pred_region
          _
        $region60: #{my_transformer_forward.7} parent=11 // pred_fallthru
          _
        // Predicated region
        $region61: #{my_transformer_forward.7} parent=11 // pred_check
          %p660 = pneg %p361
        $region62: #{my_transformer_forward.7} parent=11 // pred_check_branch
          %662 = sbr.rel (%p660) target = $region64
        $region63: #{my_transformer_forward.7} parent=11 // pred_region
          %664 = vsyncadd [#allocation11], 0
          %s666 = sshll.u32 %s14, 4
          %s667 = int_to_ptr.hbm [resolvable:$true] %s666
          %s668 = sshll.u32 [#allocation12], 4
          %s669 = int_to_ptr.vmem [resolvable:$true] %s668
          %671 = dma.hbm_to_vmem [thread:$0]  %s667, 16, %s669, [#allocation11]
        $region64: #{my_transformer_forward.7} parent=11 // pred_fallthru
          _
        // Predicated region
        $region65: #{my_transformer_forward.7} parent=11 // pred_check
          %p672 = pneg %p382
        $region66: #{my_transformer_forward.7} parent=11 // pred_check_branch
          %674 = sbr.rel (%p672) target = $region68
        $region67: #{my_transformer_forward.7} parent=11 // pred_region
          %676 = vsyncadd [#allocation14], 0
          %s678 = sshll.u32 %s15, 4
          %s679 = int_to_ptr.hbm [resolvable:$true] %s678
          %s680 = sshll.u32 [#allocation13], 4
          %s681 = int_to_ptr.vmem [resolvable:$true] %s680
          %683 = dma.hbm_to_vmem [thread:$0]  %s679, 16, %s681, [#allocation14]
        $region68: #{my_transformer_forward.7} parent=11 // pred_fallthru
          _
        // Predicated region
        $region69: #{my_transformer_forward.7} parent=11 // pred_check
          %p684 = pneg %p403
        $region70: #{my_transformer_forward.7} parent=11 // pred_check_branch
          %686 = sbr.rel (%p684) target = $region72
        $region71: #{my_transformer_forward.7} parent=11 // pred_region
          %688 = vsyncadd [#allocation14], 0
          %s690 = sshll.u32 %s16, 4
          %s691 = int_to_ptr.hbm [resolvable:$true] %s690
          %s692 = sshll.u32 [#allocation15], 4
          %s693 = int_to_ptr.vmem [resolvable:$true] %s692
          %695 = dma.hbm_to_vmem [thread:$0]  %s691, 16, %s693, [#allocation14]
        $region72: #{my_transformer_forward.7} parent=11 // pred_fallthru
          _
        // Predicated region
        $region73: #{my_transformer_forward.7} parent=11 // pred_check
          %p696 = pneg %p424
        $region74: #{my_transformer_forward.7} parent=11 // pred_check_branch
          %698 = sbr.rel (%p696) target = $region76
        $region75: #{my_transformer_forward.7} parent=11 // pred_region
          _
        $region76: #{my_transformer_forward.7} parent=11 // pred_fallthru
          _
        // Predicated region
        $region77: #{my_transformer_forward.7} parent=11 // pred_check
          %p699 = pneg %p445
        $region78: #{my_transformer_forward.7} parent=11 // pred_check_branch
          %701 = sbr.rel (%p699) target = $region80
        $region79: #{my_transformer_forward.7} parent=11 // pred_region
          %703 = vsyncadd [#allocation17], 0
          %s705 = sshll.u32 %s18, 4
          %s706 = int_to_ptr.hbm [resolvable:$true] %s705
          %s707 = sshll.u32 [#allocation16], 4
          %s708 = int_to_ptr.vmem [resolvable:$true] %s707
          %710 = dma.hbm_to_vmem [thread:$0]  %s706, 16, %s708, [#allocation17]
        $region80: #{my_transformer_forward.7} parent=11 // pred_fallthru
          _
        // Predicated region
        $region81: #{my_transformer_forward.7} parent=11 // pred_check
          %p711 = pneg %p466
        $region82: #{my_transformer_forward.7} parent=11 // pred_check_branch
          %713 = sbr.rel (%p711) target = $region84
        $region83: #{my_transformer_forward.7} parent=11 // pred_region
          _
        $region84: #{my_transformer_forward.7} parent=11 // pred_fallthru
          _
        // Predicated region
        $region85: #{my_transformer_forward.7} parent=11 // pred_check
          %p714 = pneg %p487
        $region86: #{my_transformer_forward.7} parent=11 // pred_check_branch
          %716 = sbr.rel (%p714) target = $region88
        $region87: #{my_transformer_forward.7} parent=11 // pred_region
          %718 = vsyncadd [#allocation17], 0
          %s720 = sshll.u32 %s20, 4
          %s721 = int_to_ptr.hbm [resolvable:$true] %s720
          %s722 = sshll.u32 [#allocation18], 4
          %s723 = int_to_ptr.vmem [resolvable:$true] %s722
          %725 = dma.hbm_to_vmem [thread:$0]  %s721, 16, %s723, [#allocation17]
        $region88: #{my_transformer_forward.7} parent=11 // pred_fallthru
          _
        // Predicated region
        $region89: #{my_transformer_forward.7} parent=11 // pred_check
          %p726 = pneg %p508
        $region90: #{my_transformer_forward.7} parent=11 // pred_check_branch
          %728 = sbr.rel (%p726) target = $region92
        $region91: #{my_transformer_forward.7} parent=11 // pred_region
          %730 = vsyncadd [#allocation20], 0
          %s732 = sshll.u32 %s21, 4
          %s733 = int_to_ptr.hbm [resolvable:$true] %s732
          %s734 = sshll.u32 [#allocation19], 4
          %s735 = int_to_ptr.vmem [resolvable:$true] %s734
          %737 = dma.hbm_to_vmem [thread:$0]  %s733, 16, %s735, [#allocation20]
        $region92: #{my_transformer_forward.7} parent=11 // pred_fallthru
          _
        // Predicated region
        $region93: #{my_transformer_forward.7} parent=11 // pred_check
          %p738 = pneg %p529
        $region94: #{my_transformer_forward.7} parent=11 // pred_check_branch
          %740 = sbr.rel (%p738) target = $region96
        $region95: #{my_transformer_forward.7} parent=11 // pred_region
          %742 = vsyncadd [#allocation20], 0
          %s744 = sshll.u32 %s22, 4
          %s745 = int_to_ptr.hbm [resolvable:$true] %s744
          %s746 = sshll.u32 [#allocation21], 4
          %s747 = int_to_ptr.vmem [resolvable:$true] %s746
          %749 = dma.hbm_to_vmem [thread:$0]  %s745, 16, %s747, [#allocation20]
        $region96: #{my_transformer_forward.7} parent=11 // pred_fallthru
          _
      $region12: #{my_transformer_forward.7} parent=5 // pred_fallthru
        _
      %p750 = scmp.lt.s32.totalorder %s36, 2
      // Predicated region
      $region97: #{my_transformer_forward.7} parent=5 // pred_check
        %p751 = pneg %p750
      $region98: #{my_transformer_forward.7} parent=5 // pred_check_branch
        %753 = sbr.rel (%p751) target = $region100
      $region99: #{my_transformer_forward.7} parent=5 // pred_region
        // Predicated region
        $region101: #{my_transformer_forward.7} parent=99 // pred_check
          %p754 = pneg %p56
        $region102: #{my_transformer_forward.7} parent=99 // pred_check_branch
          %756 = sbr.rel (%p754) target = $region104
        $region103: #{my_transformer_forward.7} parent=99 // pred_region
          %p757 = scmp.lt.s32.totalorder %s36, 1
          %s758 = scalar_select %p757, %s36, 1
          %s759 = smul.addr %s758, 4
          %s760 = scalar_lea.vmem %s0, %s759
        $region104: #{my_transformer_forward.7} parent=99 // pred_fallthru
          _
        // Predicated region
        $region105: #{my_transformer_forward.7} parent=99 // pred_check
          %p761 = pneg %p82
        $region106: #{my_transformer_forward.7} parent=99 // pred_check_branch
          %763 = sbr.rel (%p761) target = $region108
        $region107: #{my_transformer_forward.7} parent=99 // pred_region
          %p764 = scmp.lt.s32.totalorder %s36, 1
          %s765 = scalar_select %p764, %s36, 1
          %s766 = smul.addr %s765, 4
          %s767 = scalar_lea.vmem %s1, %s766
        $region108: #{my_transformer_forward.7} parent=99 // pred_fallthru
          _
      $region100: #{my_transformer_forward.7} parent=5 // pred_fallthru
        _
      %p768 = scmp.le.s32.totalorder 1, %s36
      %p769 = scmp.lt.s32.totalorder %s36, 3
      %p770 = pnand %p768, %p769
      %p771 = pneg %p770
      // Predicated region
      $region109: #{my_transformer_forward.7} parent=5 // pred_check
        _
      $region110: #{my_transformer_forward.7} parent=5 // pred_check_branch
        %773 = sbr.rel (%p770) target = $region112
      $region111: #{my_transformer_forward.7} parent=5 // pred_region
        %s774 = ssub.s32 %s36, 1
        // Predicated region
        $region113: #{my_transformer_forward.7} parent=111 // pred_check
          %p775 = pneg %p151
        $region114: #{my_transformer_forward.7} parent=111 // pred_check_branch
          %777 = sbr.rel (%p775) target = $region116
        $region115: #{my_transformer_forward.7} parent=111 // pred_region
          %779 = dma.done [#allocation3], 16
        $region116: #{my_transformer_forward.7} parent=111 // pred_fallthru
          _
        // Predicated region
        $region117: #{my_transformer_forward.7} parent=111 // pred_check
          %p780 = pneg %p193
        $region118: #{my_transformer_forward.7} parent=111 // pred_check_branch
          %782 = sbr.rel (%p780) target = $region120
        $region119: #{my_transformer_forward.7} parent=111 // pred_region
          %784 = dma.done [#allocation5], 16
        $region120: #{my_transformer_forward.7} parent=111 // pred_fallthru
          _
        // Predicated region
        $region121: #{my_transformer_forward.7} parent=111 // pred_check
          %p785 = pneg %p214
        $region122: #{my_transformer_forward.7} parent=111 // pred_check_branch
          %787 = sbr.rel (%p785) target = $region124
        $region123: #{my_transformer_forward.7} parent=111 // pred_region
          %789 = dma.done [#allocation5], 16
        $region124: #{my_transformer_forward.7} parent=111 // pred_fallthru
          _
        // Predicated region
        $region125: #{my_transformer_forward.7} parent=111 // pred_check
          %p790 = pneg %p235
        $region126: #{my_transformer_forward.7} parent=111 // pred_check_branch
          %792 = sbr.rel (%p790) target = $region128
        $region127: #{my_transformer_forward.7} parent=111 // pred_region
          %794 = dma.done [#allocation8], 16
        $region128: #{my_transformer_forward.7} parent=111 // pred_fallthru
          _
        // Predicated region
        $region129: #{my_transformer_forward.7} parent=111 // pred_check
          %p795 = pneg %p277
        $region130: #{my_transformer_forward.7} parent=111 // pred_check_branch
          %797 = sbr.rel (%p795) target = $region132
        $region131: #{my_transformer_forward.7} parent=111 // pred_region
          %799 = dma.done [#allocation8], 16
        $region132: #{my_transformer_forward.7} parent=111 // pred_fallthru
          _
        // Predicated region
        $region133: #{my_transformer_forward.7} parent=111 // pred_check
          %p800 = pneg %p319
        $region134: #{my_transformer_forward.7} parent=111 // pred_check_branch
          %802 = sbr.rel (%p800) target = $region136
        $region135: #{my_transformer_forward.7} parent=111 // pred_region
          %804 = dma.done [#allocation11], 16
        $region136: #{my_transformer_forward.7} parent=111 // pred_fallthru
          _
        // Predicated region
        $region137: #{my_transformer_forward.7} parent=111 // pred_check
          %p805 = pneg %p361
        $region138: #{my_transformer_forward.7} parent=111 // pred_check_branch
          %807 = sbr.rel (%p805) target = $region140
        $region139: #{my_transformer_forward.7} parent=111 // pred_region
          %809 = dma.done [#allocation11], 16
        $region140: #{my_transformer_forward.7} parent=111 // pred_fallthru
          _
        // Predicated region
        $region141: #{my_transformer_forward.7} parent=111 // pred_check
          %p810 = pneg %p382
        $region142: #{my_transformer_forward.7} parent=111 // pred_check_branch
          %812 = sbr.rel (%p810) target = $region144
        $region143: #{my_transformer_forward.7} parent=111 // pred_region
          %814 = dma.done [#allocation14], 16
        $region144: #{my_transformer_forward.7} parent=111 // pred_fallthru
          _
        // Predicated region
        $region145: #{my_transformer_forward.7} parent=111 // pred_check
          %p815 = pneg %p403
        $region146: #{my_transformer_forward.7} parent=111 // pred_check_branch
          %817 = sbr.rel (%p815) target = $region148
        $region147: #{my_transformer_forward.7} parent=111 // pred_region
          %819 = dma.done [#allocation14], 16
        $region148: #{my_transformer_forward.7} parent=111 // pred_fallthru
          _
        // Predicated region
        $region149: #{my_transformer_forward.7} parent=111 // pred_check
          %p820 = pneg %p445
        $region150: #{my_transformer_forward.7} parent=111 // pred_check_branch
          %822 = sbr.rel (%p820) target = $region152
        $region151: #{my_transformer_forward.7} parent=111 // pred_region
          %824 = dma.done [#allocation17], 16
        $region152: #{my_transformer_forward.7} parent=111 // pred_fallthru
          _
        // Predicated region
        $region153: #{my_transformer_forward.7} parent=111 // pred_check
          %p825 = pneg %p487
        $region154: #{my_transformer_forward.7} parent=111 // pred_check_branch
          %827 = sbr.rel (%p825) target = $region156
        $region155: #{my_transformer_forward.7} parent=111 // pred_region
          %829 = dma.done [#allocation17], 16
        $region156: #{my_transformer_forward.7} parent=111 // pred_fallthru
          _
        // Predicated region
        $region157: #{my_transformer_forward.7} parent=111 // pred_check
          %p830 = pneg %p508
        $region158: #{my_transformer_forward.7} parent=111 // pred_check_branch
          %832 = sbr.rel (%p830) target = $region160
        $region159: #{my_transformer_forward.7} parent=111 // pred_region
          %834 = dma.done [#allocation20], 16
        $region160: #{my_transformer_forward.7} parent=111 // pred_fallthru
          _
        // Predicated region
        $region161: #{my_transformer_forward.7} parent=111 // pred_check
          %p835 = pneg %p529
        $region162: #{my_transformer_forward.7} parent=111 // pred_check_branch
          %837 = sbr.rel (%p835) target = $region164
        $region163: #{my_transformer_forward.7} parent=111 // pred_region
          %839 = dma.done [#allocation20], 16
        $region164: #{my_transformer_forward.7} parent=111 // pred_fallthru
          _
        %p840 = scmp.lt.s32.totalorder %s41, 1
        %s841 = scalar_select %p840, %s41, 1
        %s842 = smul.addr %s841, 4
        %s843 = scalar_lea.vmem %s0, %s842
        %p844 = pneg %p62
        %p845 = pneg %p59
        %p846 = scmp.lt.s32.totalorder %s41, 1
        %s847 = scalar_select %p846, %s41, 1
        %s848 = smul.addr %s847, 4
        %s849 = scalar_lea.vmem %s1, %s848
        %p850 = pneg %p88
        %p851 = pneg %p85
        %p852 = pneg %p109
        %p853 = pneg %p106
        %p854 = pneg %p130
        %p855 = pneg %p127
        %p856 = pneg %p151
        %p857 = pneg %p148
        %p858 = pneg %p172
        %p859 = pneg %p169
        %p860 = pneg %p193
        %p861 = pneg %p190
        %p862 = pneg %p214
        %p863 = pneg %p211
        %p864 = pneg %p235
        %p865 = pneg %p232
        %p866 = pneg %p256
        %p867 = pneg %p253
        %p868 = pneg %p277
        %p869 = pneg %p274
        %p870 = pneg %p298
        %p871 = pneg %p295
        %p872 = pneg %p319
        %p873 = pneg %p316
        %p874 = pneg %p340
        %p875 = pneg %p337
        %p876 = pneg %p361
        %p877 = pneg %p358
        %p878 = pneg %p382
        %p879 = pneg %p379
        %p880 = pneg %p403
        %p881 = pneg %p400
        %p882 = pneg %p424
        %p883 = pneg %p421
        %p884 = pneg %p445
        %p885 = pneg %p442
        %p886 = pneg %p466
        %p887 = pneg %p463
        %p888 = pneg %p487
        %p889 = pneg %p484
        %p890 = pneg %p508
        %p891 = pneg %p505
        %p892 = pneg %p529
        %p893 = pneg %p526
        %p894 = pneg %p555
        %p895 = pneg %p552
        %p896 = scmp.lt.s32.totalorder %s41, 1
        %s897 = scalar_select %p896, %s41, 1
        %s898 = smul.addr %s897, 4
        %s899 = scalar_lea.vmem %s23, %s898
        %p900 = scmp.lt.s32.totalorder %s41, 1
        %s901 = scalar_select %p900, %s41, 1
        %s902 = smul.addr %s901, 4
        %s903 = scalar_lea.vmem %s0, %s902
        %p904 = scmp.lt.s32.totalorder %s41, 1
        %s905 = scalar_select %p904, %s41, 1
        %s906 = smul.addr %s905, 4
        %s907 = scalar_lea.vmem %s1, %s906
        %p908 = scmp.lt.s32.totalorder %s41, 1
        %s909 = scalar_select %p908, %s41, 1
        %s910 = smul.addr %s909, 4
        %s911 = scalar_lea.vmem %s23, %s910
        %v913 = vld [vmem:[%s903] sm:$0xf]
        %v914 = vunpack.c.l.bf16 %v913
        %v915 = vmul.f32 %v914, 2.0
        %v916 = vld [vmem:[%s2] sm:$0xff]
        %v917 = vadd.f32 %v915, %v916
        %v918 = vld [vmem:[%s907] sm:$0xf]
        %v919 = vld [vmem:[%s3] sm:$0xf]
        %v920 = vld [vmem:[%s3 + $0x4] sm:$0xf]
        %v921 = vld [vmem:[%s3 + $0x8] sm:$0xf]
        %v922 = vld [vmem:[%s3 + $0xc] sm:$0xf]
        %v923 = vpack.c.bf16 %v917, %v917
        %v924 = vld [vmem:[#allocation2] sm:$0x1]
        %v926 = vperm.slane %v924, 0
        %v932 = vunpack.c.l.b16 %v919
        %v933 = vunpack.c.l.b16 %v920
        %v934 = vunpack.c.l.b16 %v921
        %v935 = vunpack.c.l.b16 %v922
        %v936 = vpack.c.b16 %v933, %v932
        %v937 = vpack.c.b16 %v935, %v934
        %vm940 = vcmask 261120
        %v942 = vsel %vm940, %v923, 0
        %944 = vmatpush.bf16.msra.mxu0 0
        %945 = vmatpush.bf16.msra.mxu0 0
        %946 = vmatpush.bf16.msra.mxu0 0
        %947 = vmatpush.bf16.msra.mxu0 0
        %948 = vmatpush.bf16.msra.mxu0 0
        %949 = vmatpush.bf16.msra.mxu0 0
        %950 = vmatpush.bf16.msra.mxu0 %v937
        %951 = vmatpush.bf16.msra.mxu0 %v936
        %952 = vmatmul.bf16.gmra.mxu0 %v942
        %v953 = vpop.f32.mrf.mxu0
        %v954 = vadd.f32 %v926, %v953
        %v955 = vpop.f32.mrf.mxu0
        %956 = vdwg.mxu0
        %v957 = vld [vmem:[%s5] sm:$0xf]
        %v958 = vld [vmem:[%s5 + $0x4] sm:$0xf]
        %v959 = vld [vmem:[%s5 + $0x8] sm:$0xf]
        %v960 = vld [vmem:[%s5 + $0xc] sm:$0xf]
        %v961 = vld [vmem:[#allocation4] sm:$0x1]
        %v962 = vlaneseq
        %v963 = vshrl.u32 %v962, 7
        %v964 = vlaneseq
        %v965 = vand.u32 %v964, 127
        %vm966 = vcmp.gt.s32.totalorder %v965, %v963
        %v967 = vmul.f32 %v954, 0.25
        %v968 = vpack.c.bf16 %v967, %v967
        %v969 = vpack.c.bf16 %v954, %v954
        %971 = vrot.lane.b32.xlu0 %v969, 96
        %v972 = vpop.permute.xlu0 %971
        %vm973 = vcmask 130048
        %v975 = vsel %vm973, %v968, 0
        %v978 = vsel %vm973, %v972, 0
        %980 = vmatpush.bf16.xpose.msra.mxu0 0
        %981 = vmatpush.bf16.xpose.msra.mxu0 0
        %982 = vmatpush.bf16.xpose.msra.mxu0 0
        %983 = vmatpush.bf16.xpose.msra.mxu0 0
        %984 = vmatpush.bf16.xpose.msra.mxu0 0
        %985 = vmatpush.bf16.xpose.msra.mxu0 0
        %986 = vmatpush.bf16.xpose.msra.mxu0 0
        %987 = vmatpush.bf16.xpose.msra.mxu0 %v978
        %988 = vmatmul.bf16.gmra.mxu0 %v975
        %v989 = vpop.f32.mrf.mxu0
        %v990 = vadd.f32 0.0, %v989
        %v991 = vpop.f32.mrf.mxu0
        %992 = vdwg.mxu0
        %v993 = vsel %vm966, -1e+09, %v990
        %vm994 = vcmask 64512
        %v995 = vsel %vm994, %v993, -inf
        %996 = vmax.xlane.f32.xlu0 %v995
        %v997 = vpop.xlane.xlu0 %996
        %v998 = vsub.f32 %v993, %v997
        %v999 = vmul.f32 %v998, 1.442695
        %v1000 = vpow.pop %v999
        %v1001 = vsel %vm994, %v1000, 0.0
        %1002 = vadd.xlane.f32.xlu0 %v1001
        %v1003 = vpop.xlane.xlu0 %1002
        %v1004 = vrcp.pop %v1003
        %v1005 = vmul.f32 %v1000, %v1004
        %v1006 = vpack.c.bf16 %v1005, %v1005
        %1007 = vrot.lane.b32.xlu0 %v969, 64
        %v1008 = vpop.permute.xlu0 %1007
        %v1010 = vsel %vm994, %v1006, 0
        %vm1012 = vcmask 1043456
        %v1014 = vsel %vm1012, %v1008, 0
        %1016 = vmatpush.bf16.msra.mxu0 0
        %1017 = vmatpush.bf16.msra.mxu0 0
        %1018 = vmatpush.bf16.msra.mxu0 0
        %1019 = vmatpush.bf16.msra.mxu0 0
        %1020 = vmatpush.bf16.msra.mxu0 0
        %1021 = vmatpush.bf16.msra.mxu0 0
        %1022 = vmatpush.bf16.msra.mxu0 0
        %1023 = vmatpush.bf16.msra.mxu0 %v1014
        %1024 = vmatmul.bf16.gmra.mxu0 %v1010
        %v1025 = vpop.f32.mrf.mxu0
        %v1026 = vadd.f32 0.0, %v1025
        %v1027 = vpop.f32.mrf.mxu0
        %1028 = vdwg.mxu0
        %v1029 = vpack.c.bf16 %v1026, %v1026
        %1031 = vrot.lane.b32.xlu0 %v968, 112
        %v1032 = vpop.permute.xlu0 %1031
        %1033 = vrot.lane.b32.xlu0 %v969, 80
        %v1034 = vpop.permute.xlu0 %1033
        %v1036 = vsel %vm973, %v1032, 0
        %v1039 = vsel %vm973, %v1034, 0
        %1041 = vmatpush.bf16.xpose.msra.mxu0 0
        %1042 = vmatpush.bf16.xpose.msra.mxu0 0
        %1043 = vmatpush.bf16.xpose.msra.mxu0 0
        %1044 = vmatpush.bf16.xpose.msra.mxu0 0
        %1045 = vmatpush.bf16.xpose.msra.mxu0 0
        %1046 = vmatpush.bf16.xpose.msra.mxu0 0
        %1047 = vmatpush.bf16.xpose.msra.mxu0 0
        %1048 = vmatpush.bf16.xpose.msra.mxu0 %v1039
        %1049 = vmatmul.bf16.gmra.mxu0 %v1036
        %v1050 = vpop.f32.mrf.mxu0
        %v1051 = vadd.f32 0.0, %v1050
        %v1052 = vpop.f32.mrf.mxu0
        %1053 = vdwg.mxu0
        %v1054 = vsel %vm966, -1e+09, %v1051
        %v1055 = vsel %vm994, %v1054, -inf
        %1056 = vmax.xlane.f32.xlu0 %v1055
        %v1057 = vpop.xlane.xlu0 %1056
        %v1058 = vsub.f32 %v1054, %v1057
        %v1059 = vmul.f32 %v1058, 1.442695
        %v1060 = vpow.pop %v1059
        %v1061 = vsel %vm994, %v1060, 0.0
        %1062 = vadd.xlane.f32.xlu0 %v1061
        %v1063 = vpop.xlane.xlu0 %1062
        %v1064 = vrcp.pop %v1063
        %v1065 = vmul.f32 %v1060, %v1064
        %v1066 = vpack.c.bf16 %v1065, %v1065
        %1067 = vrot.lane.b32.xlu0 %v969, 48
        %v1068 = vpop.permute.xlu0 %1067
        %v1070 = vsel %vm994, %v1066, 0
        %v1073 = vsel %vm1012, %v1068, 0
        %1075 = vmatpush.bf16.msra.mxu0 0
        %1076 = vmatpush.bf16.msra.mxu0 0
        %1077 = vmatpush.bf16.msra.mxu0 0
        %1078 = vmatpush.bf16.msra.mxu0 0
        %1079 = vmatpush.bf16.msra.mxu0 0
        %1080 = vmatpush.bf16.msra.mxu0 0
        %1081 = vmatpush.bf16.msra.mxu0 0
        %1082 = vmatpush.bf16.msra.mxu0 %v1073
        %1083 = vmatmul.bf16.gmra.mxu0 %v1070
        %v1084 = vpop.f32.mrf.mxu0
        %v1085 = vadd.f32 0.0, %v1084
        %v1086 = vpop.f32.mrf.mxu0
        %1087 = vdwg.mxu0
        %v1088 = vpack.c.bf16 %v1085, %v1085
        %v1091 = vunpack.c.l.b16 %v959
        %v1092 = vunpack.c.l.b16 %v960
        %v1093 = vpack.c.b16 %v1092, %v1091
        %v1096 = vsel %vm973, %v1088, 0
        %1098 = vmatpush.bf16.msra.mxu0 0
        %1099 = vmatpush.bf16.msra.mxu0 0
        %1100 = vmatpush.bf16.msra.mxu0 0
        %1101 = vmatpush.bf16.msra.mxu0 0
        %1102 = vmatpush.bf16.msra.mxu0 0
        %1103 = vmatpush.bf16.msra.mxu0 0
        %1104 = vmatpush.bf16.msra.mxu0 0
        %1105 = vmatpush.bf16.msra.mxu0 %v1093
        %1106 = vmatmul.bf16.gmra.mxu0 %v1096
        %v1107 = vpop.f32.mrf.mxu0
        %v1108 = vadd.f32 0.0, %v1107
        %v1109 = vpop.f32.mrf.mxu0
        %1110 = vdwg.mxu0
        %v1113 = vunpack.c.l.b16 %v957
        %v1114 = vunpack.c.l.b16 %v958
        %v1115 = vpack.c.b16 %v1114, %v1113
        %v1118 = vsel %vm973, %v1029, 0
        %1120 = vmatpush.bf16.msra.mxu0 0
        %1121 = vmatpush.bf16.msra.mxu0 0
        %1122 = vmatpush.bf16.msra.mxu0 0
        %1123 = vmatpush.bf16.msra.mxu0 0
        %1124 = vmatpush.bf16.msra.mxu0 0
        %1125 = vmatpush.bf16.msra.mxu0 0
        %1126 = vmatpush.bf16.msra.mxu0 0
        %1127 = vmatpush.bf16.msra.mxu0 %v1115
        %1128 = vmatmul.bf16.gmra.mxu0 %v1118
        %v1129 = vpop.f32.mrf.mxu0
        %v1130 = vadd.f32 %v1108, %v1129
        %v1131 = vpop.f32.mrf.mxu0
        %1132 = vdwg.mxu0
        %v1134 = vperm.slane %v961, 0
        %v1136 = vadd.f32 %v1130, %v1134
        %v1137 = vadd.f32 %v917, %v1136
        %v1138 = vld [vmem:[#allocation6] sm:$0x1]
        %v1139 = vld [vmem:[#allocation7] sm:$0x1]
        %v1140 = vsel %vm940, %v1137, 0.0
        %1141 = vadd.xlane.f32.xlu0 %v1140
        %v1142 = vpop.xlane.xlu0 %1141
        %v1143 = vrcp.pop 32.0
        %v1144 = vmul.f32 32.0, %v1143
        %v1145 = vsub.f32 1.0, %v1144
        %v1146 = vmul.f32 %v1143, %v1145
        %v1147 = vadd.f32 %v1143, %v1146
        %vm1148 = vweird.f32 %v1143
        %v1149 = vsel %vm1148, %v1143, %v1147
        %v1150 = vmul.f32 %v1142, %v1149
        %v1151 = vsub.f32 %v1137, %v1150
        %v1152 = vmul.f32 %v1151, %v1151
        %v1153 = vsel %vm940, %v1152, 0.0
        %1154 = vadd.xlane.f32.xlu0 %v1153
        %v1155 = vpop.xlane.xlu0 %1154
        %v1156 = vmul.f32 %v1155, %v1149
        %v1157 = vadd.f32 %v1156, 1e-05
        %v1158 = vrsqrt.pop %v1157
        %v1159 = vmul.f32 %v1158, %v1157
        %v1160 = vmul.f32 %v1159, %v1158
        %v1161 = vmul.f32 0.5, %v1160
        %v1162 = vsub.f32 1.5, %v1161
        %v1163 = vmul.f32 %v1158, %v1162
        %vm1164 = vweird.f32 %v1157
        %vm1165 = vweird.f32 %v1158
        %vm1166 = vmor %vm1164, %vm1165
        %v1167 = vsel %vm1166, %v1158, %v1163
        %v1168 = vmul.f32 %v1151, %v1167
        %v1170 = vperm.slane %v1138, 0
        %v1172 = vmul.f32 %v1168, %v1170
        %v1174 = vperm.slane %v1139, 0
        %v1176 = vadd.f32 %v1172, %v1174
        %v1177 = vld [vmem:[%s9] sm:$0xf]
        %v1178 = vld [vmem:[%s9 + $0x4] sm:$0xf]
        %v1179 = vld [vmem:[%s9 + $0x8] sm:$0xf]
        %v1180 = vld [vmem:[%s9 + $0xc] sm:$0xf]
        %v1181 = vpack.c.bf16 %v1176, %v1176
        %v1182 = vld [vmem:[#allocation9] sm:$0x1]
        %v1184 = vperm.slane %v1182, 0
        %v1190 = vunpack.c.l.b16 %v1177
        %v1191 = vunpack.c.l.b16 %v1178
        %v1192 = vunpack.c.l.b16 %v1179
        %v1193 = vunpack.c.l.b16 %v1180
        %v1194 = vpack.c.b16 %v1191, %v1190
        %v1195 = vpack.c.b16 %v1193, %v1192
        %v1199 = vsel %vm940, %v1181, 0
        %1201 = vmatpush.bf16.msra.mxu0 0
        %1202 = vmatpush.bf16.msra.mxu0 0
        %1203 = vmatpush.bf16.msra.mxu0 0
        %1204 = vmatpush.bf16.msra.mxu0 0
        %1205 = vmatpush.bf16.msra.mxu0 0
        %1206 = vmatpush.bf16.msra.mxu0 0
        %1207 = vmatpush.bf16.msra.mxu0 %v1195
        %1208 = vmatpush.bf16.msra.mxu0 %v1194
        %1209 = vmatmul.bf16.gmra.mxu0 %v1199
        %v1210 = vpop.f32.mrf.mxu0
        %v1211 = vadd.f32 %v1184, %v1210
        %v1212 = vpop.f32.mrf.mxu0
        %1213 = vdwg.mxu0
        %v1214 = vld [vmem:[%s11] sm:$0xf]
        %v1215 = vld [vmem:[%s11 + $0x4] sm:$0xf]
        %v1216 = vld [vmem:[%s11 + $0x8] sm:$0xf]
        %v1217 = vld [vmem:[%s11 + $0xc] sm:$0xf]
        %v1218 = vld [vmem:[#allocation10] sm:$0x1]
        %v1220 = vperm.slane %v1218, 0
        %v1226 = vunpack.c.l.b16 %v1214
        %v1227 = vunpack.c.l.b16 %v1215
        %v1228 = vunpack.c.l.b16 %v1216
        %v1229 = vunpack.c.l.b16 %v1217
        %v1230 = vpack.c.b16 %v1227, %v1226
        %v1231 = vpack.c.b16 %v1229, %v1228
        %v1235 = vsel %vm940, %v918, 0
        %1237 = vmatpush.bf16.msra.mxu0 0
        %1238 = vmatpush.bf16.msra.mxu0 0
        %1239 = vmatpush.bf16.msra.mxu0 0
        %1240 = vmatpush.bf16.msra.mxu0 0
        %1241 = vmatpush.bf16.msra.mxu0 0
        %1242 = vmatpush.bf16.msra.mxu0 0
        %1243 = vmatpush.bf16.msra.mxu0 %v1231
        %1244 = vmatpush.bf16.msra.mxu0 %v1230
        %1245 = vmatmul.bf16.gmra.mxu0 %v1235
        %v1246 = vpop.f32.mrf.mxu0
        %v1247 = vadd.f32 %v1220, %v1246
        %v1248 = vpop.f32.mrf.mxu0
        %1249 = vdwg.mxu0
        %v1250 = vld [vmem:[%s13] sm:$0xf]
        %v1251 = vld [vmem:[%s13 + $0x4] sm:$0xf]
        %v1252 = vld [vmem:[%s13 + $0x8] sm:$0xf]
        %v1253 = vld [vmem:[%s13 + $0xc] sm:$0xf]
        %v1254 = vld [vmem:[#allocation12] sm:$0x1]
        %v1255 = vmul.f32 %v1211, 0.25
        %v1256 = vpack.c.bf16 %v1255, %v1255
        %v1257 = vpack.c.bf16 %v1247, %v1247
        %v1259 = vsel %vm973, %v1256, 0
        %v1262 = vsel %vm973, %v1257, 0
        %1264 = vmatpush.bf16.xpose.msra.mxu0 0
        %1265 = vmatpush.bf16.xpose.msra.mxu0 0
        %1266 = vmatpush.bf16.xpose.msra.mxu0 0
        %1267 = vmatpush.bf16.xpose.msra.mxu0 0
        %1268 = vmatpush.bf16.xpose.msra.mxu0 0
        %1269 = vmatpush.bf16.xpose.msra.mxu0 0
        %1270 = vmatpush.bf16.xpose.msra.mxu0 0
        %1271 = vmatpush.bf16.xpose.msra.mxu0 %v1262
        %1272 = vmatmul.bf16.gmra.mxu0 %v1259
        %v1273 = vpop.f32.mrf.mxu0
        %v1274 = vadd.f32 0.0, %v1273
        %v1275 = vpop.f32.mrf.mxu0
        %1276 = vdwg.mxu0
        %v1277 = vsel %vm994, %v1274, -inf
        %1278 = vmax.xlane.f32.xlu0 %v1277
        %v1279 = vpop.xlane.xlu0 %1278
        %v1280 = vsub.f32 %v1274, %v1279
        %v1281 = vmul.f32 %v1280, 1.442695
        %v1282 = vpow.pop %v1281
        %v1283 = vsel %vm994, %v1282, 0.0
        %1284 = vadd.xlane.f32.xlu0 %v1283
        %v1285 = vpop.xlane.xlu0 %1284
        %v1286 = vrcp.pop %v1285
        %v1287 = vmul.f32 %v1282, %v1286
        %v1288 = vpack.c.bf16 %v1287, %v1287
        %1290 = vrot.lane.b32.xlu0 %v1257, 96
        %v1291 = vpop.permute.xlu0 %1290
        %v1293 = vsel %vm994, %v1288, 0
        %v1296 = vsel %vm1012, %v1291, 0
        %1298 = vmatpush.bf16.msra.mxu0 0
        %1299 = vmatpush.bf16.msra.mxu0 0
        %1300 = vmatpush.bf16.msra.mxu0 0
        %1301 = vmatpush.bf16.msra.mxu0 0
        %1302 = vmatpush.bf16.msra.mxu0 0
        %1303 = vmatpush.bf16.msra.mxu0 0
        %1304 = vmatpush.bf16.msra.mxu0 0
        %1305 = vmatpush.bf16.msra.mxu0 %v1296
        %1306 = vmatmul.bf16.gmra.mxu0 %v1293
        %v1307 = vpop.f32.mrf.mxu0
        %v1308 = vadd.f32 0.0, %v1307
        %v1309 = vpop.f32.mrf.mxu0
        %1310 = vdwg.mxu0
        %v1311 = vpack.c.bf16 %v1308, %v1308
        %1313 = vrot.lane.b32.xlu0 %v1256, 112
        %v1314 = vpop.permute.xlu0 %1313
        %1315 = vrot.lane.b32.xlu0 %v1257, 112
        %v1316 = vpop.permute.xlu0 %1315
        %v1318 = vsel %vm973, %v1314, 0
        %v1321 = vsel %vm973, %v1316, 0
        %1323 = vmatpush.bf16.xpose.msra.mxu0 0
        %1324 = vmatpush.bf16.xpose.msra.mxu0 0
        %1325 = vmatpush.bf16.xpose.msra.mxu0 0
        %1326 = vmatpush.bf16.xpose.msra.mxu0 0
        %1327 = vmatpush.bf16.xpose.msra.mxu0 0
        %1328 = vmatpush.bf16.xpose.msra.mxu0 0
        %1329 = vmatpush.bf16.xpose.msra.mxu0 0
        %1330 = vmatpush.bf16.xpose.msra.mxu0 %v1321
        %1331 = vmatmul.bf16.gmra.mxu0 %v1318
        %v1332 = vpop.f32.mrf.mxu0
        %v1333 = vadd.f32 0.0, %v1332
        %v1334 = vpop.f32.mrf.mxu0
        %1335 = vdwg.mxu0
        %v1336 = vsel %vm994, %v1333, -inf
        %1337 = vmax.xlane.f32.xlu0 %v1336
        %v1338 = vpop.xlane.xlu0 %1337
        %v1339 = vsub.f32 %v1333, %v1338
        %v1340 = vmul.f32 %v1339, 1.442695
        %v1341 = vpow.pop %v1340
        %v1342 = vsel %vm994, %v1341, 0.0
        %1343 = vadd.xlane.f32.xlu0 %v1342
        %v1344 = vpop.xlane.xlu0 %1343
        %v1345 = vrcp.pop %v1344
        %v1346 = vmul.f32 %v1341, %v1345
        %v1347 = vpack.c.bf16 %v1346, %v1346
        %1348 = vrot.lane.b32.xlu0 %v1257, 80
        %v1349 = vpop.permute.xlu0 %1348
        %v1351 = vsel %vm994, %v1347, 0
        %v1354 = vsel %vm1012, %v1349, 0
        %1356 = vmatpush.bf16.msra.mxu0 0
        %1357 = vmatpush.bf16.msra.mxu0 0
        %1358 = vmatpush.bf16.msra.mxu0 0
        %1359 = vmatpush.bf16.msra.mxu0 0
        %1360 = vmatpush.bf16.msra.mxu0 0
        %1361 = vmatpush.bf16.msra.mxu0 0
        %1362 = vmatpush.bf16.msra.mxu0 0
        %1363 = vmatpush.bf16.msra.mxu0 %v1354
        %1364 = vmatmul.bf16.gmra.mxu0 %v1351
        %v1365 = vpop.f32.mrf.mxu0
        %v1366 = vadd.f32 0.0, %v1365
        %v1367 = vpop.f32.mrf.mxu0
        %1368 = vdwg.mxu0
        %v1369 = vpack.c.bf16 %v1366, %v1366
        %v1372 = vunpack.c.l.b16 %v1252
        %v1373 = vunpack.c.l.b16 %v1253
        %v1374 = vpack.c.b16 %v1373, %v1372
        %v1377 = vsel %vm973, %v1369, 0
        %1379 = vmatpush.bf16.msra.mxu0 0
        %1380 = vmatpush.bf16.msra.mxu0 0
        %1381 = vmatpush.bf16.msra.mxu0 0
        %1382 = vmatpush.bf16.msra.mxu0 0
        %1383 = vmatpush.bf16.msra.mxu0 0
        %1384 = vmatpush.bf16.msra.mxu0 0
        %1385 = vmatpush.bf16.msra.mxu0 0
        %1386 = vmatpush.bf16.msra.mxu0 %v1374
        %1387 = vmatmul.bf16.gmra.mxu0 %v1377
        %v1388 = vpop.f32.mrf.mxu0
        %v1389 = vadd.f32 0.0, %v1388
        %v1390 = vpop.f32.mrf.mxu0
        %1391 = vdwg.mxu0
        %v1394 = vunpack.c.l.b16 %v1250
        %v1395 = vunpack.c.l.b16 %v1251
        %v1396 = vpack.c.b16 %v1395, %v1394
        %v1399 = vsel %vm973, %v1311, 0
        %1401 = vmatpush.bf16.msra.mxu0 0
        %1402 = vmatpush.bf16.msra.mxu0 0
        %1403 = vmatpush.bf16.msra.mxu0 0
        %1404 = vmatpush.bf16.msra.mxu0 0
        %1405 = vmatpush.bf16.msra.mxu0 0
        %1406 = vmatpush.bf16.msra.mxu0 0
        %1407 = vmatpush.bf16.msra.mxu0 0
        %1408 = vmatpush.bf16.msra.mxu0 %v1396
        %1409 = vmatmul.bf16.gmra.mxu0 %v1399
        %v1410 = vpop.f32.mrf.mxu0
        %v1411 = vadd.f32 %v1389, %v1410
        %v1412 = vpop.f32.mrf.mxu0
        %1413 = vdwg.mxu0
        %v1415 = vperm.slane %v1254, 0
        %v1417 = vadd.f32 %v1411, %v1415
        %v1418 = vadd.f32 %v1176, %v1417
        %v1419 = vld [vmem:[#allocation13] sm:$0x1]
        %v1420 = vld [vmem:[#allocation15] sm:$0x1]
        %v1421 = vsel %vm940, %v1418, 0.0
        %1422 = vadd.xlane.f32.xlu0 %v1421
        %v1423 = vpop.xlane.xlu0 %1422
        %v1424 = vmul.f32 %v1423, %v1149
        %v1425 = vsub.f32 %v1418, %v1424
        %v1426 = vmul.f32 %v1425, %v1425
        %v1427 = vsel %vm940, %v1426, 0.0
        %1428 = vadd.xlane.f32.xlu0 %v1427
        %v1429 = vpop.xlane.xlu0 %1428
        %v1430 = vmul.f32 %v1429, %v1149
        %v1431 = vadd.f32 %v1430, 1e-05
        %v1432 = vrsqrt.pop %v1431
        %v1433 = vmul.f32 %v1432, %v1431
        %v1434 = vmul.f32 %v1433, %v1432
        %v1435 = vmul.f32 0.5, %v1434
        %v1436 = vsub.f32 1.5, %v1435
        %v1437 = vmul.f32 %v1432, %v1436
        %vm1438 = vweird.f32 %v1431
        %vm1439 = vweird.f32 %v1432
        %vm1440 = vmor %vm1438, %vm1439
        %v1441 = vsel %vm1440, %v1432, %v1437
        %v1442 = vmul.f32 %v1425, %v1441
        %v1444 = vperm.slane %v1419, 0
        %v1446 = vmul.f32 %v1442, %v1444
        %v1448 = vperm.slane %v1420, 0
        %v1450 = vadd.f32 %v1446, %v1448
        %v1451 = vld [vmem:[%s17] sm:$0xf]
        %v1452 = vld [vmem:[%s17 + $0x4] sm:$0xf]
        %v1453 = vld [vmem:[%s17 + $0x8] sm:$0xf]
        %v1454 = vld [vmem:[%s17 + $0xc] sm:$0xf]
        %v1455 = vpack.c.bf16 %v1450, %v1450
        %v1456 = vld [vmem:[#allocation16] sm:$0x1]
        %v1458 = vperm.slane %v1456, 0
        %v1464 = vunpack.c.l.b16 %v1451
        %v1465 = vunpack.c.l.b16 %v1452
        %v1466 = vunpack.c.l.b16 %v1453
        %v1467 = vunpack.c.l.b16 %v1454
        %v1468 = vpack.c.b16 %v1465, %v1464
        %v1469 = vpack.c.b16 %v1467, %v1466
        %v1473 = vsel %vm940, %v1455, 0
        %1475 = vmatpush.bf16.msra.mxu0 0
        %1476 = vmatpush.bf16.msra.mxu0 0
        %1477 = vmatpush.bf16.msra.mxu0 0
        %1478 = vmatpush.bf16.msra.mxu0 0
        %1479 = vmatpush.bf16.msra.mxu0 0
        %1480 = vmatpush.bf16.msra.mxu0 0
        %1481 = vmatpush.bf16.msra.mxu0 %v1469
        %1482 = vmatpush.bf16.msra.mxu0 %v1468
        %1483 = vmatmul.bf16.gmra.mxu0 %v1473
        %v1484 = vpop.f32.mrf.mxu0
        %v1485 = vadd.f32 %v1458, %v1484
        %v1486 = vpop.f32.mrf.mxu0
        %1487 = vdwg.mxu0
        %v1488 = vmax.f32 %v1485, 0.0
        %v1489 = vld [vmem:[%s19] sm:$0xf]
        %v1490 = vld [vmem:[%s19 + $0x4] sm:$0xf]
        %v1491 = vld [vmem:[%s19 + $0x8] sm:$0xf]
        %v1492 = vld [vmem:[%s19 + $0xc] sm:$0xf]
        %v1493 = vld [vmem:[%s19 + $0x10] sm:$0xf]
        %v1494 = vld [vmem:[%s19 + $0x14] sm:$0xf]
        %v1495 = vld [vmem:[%s19 + $0x18] sm:$0xf]
        %v1496 = vld [vmem:[%s19 + $0x1c] sm:$0xf]
        %v1497 = vpack.c.bf16 %v1488, %v1488
        %v1498 = vld [vmem:[#allocation18] sm:$0x1]
        %v1500 = vperm.slane %v1498, 0
        %v1510 = vunpack.c.l.b16 %v1489
        %v1511 = vunpack.c.l.b16 %v1490
        %v1512 = vunpack.c.l.b16 %v1491
        %v1513 = vunpack.c.l.b16 %v1492
        %v1514 = vunpack.c.l.b16 %v1493
        %v1515 = vunpack.c.l.b16 %v1494
        %v1516 = vunpack.c.l.b16 %v1495
        %v1517 = vunpack.c.l.b16 %v1496
        %v1518 = vpack.c.b16 %v1511, %v1510
        %v1519 = vpack.c.b16 %v1513, %v1512
        %v1520 = vpack.c.b16 %v1515, %v1514
        %v1521 = vpack.c.b16 %v1517, %v1516
        %vm1526 = vcmask 523264
        %v1528 = vsel %vm1526, %v1497, 0
        %1530 = vmatpush.bf16.msra.mxu0 0
        %1531 = vmatpush.bf16.msra.mxu0 0
        %1532 = vmatpush.bf16.msra.mxu0 0
        %1533 = vmatpush.bf16.msra.mxu0 0
        %1534 = vmatpush.bf16.msra.mxu0 %v1521
        %1535 = vmatpush.bf16.msra.mxu0 %v1520
        %1536 = vmatpush.bf16.msra.mxu0 %v1519
        %1537 = vmatpush.bf16.msra.mxu0 %v1518
        %1538 = vmatmul.bf16.gmra.mxu0 %v1528
        %v1539 = vpop.f32.mrf.mxu0
        %v1540 = vadd.f32 %v1500, %v1539
        %v1541 = vpop.f32.mrf.mxu0
        %1542 = vdwg.mxu0
        %v1543 = vadd.f32 %v1450, %v1540
        %v1544 = vld [vmem:[#allocation19] sm:$0x1]
        %v1545 = vld [vmem:[#allocation21] sm:$0x1]
        %v1546 = vsel %vm940, %v1543, 0.0
        %1547 = vadd.xlane.f32.xlu0 %v1546
        %v1548 = vpop.xlane.xlu0 %1547
        %v1549 = vmul.f32 %v1548, %v1149
        %v1550 = vsub.f32 %v1543, %v1549
        %v1551 = vmul.f32 %v1550, %v1550
        %v1552 = vsel %vm940, %v1551, 0.0
        %1553 = vadd.xlane.f32.xlu0 %v1552
        %v1554 = vpop.xlane.xlu0 %1553
        %v1555 = vmul.f32 %v1554, %v1149
        %v1556 = vadd.f32 %v1555, 1e-05
        %v1557 = vrsqrt.pop %v1556
        %v1558 = vmul.f32 %v1557, %v1556
        %v1559 = vmul.f32 %v1558, %v1557
        %v1560 = vmul.f32 0.5, %v1559
        %v1561 = vsub.f32 1.5, %v1560
        %v1562 = vmul.f32 %v1557, %v1561
        %vm1563 = vweird.f32 %v1556
        %vm1564 = vweird.f32 %v1557
        %vm1565 = vmor %vm1563, %vm1564
        %v1566 = vsel %vm1565, %v1557, %v1562
        %v1567 = vmul.f32 %v1550, %v1566
        %v1569 = vperm.slane %v1544, 0
        %v1571 = vmul.f32 %v1567, %v1569
        %v1573 = vperm.slane %v1545, 0
        %v1575 = vadd.f32 %v1571, %v1573
        %v1576 = vpack.c.bf16 %v1575, %v1575
        %vm1577 = vcmask 257024
        %1578 = vst.msk [vmem:[%s911] sm:$0xf] %vm1577, %v1576
        %p1579 = scmp.lt.s32.totalorder %s41, 1
        %s1580 = scalar_select %p1579, %s41, 1
        %s1581 = smul.addr %s1580, 4
        %s1582 = scalar_lea.vmem %s23, %s1581
        // Predicated region
        $region165: #{my_transformer_forward.7} parent=111 // pred_check
          %p1583 = pneg %p552
        $region166: #{my_transformer_forward.7} parent=111 // pred_check_branch
          %1585 = sbr.rel (%p1583) target = $region168
        $region167: #{my_transformer_forward.7} parent=111 // pred_region
          _
        $region168: #{my_transformer_forward.7} parent=111 // pred_fallthru
          _
      $region112: #{my_transformer_forward.7} parent=5 // pred_fallthru
        _
      %p1586 = scmp.le.s32.totalorder 2, %s36
      // Predicated region
      $region169: #{my_transformer_forward.7} parent=5 // pred_check
        %p1587 = pneg %p1586
      $region170: #{my_transformer_forward.7} parent=5 // pred_check_branch
        %1589 = sbr.rel (%p1587) target = $region172
      $region171: #{my_transformer_forward.7} parent=5 // pred_region
        %s1590 = ssub.s32 %s36, 2
        // Predicated region
        $region173: #{my_transformer_forward.7} parent=171 // pred_check
          %p1591 = pneg %p558
        $region174: #{my_transformer_forward.7} parent=171 // pred_check_branch
          %1593 = sbr.rel (%p1591) target = $region176
        $region175: #{my_transformer_forward.7} parent=171 // pred_region
          %p1594 = scmp.lt.s32.totalorder %s42, 1
          %s1595 = scalar_select %p1594, %s42, 1
          %s1596 = smul.addr %s1595, 4
          %s1597 = scalar_lea.vmem %s23, %s1596
        $region176: #{my_transformer_forward.7} parent=171 // pred_fallthru
          _
      $region172: #{my_transformer_forward.7} parent=5 // pred_fallthru
        _
    $region6: #{my_transformer_forward.7} parent=1 // loop_footer
      %s40 = sadd.s32 1, %s36
    $region7: #{my_transformer_forward.7} parent=1 // loop_footer_branch
      %35 = sbr.rel target = $region3
    $region8: #{my_transformer_forward.7} parent=1 // loop_exit
      _
    %1598 = vsyncpa [#allocation3], 1
    %s1599 = scalar_lea.sflag [#allocation3], 1
    %1600 = vsyncpa %s1599, 1
    %1601 = vsyncpa [#allocation5], 1
    %1602 = vsyncpa [#allocation8], 1
    %1603 = vsyncpa [#allocation11], 1
    %1604 = vsyncpa [#allocation14], 1
    %1605 = vsyncpa [#allocation17], 1
    %1606 = vsyncpa [#allocation20], 1

// kernel: my_transformer_forward.8
$region0: #{my_transformer_forward.8}
  #allocation0 [shape = 'u32[]', space=smem, size = 0x4, offset = 0x4, fixed_abs, tag = 'smem constant byte address 0x4 - core index']
  #allocation1 [shape = 'u32[72,128]{1,0:T(1,128)}', space=vmem, size = 0x9000, scoped, tag = 'internal scratch']
  %s0 = inlined_call_operand.vmem [shape: bf16[2,8,32], index: 0, kind: input, shape index: {}]
  %s1 = inlined_call_operand.vmem [shape: bf16[2,8,32], index: 1, kind: input, shape index: {}]
  %s2 = inlined_call_operand.vmem [shape: bf16[32,96], index: 2, kind: input, shape index: {}]
  %s3 = inlined_call_operand.hbm [shape: f32[1,96], index: 3, kind: input, shape index: {}]
  %s4 = inlined_call_operand.vmem [shape: bf16[32,32], index: 4, kind: input, shape index: {}]
  %s5 = inlined_call_operand.hbm [shape: f32[1,32], index: 5, kind: input, shape index: {}]
  %s6 = inlined_call_operand.hbm [shape: f32[1,32], index: 6, kind: input, shape index: {}]
  %s7 = inlined_call_operand.hbm [shape: f32[1,32], index: 7, kind: input, shape index: {}]
  %s8 = inlined_call_operand.vmem [shape: bf16[32,32], index: 8, kind: input, shape index: {}]
  %s9 = inlined_call_operand.hbm [shape: f32[1,32], index: 9, kind: input, shape index: {}]
  %s10 = inlined_call_operand.vmem [shape: bf16[32,64], index: 10, kind: input, shape index: {}]
  %s11 = inlined_call_operand.hbm [shape: f32[1,64], index: 11, kind: input, shape index: {}]
  %s12 = inlined_call_operand.vmem [shape: bf16[32,32], index: 12, kind: input, shape index: {}]
  %s13 = inlined_call_operand.hbm [shape: f32[1,32], index: 13, kind: input, shape index: {}]
  %s14 = inlined_call_operand.hbm [shape: f32[1,32], index: 14, kind: input, shape index: {}]
  %s15 = inlined_call_operand.hbm [shape: f32[1,32], index: 15, kind: input, shape index: {}]
  %s16 = inlined_call_operand.vmem [shape: bf16[32,64], index: 16, kind: input, shape index: {}]
  %s17 = inlined_call_operand.hbm [shape: f32[1,64], index: 17, kind: input, shape index: {}]
  %s18 = inlined_call_operand.vmem [shape: bf16[64,32], index: 18, kind: input, shape index: {}]
  %s19 = inlined_call_operand.hbm [shape: f32[1,32], index: 19, kind: input, shape index: {}]
  %s20 = inlined_call_operand.hbm [shape: f32[1,32], index: 20, kind: input, shape index: {}]
  %s21 = inlined_call_operand.hbm [shape: f32[1,32], index: 21, kind: input, shape index: {}]
  %s22 = inlined_call_operand.hbm [shape: f32[1,32], index: 22, kind: input, shape index: {}]
  %s23 = inlined_call_operand.hbm [shape: f32[1,32], index: 23, kind: input, shape index: {}]
  %s24 = inlined_call_operand.vmem [shape: bf16[2,8,32], index: 24, kind: output, shape index: {}]
  %s25 = sld [smem:[#allocation0]]
  $region189: #{my_transformer_forward.8} parent=0
    _
  %s27 = ssub.s32 1, %s25
  %s28 = scalar_select 0, %s27, %s25
  $region1: #{my_transformer_forward.8} parent=0
    #allocation2 [shape = 'u8[512]{0}', space=vmem, size = 0x400, scoped, tag = 'input window, operand 3, single buffered']
    #allocation3 [shape = 's32[2]{0}', space=sflag, size = 0x8, scoped, tag = 'scoped memory for my_transformer_forward.8']
    #allocation4 [shape = 'u8[512]{0}', space=vmem, size = 0x400, scoped, tag = 'input window, operand 5, single buffered']
    #allocation5 [shape = 's32[1]{0}', space=sflag, size = 0x4, scoped, tag = 'scoped memory for my_transformer_forward.8']
    #allocation6 [shape = 'u8[512]{0}', space=vmem, size = 0x400, scoped, tag = 'input window, operand 6, single buffered']
    #allocation7 [shape = 'u8[512]{0}', space=vmem, size = 0x400, scoped, tag = 'input window, operand 7, single buffered']
    #allocation8 [shape = 's32[1]{0}', space=sflag, size = 0x4, scoped, tag = 'scoped memory for my_transformer_forward.8']
    #allocation9 [shape = 'u8[512]{0}', space=vmem, size = 0x400, scoped, tag = 'input window, operand 9, single buffered']
    #allocation10 [shape = 'u8[512]{0}', space=vmem, size = 0x400, scoped, tag = 'input window, operand 11, single buffered']
    #allocation11 [shape = 's32[1]{0}', space=sflag, size = 0x4, scoped, tag = 'scoped memory for my_transformer_forward.8']
    #allocation12 [shape = 'u8[512]{0}', space=vmem, size = 0x400, scoped, tag = 'input window, operand 13, single buffered']
    #allocation13 [shape = 'u8[512]{0}', space=vmem, size = 0x400, scoped, tag = 'input window, operand 14, single buffered']
    #allocation14 [shape = 's32[1]{0}', space=sflag, size = 0x4, scoped, tag = 'scoped memory for my_transformer_forward.8']
    #allocation15 [shape = 'u8[512]{0}', space=vmem, size = 0x400, scoped, tag = 'input window, operand 15, single buffered']
    #allocation16 [shape = 'u8[512]{0}', space=vmem, size = 0x400, scoped, tag = 'input window, operand 17, single buffered']
    #allocation17 [shape = 's32[1]{0}', space=sflag, size = 0x4, scoped, tag = 'scoped memory for my_transformer_forward.8']
    #allocation18 [shape = 'u8[512]{0}', space=vmem, size = 0x400, scoped, tag = 'input window, operand 19, single buffered']
    #allocation19 [shape = 'u8[512]{0}', space=vmem, size = 0x400, scoped, tag = 'input window, operand 20, single buffered']
    #allocation20 [shape = 's32[1]{0}', space=sflag, size = 0x4, scoped, tag = 'scoped memory for my_transformer_forward.8']
    #allocation21 [shape = 'u8[512]{0}', space=vmem, size = 0x400, scoped, tag = 'input window, operand 21, single buffered']
    #allocation22 [shape = 'u8[512]{0}', space=vmem, size = 0x400, scoped, tag = 'input window, operand 22, single buffered']
    #allocation23 [shape = 's32[1]{0}', space=sflag, size = 0x4, scoped, tag = 'scoped memory for my_transformer_forward.8']
    #allocation24 [shape = 'u8[512]{0}', space=vmem, size = 0x400, scoped, tag = 'input window, operand 23, single buffered']
    %29 = vsyncpa [#allocation3], 0
    %30 = vsyncpa [#allocation5], 0
    %31 = vsyncpa [#allocation8], 0
    %32 = vsyncpa [#allocation11], 0
    %33 = vsyncpa [#allocation14], 0
    %34 = vsyncpa [#allocation17], 0
    %35 = vsyncpa [#allocation20], 0
    %36 = vsyncpa [#allocation23], 0
    loop: start=0, step=1, limit=4
    $region2: #{my_transformer_forward.8} parent=1 // loop_pre_header
      _
    $region3: #{my_transformer_forward.8} parent=1 // loop_header
      %s38 = sphi 0, %s42
      %p39 = scmp.ge.s32.totalorder %s38, 4
      %s48 = sphi 0, %s50
      %s51 = sphi 0, %s48
      %s52 = sphi 0, %s51
      %s68 = sphi 0, %s52
      %s74 = sphi 0, %s76
      %s77 = sphi 0, %s74
      %s78 = sphi 0, %s77
      %s94 = sphi 0, %s78
      %s98 = sphi 0, %s98
      %s100 = sphi 0, %s98
      %s101 = sphi 0, %s100
      %s115 = sphi 0, %s101
      %s119 = sphi 0, %s119
      %s121 = sphi 0, %s119
      %s122 = sphi 0, %s121
      %s136 = sphi 0, %s122
      %s140 = sphi 0, %s140
      %s142 = sphi 0, %s140
      %s143 = sphi 0, %s142
      %s157 = sphi 0, %s143
      %s161 = sphi 0, %s161
      %s163 = sphi 0, %s161
      %s164 = sphi 0, %s163
      %s178 = sphi 0, %s164
      %s182 = sphi 0, %s182
      %s184 = sphi 0, %s182
      %s185 = sphi 0, %s184
      %s199 = sphi 0, %s185
      %s203 = sphi 0, %s203
      %s205 = sphi 0, %s203
      %s206 = sphi 0, %s205
      %s220 = sphi 0, %s206
      %s224 = sphi 0, %s224
      %s226 = sphi 0, %s224
      %s227 = sphi 0, %s226
      %s241 = sphi 0, %s227
      %s245 = sphi 0, %s245
      %s247 = sphi 0, %s245
      %s248 = sphi 0, %s247
      %s262 = sphi 0, %s248
      %s266 = sphi 0, %s266
      %s268 = sphi 0, %s266
      %s269 = sphi 0, %s268
      %s283 = sphi 0, %s269
      %s287 = sphi 0, %s287
      %s289 = sphi 0, %s287
      %s290 = sphi 0, %s289
      %s304 = sphi 0, %s290
      %s308 = sphi 0, %s308
      %s310 = sphi 0, %s308
      %s311 = sphi 0, %s310
      %s325 = sphi 0, %s311
      %s329 = sphi 0, %s329
      %s331 = sphi 0, %s329
      %s332 = sphi 0, %s331
      %s346 = sphi 0, %s332
      %s350 = sphi 0, %s350
      %s352 = sphi 0, %s350
      %s353 = sphi 0, %s352
      %s367 = sphi 0, %s353
      %s371 = sphi 0, %s371
      %s373 = sphi 0, %s371
      %s374 = sphi 0, %s373
      %s388 = sphi 0, %s374
      %s392 = sphi 0, %s392
      %s394 = sphi 0, %s392
      %s395 = sphi 0, %s394
      %s409 = sphi 0, %s395
      %s413 = sphi 0, %s413
      %s415 = sphi 0, %s413
      %s416 = sphi 0, %s415
      %s430 = sphi 0, %s416
      %s434 = sphi 0, %s434
      %s436 = sphi 0, %s434
      %s437 = sphi 0, %s436
      %s451 = sphi 0, %s437
      %s455 = sphi 0, %s455
      %s457 = sphi 0, %s455
      %s458 = sphi 0, %s457
      %s472 = sphi 0, %s458
      %s476 = sphi 0, %s476
      %s478 = sphi 0, %s476
      %s479 = sphi 0, %s478
      %s493 = sphi 0, %s479
      %s497 = sphi 0, %s497
      %s499 = sphi 0, %s497
      %s500 = sphi 0, %s499
      %s514 = sphi 0, %s500
      %s518 = sphi 0, %s518
      %s520 = sphi 0, %s518
      %s521 = sphi 0, %s520
      %s535 = sphi 0, %s521
      %s539 = sphi 0, %s539
      %s541 = sphi 0, %s539
      %s542 = sphi 0, %s541
      %s556 = sphi 0, %s542
      %s562 = sphi 0, %s564
      %s565 = sphi 0, %s562
      %s566 = sphi 0, %s565
      %s582 = sphi 0, %s566
    $region4: #{my_transformer_forward.8} parent=1 // loop_header_branch
      %41 = sbr.rel (%p39) target = $region8
    $region5: #{my_transformer_forward.8} parent=1 // loop_body
      %s43 = ssub.s32 %s38, 1
      %s44 = ssub.s32 %s38, 2
      %s45 = sadd.s32 %s38, 1
      %s46 = ssub.s32 %s38, %s45
      %p47 = scmp.eq.s32.totalorder %s46, 0
      %s49 = sadd.s32 %s48, 1
      %s50 = scalar_select %p47, %s48, %s49
      %p53 = pneg %p47
      %p54 = scmp.eq.s32.totalorder %s38, 1
      %p55 = por %p53, %p54
      %p56 = scmp.ne.s32.totalorder %s48, %s51
      %p57 = scmp.eq.s32.totalorder %s38, 0
      %p58 = por %p56, %p57
      %p59 = scmp.ne.s32.totalorder %s48, %s51
      %p60 = scmp.eq.s32.totalorder %s43, 1
      %p61 = por %p59, %p60
      %p62 = scmp.ne.s32.totalorder %s51, %s52
      %p63 = scmp.eq.s32.totalorder %s43, 0
      %p64 = por %p62, %p63
      %p65 = scmp.ne.s32.totalorder %s51, %s52
      %p66 = scmp.eq.s32.totalorder %s44, 1
      %p67 = por %p65, %p66
      %p69 = scmp.ne.s32.totalorder %s52, %s68
      %p70 = scmp.eq.s32.totalorder %s44, 0
      %p71 = por %p69, %p70
      %s72 = ssub.s32 %s38, %s45
      %p73 = scmp.eq.s32.totalorder %s72, 0
      %s75 = sadd.s32 %s74, 1
      %s76 = scalar_select %p73, %s74, %s75
      %p79 = pneg %p73
      %p80 = scmp.eq.s32.totalorder %s38, 1
      %p81 = por %p79, %p80
      %p82 = scmp.ne.s32.totalorder %s74, %s77
      %p83 = scmp.eq.s32.totalorder %s38, 0
      %p84 = por %p82, %p83
      %p85 = scmp.ne.s32.totalorder %s74, %s77
      %p86 = scmp.eq.s32.totalorder %s43, 1
      %p87 = por %p85, %p86
      %p88 = scmp.ne.s32.totalorder %s77, %s78
      %p89 = scmp.eq.s32.totalorder %s43, 0
      %p90 = por %p88, %p89
      %p91 = scmp.ne.s32.totalorder %s77, %s78
      %p92 = scmp.eq.s32.totalorder %s44, 1
      %p93 = por %p91, %p92
      %p95 = scmp.ne.s32.totalorder %s78, %s94
      %p96 = scmp.eq.s32.totalorder %s44, 0
      %p97 = por %p95, %p96
      %s99 = sadd.s32 %s98, 1
      %p102 = scmp.eq.s32.totalorder %s38, 1
      %p103 = scmp.ne.s32.totalorder %s98, %s100
      %p104 = scmp.eq.s32.totalorder %s38, 0
      %p105 = por %p103, %p104
      %p106 = scmp.ne.s32.totalorder %s98, %s100
      %p107 = scmp.eq.s32.totalorder %s43, 1
      %p108 = por %p106, %p107
      %p109 = scmp.ne.s32.totalorder %s100, %s101
      %p110 = scmp.eq.s32.totalorder %s43, 0
      %p111 = por %p109, %p110
      %p112 = scmp.ne.s32.totalorder %s100, %s101
      %p113 = scmp.eq.s32.totalorder %s44, 1
      %p114 = por %p112, %p113
      %p116 = scmp.ne.s32.totalorder %s101, %s115
      %p117 = scmp.eq.s32.totalorder %s44, 0
      %p118 = por %p116, %p117
      %s120 = sadd.s32 %s119, 1
      %p123 = scmp.eq.s32.totalorder %s38, 1
      %p124 = scmp.ne.s32.totalorder %s119, %s121
      %p125 = scmp.eq.s32.totalorder %s38, 0
      %p126 = por %p124, %p125
      %p127 = scmp.ne.s32.totalorder %s119, %s121
      %p128 = scmp.eq.s32.totalorder %s43, 1
      %p129 = por %p127, %p128
      %p130 = scmp.ne.s32.totalorder %s121, %s122
      %p131 = scmp.eq.s32.totalorder %s43, 0
      %p132 = por %p130, %p131
      %p133 = scmp.ne.s32.totalorder %s121, %s122
      %p134 = scmp.eq.s32.totalorder %s44, 1
      %p135 = por %p133, %p134
      %p137 = scmp.ne.s32.totalorder %s122, %s136
      %p138 = scmp.eq.s32.totalorder %s44, 0
      %p139 = por %p137, %p138
      %s141 = sadd.s32 %s140, 1
      %p144 = scmp.eq.s32.totalorder %s38, 1
      %p145 = scmp.ne.s32.totalorder %s140, %s142
      %p146 = scmp.eq.s32.totalorder %s38, 0
      %p147 = por %p145, %p146
      %p148 = scmp.ne.s32.totalorder %s140, %s142
      %p149 = scmp.eq.s32.totalorder %s43, 1
      %p150 = por %p148, %p149
      %p151 = scmp.ne.s32.totalorder %s142, %s143
      %p152 = scmp.eq.s32.totalorder %s43, 0
      %p153 = por %p151, %p152
      %p154 = scmp.ne.s32.totalorder %s142, %s143
      %p155 = scmp.eq.s32.totalorder %s44, 1
      %p156 = por %p154, %p155
      %p158 = scmp.ne.s32.totalorder %s143, %s157
      %p159 = scmp.eq.s32.totalorder %s44, 0
      %p160 = por %p158, %p159
      %s162 = sadd.s32 %s161, 1
      %p165 = scmp.eq.s32.totalorder %s38, 1
      %p166 = scmp.ne.s32.totalorder %s161, %s163
      %p167 = scmp.eq.s32.totalorder %s38, 0
      %p168 = por %p166, %p167
      %p169 = scmp.ne.s32.totalorder %s161, %s163
      %p170 = scmp.eq.s32.totalorder %s43, 1
      %p171 = por %p169, %p170
      %p172 = scmp.ne.s32.totalorder %s163, %s164
      %p173 = scmp.eq.s32.totalorder %s43, 0
      %p174 = por %p172, %p173
      %p175 = scmp.ne.s32.totalorder %s163, %s164
      %p176 = scmp.eq.s32.totalorder %s44, 1
      %p177 = por %p175, %p176
      %p179 = scmp.ne.s32.totalorder %s164, %s178
      %p180 = scmp.eq.s32.totalorder %s44, 0
      %p181 = por %p179, %p180
      %s183 = sadd.s32 %s182, 1
      %p186 = scmp.eq.s32.totalorder %s38, 1
      %p187 = scmp.ne.s32.totalorder %s182, %s184
      %p188 = scmp.eq.s32.totalorder %s38, 0
      %p189 = por %p187, %p188
      %p190 = scmp.ne.s32.totalorder %s182, %s184
      %p191 = scmp.eq.s32.totalorder %s43, 1
      %p192 = por %p190, %p191
      %p193 = scmp.ne.s32.totalorder %s184, %s185
      %p194 = scmp.eq.s32.totalorder %s43, 0
      %p195 = por %p193, %p194
      %p196 = scmp.ne.s32.totalorder %s184, %s185
      %p197 = scmp.eq.s32.totalorder %s44, 1
      %p198 = por %p196, %p197
      %p200 = scmp.ne.s32.totalorder %s185, %s199
      %p201 = scmp.eq.s32.totalorder %s44, 0
      %p202 = por %p200, %p201
      %s204 = sadd.s32 %s203, 1
      %p207 = scmp.eq.s32.totalorder %s38, 1
      %p208 = scmp.ne.s32.totalorder %s203, %s205
      %p209 = scmp.eq.s32.totalorder %s38, 0
      %p210 = por %p208, %p209
      %p211 = scmp.ne.s32.totalorder %s203, %s205
      %p212 = scmp.eq.s32.totalorder %s43, 1
      %p213 = por %p211, %p212
      %p214 = scmp.ne.s32.totalorder %s205, %s206
      %p215 = scmp.eq.s32.totalorder %s43, 0
      %p216 = por %p214, %p215
      %p217 = scmp.ne.s32.totalorder %s205, %s206
      %p218 = scmp.eq.s32.totalorder %s44, 1
      %p219 = por %p217, %p218
      %p221 = scmp.ne.s32.totalorder %s206, %s220
      %p222 = scmp.eq.s32.totalorder %s44, 0
      %p223 = por %p221, %p222
      %s225 = sadd.s32 %s224, 1
      %p228 = scmp.eq.s32.totalorder %s38, 1
      %p229 = scmp.ne.s32.totalorder %s224, %s226
      %p230 = scmp.eq.s32.totalorder %s38, 0
      %p231 = por %p229, %p230
      %p232 = scmp.ne.s32.totalorder %s224, %s226
      %p233 = scmp.eq.s32.totalorder %s43, 1
      %p234 = por %p232, %p233
      %p235 = scmp.ne.s32.totalorder %s226, %s227
      %p236 = scmp.eq.s32.totalorder %s43, 0
      %p237 = por %p235, %p236
      %p238 = scmp.ne.s32.totalorder %s226, %s227
      %p239 = scmp.eq.s32.totalorder %s44, 1
      %p240 = por %p238, %p239
      %p242 = scmp.ne.s32.totalorder %s227, %s241
      %p243 = scmp.eq.s32.totalorder %s44, 0
      %p244 = por %p242, %p243
      %s246 = sadd.s32 %s245, 1
      %p249 = scmp.eq.s32.totalorder %s38, 1
      %p250 = scmp.ne.s32.totalorder %s245, %s247
      %p251 = scmp.eq.s32.totalorder %s38, 0
      %p252 = por %p250, %p251
      %p253 = scmp.ne.s32.totalorder %s245, %s247
      %p254 = scmp.eq.s32.totalorder %s43, 1
      %p255 = por %p253, %p254
      %p256 = scmp.ne.s32.totalorder %s247, %s248
      %p257 = scmp.eq.s32.totalorder %s43, 0
      %p258 = por %p256, %p257
      %p259 = scmp.ne.s32.totalorder %s247, %s248
      %p260 = scmp.eq.s32.totalorder %s44, 1
      %p261 = por %p259, %p260
      %p263 = scmp.ne.s32.totalorder %s248, %s262
      %p264 = scmp.eq.s32.totalorder %s44, 0
      %p265 = por %p263, %p264
      %s267 = sadd.s32 %s266, 1
      %p270 = scmp.eq.s32.totalorder %s38, 1
      %p271 = scmp.ne.s32.totalorder %s266, %s268
      %p272 = scmp.eq.s32.totalorder %s38, 0
      %p273 = por %p271, %p272
      %p274 = scmp.ne.s32.totalorder %s266, %s268
      %p275 = scmp.eq.s32.totalorder %s43, 1
      %p276 = por %p274, %p275
      %p277 = scmp.ne.s32.totalorder %s268, %s269
      %p278 = scmp.eq.s32.totalorder %s43, 0
      %p279 = por %p277, %p278
      %p280 = scmp.ne.s32.totalorder %s268, %s269
      %p281 = scmp.eq.s32.totalorder %s44, 1
      %p282 = por %p280, %p281
      %p284 = scmp.ne.s32.totalorder %s269, %s283
      %p285 = scmp.eq.s32.totalorder %s44, 0
      %p286 = por %p284, %p285
      %s288 = sadd.s32 %s287, 1
      %p291 = scmp.eq.s32.totalorder %s38, 1
      %p292 = scmp.ne.s32.totalorder %s287, %s289
      %p293 = scmp.eq.s32.totalorder %s38, 0
      %p294 = por %p292, %p293
      %p295 = scmp.ne.s32.totalorder %s287, %s289
      %p296 = scmp.eq.s32.totalorder %s43, 1
      %p297 = por %p295, %p296
      %p298 = scmp.ne.s32.totalorder %s289, %s290
      %p299 = scmp.eq.s32.totalorder %s43, 0
      %p300 = por %p298, %p299
      %p301 = scmp.ne.s32.totalorder %s289, %s290
      %p302 = scmp.eq.s32.totalorder %s44, 1
      %p303 = por %p301, %p302
      %p305 = scmp.ne.s32.totalorder %s290, %s304
      %p306 = scmp.eq.s32.totalorder %s44, 0
      %p307 = por %p305, %p306
      %s309 = sadd.s32 %s308, 1
      %p312 = scmp.eq.s32.totalorder %s38, 1
      %p313 = scmp.ne.s32.totalorder %s308, %s310
      %p314 = scmp.eq.s32.totalorder %s38, 0
      %p315 = por %p313, %p314
      %p316 = scmp.ne.s32.totalorder %s308, %s310
      %p317 = scmp.eq.s32.totalorder %s43, 1
      %p318 = por %p316, %p317
      %p319 = scmp.ne.s32.totalorder %s310, %s311
      %p320 = scmp.eq.s32.totalorder %s43, 0
      %p321 = por %p319, %p320
      %p322 = scmp.ne.s32.totalorder %s310, %s311
      %p323 = scmp.eq.s32.totalorder %s44, 1
      %p324 = por %p322, %p323
      %p326 = scmp.ne.s32.totalorder %s311, %s325
      %p327 = scmp.eq.s32.totalorder %s44, 0
      %p328 = por %p326, %p327
      %s330 = sadd.s32 %s329, 1
      %p333 = scmp.eq.s32.totalorder %s38, 1
      %p334 = scmp.ne.s32.totalorder %s329, %s331
      %p335 = scmp.eq.s32.totalorder %s38, 0
      %p336 = por %p334, %p335
      %p337 = scmp.ne.s32.totalorder %s329, %s331
      %p338 = scmp.eq.s32.totalorder %s43, 1
      %p339 = por %p337, %p338
      %p340 = scmp.ne.s32.totalorder %s331, %s332
      %p341 = scmp.eq.s32.totalorder %s43, 0
      %p342 = por %p340, %p341
      %p343 = scmp.ne.s32.totalorder %s331, %s332
      %p344 = scmp.eq.s32.totalorder %s44, 1
      %p345 = por %p343, %p344
      %p347 = scmp.ne.s32.totalorder %s332, %s346
      %p348 = scmp.eq.s32.totalorder %s44, 0
      %p349 = por %p347, %p348
      %s351 = sadd.s32 %s350, 1
      %p354 = scmp.eq.s32.totalorder %s38, 1
      %p355 = scmp.ne.s32.totalorder %s350, %s352
      %p356 = scmp.eq.s32.totalorder %s38, 0
      %p357 = por %p355, %p356
      %p358 = scmp.ne.s32.totalorder %s350, %s352
      %p359 = scmp.eq.s32.totalorder %s43, 1
      %p360 = por %p358, %p359
      %p361 = scmp.ne.s32.totalorder %s352, %s353
      %p362 = scmp.eq.s32.totalorder %s43, 0
      %p363 = por %p361, %p362
      %p364 = scmp.ne.s32.totalorder %s352, %s353
      %p365 = scmp.eq.s32.totalorder %s44, 1
      %p366 = por %p364, %p365
      %p368 = scmp.ne.s32.totalorder %s353, %s367
      %p369 = scmp.eq.s32.totalorder %s44, 0
      %p370 = por %p368, %p369
      %s372 = sadd.s32 %s371, 1
      %p375 = scmp.eq.s32.totalorder %s38, 1
      %p376 = scmp.ne.s32.totalorder %s371, %s373
      %p377 = scmp.eq.s32.totalorder %s38, 0
      %p378 = por %p376, %p377
      %p379 = scmp.ne.s32.totalorder %s371, %s373
      %p380 = scmp.eq.s32.totalorder %s43, 1
      %p381 = por %p379, %p380
      %p382 = scmp.ne.s32.totalorder %s373, %s374
      %p383 = scmp.eq.s32.totalorder %s43, 0
      %p384 = por %p382, %p383
      %p385 = scmp.ne.s32.totalorder %s373, %s374
      %p386 = scmp.eq.s32.totalorder %s44, 1
      %p387 = por %p385, %p386
      %p389 = scmp.ne.s32.totalorder %s374, %s388
      %p390 = scmp.eq.s32.totalorder %s44, 0
      %p391 = por %p389, %p390
      %s393 = sadd.s32 %s392, 1
      %p396 = scmp.eq.s32.totalorder %s38, 1
      %p397 = scmp.ne.s32.totalorder %s392, %s394
      %p398 = scmp.eq.s32.totalorder %s38, 0
      %p399 = por %p397, %p398
      %p400 = scmp.ne.s32.totalorder %s392, %s394
      %p401 = scmp.eq.s32.totalorder %s43, 1
      %p402 = por %p400, %p401
      %p403 = scmp.ne.s32.totalorder %s394, %s395
      %p404 = scmp.eq.s32.totalorder %s43, 0
      %p405 = por %p403, %p404
      %p406 = scmp.ne.s32.totalorder %s394, %s395
      %p407 = scmp.eq.s32.totalorder %s44, 1
      %p408 = por %p406, %p407
      %p410 = scmp.ne.s32.totalorder %s395, %s409
      %p411 = scmp.eq.s32.totalorder %s44, 0
      %p412 = por %p410, %p411
      %s414 = sadd.s32 %s413, 1
      %p417 = scmp.eq.s32.totalorder %s38, 1
      %p418 = scmp.ne.s32.totalorder %s413, %s415
      %p419 = scmp.eq.s32.totalorder %s38, 0
      %p420 = por %p418, %p419
      %p421 = scmp.ne.s32.totalorder %s413, %s415
      %p422 = scmp.eq.s32.totalorder %s43, 1
      %p423 = por %p421, %p422
      %p424 = scmp.ne.s32.totalorder %s415, %s416
      %p425 = scmp.eq.s32.totalorder %s43, 0
      %p426 = por %p424, %p425
      %p427 = scmp.ne.s32.totalorder %s415, %s416
      %p428 = scmp.eq.s32.totalorder %s44, 1
      %p429 = por %p427, %p428
      %p431 = scmp.ne.s32.totalorder %s416, %s430
      %p432 = scmp.eq.s32.totalorder %s44, 0
      %p433 = por %p431, %p432
      %s435 = sadd.s32 %s434, 1
      %p438 = scmp.eq.s32.totalorder %s38, 1
      %p439 = scmp.ne.s32.totalorder %s434, %s436
      %p440 = scmp.eq.s32.totalorder %s38, 0
      %p441 = por %p439, %p440
      %p442 = scmp.ne.s32.totalorder %s434, %s436
      %p443 = scmp.eq.s32.totalorder %s43, 1
      %p444 = por %p442, %p443
      %p445 = scmp.ne.s32.totalorder %s436, %s437
      %p446 = scmp.eq.s32.totalorder %s43, 0
      %p447 = por %p445, %p446
      %p448 = scmp.ne.s32.totalorder %s436, %s437
      %p449 = scmp.eq.s32.totalorder %s44, 1
      %p450 = por %p448, %p449
      %p452 = scmp.ne.s32.totalorder %s437, %s451
      %p453 = scmp.eq.s32.totalorder %s44, 0
      %p454 = por %p452, %p453
      %s456 = sadd.s32 %s455, 1
      %p459 = scmp.eq.s32.totalorder %s38, 1
      %p460 = scmp.ne.s32.totalorder %s455, %s457
      %p461 = scmp.eq.s32.totalorder %s38, 0
      %p462 = por %p460, %p461
      %p463 = scmp.ne.s32.totalorder %s455, %s457
      %p464 = scmp.eq.s32.totalorder %s43, 1
      %p465 = por %p463, %p464
      %p466 = scmp.ne.s32.totalorder %s457, %s458
      %p467 = scmp.eq.s32.totalorder %s43, 0
      %p468 = por %p466, %p467
      %p469 = scmp.ne.s32.totalorder %s457, %s458
      %p470 = scmp.eq.s32.totalorder %s44, 1
      %p471 = por %p469, %p470
      %p473 = scmp.ne.s32.totalorder %s458, %s472
      %p474 = scmp.eq.s32.totalorder %s44, 0
      %p475 = por %p473, %p474
      %s477 = sadd.s32 %s476, 1
      %p480 = scmp.eq.s32.totalorder %s38, 1
      %p481 = scmp.ne.s32.totalorder %s476, %s478
      %p482 = scmp.eq.s32.totalorder %s38, 0
      %p483 = por %p481, %p482
      %p484 = scmp.ne.s32.totalorder %s476, %s478
      %p485 = scmp.eq.s32.totalorder %s43, 1
      %p486 = por %p484, %p485
      %p487 = scmp.ne.s32.totalorder %s478, %s479
      %p488 = scmp.eq.s32.totalorder %s43, 0
      %p489 = por %p487, %p488
      %p490 = scmp.ne.s32.totalorder %s478, %s479
      %p491 = scmp.eq.s32.totalorder %s44, 1
      %p492 = por %p490, %p491
      %p494 = scmp.ne.s32.totalorder %s479, %s493
      %p495 = scmp.eq.s32.totalorder %s44, 0
      %p496 = por %p494, %p495
      %s498 = sadd.s32 %s497, 1
      %p501 = scmp.eq.s32.totalorder %s38, 1
      %p502 = scmp.ne.s32.totalorder %s497, %s499
      %p503 = scmp.eq.s32.totalorder %s38, 0
      %p504 = por %p502, %p503
      %p505 = scmp.ne.s32.totalorder %s497, %s499
      %p506 = scmp.eq.s32.totalorder %s43, 1
      %p507 = por %p505, %p506
      %p508 = scmp.ne.s32.totalorder %s499, %s500
      %p509 = scmp.eq.s32.totalorder %s43, 0
      %p510 = por %p508, %p509
      %p511 = scmp.ne.s32.totalorder %s499, %s500
      %p512 = scmp.eq.s32.totalorder %s44, 1
      %p513 = por %p511, %p512
      %p515 = scmp.ne.s32.totalorder %s500, %s514
      %p516 = scmp.eq.s32.totalorder %s44, 0
      %p517 = por %p515, %p516
      %s519 = sadd.s32 %s518, 1
      %p522 = scmp.eq.s32.totalorder %s38, 1
      %p523 = scmp.ne.s32.totalorder %s518, %s520
      %p524 = scmp.eq.s32.totalorder %s38, 0
      %p525 = por %p523, %p524
      %p526 = scmp.ne.s32.totalorder %s518, %s520
      %p527 = scmp.eq.s32.totalorder %s43, 1
      %p528 = por %p526, %p527
      %p529 = scmp.ne.s32.totalorder %s520, %s521
      %p530 = scmp.eq.s32.totalorder %s43, 0
      %p531 = por %p529, %p530
      %p532 = scmp.ne.s32.totalorder %s520, %s521
      %p533 = scmp.eq.s32.totalorder %s44, 1
      %p534 = por %p532, %p533
      %p536 = scmp.ne.s32.totalorder %s521, %s535
      %p537 = scmp.eq.s32.totalorder %s44, 0
      %p538 = por %p536, %p537
      %s540 = sadd.s32 %s539, 1
      %p543 = scmp.eq.s32.totalorder %s38, 1
      %p544 = scmp.ne.s32.totalorder %s539, %s541
      %p545 = scmp.eq.s32.totalorder %s38, 0
      %p546 = por %p544, %p545
      %p547 = scmp.ne.s32.totalorder %s539, %s541
      %p548 = scmp.eq.s32.totalorder %s43, 1
      %p549 = por %p547, %p548
      %p550 = scmp.ne.s32.totalorder %s541, %s542
      %p551 = scmp.eq.s32.totalorder %s43, 0
      %p552 = por %p550, %p551
      %p553 = scmp.ne.s32.totalorder %s541, %s542
      %p554 = scmp.eq.s32.totalorder %s44, 1
      %p555 = por %p553, %p554
      %p557 = scmp.ne.s32.totalorder %s542, %s556
      %p558 = scmp.eq.s32.totalorder %s44, 0
      %p559 = por %p557, %p558
      %s560 = ssub.s32 %s38, %s45
      %p561 = scmp.eq.s32.totalorder %s560, 0
      %s563 = sadd.s32 %s562, 1
      %s564 = scalar_select %p561, %s562, %s563
      %p567 = pneg %p561
      %p568 = scmp.eq.s32.totalorder %s38, 1
      %p569 = por %p567, %p568
      %p570 = scmp.ne.s32.totalorder %s562, %s565
      %p571 = scmp.eq.s32.totalorder %s38, 0
      %p572 = por %p570, %p571
      %p573 = scmp.ne.s32.totalorder %s562, %s565
      %p574 = scmp.eq.s32.totalorder %s43, 1
      %p575 = por %p573, %p574
      %p576 = scmp.ne.s32.totalorder %s565, %s566
      %p577 = scmp.eq.s32.totalorder %s43, 0
      %p578 = por %p576, %p577
      %p579 = scmp.ne.s32.totalorder %s565, %s566
      %p580 = scmp.eq.s32.totalorder %s44, 1
      %p581 = por %p579, %p580
      %p583 = scmp.ne.s32.totalorder %s566, %s582
      %p584 = scmp.eq.s32.totalorder %s44, 0
      %p585 = por %p583, %p584
      %p586 = scmp.le.s32.totalorder 1, %s38
      %p587 = scmp.lt.s32.totalorder %s38, 3
      %p588 = pnand %p586, %p587
      %p589 = pneg %p588
      // Predicated region
      $region9: #{my_transformer_forward.8} parent=5 // pred_check
        _
      $region10: #{my_transformer_forward.8} parent=5 // pred_check_branch
        %591 = sbr.rel (%p588) target = $region12
      $region11: #{my_transformer_forward.8} parent=5 // pred_region
        %s592 = ssub.s32 %s38, 1
        // Predicated region
        $region13: #{my_transformer_forward.8} parent=11 // pred_check
          %p593 = pneg %p111
        $region14: #{my_transformer_forward.8} parent=11 // pred_check_branch
          %595 = sbr.rel (%p593) target = $region16
        $region15: #{my_transformer_forward.8} parent=11 // pred_region
          _
        $region16: #{my_transformer_forward.8} parent=11 // pred_fallthru
          _
        // Predicated region
        $region17: #{my_transformer_forward.8} parent=11 // pred_check
          %p596 = pneg %p132
        $region18: #{my_transformer_forward.8} parent=11 // pred_check_branch
          %598 = sbr.rel (%p596) target = $region20
        $region19: #{my_transformer_forward.8} parent=11 // pred_region
          %600 = vsyncadd [#allocation3], 0
          %s602 = sshll.u32 %s3, 4
          %s603 = int_to_ptr.hbm [resolvable:$true] %s602
          %s604 = sshll.u32 [#allocation2], 4
          %s605 = int_to_ptr.vmem [resolvable:$true] %s604
          %607 = dma.hbm_to_vmem [thread:$0]  %s603, 16, %s605, [#allocation3]
        $region20: #{my_transformer_forward.8} parent=11 // pred_fallthru
          _
        // Predicated region
        $region21: #{my_transformer_forward.8} parent=11 // pred_check
          %p608 = pneg %p153
        $region22: #{my_transformer_forward.8} parent=11 // pred_check_branch
          %610 = sbr.rel (%p608) target = $region24
        $region23: #{my_transformer_forward.8} parent=11 // pred_region
          _
        $region24: #{my_transformer_forward.8} parent=11 // pred_fallthru
          _
        // Predicated region
        $region25: #{my_transformer_forward.8} parent=11 // pred_check
          %p611 = pneg %p174
        $region26: #{my_transformer_forward.8} parent=11 // pred_check_branch
          %613 = sbr.rel (%p611) target = $region28
        $region27: #{my_transformer_forward.8} parent=11 // pred_region
          %615 = vsyncadd [#allocation5], 0
          %s617 = sshll.u32 %s5, 4
          %s618 = int_to_ptr.hbm [resolvable:$true] %s617
          %s619 = sshll.u32 [#allocation4], 4
          %s620 = int_to_ptr.vmem [resolvable:$true] %s619
          %622 = dma.hbm_to_vmem [thread:$0]  %s618, 16, %s620, [#allocation5]
        $region28: #{my_transformer_forward.8} parent=11 // pred_fallthru
          _
        // Predicated region
        $region29: #{my_transformer_forward.8} parent=11 // pred_check
          %p623 = pneg %p195
        $region30: #{my_transformer_forward.8} parent=11 // pred_check_branch
          %625 = sbr.rel (%p623) target = $region32
        $region31: #{my_transformer_forward.8} parent=11 // pred_region
          %627 = vsyncadd [#allocation5], 0
          %s629 = sshll.u32 %s6, 4
          %s630 = int_to_ptr.hbm [resolvable:$true] %s629
          %s631 = sshll.u32 [#allocation6], 4
          %s632 = int_to_ptr.vmem [resolvable:$true] %s631
          %634 = dma.hbm_to_vmem [thread:$0]  %s630, 16, %s632, [#allocation5]
        $region32: #{my_transformer_forward.8} parent=11 // pred_fallthru
          _
        // Predicated region
        $region33: #{my_transformer_forward.8} parent=11 // pred_check
          %p635 = pneg %p216
        $region34: #{my_transformer_forward.8} parent=11 // pred_check_branch
          %637 = sbr.rel (%p635) target = $region36
        $region35: #{my_transformer_forward.8} parent=11 // pred_region
          %639 = vsyncadd [#allocation8], 0
          %s641 = sshll.u32 %s7, 4
          %s642 = int_to_ptr.hbm [resolvable:$true] %s641
          %s643 = sshll.u32 [#allocation7], 4
          %s644 = int_to_ptr.vmem [resolvable:$true] %s643
          %646 = dma.hbm_to_vmem [thread:$0]  %s642, 16, %s644, [#allocation8]
        $region36: #{my_transformer_forward.8} parent=11 // pred_fallthru
          _
        // Predicated region
        $region37: #{my_transformer_forward.8} parent=11 // pred_check
          %p647 = pneg %p237
        $region38: #{my_transformer_forward.8} parent=11 // pred_check_branch
          %649 = sbr.rel (%p647) target = $region40
        $region39: #{my_transformer_forward.8} parent=11 // pred_region
          _
        $region40: #{my_transformer_forward.8} parent=11 // pred_fallthru
          _
        // Predicated region
        $region41: #{my_transformer_forward.8} parent=11 // pred_check
          %p650 = pneg %p258
        $region42: #{my_transformer_forward.8} parent=11 // pred_check_branch
          %652 = sbr.rel (%p650) target = $region44
        $region43: #{my_transformer_forward.8} parent=11 // pred_region
          %654 = vsyncadd [#allocation8], 0
          %s656 = sshll.u32 %s9, 4
          %s657 = int_to_ptr.hbm [resolvable:$true] %s656
          %s658 = sshll.u32 [#allocation9], 4
          %s659 = int_to_ptr.vmem [resolvable:$true] %s658
          %661 = dma.hbm_to_vmem [thread:$0]  %s657, 16, %s659, [#allocation8]
        $region44: #{my_transformer_forward.8} parent=11 // pred_fallthru
          _
        // Predicated region
        $region45: #{my_transformer_forward.8} parent=11 // pred_check
          %p662 = pneg %p279
        $region46: #{my_transformer_forward.8} parent=11 // pred_check_branch
          %664 = sbr.rel (%p662) target = $region48
        $region47: #{my_transformer_forward.8} parent=11 // pred_region
          _
        $region48: #{my_transformer_forward.8} parent=11 // pred_fallthru
          _
        // Predicated region
        $region49: #{my_transformer_forward.8} parent=11 // pred_check
          %p665 = pneg %p300
        $region50: #{my_transformer_forward.8} parent=11 // pred_check_branch
          %667 = sbr.rel (%p665) target = $region52
        $region51: #{my_transformer_forward.8} parent=11 // pred_region
          %669 = vsyncadd [#allocation11], 0
          %s671 = sshll.u32 %s11, 4
          %s672 = int_to_ptr.hbm [resolvable:$true] %s671
          %s673 = sshll.u32 [#allocation10], 4
          %s674 = int_to_ptr.vmem [resolvable:$true] %s673
          %676 = dma.hbm_to_vmem [thread:$0]  %s672, 16, %s674, [#allocation11]
        $region52: #{my_transformer_forward.8} parent=11 // pred_fallthru
          _
        // Predicated region
        $region53: #{my_transformer_forward.8} parent=11 // pred_check
          %p677 = pneg %p321
        $region54: #{my_transformer_forward.8} parent=11 // pred_check_branch
          %679 = sbr.rel (%p677) target = $region56
        $region55: #{my_transformer_forward.8} parent=11 // pred_region
          _
        $region56: #{my_transformer_forward.8} parent=11 // pred_fallthru
          _
        // Predicated region
        $region57: #{my_transformer_forward.8} parent=11 // pred_check
          %p680 = pneg %p342
        $region58: #{my_transformer_forward.8} parent=11 // pred_check_branch
          %682 = sbr.rel (%p680) target = $region60
        $region59: #{my_transformer_forward.8} parent=11 // pred_region
          %684 = vsyncadd [#allocation11], 0
          %s686 = sshll.u32 %s13, 4
          %s687 = int_to_ptr.hbm [resolvable:$true] %s686
          %s688 = sshll.u32 [#allocation12], 4
          %s689 = int_to_ptr.vmem [resolvable:$true] %s688
          %691 = dma.hbm_to_vmem [thread:$0]  %s687, 16, %s689, [#allocation11]
        $region60: #{my_transformer_forward.8} parent=11 // pred_fallthru
          _
        // Predicated region
        $region61: #{my_transformer_forward.8} parent=11 // pred_check
          %p692 = pneg %p363
        $region62: #{my_transformer_forward.8} parent=11 // pred_check_branch
          %694 = sbr.rel (%p692) target = $region64
        $region63: #{my_transformer_forward.8} parent=11 // pred_region
          %696 = vsyncadd [#allocation14], 0
          %s698 = sshll.u32 %s14, 4
          %s699 = int_to_ptr.hbm [resolvable:$true] %s698
          %s700 = sshll.u32 [#allocation13], 4
          %s701 = int_to_ptr.vmem [resolvable:$true] %s700
          %703 = dma.hbm_to_vmem [thread:$0]  %s699, 16, %s701, [#allocation14]
        $region64: #{my_transformer_forward.8} parent=11 // pred_fallthru
          _
        // Predicated region
        $region65: #{my_transformer_forward.8} parent=11 // pred_check
          %p704 = pneg %p384
        $region66: #{my_transformer_forward.8} parent=11 // pred_check_branch
          %706 = sbr.rel (%p704) target = $region68
        $region67: #{my_transformer_forward.8} parent=11 // pred_region
          %708 = vsyncadd [#allocation14], 0
          %s710 = sshll.u32 %s15, 4
          %s711 = int_to_ptr.hbm [resolvable:$true] %s710
          %s712 = sshll.u32 [#allocation15], 4
          %s713 = int_to_ptr.vmem [resolvable:$true] %s712
          %715 = dma.hbm_to_vmem [thread:$0]  %s711, 16, %s713, [#allocation14]
        $region68: #{my_transformer_forward.8} parent=11 // pred_fallthru
          _
        // Predicated region
        $region69: #{my_transformer_forward.8} parent=11 // pred_check
          %p716 = pneg %p405
        $region70: #{my_transformer_forward.8} parent=11 // pred_check_branch
          %718 = sbr.rel (%p716) target = $region72
        $region71: #{my_transformer_forward.8} parent=11 // pred_region
          _
        $region72: #{my_transformer_forward.8} parent=11 // pred_fallthru
          _
        // Predicated region
        $region73: #{my_transformer_forward.8} parent=11 // pred_check
          %p719 = pneg %p426
        $region74: #{my_transformer_forward.8} parent=11 // pred_check_branch
          %721 = sbr.rel (%p719) target = $region76
        $region75: #{my_transformer_forward.8} parent=11 // pred_region
          %723 = vsyncadd [#allocation17], 0
          %s725 = sshll.u32 %s17, 4
          %s726 = int_to_ptr.hbm [resolvable:$true] %s725
          %s727 = sshll.u32 [#allocation16], 4
          %s728 = int_to_ptr.vmem [resolvable:$true] %s727
          %730 = dma.hbm_to_vmem [thread:$0]  %s726, 16, %s728, [#allocation17]
        $region76: #{my_transformer_forward.8} parent=11 // pred_fallthru
          _
        // Predicated region
        $region77: #{my_transformer_forward.8} parent=11 // pred_check
          %p731 = pneg %p447
        $region78: #{my_transformer_forward.8} parent=11 // pred_check_branch
          %733 = sbr.rel (%p731) target = $region80
        $region79: #{my_transformer_forward.8} parent=11 // pred_region
          _
        $region80: #{my_transformer_forward.8} parent=11 // pred_fallthru
          _
        // Predicated region
        $region81: #{my_transformer_forward.8} parent=11 // pred_check
          %p734 = pneg %p468
        $region82: #{my_transformer_forward.8} parent=11 // pred_check_branch
          %736 = sbr.rel (%p734) target = $region84
        $region83: #{my_transformer_forward.8} parent=11 // pred_region
          %738 = vsyncadd [#allocation17], 0
          %s740 = sshll.u32 %s19, 4
          %s741 = int_to_ptr.hbm [resolvable:$true] %s740
          %s742 = sshll.u32 [#allocation18], 4
          %s743 = int_to_ptr.vmem [resolvable:$true] %s742
          %745 = dma.hbm_to_vmem [thread:$0]  %s741, 16, %s743, [#allocation17]
        $region84: #{my_transformer_forward.8} parent=11 // pred_fallthru
          _
        // Predicated region
        $region85: #{my_transformer_forward.8} parent=11 // pred_check
          %p746 = pneg %p489
        $region86: #{my_transformer_forward.8} parent=11 // pred_check_branch
          %748 = sbr.rel (%p746) target = $region88
        $region87: #{my_transformer_forward.8} parent=11 // pred_region
          %750 = vsyncadd [#allocation20], 0
          %s752 = sshll.u32 %s20, 4
          %s753 = int_to_ptr.hbm [resolvable:$true] %s752
          %s754 = sshll.u32 [#allocation19], 4
          %s755 = int_to_ptr.vmem [resolvable:$true] %s754
          %757 = dma.hbm_to_vmem [thread:$0]  %s753, 16, %s755, [#allocation20]
        $region88: #{my_transformer_forward.8} parent=11 // pred_fallthru
          _
        // Predicated region
        $region89: #{my_transformer_forward.8} parent=11 // pred_check
          %p758 = pneg %p510
        $region90: #{my_transformer_forward.8} parent=11 // pred_check_branch
          %760 = sbr.rel (%p758) target = $region92
        $region91: #{my_transformer_forward.8} parent=11 // pred_region
          %762 = vsyncadd [#allocation20], 0
          %s764 = sshll.u32 %s21, 4
          %s765 = int_to_ptr.hbm [resolvable:$true] %s764
          %s766 = sshll.u32 [#allocation21], 4
          %s767 = int_to_ptr.vmem [resolvable:$true] %s766
          %769 = dma.hbm_to_vmem [thread:$0]  %s765, 16, %s767, [#allocation20]
        $region92: #{my_transformer_forward.8} parent=11 // pred_fallthru
          _
        // Predicated region
        $region93: #{my_transformer_forward.8} parent=11 // pred_check
          %p770 = pneg %p531
        $region94: #{my_transformer_forward.8} parent=11 // pred_check_branch
          %772 = sbr.rel (%p770) target = $region96
        $region95: #{my_transformer_forward.8} parent=11 // pred_region
          %774 = vsyncadd [#allocation23], 0
          %s776 = sshll.u32 %s22, 4
          %s777 = int_to_ptr.hbm [resolvable:$true] %s776
          %s778 = sshll.u32 [#allocation22], 4
          %s779 = int_to_ptr.vmem [resolvable:$true] %s778
          %781 = dma.hbm_to_vmem [thread:$0]  %s777, 16, %s779, [#allocation23]
        $region96: #{my_transformer_forward.8} parent=11 // pred_fallthru
          _
        // Predicated region
        $region97: #{my_transformer_forward.8} parent=11 // pred_check
          %p782 = pneg %p552
        $region98: #{my_transformer_forward.8} parent=11 // pred_check_branch
          %784 = sbr.rel (%p782) target = $region100
        $region99: #{my_transformer_forward.8} parent=11 // pred_region
          %786 = vsyncadd [#allocation23], 0
          %s788 = sshll.u32 %s23, 4
          %s789 = int_to_ptr.hbm [resolvable:$true] %s788
          %s790 = sshll.u32 [#allocation24], 4
          %s791 = int_to_ptr.vmem [resolvable:$true] %s790
          %793 = dma.hbm_to_vmem [thread:$0]  %s789, 16, %s791, [#allocation23]
        $region100: #{my_transformer_forward.8} parent=11 // pred_fallthru
          _
      $region12: #{my_transformer_forward.8} parent=5 // pred_fallthru
        _
      %p794 = scmp.lt.s32.totalorder %s38, 2
      // Predicated region
      $region101: #{my_transformer_forward.8} parent=5 // pred_check
        %p795 = pneg %p794
      $region102: #{my_transformer_forward.8} parent=5 // pred_check_branch
        %797 = sbr.rel (%p795) target = $region104
      $region103: #{my_transformer_forward.8} parent=5 // pred_region
        // Predicated region
        $region105: #{my_transformer_forward.8} parent=103 // pred_check
          %p798 = pneg %p58
        $region106: #{my_transformer_forward.8} parent=103 // pred_check_branch
          %800 = sbr.rel (%p798) target = $region108
        $region107: #{my_transformer_forward.8} parent=103 // pred_region
          %p801 = scmp.lt.s32.totalorder %s38, 1
          %s802 = scalar_select %p801, %s38, 1
          %s803 = smul.addr %s802, 4
          %s804 = scalar_lea.vmem %s0, %s803
        $region108: #{my_transformer_forward.8} parent=103 // pred_fallthru
          _
        // Predicated region
        $region109: #{my_transformer_forward.8} parent=103 // pred_check
          %p805 = pneg %p84
        $region110: #{my_transformer_forward.8} parent=103 // pred_check_branch
          %807 = sbr.rel (%p805) target = $region112
        $region111: #{my_transformer_forward.8} parent=103 // pred_region
          %p808 = scmp.lt.s32.totalorder %s38, 1
          %s809 = scalar_select %p808, %s38, 1
          %s810 = smul.addr %s809, 4
          %s811 = scalar_lea.vmem %s1, %s810
        $region112: #{my_transformer_forward.8} parent=103 // pred_fallthru
          _
      $region104: #{my_transformer_forward.8} parent=5 // pred_fallthru
        _
      %p812 = scmp.le.s32.totalorder 1, %s38
      %p813 = scmp.lt.s32.totalorder %s38, 3
      %p814 = pnand %p812, %p813
      %p815 = pneg %p814
      // Predicated region
      $region113: #{my_transformer_forward.8} parent=5 // pred_check
        _
      $region114: #{my_transformer_forward.8} parent=5 // pred_check_branch
        %817 = sbr.rel (%p814) target = $region116
      $region115: #{my_transformer_forward.8} parent=5 // pred_region
        %s818 = ssub.s32 %s38, 1
        // Predicated region
        $region117: #{my_transformer_forward.8} parent=115 // pred_check
          %p819 = pneg %p132
        $region118: #{my_transformer_forward.8} parent=115 // pred_check_branch
          %821 = sbr.rel (%p819) target = $region120
        $region119: #{my_transformer_forward.8} parent=115 // pred_region
          %823 = dma.done [#allocation3], 16
        $region120: #{my_transformer_forward.8} parent=115 // pred_fallthru
          _
        // Predicated region
        $region121: #{my_transformer_forward.8} parent=115 // pred_check
          %p824 = pneg %p174
        $region122: #{my_transformer_forward.8} parent=115 // pred_check_branch
          %826 = sbr.rel (%p824) target = $region124
        $region123: #{my_transformer_forward.8} parent=115 // pred_region
          %828 = dma.done [#allocation5], 16
        $region124: #{my_transformer_forward.8} parent=115 // pred_fallthru
          _
        // Predicated region
        $region125: #{my_transformer_forward.8} parent=115 // pred_check
          %p829 = pneg %p195
        $region126: #{my_transformer_forward.8} parent=115 // pred_check_branch
          %831 = sbr.rel (%p829) target = $region128
        $region127: #{my_transformer_forward.8} parent=115 // pred_region
          %833 = dma.done [#allocation5], 16
        $region128: #{my_transformer_forward.8} parent=115 // pred_fallthru
          _
        // Predicated region
        $region129: #{my_transformer_forward.8} parent=115 // pred_check
          %p834 = pneg %p216
        $region130: #{my_transformer_forward.8} parent=115 // pred_check_branch
          %836 = sbr.rel (%p834) target = $region132
        $region131: #{my_transformer_forward.8} parent=115 // pred_region
          %838 = dma.done [#allocation8], 16
        $region132: #{my_transformer_forward.8} parent=115 // pred_fallthru
          _
        // Predicated region
        $region133: #{my_transformer_forward.8} parent=115 // pred_check
          %p839 = pneg %p258
        $region134: #{my_transformer_forward.8} parent=115 // pred_check_branch
          %841 = sbr.rel (%p839) target = $region136
        $region135: #{my_transformer_forward.8} parent=115 // pred_region
          %843 = dma.done [#allocation8], 16
        $region136: #{my_transformer_forward.8} parent=115 // pred_fallthru
          _
        // Predicated region
        $region137: #{my_transformer_forward.8} parent=115 // pred_check
          %p844 = pneg %p300
        $region138: #{my_transformer_forward.8} parent=115 // pred_check_branch
          %846 = sbr.rel (%p844) target = $region140
        $region139: #{my_transformer_forward.8} parent=115 // pred_region
          %848 = dma.done [#allocation11], 16
        $region140: #{my_transformer_forward.8} parent=115 // pred_fallthru
          _
        // Predicated region
        $region141: #{my_transformer_forward.8} parent=115 // pred_check
          %p849 = pneg %p342
        $region142: #{my_transformer_forward.8} parent=115 // pred_check_branch
          %851 = sbr.rel (%p849) target = $region144
        $region143: #{my_transformer_forward.8} parent=115 // pred_region
          %853 = dma.done [#allocation11], 16
        $region144: #{my_transformer_forward.8} parent=115 // pred_fallthru
          _
        // Predicated region
        $region145: #{my_transformer_forward.8} parent=115 // pred_check
          %p854 = pneg %p363
        $region146: #{my_transformer_forward.8} parent=115 // pred_check_branch
          %856 = sbr.rel (%p854) target = $region148
        $region147: #{my_transformer_forward.8} parent=115 // pred_region
          %858 = dma.done [#allocation14], 16
        $region148: #{my_transformer_forward.8} parent=115 // pred_fallthru
          _
        // Predicated region
        $region149: #{my_transformer_forward.8} parent=115 // pred_check
          %p859 = pneg %p384
        $region150: #{my_transformer_forward.8} parent=115 // pred_check_branch
          %861 = sbr.rel (%p859) target = $region152
        $region151: #{my_transformer_forward.8} parent=115 // pred_region
          %863 = dma.done [#allocation14], 16
        $region152: #{my_transformer_forward.8} parent=115 // pred_fallthru
          _
        // Predicated region
        $region153: #{my_transformer_forward.8} parent=115 // pred_check
          %p864 = pneg %p426
        $region154: #{my_transformer_forward.8} parent=115 // pred_check_branch
          %866 = sbr.rel (%p864) target = $region156
        $region155: #{my_transformer_forward.8} parent=115 // pred_region
          %868 = dma.done [#allocation17], 16
        $region156: #{my_transformer_forward.8} parent=115 // pred_fallthru
          _
        // Predicated region
        $region157: #{my_transformer_forward.8} parent=115 // pred_check
          %p869 = pneg %p468
        $region158: #{my_transformer_forward.8} parent=115 // pred_check_branch
          %871 = sbr.rel (%p869) target = $region160
        $region159: #{my_transformer_forward.8} parent=115 // pred_region
          %873 = dma.done [#allocation17], 16
        $region160: #{my_transformer_forward.8} parent=115 // pred_fallthru
          _
        // Predicated region
        $region161: #{my_transformer_forward.8} parent=115 // pred_check
          %p874 = pneg %p489
        $region162: #{my_transformer_forward.8} parent=115 // pred_check_branch
          %876 = sbr.rel (%p874) target = $region164
        $region163: #{my_transformer_forward.8} parent=115 // pred_region
          %878 = dma.done [#allocation20], 16
        $region164: #{my_transformer_forward.8} parent=115 // pred_fallthru
          _
        // Predicated region
        $region165: #{my_transformer_forward.8} parent=115 // pred_check
          %p879 = pneg %p510
        $region166: #{my_transformer_forward.8} parent=115 // pred_check_branch
          %881 = sbr.rel (%p879) target = $region168
        $region167: #{my_transformer_forward.8} parent=115 // pred_region
          %883 = dma.done [#allocation20], 16
        $region168: #{my_transformer_forward.8} parent=115 // pred_fallthru
          _
        // Predicated region
        $region169: #{my_transformer_forward.8} parent=115 // pred_check
          %p884 = pneg %p531
        $region170: #{my_transformer_forward.8} parent=115 // pred_check_branch
          %886 = sbr.rel (%p884) target = $region172
        $region171: #{my_transformer_forward.8} parent=115 // pred_region
          %888 = dma.done [#allocation23], 16
        $region172: #{my_transformer_forward.8} parent=115 // pred_fallthru
          _
        // Predicated region
        $region173: #{my_transformer_forward.8} parent=115 // pred_check
          %p889 = pneg %p552
        $region174: #{my_transformer_forward.8} parent=115 // pred_check_branch
          %891 = sbr.rel (%p889) target = $region176
        $region175: #{my_transformer_forward.8} parent=115 // pred_region
          %893 = dma.done [#allocation23], 16
        $region176: #{my_transformer_forward.8} parent=115 // pred_fallthru
          _
        %p894 = scmp.lt.s32.totalorder %s43, 1
        %s895 = scalar_select %p894, %s43, 1
        %s896 = smul.addr %s895, 4
        %s897 = scalar_lea.vmem %s0, %s896
        %p898 = pneg %p64
        %p899 = pneg %p61
        %p900 = scmp.lt.s32.totalorder %s43, 1
        %s901 = scalar_select %p900, %s43, 1
        %s902 = smul.addr %s901, 4
        %s903 = scalar_lea.vmem %s1, %s902
        %p904 = pneg %p90
        %p905 = pneg %p87
        %p906 = pneg %p111
        %p907 = pneg %p108
        %p908 = pneg %p132
        %p909 = pneg %p129
        %p910 = pneg %p153
        %p911 = pneg %p150
        %p912 = pneg %p174
        %p913 = pneg %p171
        %p914 = pneg %p195
        %p915 = pneg %p192
        %p916 = pneg %p216
        %p917 = pneg %p213
        %p918 = pneg %p237
        %p919 = pneg %p234
        %p920 = pneg %p258
        %p921 = pneg %p255
        %p922 = pneg %p279
        %p923 = pneg %p276
        %p924 = pneg %p300
        %p925 = pneg %p297
        %p926 = pneg %p321
        %p927 = pneg %p318
        %p928 = pneg %p342
        %p929 = pneg %p339
        %p930 = pneg %p363
        %p931 = pneg %p360
        %p932 = pneg %p384
        %p933 = pneg %p381
        %p934 = pneg %p405
        %p935 = pneg %p402
        %p936 = pneg %p426
        %p937 = pneg %p423
        %p938 = pneg %p447
        %p939 = pneg %p444
        %p940 = pneg %p468
        %p941 = pneg %p465
        %p942 = pneg %p489
        %p943 = pneg %p486
        %p944 = pneg %p510
        %p945 = pneg %p507
        %p946 = pneg %p531
        %p947 = pneg %p528
        %p948 = pneg %p552
        %p949 = pneg %p549
        %p950 = pneg %p578
        %p951 = pneg %p575
        %p952 = scmp.lt.s32.totalorder %s43, 1
        %s953 = scalar_select %p952, %s43, 1
        %s954 = smul.addr %s953, 4
        %s955 = scalar_lea.vmem %s24, %s954
        %p956 = scmp.lt.s32.totalorder %s43, 1
        %s957 = scalar_select %p956, %s43, 1
        %s958 = smul.addr %s957, 4
        %s959 = scalar_lea.vmem %s0, %s958
        %p960 = scmp.lt.s32.totalorder %s43, 1
        %s961 = scalar_select %p960, %s43, 1
        %s962 = smul.addr %s961, 4
        %s963 = scalar_lea.vmem %s1, %s962
        %p964 = scmp.lt.s32.totalorder %s43, 1
        %s965 = scalar_select %p964, %s43, 1
        %s966 = smul.addr %s965, 4
        %s967 = scalar_lea.vmem %s24, %s966
        %v969 = vld [vmem:[%s959] sm:$0xf]
        %v970 = vunpack.c.l.bf16 %v969
        %v971 = vld [vmem:[%s963] sm:$0xf]
        %v972 = vld [vmem:[%s2] sm:$0xf]
        %v973 = vld [vmem:[%s2 + $0x4] sm:$0xf]
        %v974 = vld [vmem:[%s2 + $0x8] sm:$0xf]
        %v975 = vld [vmem:[%s2 + $0xc] sm:$0xf]
        %v976 = vld [vmem:[#allocation2] sm:$0x1]
        %v978 = vperm.slane %v976, 0
        %v984 = vunpack.c.l.b16 %v972
        %v985 = vunpack.c.l.b16 %v973
        %v986 = vunpack.c.l.b16 %v974
        %v987 = vunpack.c.l.b16 %v975
        %v988 = vpack.c.b16 %v985, %v984
        %v989 = vpack.c.b16 %v987, %v986
        %vm992 = vcmask 261120
        %v994 = vsel %vm992, %v969, 0
        %996 = vmatpush.bf16.msra.mxu0 0
        %997 = vmatpush.bf16.msra.mxu0 0
        %998 = vmatpush.bf16.msra.mxu0 0
        %999 = vmatpush.bf16.msra.mxu0 0
        %1000 = vmatpush.bf16.msra.mxu0 0
        %1001 = vmatpush.bf16.msra.mxu0 0
        %1002 = vmatpush.bf16.msra.mxu0 %v989
        %1003 = vmatpush.bf16.msra.mxu0 %v988
        %1004 = vmatmul.bf16.gmra.mxu0 %v994
        %v1005 = vpop.f32.mrf.mxu0
        %v1006 = vadd.f32 %v978, %v1005
        %v1007 = vpop.f32.mrf.mxu0
        %1008 = vdwg.mxu0
        %v1009 = vld [vmem:[%s4] sm:$0xf]
        %v1010 = vld [vmem:[%s4 + $0x4] sm:$0xf]
        %v1011 = vld [vmem:[%s4 + $0x8] sm:$0xf]
        %v1012 = vld [vmem:[%s4 + $0xc] sm:$0xf]
        %v1013 = vld [vmem:[#allocation4] sm:$0x1]
        %v1014 = vlaneseq
        %v1015 = vshrl.u32 %v1014, 7
        %v1016 = vlaneseq
        %v1017 = vand.u32 %v1016, 127
        %vm1018 = vcmp.gt.s32.totalorder %v1017, %v1015
        %v1019 = vmul.f32 %v1006, 0.25
        %v1020 = vpack.c.bf16 %v1019, %v1019
        %v1021 = vpack.c.bf16 %v1006, %v1006
        %1023 = vrot.lane.b32.xlu0 %v1021, 96
        %v1024 = vpop.permute.xlu0 %1023
        %vm1025 = vcmask 130048
        %v1027 = vsel %vm1025, %v1020, 0
        %v1030 = vsel %vm1025, %v1024, 0
        %1032 = vmatpush.bf16.xpose.msra.mxu0 0
        %1033 = vmatpush.bf16.xpose.msra.mxu0 0
        %1034 = vmatpush.bf16.xpose.msra.mxu0 0
        %1035 = vmatpush.bf16.xpose.msra.mxu0 0
        %1036 = vmatpush.bf16.xpose.msra.mxu0 0
        %1037 = vmatpush.bf16.xpose.msra.mxu0 0
        %1038 = vmatpush.bf16.xpose.msra.mxu0 0
        %1039 = vmatpush.bf16.xpose.msra.mxu0 %v1030
        %1040 = vmatmul.bf16.gmra.mxu0 %v1027
        %v1041 = vpop.f32.mrf.mxu0
        %v1042 = vadd.f32 0.0, %v1041
        %v1043 = vpop.f32.mrf.mxu0
        %1044 = vdwg.mxu0
        %v1045 = vsel %vm1018, -1e+09, %v1042
        %vm1046 = vcmask 64512
        %v1047 = vsel %vm1046, %v1045, -inf
        %1048 = vmax.xlane.f32.xlu0 %v1047
        %v1049 = vpop.xlane.xlu0 %1048
        %v1050 = vsub.f32 %v1045, %v1049
        %v1051 = vmul.f32 %v1050, 1.442695
        %v1052 = vpow.pop %v1051
        %v1053 = vsel %vm1046, %v1052, 0.0
        %1054 = vadd.xlane.f32.xlu0 %v1053
        %v1055 = vpop.xlane.xlu0 %1054
        %v1056 = vrcp.pop %v1055
        %v1057 = vmul.f32 %v1052, %v1056
        %v1058 = vpack.c.bf16 %v1057, %v1057
        %1059 = vrot.lane.b32.xlu0 %v1021, 64
        %v1060 = vpop.permute.xlu0 %1059
        %v1062 = vsel %vm1046, %v1058, 0
        %vm1064 = vcmask 1043456
        %v1066 = vsel %vm1064, %v1060, 0
        %1068 = vmatpush.bf16.msra.mxu0 0
        %1069 = vmatpush.bf16.msra.mxu0 0
        %1070 = vmatpush.bf16.msra.mxu0 0
        %1071 = vmatpush.bf16.msra.mxu0 0
        %1072 = vmatpush.bf16.msra.mxu0 0
        %1073 = vmatpush.bf16.msra.mxu0 0
        %1074 = vmatpush.bf16.msra.mxu0 0
        %1075 = vmatpush.bf16.msra.mxu0 %v1066
        %1076 = vmatmul.bf16.gmra.mxu0 %v1062
        %v1077 = vpop.f32.mrf.mxu0
        %v1078 = vadd.f32 0.0, %v1077
        %v1079 = vpop.f32.mrf.mxu0
        %1080 = vdwg.mxu0
        %v1081 = vpack.c.bf16 %v1078, %v1078
        %1083 = vrot.lane.b32.xlu0 %v1020, 112
        %v1084 = vpop.permute.xlu0 %1083
        %1085 = vrot.lane.b32.xlu0 %v1021, 80
        %v1086 = vpop.permute.xlu0 %1085
        %v1088 = vsel %vm1025, %v1084, 0
        %v1091 = vsel %vm1025, %v1086, 0
        %1093 = vmatpush.bf16.xpose.msra.mxu0 0
        %1094 = vmatpush.bf16.xpose.msra.mxu0 0
        %1095 = vmatpush.bf16.xpose.msra.mxu0 0
        %1096 = vmatpush.bf16.xpose.msra.mxu0 0
        %1097 = vmatpush.bf16.xpose.msra.mxu0 0
        %1098 = vmatpush.bf16.xpose.msra.mxu0 0
        %1099 = vmatpush.bf16.xpose.msra.mxu0 0
        %1100 = vmatpush.bf16.xpose.msra.mxu0 %v1091
        %1101 = vmatmul.bf16.gmra.mxu0 %v1088
        %v1102 = vpop.f32.mrf.mxu0
        %v1103 = vadd.f32 0.0, %v1102
        %v1104 = vpop.f32.mrf.mxu0
        %1105 = vdwg.mxu0
        %v1106 = vsel %vm1018, -1e+09, %v1103
        %v1107 = vsel %vm1046, %v1106, -inf
        %1108 = vmax.xlane.f32.xlu0 %v1107
        %v1109 = vpop.xlane.xlu0 %1108
        %v1110 = vsub.f32 %v1106, %v1109
        %v1111 = vmul.f32 %v1110, 1.442695
        %v1112 = vpow.pop %v1111
        %v1113 = vsel %vm1046, %v1112, 0.0
        %1114 = vadd.xlane.f32.xlu0 %v1113
        %v1115 = vpop.xlane.xlu0 %1114
        %v1116 = vrcp.pop %v1115
        %v1117 = vmul.f32 %v1112, %v1116
        %v1118 = vpack.c.bf16 %v1117, %v1117
        %1119 = vrot.lane.b32.xlu0 %v1021, 48
        %v1120 = vpop.permute.xlu0 %1119
        %v1122 = vsel %vm1046, %v1118, 0
        %v1125 = vsel %vm1064, %v1120, 0
        %1127 = vmatpush.bf16.msra.mxu0 0
        %1128 = vmatpush.bf16.msra.mxu0 0
        %1129 = vmatpush.bf16.msra.mxu0 0
        %1130 = vmatpush.bf16.msra.mxu0 0
        %1131 = vmatpush.bf16.msra.mxu0 0
        %1132 = vmatpush.bf16.msra.mxu0 0
        %1133 = vmatpush.bf16.msra.mxu0 0
        %1134 = vmatpush.bf16.msra.mxu0 %v1125
        %1135 = vmatmul.bf16.gmra.mxu0 %v1122
        %v1136 = vpop.f32.mrf.mxu0
        %v1137 = vadd.f32 0.0, %v1136
        %v1138 = vpop.f32.mrf.mxu0
        %1139 = vdwg.mxu0
        %v1140 = vpack.c.bf16 %v1137, %v1137
        %v1143 = vunpack.c.l.b16 %v1011
        %v1144 = vunpack.c.l.b16 %v1012
        %v1145 = vpack.c.b16 %v1144, %v1143
        %v1148 = vsel %vm1025, %v1140, 0
        %1150 = vmatpush.bf16.msra.mxu0 0
        %1151 = vmatpush.bf16.msra.mxu0 0
        %1152 = vmatpush.bf16.msra.mxu0 0
        %1153 = vmatpush.bf16.msra.mxu0 0
        %1154 = vmatpush.bf16.msra.mxu0 0
        %1155 = vmatpush.bf16.msra.mxu0 0
        %1156 = vmatpush.bf16.msra.mxu0 0
        %1157 = vmatpush.bf16.msra.mxu0 %v1145
        %1158 = vmatmul.bf16.gmra.mxu0 %v1148
        %v1159 = vpop.f32.mrf.mxu0
        %v1160 = vadd.f32 0.0, %v1159
        %v1161 = vpop.f32.mrf.mxu0
        %1162 = vdwg.mxu0
        %v1165 = vunpack.c.l.b16 %v1009
        %v1166 = vunpack.c.l.b16 %v1010
        %v1167 = vpack.c.b16 %v1166, %v1165
        %v1170 = vsel %vm1025, %v1081, 0
        %1172 = vmatpush.bf16.msra.mxu0 0
        %1173 = vmatpush.bf16.msra.mxu0 0
        %1174 = vmatpush.bf16.msra.mxu0 0
        %1175 = vmatpush.bf16.msra.mxu0 0
        %1176 = vmatpush.bf16.msra.mxu0 0
        %1177 = vmatpush.bf16.msra.mxu0 0
        %1178 = vmatpush.bf16.msra.mxu0 0
        %1179 = vmatpush.bf16.msra.mxu0 %v1167
        %1180 = vmatmul.bf16.gmra.mxu0 %v1170
        %v1181 = vpop.f32.mrf.mxu0
        %v1182 = vadd.f32 %v1160, %v1181
        %v1183 = vpop.f32.mrf.mxu0
        %1184 = vdwg.mxu0
        %v1186 = vperm.slane %v1013, 0
        %v1188 = vadd.f32 %v1182, %v1186
        %v1189 = vadd.f32 %v970, %v1188
        %v1190 = vld [vmem:[#allocation6] sm:$0x1]
        %v1191 = vld [vmem:[#allocation7] sm:$0x1]
        %v1192 = vsel %vm992, %v1189, 0.0
        %1193 = vadd.xlane.f32.xlu0 %v1192
        %v1194 = vpop.xlane.xlu0 %1193
        %v1195 = vrcp.pop 32.0
        %v1196 = vmul.f32 32.0, %v1195
        %v1197 = vsub.f32 1.0, %v1196
        %v1198 = vmul.f32 %v1195, %v1197
        %v1199 = vadd.f32 %v1195, %v1198
        %vm1200 = vweird.f32 %v1195
        %v1201 = vsel %vm1200, %v1195, %v1199
        %v1202 = vmul.f32 %v1194, %v1201
        %v1203 = vsub.f32 %v1189, %v1202
        %v1204 = vmul.f32 %v1203, %v1203
        %v1205 = vsel %vm992, %v1204, 0.0
        %1206 = vadd.xlane.f32.xlu0 %v1205
        %v1207 = vpop.xlane.xlu0 %1206
        %v1208 = vmul.f32 %v1207, %v1201
        %v1209 = vadd.f32 %v1208, 1e-05
        %v1210 = vrsqrt.pop %v1209
        %v1211 = vmul.f32 %v1210, %v1209
        %v1212 = vmul.f32 %v1211, %v1210
        %v1213 = vmul.f32 0.5, %v1212
        %v1214 = vsub.f32 1.5, %v1213
        %v1215 = vmul.f32 %v1210, %v1214
        %vm1216 = vweird.f32 %v1209
        %vm1217 = vweird.f32 %v1210
        %vm1218 = vmor %vm1216, %vm1217
        %v1219 = vsel %vm1218, %v1210, %v1215
        %v1220 = vmul.f32 %v1203, %v1219
        %v1222 = vperm.slane %v1190, 0
        %v1224 = vmul.f32 %v1220, %v1222
        %v1226 = vperm.slane %v1191, 0
        %v1228 = vadd.f32 %v1224, %v1226
        %v1229 = vld [vmem:[%s8] sm:$0xf]
        %v1230 = vld [vmem:[%s8 + $0x4] sm:$0xf]
        %v1231 = vld [vmem:[%s8 + $0x8] sm:$0xf]
        %v1232 = vld [vmem:[%s8 + $0xc] sm:$0xf]
        %v1233 = vpack.c.bf16 %v1228, %v1228
        %v1234 = vld [vmem:[#allocation9] sm:$0x1]
        %v1236 = vperm.slane %v1234, 0
        %v1242 = vunpack.c.l.b16 %v1229
        %v1243 = vunpack.c.l.b16 %v1230
        %v1244 = vunpack.c.l.b16 %v1231
        %v1245 = vunpack.c.l.b16 %v1232
        %v1246 = vpack.c.b16 %v1243, %v1242
        %v1247 = vpack.c.b16 %v1245, %v1244
        %v1251 = vsel %vm992, %v1233, 0
        %1253 = vmatpush.bf16.msra.mxu0 0
        %1254 = vmatpush.bf16.msra.mxu0 0
        %1255 = vmatpush.bf16.msra.mxu0 0
        %1256 = vmatpush.bf16.msra.mxu0 0
        %1257 = vmatpush.bf16.msra.mxu0 0
        %1258 = vmatpush.bf16.msra.mxu0 0
        %1259 = vmatpush.bf16.msra.mxu0 %v1247
        %1260 = vmatpush.bf16.msra.mxu0 %v1246
        %1261 = vmatmul.bf16.gmra.mxu0 %v1251
        %v1262 = vpop.f32.mrf.mxu0
        %v1263 = vadd.f32 %v1236, %v1262
        %v1264 = vpop.f32.mrf.mxu0
        %1265 = vdwg.mxu0
        %v1266 = vld [vmem:[%s10] sm:$0xf]
        %v1267 = vld [vmem:[%s10 + $0x4] sm:$0xf]
        %v1268 = vld [vmem:[%s10 + $0x8] sm:$0xf]
        %v1269 = vld [vmem:[%s10 + $0xc] sm:$0xf]
        %v1270 = vld [vmem:[#allocation10] sm:$0x1]
        %v1272 = vperm.slane %v1270, 0
        %v1278 = vunpack.c.l.b16 %v1266
        %v1279 = vunpack.c.l.b16 %v1267
        %v1280 = vunpack.c.l.b16 %v1268
        %v1281 = vunpack.c.l.b16 %v1269
        %v1282 = vpack.c.b16 %v1279, %v1278
        %v1283 = vpack.c.b16 %v1281, %v1280
        %v1287 = vsel %vm992, %v971, 0
        %1289 = vmatpush.bf16.msra.mxu0 0
        %1290 = vmatpush.bf16.msra.mxu0 0
        %1291 = vmatpush.bf16.msra.mxu0 0
        %1292 = vmatpush.bf16.msra.mxu0 0
        %1293 = vmatpush.bf16.msra.mxu0 0
        %1294 = vmatpush.bf16.msra.mxu0 0
        %1295 = vmatpush.bf16.msra.mxu0 %v1283
        %1296 = vmatpush.bf16.msra.mxu0 %v1282
        %1297 = vmatmul.bf16.gmra.mxu0 %v1287
        %v1298 = vpop.f32.mrf.mxu0
        %v1299 = vadd.f32 %v1272, %v1298
        %v1300 = vpop.f32.mrf.mxu0
        %1301 = vdwg.mxu0
        %v1302 = vld [vmem:[%s12] sm:$0xf]
        %v1303 = vld [vmem:[%s12 + $0x4] sm:$0xf]
        %v1304 = vld [vmem:[%s12 + $0x8] sm:$0xf]
        %v1305 = vld [vmem:[%s12 + $0xc] sm:$0xf]
        %v1306 = vld [vmem:[#allocation12] sm:$0x1]
        %v1307 = vmul.f32 %v1263, 0.25
        %v1308 = vpack.c.bf16 %v1307, %v1307
        %v1309 = vpack.c.bf16 %v1299, %v1299
        %v1311 = vsel %vm1025, %v1308, 0
        %v1314 = vsel %vm1025, %v1309, 0
        %1316 = vmatpush.bf16.xpose.msra.mxu0 0
        %1317 = vmatpush.bf16.xpose.msra.mxu0 0
        %1318 = vmatpush.bf16.xpose.msra.mxu0 0
        %1319 = vmatpush.bf16.xpose.msra.mxu0 0
        %1320 = vmatpush.bf16.xpose.msra.mxu0 0
        %1321 = vmatpush.bf16.xpose.msra.mxu0 0
        %1322 = vmatpush.bf16.xpose.msra.mxu0 0
        %1323 = vmatpush.bf16.xpose.msra.mxu0 %v1314
        %1324 = vmatmul.bf16.gmra.mxu0 %v1311
        %v1325 = vpop.f32.mrf.mxu0
        %v1326 = vadd.f32 0.0, %v1325
        %v1327 = vpop.f32.mrf.mxu0
        %1328 = vdwg.mxu0
        %v1329 = vsel %vm1046, %v1326, -inf
        %1330 = vmax.xlane.f32.xlu0 %v1329
        %v1331 = vpop.xlane.xlu0 %1330
        %v1332 = vsub.f32 %v1326, %v1331
        %v1333 = vmul.f32 %v1332, 1.442695
        %v1334 = vpow.pop %v1333
        %v1335 = vsel %vm1046, %v1334, 0.0
        %1336 = vadd.xlane.f32.xlu0 %v1335
        %v1337 = vpop.xlane.xlu0 %1336
        %v1338 = vrcp.pop %v1337
        %v1339 = vmul.f32 %v1334, %v1338
        %v1340 = vpack.c.bf16 %v1339, %v1339
        %1342 = vrot.lane.b32.xlu0 %v1309, 96
        %v1343 = vpop.permute.xlu0 %1342
        %v1345 = vsel %vm1046, %v1340, 0
        %v1348 = vsel %vm1064, %v1343, 0
        %1350 = vmatpush.bf16.msra.mxu0 0
        %1351 = vmatpush.bf16.msra.mxu0 0
        %1352 = vmatpush.bf16.msra.mxu0 0
        %1353 = vmatpush.bf16.msra.mxu0 0
        %1354 = vmatpush.bf16.msra.mxu0 0
        %1355 = vmatpush.bf16.msra.mxu0 0
        %1356 = vmatpush.bf16.msra.mxu0 0
        %1357 = vmatpush.bf16.msra.mxu0 %v1348
        %1358 = vmatmul.bf16.gmra.mxu0 %v1345
        %v1359 = vpop.f32.mrf.mxu0
        %v1360 = vadd.f32 0.0, %v1359
        %v1361 = vpop.f32.mrf.mxu0
        %1362 = vdwg.mxu0
        %v1363 = vpack.c.bf16 %v1360, %v1360
        %1365 = vrot.lane.b32.xlu0 %v1308, 112
        %v1366 = vpop.permute.xlu0 %1365
        %1367 = vrot.lane.b32.xlu0 %v1309, 112
        %v1368 = vpop.permute.xlu0 %1367
        %v1370 = vsel %vm1025, %v1366, 0
        %v1373 = vsel %vm1025, %v1368, 0
        %1375 = vmatpush.bf16.xpose.msra.mxu0 0
        %1376 = vmatpush.bf16.xpose.msra.mxu0 0
        %1377 = vmatpush.bf16.xpose.msra.mxu0 0
        %1378 = vmatpush.bf16.xpose.msra.mxu0 0
        %1379 = vmatpush.bf16.xpose.msra.mxu0 0
        %1380 = vmatpush.bf16.xpose.msra.mxu0 0
        %1381 = vmatpush.bf16.xpose.msra.mxu0 0
        %1382 = vmatpush.bf16.xpose.msra.mxu0 %v1373
        %1383 = vmatmul.bf16.gmra.mxu0 %v1370
        %v1384 = vpop.f32.mrf.mxu0
        %v1385 = vadd.f32 0.0, %v1384
        %v1386 = vpop.f32.mrf.mxu0
        %1387 = vdwg.mxu0
        %v1388 = vsel %vm1046, %v1385, -inf
        %1389 = vmax.xlane.f32.xlu0 %v1388
        %v1390 = vpop.xlane.xlu0 %1389
        %v1391 = vsub.f32 %v1385, %v1390
        %v1392 = vmul.f32 %v1391, 1.442695
        %v1393 = vpow.pop %v1392
        %v1394 = vsel %vm1046, %v1393, 0.0
        %1395 = vadd.xlane.f32.xlu0 %v1394
        %v1396 = vpop.xlane.xlu0 %1395
        %v1397 = vrcp.pop %v1396
        %v1398 = vmul.f32 %v1393, %v1397
        %v1399 = vpack.c.bf16 %v1398, %v1398
        %1400 = vrot.lane.b32.xlu0 %v1309, 80
        %v1401 = vpop.permute.xlu0 %1400
        %v1403 = vsel %vm1046, %v1399, 0
        %v1406 = vsel %vm1064, %v1401, 0
        %1408 = vmatpush.bf16.msra.mxu0 0
        %1409 = vmatpush.bf16.msra.mxu0 0
        %1410 = vmatpush.bf16.msra.mxu0 0
        %1411 = vmatpush.bf16.msra.mxu0 0
        %1412 = vmatpush.bf16.msra.mxu0 0
        %1413 = vmatpush.bf16.msra.mxu0 0
        %1414 = vmatpush.bf16.msra.mxu0 0
        %1415 = vmatpush.bf16.msra.mxu0 %v1406
        %1416 = vmatmul.bf16.gmra.mxu0 %v1403
        %v1417 = vpop.f32.mrf.mxu0
        %v1418 = vadd.f32 0.0, %v1417
        %v1419 = vpop.f32.mrf.mxu0
        %1420 = vdwg.mxu0
        %v1421 = vpack.c.bf16 %v1418, %v1418
        %v1424 = vunpack.c.l.b16 %v1304
        %v1425 = vunpack.c.l.b16 %v1305
        %v1426 = vpack.c.b16 %v1425, %v1424
        %v1429 = vsel %vm1025, %v1421, 0
        %1431 = vmatpush.bf16.msra.mxu0 0
        %1432 = vmatpush.bf16.msra.mxu0 0
        %1433 = vmatpush.bf16.msra.mxu0 0
        %1434 = vmatpush.bf16.msra.mxu0 0
        %1435 = vmatpush.bf16.msra.mxu0 0
        %1436 = vmatpush.bf16.msra.mxu0 0
        %1437 = vmatpush.bf16.msra.mxu0 0
        %1438 = vmatpush.bf16.msra.mxu0 %v1426
        %1439 = vmatmul.bf16.gmra.mxu0 %v1429
        %v1440 = vpop.f32.mrf.mxu0
        %v1441 = vadd.f32 0.0, %v1440
        %v1442 = vpop.f32.mrf.mxu0
        %1443 = vdwg.mxu0
        %v1446 = vunpack.c.l.b16 %v1302
        %v1447 = vunpack.c.l.b16 %v1303
        %v1448 = vpack.c.b16 %v1447, %v1446
        %v1451 = vsel %vm1025, %v1363, 0
        %1453 = vmatpush.bf16.msra.mxu0 0
        %1454 = vmatpush.bf16.msra.mxu0 0
        %1455 = vmatpush.bf16.msra.mxu0 0
        %1456 = vmatpush.bf16.msra.mxu0 0
        %1457 = vmatpush.bf16.msra.mxu0 0
        %1458 = vmatpush.bf16.msra.mxu0 0
        %1459 = vmatpush.bf16.msra.mxu0 0
        %1460 = vmatpush.bf16.msra.mxu0 %v1448
        %1461 = vmatmul.bf16.gmra.mxu0 %v1451
        %v1462 = vpop.f32.mrf.mxu0
        %v1463 = vadd.f32 %v1441, %v1462
        %v1464 = vpop.f32.mrf.mxu0
        %1465 = vdwg.mxu0
        %v1467 = vperm.slane %v1306, 0
        %v1469 = vadd.f32 %v1463, %v1467
        %v1470 = vadd.f32 %v1228, %v1469
        %v1471 = vld [vmem:[#allocation13] sm:$0x1]
        %v1472 = vld [vmem:[#allocation15] sm:$0x1]
        %v1473 = vsel %vm992, %v1470, 0.0
        %1474 = vadd.xlane.f32.xlu0 %v1473
        %v1475 = vpop.xlane.xlu0 %1474
        %v1476 = vmul.f32 %v1475, %v1201
        %v1477 = vsub.f32 %v1470, %v1476
        %v1478 = vmul.f32 %v1477, %v1477
        %v1479 = vsel %vm992, %v1478, 0.0
        %1480 = vadd.xlane.f32.xlu0 %v1479
        %v1481 = vpop.xlane.xlu0 %1480
        %v1482 = vmul.f32 %v1481, %v1201
        %v1483 = vadd.f32 %v1482, 1e-05
        %v1484 = vrsqrt.pop %v1483
        %v1485 = vmul.f32 %v1484, %v1483
        %v1486 = vmul.f32 %v1485, %v1484
        %v1487 = vmul.f32 0.5, %v1486
        %v1488 = vsub.f32 1.5, %v1487
        %v1489 = vmul.f32 %v1484, %v1488
        %vm1490 = vweird.f32 %v1483
        %vm1491 = vweird.f32 %v1484
        %vm1492 = vmor %vm1490, %vm1491
        %v1493 = vsel %vm1492, %v1484, %v1489
        %v1494 = vmul.f32 %v1477, %v1493
        %v1496 = vperm.slane %v1471, 0
        %v1498 = vmul.f32 %v1494, %v1496
        %v1500 = vperm.slane %v1472, 0
        %v1502 = vadd.f32 %v1498, %v1500
        %v1503 = vld [vmem:[%s16] sm:$0xf]
        %v1504 = vld [vmem:[%s16 + $0x4] sm:$0xf]
        %v1505 = vld [vmem:[%s16 + $0x8] sm:$0xf]
        %v1506 = vld [vmem:[%s16 + $0xc] sm:$0xf]
        %v1507 = vpack.c.bf16 %v1502, %v1502
        %v1508 = vld [vmem:[#allocation16] sm:$0x1]
        %v1510 = vperm.slane %v1508, 0
        %v1516 = vunpack.c.l.b16 %v1503
        %v1517 = vunpack.c.l.b16 %v1504
        %v1518 = vunpack.c.l.b16 %v1505
        %v1519 = vunpack.c.l.b16 %v1506
        %v1520 = vpack.c.b16 %v1517, %v1516
        %v1521 = vpack.c.b16 %v1519, %v1518
        %v1525 = vsel %vm992, %v1507, 0
        %1527 = vmatpush.bf16.msra.mxu0 0
        %1528 = vmatpush.bf16.msra.mxu0 0
        %1529 = vmatpush.bf16.msra.mxu0 0
        %1530 = vmatpush.bf16.msra.mxu0 0
        %1531 = vmatpush.bf16.msra.mxu0 0
        %1532 = vmatpush.bf16.msra.mxu0 0
        %1533 = vmatpush.bf16.msra.mxu0 %v1521
        %1534 = vmatpush.bf16.msra.mxu0 %v1520
        %1535 = vmatmul.bf16.gmra.mxu0 %v1525
        %v1536 = vpop.f32.mrf.mxu0
        %v1537 = vadd.f32 %v1510, %v1536
        %v1538 = vpop.f32.mrf.mxu0
        %1539 = vdwg.mxu0
        %v1540 = vmax.f32 %v1537, 0.0
        %v1541 = vld [vmem:[%s18] sm:$0xf]
        %v1542 = vld [vmem:[%s18 + $0x4] sm:$0xf]
        %v1543 = vld [vmem:[%s18 + $0x8] sm:$0xf]
        %v1544 = vld [vmem:[%s18 + $0xc] sm:$0xf]
        %v1545 = vld [vmem:[%s18 + $0x10] sm:$0xf]
        %v1546 = vld [vmem:[%s18 + $0x14] sm:$0xf]
        %v1547 = vld [vmem:[%s18 + $0x18] sm:$0xf]
        %v1548 = vld [vmem:[%s18 + $0x1c] sm:$0xf]
        %v1549 = vpack.c.bf16 %v1540, %v1540
        %v1550 = vld [vmem:[#allocation18] sm:$0x1]
        %v1552 = vperm.slane %v1550, 0
        %v1562 = vunpack.c.l.b16 %v1541
        %v1563 = vunpack.c.l.b16 %v1542
        %v1564 = vunpack.c.l.b16 %v1543
        %v1565 = vunpack.c.l.b16 %v1544
        %v1566 = vunpack.c.l.b16 %v1545
        %v1567 = vunpack.c.l.b16 %v1546
        %v1568 = vunpack.c.l.b16 %v1547
        %v1569 = vunpack.c.l.b16 %v1548
        %v1570 = vpack.c.b16 %v1563, %v1562
        %v1571 = vpack.c.b16 %v1565, %v1564
        %v1572 = vpack.c.b16 %v1567, %v1566
        %v1573 = vpack.c.b16 %v1569, %v1568
        %vm1578 = vcmask 523264
        %v1580 = vsel %vm1578, %v1549, 0
        %1582 = vmatpush.bf16.msra.mxu0 0
        %1583 = vmatpush.bf16.msra.mxu0 0
        %1584 = vmatpush.bf16.msra.mxu0 0
        %1585 = vmatpush.bf16.msra.mxu0 0
        %1586 = vmatpush.bf16.msra.mxu0 %v1573
        %1587 = vmatpush.bf16.msra.mxu0 %v1572
        %1588 = vmatpush.bf16.msra.mxu0 %v1571
        %1589 = vmatpush.bf16.msra.mxu0 %v1570
        %1590 = vmatmul.bf16.gmra.mxu0 %v1580
        %v1591 = vpop.f32.mrf.mxu0
        %v1592 = vadd.f32 %v1552, %v1591
        %v1593 = vpop.f32.mrf.mxu0
        %1594 = vdwg.mxu0
        %v1595 = vadd.f32 %v1502, %v1592
        %v1596 = vld [vmem:[#allocation19] sm:$0x1]
        %v1597 = vld [vmem:[#allocation21] sm:$0x1]
        %v1598 = vsel %vm992, %v1595, 0.0
        %1599 = vadd.xlane.f32.xlu0 %v1598
        %v1600 = vpop.xlane.xlu0 %1599
        %v1601 = vmul.f32 %v1600, %v1201
        %v1602 = vsub.f32 %v1595, %v1601
        %v1603 = vmul.f32 %v1602, %v1602
        %v1604 = vsel %vm992, %v1603, 0.0
        %1605 = vadd.xlane.f32.xlu0 %v1604
        %v1606 = vpop.xlane.xlu0 %1605
        %v1607 = vmul.f32 %v1606, %v1201
        %v1608 = vadd.f32 %v1607, 1e-05
        %v1609 = vrsqrt.pop %v1608
        %v1610 = vmul.f32 %v1609, %v1608
        %v1611 = vmul.f32 %v1610, %v1609
        %v1612 = vmul.f32 0.5, %v1611
        %v1613 = vsub.f32 1.5, %v1612
        %v1614 = vmul.f32 %v1609, %v1613
        %vm1615 = vweird.f32 %v1608
        %vm1616 = vweird.f32 %v1609
        %vm1617 = vmor %vm1615, %vm1616
        %v1618 = vsel %vm1617, %v1609, %v1614
        %v1619 = vmul.f32 %v1602, %v1618
        %v1621 = vperm.slane %v1596, 0
        %v1623 = vmul.f32 %v1619, %v1621
        %v1625 = vperm.slane %v1597, 0
        %v1627 = vadd.f32 %v1623, %v1625
        %v1628 = vld [vmem:[#allocation22] sm:$0x1]
        %v1629 = vld [vmem:[#allocation24] sm:$0x1]
        %v1630 = vsel %vm992, %v1627, 0.0
        %1631 = vadd.xlane.f32.xlu0 %v1630
        %v1632 = vpop.xlane.xlu0 %1631
        %v1633 = vmul.f32 %v1632, %v1201
        %v1634 = vsub.f32 %v1627, %v1633
        %v1635 = vmul.f32 %v1634, %v1634
        %v1636 = vsel %vm992, %v1635, 0.0
        %1637 = vadd.xlane.f32.xlu0 %v1636
        %v1638 = vpop.xlane.xlu0 %1637
        %v1639 = vmul.f32 %v1638, %v1201
        %v1640 = vadd.f32 %v1639, 1e-05
        %v1641 = vrsqrt.pop %v1640
        %v1642 = vmul.f32 %v1641, %v1640
        %v1643 = vmul.f32 %v1642, %v1641
        %v1644 = vmul.f32 0.5, %v1643
        %v1645 = vsub.f32 1.5, %v1644
        %v1646 = vmul.f32 %v1641, %v1645
        %vm1647 = vweird.f32 %v1640
        %vm1648 = vweird.f32 %v1641
        %vm1649 = vmor %vm1647, %vm1648
        %v1650 = vsel %vm1649, %v1641, %v1646
        %v1651 = vmul.f32 %v1634, %v1650
        %v1653 = vperm.slane %v1628, 0
        %v1655 = vmul.f32 %v1651, %v1653
        %v1657 = vperm.slane %v1629, 0
        %v1659 = vadd.f32 %v1655, %v1657
        %v1660 = vpack.c.bf16 %v1659, %v1659
        %vm1661 = vcmask 257024
        %1662 = vst.msk [vmem:[%s967] sm:$0xf] %vm1661, %v1660
        %p1663 = scmp.lt.s32.totalorder %s43, 1
        %s1664 = scalar_select %p1663, %s43, 1
        %s1665 = smul.addr %s1664, 4
        %s1666 = scalar_lea.vmem %s24, %s1665
        // Predicated region
        $region177: #{my_transformer_forward.8} parent=115 // pred_check
          %p1667 = pneg %p575
        $region178: #{my_transformer_forward.8} parent=115 // pred_check_branch
          %1669 = sbr.rel (%p1667) target = $region180
        $region179: #{my_transformer_forward.8} parent=115 // pred_region
          _
        $region180: #{my_transformer_forward.8} parent=115 // pred_fallthru
          _
      $region116: #{my_transformer_forward.8} parent=5 // pred_fallthru
        _
      %p1670 = scmp.le.s32.totalorder 2, %s38
      // Predicated region
      $region181: #{my_transformer_forward.8} parent=5 // pred_check
        %p1671 = pneg %p1670
      $region182: #{my_transformer_forward.8} parent=5 // pred_check_branch
        %1673 = sbr.rel (%p1671) target = $region184
      $region183: #{my_transformer_forward.8} parent=5 // pred_region
        %s1674 = ssub.s32 %s38, 2
        // Predicated region
        $region185: #{my_transformer_forward.8} parent=183 // pred_check
          %p1675 = pneg %p581
        $region186: #{my_transformer_forward.8} parent=183 // pred_check_branch
          %1677 = sbr.rel (%p1675) target = $region188
        $region187: #{my_transformer_forward.8} parent=183 // pred_region
          %p1678 = scmp.lt.s32.totalorder %s44, 1
          %s1679 = scalar_select %p1678, %s44, 1
          %s1680 = smul.addr %s1679, 4
          %s1681 = scalar_lea.vmem %s24, %s1680
        $region188: #{my_transformer_forward.8} parent=183 // pred_fallthru
          _
      $region184: #{my_transformer_forward.8} parent=5 // pred_fallthru
        _
    $region6: #{my_transformer_forward.8} parent=1 // loop_footer
      %s42 = sadd.s32 1, %s38
    $region7: #{my_transformer_forward.8} parent=1 // loop_footer_branch
      %37 = sbr.rel target = $region3
    $region8: #{my_transformer_forward.8} parent=1 // loop_exit
      _
    %1682 = vsyncpa [#allocation3], 1
    %s1683 = scalar_lea.sflag [#allocation3], 1
    %1684 = vsyncpa %s1683, 1
    %1685 = vsyncpa [#allocation5], 1
    %1686 = vsyncpa [#allocation8], 1
    %1687 = vsyncpa [#allocation11], 1
    %1688 = vsyncpa [#allocation14], 1
    %1689 = vsyncpa [#allocation17], 1
    %1690 = vsyncpa [#allocation20], 1
    %1691 = vsyncpa [#allocation23], 1

</llo_original>
